<compile_context>
chip_gen: v5e
topology: v5e:2x2
jax: 0.10.0
libtpu: 0.0.40
codegen_flags: <defaults>
</compile_context>

<pallas_src>
import jax
import jax.numpy as jnp
import numpy as np
from jax import lax
from jax.experimental import pallas as pl
from jax.experimental.pallas import tpu as pltpu

BN_EPS = 1e-5
LATENT_N = 32          # `n` of the original module
LANE = 128
K5 = 5                 # all convs are 5x5

_VMEM = pl.BlockSpec(memory_space=pltpu.MemorySpace.VMEM)


# ----------------------------------------------------------------------------
# In-kernel helpers (everything in f32 epilogues, bf16 MXU inputs)
# ----------------------------------------------------------------------------
def _elu(y):
    return jnp.where(y > 0, y, jnp.exp(y) - 1.0)


def _sigmoid(y):
    return 1.0 / (1.0 + jnp.exp(-y))          # exact (review correctness note)


def _conv_block(x_bf, s_ref, w_ref, b_ref):
    """Folded-BN conv / convT layer:  sum_dy  S[dy] @ (x @ Wband[dy]) + shift.

    x_bf : (R_in, Win*Cin)  bf16 activation rows (rows = (batch, y))
    Wband: (5, Win*Cin, Wout*Cout) bf16  -- horizontal taps + channel mix + BN
    S    : (5, R_out, R_in) f32 0/1      -- vertical taps / stride / pad / dilation
    b    : (1, Wout*Cout) f32 shift
    """
    acc = None
    for dy in range(w_ref.shape[0]):
        h = jnp.dot(x_bf, w_ref[dy], preferred_element_type=jnp.float32)
        g = jnp.dot(s_ref[dy], h, preferred_element_type=jnp.float32)
        acc = g if acc is None else acc + g
    return acc + b_ref[...]


def _fc(x_bf, w_ref, b_ref):
    return jnp.dot(x_bf, w_ref[...], preferred_element_type=jnp.float32) + b_ref[...]


# ----------------------------------------------------------------------------
# Fused kernels: one for the encoder, one for the decoder
# ----------------------------------------------------------------------------
def _encoder_kernel(x_ref,
                    s1, w1, b1, s2, w2, b2, s3, w3, b3, s4, w4, b4,
                    f1w, f1b, f2w, f2b, f3w, f3b,
                    o_ref):
    B = o_ref.shape[0]
    x = x_ref[...]                                                  # (B*16,128) bf16
    x = _elu(_conv_block(x, s1, w1, b1)).astype(jnp.bfloat16)       # (B*16,128)
    x = _elu(_conv_block(x, s2, w2, b2)).astype(jnp.bfloat16)       # (B*8, 128)
    x = _elu(_conv_block(x, s3, w3, b3)).astype(jnp.bfloat16)       # (B*4, 128)
    x = _elu(_conv_block(x, s4, w4, b4)).astype(jnp.bfloat16)       # (2B,  128) rows=(y,b)
    # Flatten (y,x,c) -> FC1 without any relayout: split FC1 rows at 128.
    wfc1 = f1w[...]
    h = (jnp.dot(x[0:B, :], wfc1[0:128, :], preferred_element_type=jnp.float32)
         + jnp.dot(x[B:2 * B, :], wfc1[128:256, :], preferred_element_type=jnp.float32)
         + f1b[...])
    h = _elu(h).astype(jnp.bfloat16)
    h = _elu(_fc(h, f2w, f2b)).astype(jnp.bfloat16)
    z = _sigmoid(_fc(h, f3w, f3b))                                  # (B,128) f32
    o_ref[...] = z.astype(o_ref.dtype)


def _decoder_kernel(z_ref,
                    g1w, g1b, g2w, g2b, g3w, g3b,
                    s1t, s1b, w1, b1,
                    s2, w2, b2, s3, w3, b3, s4, w4, b4, s5, w5, b5,
                    o_ref):
    h = _elu(_fc(z_ref[...], g1w, g1b)).astype(jnp.bfloat16)        # (B,256)
    h = _elu(_fc(h, g2w, g2b)).astype(jnp.bfloat16)
    h = _elu(_fc(h, g3w, g3b)).astype(jnp.bfloat16)                 # lanes = (y,x,c)
    # Unflatten to (B*2, 128) without relayout: the two 128-lane halves of h are
    # the y=0 / y=1 input row blocks of d_ct1; gather matrices are pre-split.
    h_top = h[:, 0:128]
    h_bot = h[:, 128:256]
    acc = None
    for dy in range(w1.shape[0]):
        ht = jnp.dot(h_top, w1[dy], preferred_element_type=jnp.float32)
        hb = jnp.dot(h_bot, w1[dy], preferred_element_type=jnp.float32)
        g = (jnp.dot(s1t[dy], ht, preferred_element_type=jnp.float32)
             + jnp.dot(s1b[dy], hb, preferred_element_type=jnp.float32))
        acc = g if acc is None else acc + g
    x = _elu(acc + b1[...]).astype(jnp.bfloat16)                    # (B*4, 256)
    x = _elu(_conv_block(x, s2, w2, b2)).astype(jnp.bfloat16)       # (B*8, 256)
    x = _elu(_conv_block(x, s3, w3, b3)).astype(jnp.bfloat16)       # (B*16,256)
    x = _elu(_conv_block(x, s4, w4, b4)).astype(jnp.bfloat16)       # (B*16,128)
    y = _sigmoid(_conv_block(x, s5, w5, b5))                        # (B*16,128) f32
    o_ref[...] = y.astype(o_ref.dtype)


# ----------------------------------------------------------------------------
# Wrappers (one pallas_call each; only cheap layout glue in XLA)
# ----------------------------------------------------------------------------
def encoder_forward(q, x_nchw):
    B = x_nchw.shape[0]
    x = jnp.transpose(x_nchw, (0, 2, 3, 1))                         # (B,16,16,3)
    x = jnp.pad(x, ((0, 0), (0, 0), (0, 0), (0, 8 - x.shape[-1])))  # C: 3->8
    x = x.reshape(B * 16, 16 * 8).astype(jnp.bfloat16)              # (B*16,128)
    args = (x,) + q["e1"] + q["e2"] + q["e3"] + q["e4"] \
        + q["e_fc1"] + q["e_fc2"] + q["e_fc3"]
    return pl.pallas_call(
        _encoder_kernel,
        out_shape=jax.ShapeDtypeStruct((B, LANE), jnp.float32),
        in_specs=[_VMEM] * len(args),
        out_specs=_VMEM,
    )(*args)                          # (B,128): lanes [:n] = latent, rest = 0.5


def decoder_forward(q, z128_bf16):
    B = z128_bf16.shape[0]
    args = (z128_bf16,) + q["d_fc1"] + q["d_fc2"] + q["d_fc3"] \
        + q["d1"] + q["d2"] + q["d3"] + q["d4"] + q["d5"]
    y = pl.pallas_call(
        _decoder_kernel,
        out_shape=jax.ShapeDtypeStruct((B * 16, LANE), jnp.float32),
        in_specs=[_VMEM] * len(args),
        out_specs=_VMEM,
    )(*args)
    y = y.reshape(B, 16, 16, 8)[..., :3]                            # drop pad chans
    return jnp.transpose(y, (0, 3, 1, 2))                           # NHWC -> NCHW


def forward(q, x, type_: int):
    if type_ == 0:
        z = encoder_forward(q, x)                     # lane-dense latent (B,128)
        return decoder_forward(q, z.astype(jnp.bfloat16))
    elif type_ == 1:
        return encoder_forward(q, x)[:, :LATENT_N]
    else:
        B, n = x.shape
        z = jnp.pad(x, ((0, 0), (0, LANE - n))).astype(jnp.bfloat16)
        return decoder_forward(q, z)


# ----------------------------------------------------------------------------
# One-time parameter preprocessing (numpy, host side):
#   BN folding, band-matrix + row-gather construction, lane padding, bf16 cast.
# ----------------------------------------------------------------------------
def _fold_bn_np(bias, bn):
    g, b, m, v = [np.asarray(t, np.float32) for t in bn]
    s = g / np.sqrt(v + BN_EPS)
    return s, (np.asarray(bias, np.float32) - m) * s + b


def _expand_S(S, B, in_order="by", out_order="by"):
    """Batch-expand a (k, H_out, H_in) gather into (k, B*H_out, B*H_in).
    Row/col index is b*H + y for "by", y*B + b for "yb"."""
    k, Ho, Hi = S.shape
    Sb = np.zeros((k, B * Ho, B * Hi), np.float32)
    for b in range(B):
        for oy in range(Ho):
            r = b * Ho + oy if out_order == "by" else oy * B + b
            for iy in range(Hi):
                c = b * Hi + iy if in_order == "by" else iy * B + b
                Sb[:, r, c] = S[:, oy, iy]
    return Sb


def _prep_conv(w, bias, bn, stride, pad, H_in, B,
               cin_pad=None, in_order="by", out_order="by"):
    """Forward Conv2d (k=5) + folded BN -> (S, Wband, shift)."""
    w = np.asarray(w, np.float32)
    cout, cin, k, _ = w.shape
    scale, shift = _fold_bn_np(bias, bn)
    w = w * scale[:, None, None, None]
    if cin_pad is not None and cin_pad > cin:
        w = np.pad(w, ((0, 0), (0, cin_pad - cin), (0, 0), (0, 0)))
        cin = cin_pad
    H_out = (H_in + 2 * pad - k) // stride + 1
    W_in, W_out = H_in, H_out
    Wb = np.zeros((k, W_in * cin, W_out * cout), np.float32)
    for dy in range(k):
        for xo in range(W_out):
            for dx in range(k):
                xi = stride * xo + dx - pad
                if 0 <= xi < W_in:
                    Wb[dy, xi * cin:(xi + 1) * cin,
                       xo * cout:(xo + 1) * cout] = w[:, :, dy, dx].T
    S = np.zeros((k, H_out, H_in), np.float32)
    for dy in range(k):
        for oy in range(H_out):
            iy = stride * oy + dy - pad
            if 0 <= iy < H_in:
                S[dy, oy, iy] = 1.0
    Sb = _expand_S(S, B, in_order, out_order)
    bvec = np.tile(shift, W_out)[None, :]
    return (jnp.asarray(Sb, jnp.float32),
            jnp.asarray(Wb, jnp.bfloat16),
            jnp.asarray(bvec, jnp.float32))


def _prep_convT(wt, bias, bn, stride, pad, H_in, B,
                cout_pad=None, in_order="by", out_order="by", split_in=False):
    """ConvTranspose2d (k=5) + folded BN -> (S, Wband, shift) (direct scatter form)."""
    wt = np.asarray(wt, np.float32)
    cin, cout, k, _ = wt.shape
    scale, shift = _fold_bn_np(bias, bn)
    wt = wt * scale[None, :, None, None]
    if cout_pad is not None and cout_pad > cout:
        wt = np.pad(wt, ((0, 0), (0, cout_pad - cout), (0, 0), (0, 0)))
        shift = np.pad(shift, (0, cout_pad - cout))
        cout = cout_pad
    H_out = (H_in - 1) * stride - 2 * pad + k
    W_in, W_out = H_in, H_out
    Wb = np.zeros((k, W_in * cin, W_out * cout), np.float32)
    for dy in range(k):
        for xi in range(W_in):
            for dx in range(k):
                xo = stride * xi - pad + dx
                if 0 <= xo < W_out:
                    Wb[dy, xi * cin:(xi + 1) * cin,
                       xo * cout:(xo + 1) * cout] = wt[:, :, dy, dx]
    S = np.zeros((k, H_out, H_in), np.float32)
    for dy in range(k):
        for iy in range(H_in):
            oy = stride * iy - pad + dy
            if 0 <= oy < H_out:
                S[dy, oy, iy] = 1.0
    Sb = _expand_S(S, B, in_order, out_order)
    bvec = np.tile(shift, W_out)[None, :]
    if split_in:        # d_ct1: input rows arrive as the 128-lane halves of the FC output
        return (jnp.asarray(Sb[:, :, :B], jnp.float32),
                jnp.asarray(Sb[:, :, B:], jnp.float32),
                jnp.asarray(Wb, jnp.bfloat16),
                jnp.asarray(bvec, jnp.float32))
    return (jnp.asarray(Sb, jnp.float32),
            jnp.asarray(Wb, jnp.bfloat16),
            jnp.asarray(bvec, jnp.float32))


def _prep_linear(w, bias, row_perm=None, col_perm=None, in_pad=None, out_pad=None):
    w = np.asarray(w, np.float32)
    bias = np.asarray(bias, np.float32)
    out_f, in_f = w.shape
    wm = w.T
    if row_perm is not None:
        wm = wm[row_perm, :]
    if col_perm is not None:
        wm = wm[:, col_perm]
        bias = bias[col_perm]
    ip = in_f if in_pad is None else in_pad
    op = out_f if out_pad is None else out_pad
    wp = np.zeros((ip, op), np.float32)          # padded rows/cols are exactly zero
    wp[:in_f, :out_f] = wm
    bp = np.zeros((1, op), np.float32)
    bp[0, :out_f] = bias
    return jnp.asarray(wp, jnp.bfloat16), jnp.asarray(bp, jnp.float32)


def _chw_to_hwc_perm(c, h, w):
    """perm[i_hwc] = i_chw (torch Flatten/Unflatten ordering fold)."""
    hh = np.arange(h).reshape(h, 1, 1)
    ww = np.arange(w).reshape(1, w, 1)
    cc = np.arange(c).reshape(1, 1, c)
    return np.asarray((cc * (h * w) + hh * w + ww).reshape(-1))


def prepare_params(p, B):
    perm = _chw_to_hwc_perm(64, 2, 2)
    q = {}
    # encoder convs (e1 input channels zero-padded 3 -> 8 for a 128-lane input)
    q["e1"] = _prep_conv(*p["e_conv1"], bn=p["e_bn1"], stride=1, pad=2, H_in=16, B=B, cin_pad=8)
    q["e2"] = _prep_conv(*p["e_conv2"], bn=p["e_bn2"], stride=2, pad=2, H_in=16, B=B)
    q["e3"] = _prep_conv(*p["e_conv3"], bn=p["e_bn3"], stride=2, pad=2, H_in=8, B=B)
    q["e4"] = _prep_conv(*p["e_conv4"], bn=p["e_bn4"], stride=2, pad=2, H_in=4, B=B,
                         out_order="yb")                     # rows (y,b) for the FC split
    # encoder FCs (torch Flatten CHW ordering folded into e_fc1 rows)
    q["e_fc1"] = _prep_linear(*p["e_fc1"], row_perm=perm)
    q["e_fc2"] = _prep_linear(*p["e_fc2"])
    q["e_fc3"] = _prep_linear(*p["e_fc3"], out_pad=LANE)     # latent lane-dense
    # decoder FCs (d_fc1 rows padded n->128 with zeros so 0.5-padding lanes are inert;
    #              torch Unflatten CHW ordering folded into d_fc3 columns)
    q["d_fc1"] = _prep_linear(*p["d_fc1"], in_pad=LANE)
    q["d_fc2"] = _prep_linear(*p["d_fc2"])
    q["d_fc3"] = _prep_linear(*p["d_fc3"], col_perm=perm)
    # decoder transposed convs
    q["d1"] = _prep_convT(*p["d_ct1"], bn=p["d_bn1"], stride=1, pad=1, H_in=2, B=B,
                          in_order="yb", split_in=True)
    q["d2"] = _prep_convT(*p["d_ct2"], bn=p["d_bn2"], stride=1, pad=0, H_in=4, B=B)
    q["d3"] = _prep_convT(*p["d_ct3"], bn=p["d_bn3"], stride=3, pad=5, H_in=8, B=B)
    q["d4"] = _prep_convT(*p["d_ct4"], bn=p["d_bn4"], stride=1, pad=2, H_in=16, B=B)
    q["d5"] = _prep_convT(*p["d_ct5"], bn=p["d_bn5"], stride=1, pad=2, H_in=16, B=B,
                          cout_pad=8)
    return q


# ----------------------------------------------------------------------------
# Deterministic raw parameter initialization (synthetic, matches module shapes)
# ----------------------------------------------------------------------------
def _uniform(key, shape, bound):
    return jax.random.uniform(key, shape, jnp.float32, -bound, bound)


def init_conv(key, cout, cin, k=5):
    k1, k2 = jax.random.split(key)
    bound = 1.0 / np.sqrt(cin * k * k)
    return _uniform(k1, (cout, cin, k, k), bound), _uniform(k2, (cout,), bound)


def init_convT(key, cin, cout, k=5):
    k1, k2 = jax.random.split(key)
    bound = 1.0 / np.sqrt(cout * k * k)
    return _uniform(k1, (cin, cout, k, k), bound), _uniform(k2, (cout,), bound)


def init_linear(key, out_f, in_f):
    k1, k2 = jax.random.split(key)
    bound = 1.0 / np.sqrt(in_f)
    return _uniform(k1, (out_f, in_f), bound), _uniform(k2, (out_f,), bound)


def init_bn(key, c):
    k1, k2, k3 = jax.random.split(key, 3)
    gamma = jax.random.uniform(k1, (c,), jnp.float32, 0.5, 1.5)
    beta = _uniform(k2, (c,), 0.1)
    mean = jax.random.normal(k3, (c,), jnp.float32) * 0.1
    var = jnp.ones((c,), jnp.float32)
    return (gamma, beta, mean, var)


def init_params(key, n=LATENT_N):
    ks = jax.random.split(key, 32)
    p = {}
    p["e_conv1"] = init_conv(ks[0], 8, 3);    p["e_bn1"] = init_bn(ks[1], 8)
    p["e_conv2"] = init_conv(ks[2], 16, 8);   p["e_bn2"] = init_bn(ks[3], 16)
    p["e_conv3"] = init_conv(ks[4], 32, 16);  p["e_bn3"] = init_bn(ks[5], 32)
    p["e_conv4"] = init_conv(ks[6], 64, 32);  p["e_bn4"] = init_bn(ks[7], 64)
    p["e_fc1"] = init_linear(ks[8], 256, 256)
    p["e_fc2"] = init_linear(ks[9], 256, 256)
    p["e_fc3"] = init_linear(ks[10], n, 256)
    p["d_fc1"] = init_linear(ks[11], 256, n)
    p["d_fc2"] = init_linear(ks[12], 256, 256)
    p["d_fc3"] = init_linear(ks[13], 256, 256)
    p["d_ct1"] = init_convT(ks[14], 64, 64);  p["d_bn1"] = init_bn(ks[15], 64)
    p["d_ct2"] = init_convT(ks[16], 64, 32);  p["d_bn2"] = init_bn(ks[17], 32)
    p["d_ct3"] = init_convT(ks[18], 32, 16);  p["d_bn3"] = init_bn(ks[19], 16)
    p["d_ct4"] = init_convT(ks[20], 16, 8);   p["d_bn4"] = init_bn(ks[21], 8)
    p["d_ct5"] = init_convT(ks[22], 8, 3);    p["d_bn5"] = init_bn(ks[23], 3)
    return p


# ----------------------------------------------------------------------------
# Plain-JAX f32 reference of the PyTorch module (used only for a sanity check)
# ----------------------------------------------------------------------------
def _bn_ref(y, bn):
    g, b, m, v = bn
    return ((y - m[None, :, None, None]) / jnp.sqrt(v[None, :, None, None] + BN_EPS)
            * g[None, :, None, None] + b[None, :, None, None])


def _conv_ref(x, w, b, s, p):
    y = lax.conv_general_dilated(x, w, (s, s), [(p, p), (p, p)],
                                 dimension_numbers=("NCHW", "OIHW", "NCHW"))
    return y + b[None, :, None, None]


def _convT_ref(x, wt, b, s, p):
    k = wt.shape[2]
    B, C, H, W = x.shape
    if s > 1:
        xd = jnp.zeros((B, C, (H - 1) * s + 1, (W - 1) * s + 1), x.dtype)
        xd = xd.at[:, :, ::s, ::s].set(x)
    else:
        xd = x
    pp = k - 1 - p
    if pp >= 0:
        xd = jnp.pad(xd, ((0, 0), (0, 0), (pp, pp), (pp, pp)))
    else:
        xd = xd[:, :, -pp:pp, -pp:pp]
    w = jnp.transpose(wt[:, :, ::-1, ::-1], (1, 0, 2, 3))
    y = lax.conv_general_dilated(xd, w, (1, 1), [(0, 0), (0, 0)],
                                 dimension_numbers=("NCHW", "OIHW", "NCHW"))
    return y + b[None, :, None, None]


def encoder_ref(p, x):
    x = _elu(_bn_ref(_conv_ref(x, *p["e_conv1"], 1, 2), p["e_bn1"]))
    x = _elu(_bn_ref(_conv_ref(x, *p["e_conv2"], 2, 2), p["e_bn2"]))
    x = _elu(_bn_ref(_conv_ref(x, *p["e_conv3"], 2, 2), p["e_bn3"]))
    x = _elu(_bn_ref(_conv_ref(x, *p["e_conv4"], 2, 2), p["e_bn4"]))
    x = x.reshape(x.shape[0], -1)                 # torch Flatten (CHW)
    w, b = p["e_fc1"]; x = _elu(x @ w.T + b)
    w, b = p["e_fc2"]; x = _elu(x @ w.T + b)
    w, b = p["e_fc3"]; return _sigmoid(x @ w.T + b)


def decoder_ref(p, z):
    w, b = p["d_fc1"]; h = _elu(z @ w.T + b)
    w, b = p["d_fc2"]; h = _elu(h @ w.T + b)
    w, b = p["d_fc3"]; h = _elu(h @ w.T + b)
    x = h.reshape(h.shape[0], 64, 2, 2)           # torch Unflatten
    x = _elu(_bn_ref(_convT_ref(x, *p["d_ct1"], 1, 1), p["d_bn1"]))
    x = _elu(_bn_ref(_convT_ref(x, *p["d_ct2"], 1, 0), p["d_bn2"]))
    x = _elu(_bn_ref(_convT_ref(x, *p["d_ct3"], 3, 5), p["d_bn3"]))
    x = _elu(_bn_ref(_convT_ref(x, *p["d_ct4"], 1, 2), p["d_bn4"]))
    x = _sigmoid(_bn_ref(_convT_ref(x, *p["d_ct5"], 1, 2), p["d_bn5"]))
    return x


# ----------------------------------------------------------------------------
if __name__ == "__main__":
    key = jax.random.PRNGKey(0)
    kp, kx = jax.random.split(key)
    B = 2
    raw = init_params(kp, n=LATENT_N)
    q = prepare_params(raw, B=B)     # one-time: fold BN, build band/gather mats, bf16

    # Input consistent with the module: Flatten->Linear(256) implies 16x16x3.
    x = jax.random.normal(kx, (B, 3, 16, 16), jnp.float32)    # NCHW like PyTorch

    fwd0 = jax.jit(lambda q, x: forward(q, x, 0))
    fwd1 = jax.jit(lambda q, x: forward(q, x, 1))
    fwd2 = jax.jit(lambda q, z: forward(q, z, 2))

    out = jax.block_until_ready(fwd0(q, x))
    z = jax.block_until_ready(fwd1(q, x))
    rec = jax.block_until_ready(fwd2(q, z))

    assert out.shape == (B, 3, 16, 16) and out.dtype == jnp.float32
    assert z.shape == (B, LATENT_N)
    assert rec.shape == (B, 3, 16, 16)

    # Numerical sanity check against the plain-JAX f32 reference (bf16-tolerant).
    z_ref = encoder_ref(raw, x)
    out_ref = decoder_ref(raw, z_ref)
    assert float(jnp.max(jnp.abs(z - z_ref))) < 0.1
    assert float(jnp.max(jnp.abs(out - out_ref))) < 0.1

    print("KERNEL_OK")
</pallas_src>

<mosaic_0001>
module attributes {stable_mosaic.version = 11 : i64} {
  func.func @_encoder_kernel(%arg0: memref<32x128xbf16, #tpu.memory_space<vmem>>, %arg1: memref<5x32x32xf32, #tpu.memory_space<vmem>>, %arg2: memref<5x128x128xbf16, #tpu.memory_space<vmem>>, %arg3: memref<1x128xf32, #tpu.memory_space<vmem>>, %arg4: memref<5x16x32xf32, #tpu.memory_space<vmem>>, %arg5: memref<5x128x128xbf16, #tpu.memory_space<vmem>>, %arg6: memref<1x128xf32, #tpu.memory_space<vmem>>, %arg7: memref<5x8x16xf32, #tpu.memory_space<vmem>>, %arg8: memref<5x128x128xbf16, #tpu.memory_space<vmem>>, %arg9: memref<1x128xf32, #tpu.memory_space<vmem>>, %arg10: memref<5x4x8xf32, #tpu.memory_space<vmem>>, %arg11: memref<5x128x128xbf16, #tpu.memory_space<vmem>>, %arg12: memref<1x128xf32, #tpu.memory_space<vmem>>, %arg13: memref<256x256xbf16, #tpu.memory_space<vmem>>, %arg14: memref<1x256xf32, #tpu.memory_space<vmem>>, %arg15: memref<256x256xbf16, #tpu.memory_space<vmem>>, %arg16: memref<1x256xf32, #tpu.memory_space<vmem>>, %arg17: memref<256x128xbf16, #tpu.memory_space<vmem>>, %arg18: memref<1x128xf32, #tpu.memory_space<vmem>>, %arg19: memref<2x128xf32, #tpu.memory_space<vmem>>) attributes {dimension_semantics = [], scalar_prefetch = 0 : i64, scratch_operands = 0 : i64, tpu.core_type = #tpu.core_type<tc>} {
    %c0 = arith.constant 0 : index
    %c0_0 = arith.constant 0 : index
    %0 = vector.load %arg0[%c0, %c0_0] : memref<32x128xbf16, #tpu.memory_space<vmem>>, vector<32x128xbf16>
    %c0_1 = arith.constant 0 : index
    %c0_2 = arith.constant 0 : index
    %c0_3 = arith.constant 0 : index
    %1 = vector.load %arg2[%c0_1, %c0_2, %c0_3] : memref<5x128x128xbf16, #tpu.memory_space<vmem>>, vector<1x128x128xbf16>
    %2 = vector.shape_cast %1 : vector<1x128x128xbf16> to vector<128x128xbf16>
    %cst = arith.constant dense<0.000000e+00> : vector<32x128xf32>
    %3 = tpu.matmul %0, %2, %cst {dimension_numbers = #tpu.dot_dimension_numbers<[1], [0], [0], [1], [0, 0, 1, 1], [], []>} : vector<32x128xbf16>, vector<128x128xbf16>, vector<32x128xf32> -> vector<32x128xf32>
    %c0_4 = arith.constant 0 : index
    %c0_5 = arith.constant 0 : index
    %c0_6 = arith.constant 0 : index
    %4 = vector.load %arg1[%c0_4, %c0_5, %c0_6] : memref<5x32x32xf32, #tpu.memory_space<vmem>>, vector<1x32x32xf32>
    %5 = vector.shape_cast %4 : vector<1x32x32xf32> to vector<32x32xf32>
    %cst_7 = arith.constant dense<0.000000e+00> : vector<32x128xf32>
    %6 = tpu.matmul %5, %3, %cst_7 {dimension_numbers = #tpu.dot_dimension_numbers<[1], [0], [0], [1], [0, 0, 1, 1], [], []>} : vector<32x32xf32>, vector<32x128xf32>, vector<32x128xf32> -> vector<32x128xf32>
    %c1 = arith.constant 1 : index
    %c0_8 = arith.constant 0 : index
    %c0_9 = arith.constant 0 : index
    %7 = vector.load %arg2[%c1, %c0_8, %c0_9] : memref<5x128x128xbf16, #tpu.memory_space<vmem>>, vector<1x128x128xbf16>
    %8 = vector.shape_cast %7 : vector<1x128x128xbf16> to vector<128x128xbf16>
    %cst_10 = arith.constant dense<0.000000e+00> : vector<32x128xf32>
    %9 = tpu.matmul %0, %8, %cst_10 {dimension_numbers = #tpu.dot_dimension_numbers<[1], [0], [0], [1], [0, 0, 1, 1], [], []>} : vector<32x128xbf16>, vector<128x128xbf16>, vector<32x128xf32> -> vector<32x128xf32>
    %c1_11 = arith.constant 1 : index
    %c0_12 = arith.constant 0 : index
    %c0_13 = arith.constant 0 : index
    %10 = vector.load %arg1[%c1_11, %c0_12, %c0_13] : memref<5x32x32xf32, #tpu.memory_space<vmem>>, vector<1x32x32xf32>
    %11 = vector.shape_cast %10 : vector<1x32x32xf32> to vector<32x32xf32>
    %cst_14 = arith.constant dense<0.000000e+00> : vector<32x128xf32>
    %12 = tpu.matmul %11, %9, %cst_14 {dimension_numbers = #tpu.dot_dimension_numbers<[1], [0], [0], [1], [0, 0, 1, 1], [], []>} : vector<32x32xf32>, vector<32x128xf32>, vector<32x128xf32> -> vector<32x128xf32>
    %13 = arith.addf %6, %12 : vector<32x128xf32>
    %c2 = arith.constant 2 : index
    %c0_15 = arith.constant 0 : index
    %c0_16 = arith.constant 0 : index
    %14 = vector.load %arg2[%c2, %c0_15, %c0_16] : memref<5x128x128xbf16, #tpu.memory_space<vmem>>, vector<1x128x128xbf16>
    %15 = vector.shape_cast %14 : vector<1x128x128xbf16> to vector<128x128xbf16>
    %cst_17 = arith.constant dense<0.000000e+00> : vector<32x128xf32>
    %16 = tpu.matmul %0, %15, %cst_17 {dimension_numbers = #tpu.dot_dimension_numbers<[1], [0], [0], [1], [0, 0, 1, 1], [], []>} : vector<32x128xbf16>, vector<128x128xbf16>, vector<32x128xf32> -> vector<32x128xf32>
    %c2_18 = arith.constant 2 : index
    %c0_19 = arith.constant 0 : index
    %c0_20 = arith.constant 0 : index
    %17 = vector.load %arg1[%c2_18, %c0_19, %c0_20] : memref<5x32x32xf32, #tpu.memory_space<vmem>>, vector<1x32x32xf32>
    %18 = vector.shape_cast %17 : vector<1x32x32xf32> to vector<32x32xf32>
    %cst_21 = arith.constant dense<0.000000e+00> : vector<32x128xf32>
    %19 = tpu.matmul %18, %16, %cst_21 {dimension_numbers = #tpu.dot_dimension_numbers<[1], [0], [0], [1], [0, 0, 1, 1], [], []>} : vector<32x32xf32>, vector<32x128xf32>, vector<32x128xf32> -> vector<32x128xf32>
    %20 = arith.addf %13, %19 : vector<32x128xf32>
    %c3 = arith.constant 3 : index
    %c0_22 = arith.constant 0 : index
    %c0_23 = arith.constant 0 : index
    %21 = vector.load %arg2[%c3, %c0_22, %c0_23] : memref<5x128x128xbf16, #tpu.memory_space<vmem>>, vector<1x128x128xbf16>
    %22 = vector.shape_cast %21 : vector<1x128x128xbf16> to vector<128x128xbf16>
    %cst_24 = arith.constant dense<0.000000e+00> : vector<32x128xf32>
    %23 = tpu.matmul %0, %22, %cst_24 {dimension_numbers = #tpu.dot_dimension_numbers<[1], [0], [0], [1], [0, 0, 1, 1], [], []>} : vector<32x128xbf16>, vector<128x128xbf16>, vector<32x128xf32> -> vector<32x128xf32>
    %c3_25 = arith.constant 3 : index
    %c0_26 = arith.constant 0 : index
    %c0_27 = arith.constant 0 : index
    %24 = vector.load %arg1[%c3_25, %c0_26, %c0_27] : memref<5x32x32xf32, #tpu.memory_space<vmem>>, vector<1x32x32xf32>
    %25 = vector.shape_cast %24 : vector<1x32x32xf32> to vector<32x32xf32>
    %cst_28 = arith.constant dense<0.000000e+00> : vector<32x128xf32>
    %26 = tpu.matmul %25, %23, %cst_28 {dimension_numbers = #tpu.dot_dimension_numbers<[1], [0], [0], [1], [0, 0, 1, 1], [], []>} : vector<32x32xf32>, vector<32x128xf32>, vector<32x128xf32> -> vector<32x128xf32>
    %27 = arith.addf %20, %26 : vector<32x128xf32>
    %c4 = arith.constant 4 : index
    %c0_29 = arith.constant 0 : index
    %c0_30 = arith.constant 0 : index
    %28 = vector.load %arg2[%c4, %c0_29, %c0_30] : memref<5x128x128xbf16, #tpu.memory_space<vmem>>, vector<1x128x128xbf16>
    %29 = vector.shape_cast %28 : vector<1x128x128xbf16> to vector<128x128xbf16>
    %cst_31 = arith.constant dense<0.000000e+00> : vector<32x128xf32>
    %30 = tpu.matmul %0, %29, %cst_31 {dimension_numbers = #tpu.dot_dimension_numbers<[1], [0], [0], [1], [0, 0, 1, 1], [], []>} : vector<32x128xbf16>, vector<128x128xbf16>, vector<32x128xf32> -> vector<32x128xf32>
    %c4_32 = arith.constant 4 : index
    %c0_33 = arith.constant 0 : index
    %c0_34 = arith.constant 0 : index
    %31 = vector.load %arg1[%c4_32, %c0_33, %c0_34] : memref<5x32x32xf32, #tpu.memory_space<vmem>>, vector<1x32x32xf32>
    %32 = vector.shape_cast %31 : vector<1x32x32xf32> to vector<32x32xf32>
    %cst_35 = arith.constant dense<0.000000e+00> : vector<32x128xf32>
    %33 = tpu.matmul %32, %30, %cst_35 {dimension_numbers = #tpu.dot_dimension_numbers<[1], [0], [0], [1], [0, 0, 1, 1], [], []>} : vector<32x32xf32>, vector<32x128xf32>, vector<32x128xf32> -> vector<32x128xf32>
    %34 = arith.addf %27, %33 : vector<32x128xf32>
    %c0_36 = arith.constant 0 : index
    %c0_37 = arith.constant 0 : index
    %35 = vector.load %arg3[%c0_36, %c0_37] : memref<1x128xf32, #tpu.memory_space<vmem>>, vector<1x128xf32>
    %36 = vector.broadcast %35 : vector<1x128xf32> to vector<32x128xf32>
    %37 = arith.addf %34, %36 : vector<32x128xf32>
    %cst_38 = arith.constant 0.000000e+00 : f32
    %38 = vector.broadcast %cst_38 : f32 to vector<32x128xf32>
    %39 = arith.cmpf ogt, %37, %38 : vector<32x128xf32>
    %40 = math.exp %37 : vector<32x128xf32>
    %cst_39 = arith.constant 1.000000e+00 : f32
    %41 = vector.broadcast %cst_39 : f32 to vector<32x128xf32>
    %42 = arith.subf %40, %41 : vector<32x128xf32>
    %43 = arith.select %39, %37, %42 : vector<32x128xi1>, vector<32x128xf32>
    %44 = arith.truncf %43 : vector<32x128xf32> to vector<32x128xbf16>
    %c0_40 = arith.constant 0 : index
    %c0_41 = arith.constant 0 : index
    %c0_42 = arith.constant 0 : index
    %45 = vector.load %arg5[%c0_40, %c0_41, %c0_42] : memref<5x128x128xbf16, #tpu.memory_space<vmem>>, vector<1x128x128xbf16>
    %46 = vector.shape_cast %45 : vector<1x128x128xbf16> to vector<128x128xbf16>
    %cst_43 = arith.constant dense<0.000000e+00> : vector<32x128xf32>
    %47 = tpu.matmul %44, %46, %cst_43 {dimension_numbers = #tpu.dot_dimension_numbers<[1], [0], [0], [1], [0, 0, 1, 1], [], []>} : vector<32x128xbf16>, vector<128x128xbf16>, vector<32x128xf32> -> vector<32x128xf32>
    %c0_44 = arith.constant 0 : index
    %c0_45 = arith.constant 0 : index
    %c0_46 = arith.constant 0 : index
    %48 = vector.load %arg4[%c0_44, %c0_45, %c0_46] : memref<5x16x32xf32, #tpu.memory_space<vmem>>, vector<1x16x32xf32>
    %49 = vector.shape_cast %48 : vector<1x16x32xf32> to vector<16x32xf32>
    %cst_47 = arith.constant dense<0.000000e+00> : vector<16x128xf32>
    %50 = tpu.matmul %49, %47, %cst_47 {dimension_numbers = #tpu.dot_dimension_numbers<[1], [0], [0], [1], [0, 0, 1, 1], [], []>} : vector<16x32xf32>, vector<32x128xf32>, vector<16x128xf32> -> vector<16x128xf32>
    %c1_48 = arith.constant 1 : index
    %c0_49 = arith.constant 0 : index
    %c0_50 = arith.constant 0 : index
    %51 = vector.load %arg5[%c1_48, %c0_49, %c0_50] : memref<5x128x128xbf16, #tpu.memory_space<vmem>>, vector<1x128x128xbf16>
    %52 = vector.shape_cast %51 : vector<1x128x128xbf16> to vector<128x128xbf16>
    %cst_51 = arith.constant dense<0.000000e+00> : vector<32x128xf32>
    %53 = tpu.matmul %44, %52, %cst_51 {dimension_numbers = #tpu.dot_dimension_numbers<[1], [0], [0], [1], [0, 0, 1, 1], [], []>} : vector<32x128xbf16>, vector<128x128xbf16>, vector<32x128xf32> -> vector<32x128xf32>
    %c1_52 = arith.constant 1 : index
    %c0_53 = arith.constant 0 : index
    %c0_54 = arith.constant 0 : index
    %54 = vector.load %arg4[%c1_52, %c0_53, %c0_54] : memref<5x16x32xf32, #tpu.memory_space<vmem>>, vector<1x16x32xf32>
    %55 = vector.shape_cast %54 : vector<1x16x32xf32> to vector<16x32xf32>
    %cst_55 = arith.constant dense<0.000000e+00> : vector<16x128xf32>
    %56 = tpu.matmul %55, %53, %cst_55 {dimension_numbers = #tpu.dot_dimension_numbers<[1], [0], [0], [1], [0, 0, 1, 1], [], []>} : vector<16x32xf32>, vector<32x128xf32>, vector<16x128xf32> -> vector<16x128xf32>
    %57 = arith.addf %50, %56 : vector<16x128xf32>
    %c2_56 = arith.constant 2 : index
    %c0_57 = arith.constant 0 : index
    %c0_58 = arith.constant 0 : index
    %58 = vector.load %arg5[%c2_56, %c0_57, %c0_58] : memref<5x128x128xbf16, #tpu.memory_space<vmem>>, vector<1x128x128xbf16>
    %59 = vector.shape_cast %58 : vector<1x128x128xbf16> to vector<128x128xbf16>
    %cst_59 = arith.constant dense<0.000000e+00> : vector<32x128xf32>
    %60 = tpu.matmul %44, %59, %cst_59 {dimension_numbers = #tpu.dot_dimension_numbers<[1], [0], [0], [1], [0, 0, 1, 1], [], []>} : vector<32x128xbf16>, vector<128x128xbf16>, vector<32x128xf32> -> vector<32x128xf32>
    %c2_60 = arith.constant 2 : index
    %c0_61 = arith.constant 0 : index
    %c0_62 = arith.constant 0 : index
    %61 = vector.load %arg4[%c2_60, %c0_61, %c0_62] : memref<5x16x32xf32, #tpu.memory_space<vmem>>, vector<1x16x32xf32>
    %62 = vector.shape_cast %61 : vector<1x16x32xf32> to vector<16x32xf32>
    %cst_63 = arith.constant dense<0.000000e+00> : vector<16x128xf32>
    %63 = tpu.matmul %62, %60, %cst_63 {dimension_numbers = #tpu.dot_dimension_numbers<[1], [0], [0], [1], [0, 0, 1, 1], [], []>} : vector<16x32xf32>, vector<32x128xf32>, vector<16x128xf32> -> vector<16x128xf32>
    %64 = arith.addf %57, %63 : vector<16x128xf32>
    %c3_64 = arith.constant 3 : index
    %c0_65 = arith.constant 0 : index
    %c0_66 = arith.constant 0 : index
    %65 = vector.load %arg5[%c3_64, %c0_65, %c0_66] : memref<5x128x128xbf16, #tpu.memory_space<vmem>>, vector<1x128x128xbf16>
    %66 = vector.shape_cast %65 : vector<1x128x128xbf16> to vector<128x128xbf16>
    %cst_67 = arith.constant dense<0.000000e+00> : vector<32x128xf32>
    %67 = tpu.matmul %44, %66, %cst_67 {dimension_numbers = #tpu.dot_dimension_numbers<[1], [0], [0], [1], [0, 0, 1, 1], [], []>} : vector<32x128xbf16>, vector<128x128xbf16>, vector<32x128xf32> -> vector<32x128xf32>
    %c3_68 = arith.constant 3 : index
    %c0_69 = arith.constant 0 : index
    %c0_70 = arith.constant 0 : index
    %68 = vector.load %arg4[%c3_68, %c0_69, %c0_70] : memref<5x16x32xf32, #tpu.memory_space<vmem>>, vector<1x16x32xf32>
    %69 = vector.shape_cast %68 : vector<1x16x32xf32> to vector<16x32xf32>
    %cst_71 = arith.constant dense<0.000000e+00> : vector<16x128xf32>
    %70 = tpu.matmul %69, %67, %cst_71 {dimension_numbers = #tpu.dot_dimension_numbers<[1], [0], [0], [1], [0, 0, 1, 1], [], []>} : vector<16x32xf32>, vector<32x128xf32>, vector<16x128xf32> -> vector<16x128xf32>
    %71 = arith.addf %64, %70 : vector<16x128xf32>
    %c4_72 = arith.constant 4 : index
    %c0_73 = arith.constant 0 : index
    %c0_74 = arith.constant 0 : index
    %72 = vector.load %arg5[%c4_72, %c0_73, %c0_74] : memref<5x128x128xbf16, #tpu.memory_space<vmem>>, vector<1x128x128xbf16>
    %73 = vector.shape_cast %72 : vector<1x128x128xbf16> to vector<128x128xbf16>
    %cst_75 = arith.constant dense<0.000000e+00> : vector<32x128xf32>
    %74 = tpu.matmul %44, %73, %cst_75 {dimension_numbers = #tpu.dot_dimension_numbers<[1], [0], [0], [1], [0, 0, 1, 1], [], []>} : vector<32x128xbf16>, vector<128x128xbf16>, vector<32x128xf32> -> vector<32x128xf32>
    %c4_76 = arith.constant 4 : index
    %c0_77 = arith.constant 0 : index
    %c0_78 = arith.constant 0 : index
    %75 = vector.load %arg4[%c4_76, %c0_77, %c0_78] : memref<5x16x32xf32, #tpu.memory_space<vmem>>, vector<1x16x32xf32>
    %76 = vector.shape_cast %75 : vector<1x16x32xf32> to vector<16x32xf32>
    %cst_79 = arith.constant dense<0.000000e+00> : vector<16x128xf32>
    %77 = tpu.matmul %76, %74, %cst_79 {dimension_numbers = #tpu.dot_dimension_numbers<[1], [0], [0], [1], [0, 0, 1, 1], [], []>} : vector<16x32xf32>, vector<32x128xf32>, vector<16x128xf32> -> vector<16x128xf32>
    %78 = arith.addf %71, %77 : vector<16x128xf32>
    %c0_80 = arith.constant 0 : index
    %c0_81 = arith.constant 0 : index
    %79 = vector.load %arg6[%c0_80, %c0_81] : memref<1x128xf32, #tpu.memory_space<vmem>>, vector<1x128xf32>
    %80 = vector.broadcast %79 : vector<1x128xf32> to vector<16x128xf32>
    %81 = arith.addf %78, %80 : vector<16x128xf32>
    %cst_82 = arith.constant 0.000000e+00 : f32
    %82 = vector.broadcast %cst_82 : f32 to vector<16x128xf32>
    %83 = arith.cmpf ogt, %81, %82 : vector<16x128xf32>
    %84 = math.exp %81 : vector<16x128xf32>
    %cst_83 = arith.constant 1.000000e+00 : f32
    %85 = vector.broadcast %cst_83 : f32 to vector<16x128xf32>
    %86 = arith.subf %84, %85 : vector<16x128xf32>
    %87 = arith.select %83, %81, %86 : vector<16x128xi1>, vector<16x128xf32>
    %88 = arith.truncf %87 : vector<16x128xf32> to vector<16x128xbf16>
    %c0_84 = arith.constant 0 : index
    %c0_85 = arith.constant 0 : index
    %c0_86 = arith.constant 0 : index
    %89 = vector.load %arg8[%c0_84, %c0_85, %c0_86] : memref<5x128x128xbf16, #tpu.memory_space<vmem>>, vector<1x128x128xbf16>
    %90 = vector.shape_cast %89 : vector<1x128x128xbf16> to vector<128x128xbf16>
    %cst_87 = arith.constant dense<0.000000e+00> : vector<16x128xf32>
    %91 = tpu.matmul %88, %90, %cst_87 {dimension_numbers = #tpu.dot_dimension_numbers<[1], [0], [0], [1], [0, 0, 1, 1], [], []>} : vector<16x128xbf16>, vector<128x128xbf16>, vector<16x128xf32> -> vector<16x128xf32>
    %c0_88 = arith.constant 0 : index
    %c0_89 = arith.constant 0 : index
    %c0_90 = arith.constant 0 : index
    %92 = vector.load %arg7[%c0_88, %c0_89, %c0_90] : memref<5x8x16xf32, #tpu.memory_space<vmem>>, vector<1x8x16xf32>
    %93 = vector.shape_cast %92 : vector<1x8x16xf32> to vector<8x16xf32>
    %cst_91 = arith.constant dense<0.000000e+00> : vector<8x128xf32>
    %94 = tpu.matmul %93, %91, %cst_91 {dimension_numbers = #tpu.dot_dimension_numbers<[1], [0], [0], [1], [0, 0, 1, 1], [], []>} : vector<8x16xf32>, vector<16x128xf32>, vector<8x128xf32> -> vector<8x128xf32>
    %c1_92 = arith.constant 1 : index
    %c0_93 = arith.constant 0 : index
    %c0_94 = arith.constant 0 : index
    %95 = vector.load %arg8[%c1_92, %c0_93, %c0_94] : memref<5x128x128xbf16, #tpu.memory_space<vmem>>, vector<1x128x128xbf16>
    %96 = vector.shape_cast %95 : vector<1x128x128xbf16> to vector<128x128xbf16>
    %cst_95 = arith.constant dense<0.000000e+00> : vector<16x128xf32>
    %97 = tpu.matmul %88, %96, %cst_95 {dimension_numbers = #tpu.dot_dimension_numbers<[1], [0], [0], [1], [0, 0, 1, 1], [], []>} : vector<16x128xbf16>, vector<128x128xbf16>, vector<16x128xf32> -> vector<16x128xf32>
    %c1_96 = arith.constant 1 : index
    %c0_97 = arith.constant 0 : index
    %c0_98 = arith.constant 0 : index
    %98 = vector.load %arg7[%c1_96, %c0_97, %c0_98] : memref<5x8x16xf32, #tpu.memory_space<vmem>>, vector<1x8x16xf32>
    %99 = vector.shape_cast %98 : vector<1x8x16xf32> to vector<8x16xf32>
    %cst_99 = arith.constant dense<0.000000e+00> : vector<8x128xf32>
    %100 = tpu.matmul %99, %97, %cst_99 {dimension_numbers = #tpu.dot_dimension_numbers<[1], [0], [0], [1], [0, 0, 1, 1], [], []>} : vector<8x16xf32>, vector<16x128xf32>, vector<8x128xf32> -> vector<8x128xf32>
    %101 = arith.addf %94, %100 : vector<8x128xf32>
    %c2_100 = arith.constant 2 : index
    %c0_101 = arith.constant 0 : index
    %c0_102 = arith.constant 0 : index
    %102 = vector.load %arg8[%c2_100, %c0_101, %c0_102] : memref<5x128x128xbf16, #tpu.memory_space<vmem>>, vector<1x128x128xbf16>
    %103 = vector.shape_cast %102 : vector<1x128x128xbf16> to vector<128x128xbf16>
    %cst_103 = arith.constant dense<0.000000e+00> : vector<16x128xf32>
    %104 = tpu.matmul %88, %103, %cst_103 {dimension_numbers = #tpu.dot_dimension_numbers<[1], [0], [0], [1], [0, 0, 1, 1], [], []>} : vector<16x128xbf16>, vector<128x128xbf16>, vector<16x128xf32> -> vector<16x128xf32>
    %c2_104 = arith.constant 2 : index
    %c0_105 = arith.constant 0 : index
    %c0_106 = arith.constant 0 : index
    %105 = vector.load %arg7[%c2_104, %c0_105, %c0_106] : memref<5x8x16xf32, #tpu.memory_space<vmem>>, vector<1x8x16xf32>
    %106 = vector.shape_cast %105 : vector<1x8x16xf32> to vector<8x16xf32>
    %cst_107 = arith.constant dense<0.000000e+00> : vector<8x128xf32>
    %107 = tpu.matmul %106, %104, %cst_107 {dimension_numbers = #tpu.dot_dimension_numbers<[1], [0], [0], [1], [0, 0, 1, 1], [], []>} : vector<8x16xf32>, vector<16x128xf32>, vector<8x128xf32> -> vector<8x128xf32>
    %108 = arith.addf %101, %107 : vector<8x128xf32>
    %c3_108 = arith.constant 3 : index
    %c0_109 = arith.constant 0 : index
    %c0_110 = arith.constant 0 : index
    %109 = vector.load %arg8[%c3_108, %c0_109, %c0_110] : memref<5x128x128xbf16, #tpu.memory_space<vmem>>, vector<1x128x128xbf16>
    %110 = vector.shape_cast %109 : vector<1x128x128xbf16> to vector<128x128xbf16>
    %cst_111 = arith.constant dense<0.000000e+00> : vector<16x128xf32>
    %111 = tpu.matmul %88, %110, %cst_111 {dimension_numbers = #tpu.dot_dimension_numbers<[1], [0], [0], [1], [0, 0, 1, 1], [], []>} : vector<16x128xbf16>, vector<128x128xbf16>, vector<16x128xf32> -> vector<16x128xf32>
    %c3_112 = arith.constant 3 : index
    %c0_113 = arith.constant 0 : index
    %c0_114 = arith.constant 0 : index
    %112 = vector.load %arg7[%c3_112, %c0_113, %c0_114] : memref<5x8x16xf32, #tpu.memory_space<vmem>>, vector<1x8x16xf32>
    %113 = vector.shape_cast %112 : vector<1x8x16xf32> to vector<8x16xf32>
    %cst_115 = arith.constant dense<0.000000e+00> : vector<8x128xf32>
    %114 = tpu.matmul %113, %111, %cst_115 {dimension_numbers = #tpu.dot_dimension_numbers<[1], [0], [0], [1], [0, 0, 1, 1], [], []>} : vector<8x16xf32>, vector<16x128xf32>, vector<8x128xf32> -> vector<8x128xf32>
    %115 = arith.addf %108, %114 : vector<8x128xf32>
    %c4_116 = arith.constant 4 : index
    %c0_117 = arith.constant 0 : index
    %c0_118 = arith.constant 0 : index
    %116 = vector.load %arg8[%c4_116, %c0_117, %c0_118] : memref<5x128x128xbf16, #tpu.memory_space<vmem>>, vector<1x128x128xbf16>
    %117 = vector.shape_cast %116 : vector<1x128x128xbf16> to vector<128x128xbf16>
    %cst_119 = arith.constant dense<0.000000e+00> : vector<16x128xf32>
    %118 = tpu.matmul %88, %117, %cst_119 {dimension_numbers = #tpu.dot_dimension_numbers<[1], [0], [0], [1], [0, 0, 1, 1], [], []>} : vector<16x128xbf16>, vector<128x128xbf16>, vector<16x128xf32> -> vector<16x128xf32>
    %c4_120 = arith.constant 4 : index
    %c0_121 = arith.constant 0 : index
    %c0_122 = arith.constant 0 : index
    %119 = vector.load %arg7[%c4_120, %c0_121, %c0_122] : memref<5x8x16xf32, #tpu.memory_space<vmem>>, vector<1x8x16xf32>
    %120 = vector.shape_cast %119 : vector<1x8x16xf32> to vector<8x16xf32>
    %cst_123 = arith.constant dense<0.000000e+00> : vector<8x128xf32>
    %121 = tpu.matmul %120, %118, %cst_123 {dimension_numbers = #tpu.dot_dimension_numbers<[1], [0], [0], [1], [0, 0, 1, 1], [], []>} : vector<8x16xf32>, vector<16x128xf32>, vector<8x128xf32> -> vector<8x128xf32>
    %122 = arith.addf %115, %121 : vector<8x128xf32>
    %c0_124 = arith.constant 0 : index
    %c0_125 = arith.constant 0 : index
    %123 = vector.load %arg9[%c0_124, %c0_125] : memref<1x128xf32, #tpu.memory_space<vmem>>, vector<1x128xf32>
    %124 = vector.broadcast %123 : vector<1x128xf32> to vector<8x128xf32>
    %125 = arith.addf %122, %124 : vector<8x128xf32>
    %cst_126 = arith.constant 0.000000e+00 : f32
    %126 = vector.broadcast %cst_126 : f32 to vector<8x128xf32>
    %127 = arith.cmpf ogt, %125, %126 : vector<8x128xf32>
    %128 = math.exp %125 : vector<8x128xf32>
    %cst_127 = arith.constant 1.000000e+00 : f32
    %129 = vector.broadcast %cst_127 : f32 to vector<8x128xf32>
    %130 = arith.subf %128, %129 : vector<8x128xf32>
    %131 = arith.select %127, %125, %130 : vector<8x128xi1>, vector<8x128xf32>
    %132 = arith.truncf %131 : vector<8x128xf32> to vector<8x128xbf16>
    %c0_128 = arith.constant 0 : index
    %c0_129 = arith.constant 0 : index
    %c0_130 = arith.constant 0 : index
    %133 = vector.load %arg11[%c0_128, %c0_129, %c0_130] : memref<5x128x128xbf16, #tpu.memory_space<vmem>>, vector<1x128x128xbf16>
    %134 = vector.shape_cast %133 : vector<1x128x128xbf16> to vector<128x128xbf16>
    %cst_131 = arith.constant dense<0.000000e+00> : vector<8x128xf32>
    %135 = tpu.matmul %132, %134, %cst_131 {dimension_numbers = #tpu.dot_dimension_numbers<[1], [0], [0], [1], [0, 0, 1, 1], [], []>} : vector<8x128xbf16>, vector<128x128xbf16>, vector<8x128xf32> -> vector<8x128xf32>
    %c0_132 = arith.constant 0 : index
    %c0_133 = arith.constant 0 : index
    %c0_134 = arith.constant 0 : index
    %136 = vector.load %arg10[%c0_132, %c0_133, %c0_134] : memref<5x4x8xf32, #tpu.memory_space<vmem>>, vector<1x4x8xf32>
    %137 = vector.shape_cast %136 : vector<1x4x8xf32> to vector<4x8xf32>
    %cst_135 = arith.constant dense<0.000000e+00> : vector<4x128xf32>
    %138 = tpu.matmul %137, %135, %cst_135 {dimension_numbers = #tpu.dot_dimension_numbers<[1], [0], [0], [1], [0, 0, 1, 1], [], []>} : vector<4x8xf32>, vector<8x128xf32>, vector<4x128xf32> -> vector<4x128xf32>
    %c1_136 = arith.constant 1 : index
    %c0_137 = arith.constant 0 : index
    %c0_138 = arith.constant 0 : index
    %139 = vector.load %arg11[%c1_136, %c0_137, %c0_138] : memref<5x128x128xbf16, #tpu.memory_space<vmem>>, vector<1x128x128xbf16>
    %140 = vector.shape_cast %139 : vector<1x128x128xbf16> to vector<128x128xbf16>
    %cst_139 = arith.constant dense<0.000000e+00> : vector<8x128xf32>
    %141 = tpu.matmul %132, %140, %cst_139 {dimension_numbers = #tpu.dot_dimension_numbers<[1], [0], [0], [1], [0, 0, 1, 1], [], []>} : vector<8x128xbf16>, vector<128x128xbf16>, vector<8x128xf32> -> vector<8x128xf32>
    %c1_140 = arith.constant 1 : index
    %c0_141 = arith.constant 0 : index
    %c0_142 = arith.constant 0 : index
    %142 = vector.load %arg10[%c1_140, %c0_141, %c0_142] : memref<5x4x8xf32, #tpu.memory_space<vmem>>, vector<1x4x8xf32>
    %143 = vector.shape_cast %142 : vector<1x4x8xf32> to vector<4x8xf32>
    %cst_143 = arith.constant dense<0.000000e+00> : vector<4x128xf32>
    %144 = tpu.matmul %143, %141, %cst_143 {dimension_numbers = #tpu.dot_dimension_numbers<[1], [0], [0], [1], [0, 0, 1, 1], [], []>} : vector<4x8xf32>, vector<8x128xf32>, vector<4x128xf32> -> vector<4x128xf32>
    %145 = arith.addf %138, %144 : vector<4x128xf32>
    %c2_144 = arith.constant 2 : index
    %c0_145 = arith.constant 0 : index
    %c0_146 = arith.constant 0 : index
    %146 = vector.load %arg11[%c2_144, %c0_145, %c0_146] : memref<5x128x128xbf16, #tpu.memory_space<vmem>>, vector<1x128x128xbf16>
    %147 = vector.shape_cast %146 : vector<1x128x128xbf16> to vector<128x128xbf16>
    %cst_147 = arith.constant dense<0.000000e+00> : vector<8x128xf32>
    %148 = tpu.matmul %132, %147, %cst_147 {dimension_numbers = #tpu.dot_dimension_numbers<[1], [0], [0], [1], [0, 0, 1, 1], [], []>} : vector<8x128xbf16>, vector<128x128xbf16>, vector<8x128xf32> -> vector<8x128xf32>
    %c2_148 = arith.constant 2 : index
    %c0_149 = arith.constant 0 : index
    %c0_150 = arith.constant 0 : index
    %149 = vector.load %arg10[%c2_148, %c0_149, %c0_150] : memref<5x4x8xf32, #tpu.memory_space<vmem>>, vector<1x4x8xf32>
    %150 = vector.shape_cast %149 : vector<1x4x8xf32> to vector<4x8xf32>
    %cst_151 = arith.constant dense<0.000000e+00> : vector<4x128xf32>
    %151 = tpu.matmul %150, %148, %cst_151 {dimension_numbers = #tpu.dot_dimension_numbers<[1], [0], [0], [1], [0, 0, 1, 1], [], []>} : vector<4x8xf32>, vector<8x128xf32>, vector<4x128xf32> -> vector<4x128xf32>
    %152 = arith.addf %145, %151 : vector<4x128xf32>
    %c3_152 = arith.constant 3 : index
    %c0_153 = arith.constant 0 : index
    %c0_154 = arith.constant 0 : index
    %153 = vector.load %arg11[%c3_152, %c0_153, %c0_154] : memref<5x128x128xbf16, #tpu.memory_space<vmem>>, vector<1x128x128xbf16>
    %154 = vector.shape_cast %153 : vector<1x128x128xbf16> to vector<128x128xbf16>
    %cst_155 = arith.constant dense<0.000000e+00> : vector<8x128xf32>
    %155 = tpu.matmul %132, %154, %cst_155 {dimension_numbers = #tpu.dot_dimension_numbers<[1], [0], [0], [1], [0, 0, 1, 1], [], []>} : vector<8x128xbf16>, vector<128x128xbf16>, vector<8x128xf32> -> vector<8x128xf32>
    %c3_156 = arith.constant 3 : index
    %c0_157 = arith.constant 0 : index
    %c0_158 = arith.constant 0 : index
    %156 = vector.load %arg10[%c3_156, %c0_157, %c0_158] : memref<5x4x8xf32, #tpu.memory_space<vmem>>, vector<1x4x8xf32>
    %157 = vector.shape_cast %156 : vector<1x4x8xf32> to vector<4x8xf32>
    %cst_159 = arith.constant dense<0.000000e+00> : vector<4x128xf32>
    %158 = tpu.matmul %157, %155, %cst_159 {dimension_numbers = #tpu.dot_dimension_numbers<[1], [0], [0], [1], [0, 0, 1, 1], [], []>} : vector<4x8xf32>, vector<8x128xf32>, vector<4x128xf32> -> vector<4x128xf32>
    %159 = arith.addf %152, %158 : vector<4x128xf32>
    %c4_160 = arith.constant 4 : index
    %c0_161 = arith.constant 0 : index
    %c0_162 = arith.constant 0 : index
    %160 = vector.load %arg11[%c4_160, %c0_161, %c0_162] : memref<5x128x128xbf16, #tpu.memory_space<vmem>>, vector<1x128x128xbf16>
    %161 = vector.shape_cast %160 : vector<1x128x128xbf16> to vector<128x128xbf16>
    %cst_163 = arith.constant dense<0.000000e+00> : vector<8x128xf32>
    %162 = tpu.matmul %132, %161, %cst_163 {dimension_numbers = #tpu.dot_dimension_numbers<[1], [0], [0], [1], [0, 0, 1, 1], [], []>} : vector<8x128xbf16>, vector<128x128xbf16>, vector<8x128xf32> -> vector<8x128xf32>
    %c4_164 = arith.constant 4 : index
    %c0_165 = arith.constant 0 : index
    %c0_166 = arith.constant 0 : index
    %163 = vector.load %arg10[%c4_164, %c0_165, %c0_166] : memref<5x4x8xf32, #tpu.memory_space<vmem>>, vector<1x4x8xf32>
    %164 = vector.shape_cast %163 : vector<1x4x8xf32> to vector<4x8xf32>
    %cst_167 = arith.constant dense<0.000000e+00> : vector<4x128xf32>
    %165 = tpu.matmul %164, %162, %cst_167 {dimension_numbers = #tpu.dot_dimension_numbers<[1], [0], [0], [1], [0, 0, 1, 1], [], []>} : vector<4x8xf32>, vector<8x128xf32>, vector<4x128xf32> -> vector<4x128xf32>
    %166 = arith.addf %159, %165 : vector<4x128xf32>
    %c0_168 = arith.constant 0 : index
    %c0_169 = arith.constant 0 : index
    %167 = vector.load %arg12[%c0_168, %c0_169] : memref<1x128xf32, #tpu.memory_space<vmem>>, vector<1x128xf32>
    %168 = vector.broadcast %167 : vector<1x128xf32> to vector<4x128xf32>
    %169 = arith.addf %166, %168 : vector<4x128xf32>
    %cst_170 = arith.constant 0.000000e+00 : f32
    %170 = vector.broadcast %cst_170 : f32 to vector<4x128xf32>
    %171 = arith.cmpf ogt, %169, %170 : vector<4x128xf32>
    %172 = math.exp %169 : vector<4x128xf32>
    %cst_171 = arith.constant 1.000000e+00 : f32
    %173 = vector.broadcast %cst_171 : f32 to vector<4x128xf32>
    %174 = arith.subf %172, %173 : vector<4x128xf32>
    %175 = arith.select %171, %169, %174 : vector<4x128xi1>, vector<4x128xf32>
    %176 = arith.truncf %175 : vector<4x128xf32> to vector<4x128xbf16>
    %c0_172 = arith.constant 0 : index
    %c0_173 = arith.constant 0 : index
    %177 = vector.load %arg13[%c0_172, %c0_173] : memref<256x256xbf16, #tpu.memory_space<vmem>>, vector<256x256xbf16>
    %178 = vector.extract_strided_slice %176 {offsets = [0, 0], sizes = [2, 128], strides = [1, 1]} : vector<4x128xbf16> to vector<2x128xbf16>
    %179 = vector.extract_strided_slice %177 {offsets = [0, 0], sizes = [128, 256], strides = [1, 1]} : vector<256x256xbf16> to vector<128x256xbf16>
    %cst_174 = arith.constant dense<0.000000e+00> : vector<2x256xf32>
    %180 = tpu.matmul %178, %179, %cst_174 {dimension_numbers = #tpu.dot_dimension_numbers<[1], [0], [0], [1], [0, 0, 1, 1], [], []>} : vector<2x128xbf16>, vector<128x256xbf16>, vector<2x256xf32> -> vector<2x256xf32>
    %181 = vector.extract_strided_slice %176 {offsets = [2, 0], sizes = [2, 128], strides = [1, 1]} : vector<4x128xbf16> to vector<2x128xbf16>
    %182 = vector.extract_strided_slice %177 {offsets = [128, 0], sizes = [128, 256], strides = [1, 1]} : vector<256x256xbf16> to vector<128x256xbf16>
    %cst_175 = arith.constant dense<0.000000e+00> : vector<2x256xf32>
    %183 = tpu.matmul %181, %182, %cst_175 {dimension_numbers = #tpu.dot_dimension_numbers<[1], [0], [0], [1], [0, 0, 1, 1], [], []>} : vector<2x128xbf16>, vector<128x256xbf16>, vector<2x256xf32> -> vector<2x256xf32>
    %184 = arith.addf %180, %183 : vector<2x256xf32>
    %c0_176 = arith.constant 0 : index
    %c0_177 = arith.constant 0 : index
    %185 = vector.load %arg14[%c0_176, %c0_177] : memref<1x256xf32, #tpu.memory_space<vmem>>, vector<1x256xf32>
    %186 = vector.broadcast %185 : vector<1x256xf32> to vector<2x256xf32>
    %187 = arith.addf %184, %186 : vector<2x256xf32>
    %cst_178 = arith.constant 0.000000e+00 : f32
    %188 = vector.broadcast %cst_178 : f32 to vector<2x256xf32>
    %189 = arith.cmpf ogt, %187, %188 : vector<2x256xf32>
    %190 = math.exp %187 : vector<2x256xf32>
    %cst_179 = arith.constant 1.000000e+00 : f32
    %191 = vector.broadcast %cst_179 : f32 to vector<2x256xf32>
    %192 = arith.subf %190, %191 : vector<2x256xf32>
    %193 = arith.select %189, %187, %192 : vector<2x256xi1>, vector<2x256xf32>
    %194 = arith.truncf %193 : vector<2x256xf32> to vector<2x256xbf16>
    %c0_180 = arith.constant 0 : index
    %c0_181 = arith.constant 0 : index
    %195 = vector.load %arg15[%c0_180, %c0_181] : memref<256x256xbf16, #tpu.memory_space<vmem>>, vector<256x256xbf16>
    %cst_182 = arith.constant dense<0.000000e+00> : vector<2x256xf32>
    %196 = tpu.matmul %194, %195, %cst_182 {dimension_numbers = #tpu.dot_dimension_numbers<[1], [0], [0], [1], [0, 0, 1, 1], [], []>} : vector<2x256xbf16>, vector<256x256xbf16>, vector<2x256xf32> -> vector<2x256xf32>
    %c0_183 = arith.constant 0 : index
    %c0_184 = arith.constant 0 : index
    %197 = vector.load %arg16[%c0_183, %c0_184] : memref<1x256xf32, #tpu.memory_space<vmem>>, vector<1x256xf32>
    %198 = vector.broadcast %197 : vector<1x256xf32> to vector<2x256xf32>
    %199 = arith.addf %196, %198 : vector<2x256xf32>
    %cst_185 = arith.constant 0.000000e+00 : f32
    %200 = vector.broadcast %cst_185 : f32 to vector<2x256xf32>
    %201 = arith.cmpf ogt, %199, %200 : vector<2x256xf32>
    %202 = math.exp %199 : vector<2x256xf32>
    %cst_186 = arith.constant 1.000000e+00 : f32
    %203 = vector.broadcast %cst_186 : f32 to vector<2x256xf32>
    %204 = arith.subf %202, %203 : vector<2x256xf32>
    %205 = arith.select %201, %199, %204 : vector<2x256xi1>, vector<2x256xf32>
    %206 = arith.truncf %205 : vector<2x256xf32> to vector<2x256xbf16>
    %c0_187 = arith.constant 0 : index
    %c0_188 = arith.constant 0 : index
    %207 = vector.load %arg17[%c0_187, %c0_188] : memref<256x128xbf16, #tpu.memory_space<vmem>>, vector<256x128xbf16>
    %cst_189 = arith.constant dense<0.000000e+00> : vector<2x128xf32>
    %208 = tpu.matmul %206, %207, %cst_189 {dimension_numbers = #tpu.dot_dimension_numbers<[1], [0], [0], [1], [0, 0, 1, 1], [], []>} : vector<2x256xbf16>, vector<256x128xbf16>, vector<2x128xf32> -> vector<2x128xf32>
    %c0_190 = arith.constant 0 : index
    %c0_191 = arith.constant 0 : index
    %209 = vector.load %arg18[%c0_190, %c0_191] : memref<1x128xf32, #tpu.memory_space<vmem>>, vector<1x128xf32>
    %210 = vector.broadcast %209 : vector<1x128xf32> to vector<2x128xf32>
    %211 = arith.addf %208, %210 : vector<2x128xf32>
    %cst_192 = arith.constant 0.000000e+00 : f32
    %212 = vector.broadcast %cst_192 : f32 to vector<2x128xf32>
    %213 = arith.subf %212, %211 : vector<2x128xf32>
    %214 = math.exp %213 : vector<2x128xf32>
    %cst_193 = arith.constant 1.000000e+00 : f32
    %215 = vector.broadcast %cst_193 : f32 to vector<2x128xf32>
    %216 = arith.addf %215, %214 : vector<2x128xf32>
    %cst_194 = arith.constant 1.000000e+00 : f32
    %217 = vector.broadcast %cst_194 : f32 to vector<2x128xf32>
    %218 = arith.divf %217, %216 : vector<2x128xf32>
    %c0_195 = arith.constant 0 : index
    %c0_196 = arith.constant 0 : index
    %219 = vector.load %arg19[%c0_195, %c0_196] : memref<2x128xf32, #tpu.memory_space<vmem>>, vector<2x128xf32>
    tpu.vector_store %arg19[%c0_195, %c0_196], %218 {strides = array<i32>} : memref<2x128xf32, #tpu.memory_space<vmem>>, vector<2x128xf32>,
    return
  }
}

module attributes {stable_mosaic.version = 11 : i64} {
  func.func @_decoder_kernel(%arg0: memref<2x128xbf16, #tpu.memory_space<vmem>>, %arg1: memref<128x256xbf16, #tpu.memory_space<vmem>>, %arg2: memref<1x256xf32, #tpu.memory_space<vmem>>, %arg3: memref<256x256xbf16, #tpu.memory_space<vmem>>, %arg4: memref<1x256xf32, #tpu.memory_space<vmem>>, %arg5: memref<256x256xbf16, #tpu.memory_space<vmem>>, %arg6: memref<1x256xf32, #tpu.memory_space<vmem>>, %arg7: memref<5x8x2xf32, #tpu.memory_space<vmem>>, %arg8: memref<5x8x2xf32, #tpu.memory_space<vmem>>, %arg9: memref<5x128x256xbf16, #tpu.memory_space<vmem>>, %arg10: memref<1x256xf32, #tpu.memory_space<vmem>>, %arg11: memref<5x16x8xf32, #tpu.memory_space<vmem>>, %arg12: memref<5x256x256xbf16, #tpu.memory_space<vmem>>, %arg13: memref<1x256xf32, #tpu.memory_space<vmem>>, %arg14: memref<5x32x16xf32, #tpu.memory_space<vmem>>, %arg15: memref<5x256x256xbf16, #tpu.memory_space<vmem>>, %arg16: memref<1x256xf32, #tpu.memory_space<vmem>>, %arg17: memref<5x32x32xf32, #tpu.memory_space<vmem>>, %arg18: memref<5x256x128xbf16, #tpu.memory_space<vmem>>, %arg19: memref<1x128xf32, #tpu.memory_space<vmem>>, %arg20: memref<5x32x32xf32, #tpu.memory_space<vmem>>, %arg21: memref<5x128x128xbf16, #tpu.memory_space<vmem>>, %arg22: memref<1x128xf32, #tpu.memory_space<vmem>>, %arg23: memref<32x128xf32, #tpu.memory_space<vmem>>) attributes {dimension_semantics = [], scalar_prefetch = 0 : i64, scratch_operands = 0 : i64, tpu.core_type = #tpu.core_type<tc>} {
    %c0 = arith.constant 0 : index
    %c0_0 = arith.constant 0 : index
    %0 = vector.load %arg0[%c0, %c0_0] : memref<2x128xbf16, #tpu.memory_space<vmem>>, vector<2x128xbf16>
    %c0_1 = arith.constant 0 : index
    %c0_2 = arith.constant 0 : index
    %1 = vector.load %arg1[%c0_1, %c0_2] : memref<128x256xbf16, #tpu.memory_space<vmem>>, vector<128x256xbf16>
    %cst = arith.constant dense<0.000000e+00> : vector<2x256xf32>
    %2 = tpu.matmul %0, %1, %cst {dimension_numbers = #tpu.dot_dimension_numbers<[1], [0], [0], [1], [0, 0, 1, 1], [], []>} : vector<2x128xbf16>, vector<128x256xbf16>, vector<2x256xf32> -> vector<2x256xf32>
    %c0_3 = arith.constant 0 : index
    %c0_4 = arith.constant 0 : index
    %3 = vector.load %arg2[%c0_3, %c0_4] : memref<1x256xf32, #tpu.memory_space<vmem>>, vector<1x256xf32>
    %4 = vector.broadcast %3 : vector<1x256xf32> to vector<2x256xf32>
    %5 = arith.addf %2, %4 : vector<2x256xf32>
    %cst_5 = arith.constant 0.000000e+00 : f32
    %6 = vector.broadcast %cst_5 : f32 to vector<2x256xf32>
    %7 = arith.cmpf ogt, %5, %6 : vector<2x256xf32>
    %8 = math.exp %5 : vector<2x256xf32>
    %cst_6 = arith.constant 1.000000e+00 : f32
    %9 = vector.broadcast %cst_6 : f32 to vector<2x256xf32>
    %10 = arith.subf %8, %9 : vector<2x256xf32>
    %11 = arith.select %7, %5, %10 : vector<2x256xi1>, vector<2x256xf32>
    %12 = arith.truncf %11 : vector<2x256xf32> to vector<2x256xbf16>
    %c0_7 = arith.constant 0 : index
    %c0_8 = arith.constant 0 : index
    %13 = vector.load %arg3[%c0_7, %c0_8] : memref<256x256xbf16, #tpu.memory_space<vmem>>, vector<256x256xbf16>
    %cst_9 = arith.constant dense<0.000000e+00> : vector<2x256xf32>
    %14 = tpu.matmul %12, %13, %cst_9 {dimension_numbers = #tpu.dot_dimension_numbers<[1], [0], [0], [1], [0, 0, 1, 1], [], []>} : vector<2x256xbf16>, vector<256x256xbf16>, vector<2x256xf32> -> vector<2x256xf32>
    %c0_10 = arith.constant 0 : index
    %c0_11 = arith.constant 0 : index
    %15 = vector.load %arg4[%c0_10, %c0_11] : memref<1x256xf32, #tpu.memory_space<vmem>>, vector<1x256xf32>
    %16 = vector.broadcast %15 : vector<1x256xf32> to vector<2x256xf32>
    %17 = arith.addf %14, %16 : vector<2x256xf32>
    %cst_12 = arith.constant 0.000000e+00 : f32
    %18 = vector.broadcast %cst_12 : f32 to vector<2x256xf32>
    %19 = arith.cmpf ogt, %17, %18 : vector<2x256xf32>
    %20 = math.exp %17 : vector<2x256xf32>
    %cst_13 = arith.constant 1.000000e+00 : f32
    %21 = vector.broadcast %cst_13 : f32 to vector<2x256xf32>
    %22 = arith.subf %20, %21 : vector<2x256xf32>
    %23 = arith.select %19, %17, %22 : vector<2x256xi1>, vector<2x256xf32>
    %24 = arith.truncf %23 : vector<2x256xf32> to vector<2x256xbf16>
    %c0_14 = arith.constant 0 : index
    %c0_15 = arith.constant 0 : index
    %25 = vector.load %arg5[%c0_14, %c0_15] : memref<256x256xbf16, #tpu.memory_space<vmem>>, vector<256x256xbf16>
    %cst_16 = arith.constant dense<0.000000e+00> : vector<2x256xf32>
    %26 = tpu.matmul %24, %25, %cst_16 {dimension_numbers = #tpu.dot_dimension_numbers<[1], [0], [0], [1], [0, 0, 1, 1], [], []>} : vector<2x256xbf16>, vector<256x256xbf16>, vector<2x256xf32> -> vector<2x256xf32>
    %c0_17 = arith.constant 0 : index
    %c0_18 = arith.constant 0 : index
    %27 = vector.load %arg6[%c0_17, %c0_18] : memref<1x256xf32, #tpu.memory_space<vmem>>, vector<1x256xf32>
    %28 = vector.broadcast %27 : vector<1x256xf32> to vector<2x256xf32>
    %29 = arith.addf %26, %28 : vector<2x256xf32>
    %cst_19 = arith.constant 0.000000e+00 : f32
    %30 = vector.broadcast %cst_19 : f32 to vector<2x256xf32>
    %31 = arith.cmpf ogt, %29, %30 : vector<2x256xf32>
    %32 = math.exp %29 : vector<2x256xf32>
    %cst_20 = arith.constant 1.000000e+00 : f32
    %33 = vector.broadcast %cst_20 : f32 to vector<2x256xf32>
    %34 = arith.subf %32, %33 : vector<2x256xf32>
    %35 = arith.select %31, %29, %34 : vector<2x256xi1>, vector<2x256xf32>
    %36 = arith.truncf %35 : vector<2x256xf32> to vector<2x256xbf16>
    %37 = vector.extract_strided_slice %36 {offsets = [0, 0], sizes = [2, 128], strides = [1, 1]} : vector<2x256xbf16> to vector<2x128xbf16>
    %38 = vector.extract_strided_slice %36 {offsets = [0, 128], sizes = [2, 128], strides = [1, 1]} : vector<2x256xbf16> to vector<2x128xbf16>
    %c0_21 = arith.constant 0 : index
    %c0_22 = arith.constant 0 : index
    %c0_23 = arith.constant 0 : index
    %39 = vector.load %arg9[%c0_21, %c0_22, %c0_23] : memref<5x128x256xbf16, #tpu.memory_space<vmem>>, vector<1x128x256xbf16>
    %40 = vector.shape_cast %39 : vector<1x128x256xbf16> to vector<128x256xbf16>
    %cst_24 = arith.constant dense<0.000000e+00> : vector<2x256xf32>
    %41 = tpu.matmul %37, %40, %cst_24 {dimension_numbers = #tpu.dot_dimension_numbers<[1], [0], [0], [1], [0, 0, 1, 1], [], []>} : vector<2x128xbf16>, vector<128x256xbf16>, vector<2x256xf32> -> vector<2x256xf32>
    %c0_25 = arith.constant 0 : index
    %c0_26 = arith.constant 0 : index
    %c0_27 = arith.constant 0 : index
    %42 = vector.load %arg9[%c0_25, %c0_26, %c0_27] : memref<5x128x256xbf16, #tpu.memory_space<vmem>>, vector<1x128x256xbf16>
    %43 = vector.shape_cast %42 : vector<1x128x256xbf16> to vector<128x256xbf16>
    %cst_28 = arith.constant dense<0.000000e+00> : vector<2x256xf32>
    %44 = tpu.matmul %38, %43, %cst_28 {dimension_numbers = #tpu.dot_dimension_numbers<[1], [0], [0], [1], [0, 0, 1, 1], [], []>} : vector<2x128xbf16>, vector<128x256xbf16>, vector<2x256xf32> -> vector<2x256xf32>
    %c0_29 = arith.constant 0 : index
    %c0_30 = arith.constant 0 : index
    %c0_31 = arith.constant 0 : index
    %45 = vector.load %arg7[%c0_29, %c0_30, %c0_31] : memref<5x8x2xf32, #tpu.memory_space<vmem>>, vector<1x8x2xf32>
    %46 = vector.shape_cast %45 : vector<1x8x2xf32> to vector<8x2xf32>
    %cst_32 = arith.constant dense<0.000000e+00> : vector<8x256xf32>
    %47 = tpu.matmul %46, %41, %cst_32 {dimension_numbers = #tpu.dot_dimension_numbers<[1], [0], [0], [1], [0, 0, 1, 1], [], []>} : vector<8x2xf32>, vector<2x256xf32>, vector<8x256xf32> -> vector<8x256xf32>
    %c0_33 = arith.constant 0 : index
    %c0_34 = arith.constant 0 : index
    %c0_35 = arith.constant 0 : index
    %48 = vector.load %arg8[%c0_33, %c0_34, %c0_35] : memref<5x8x2xf32, #tpu.memory_space<vmem>>, vector<1x8x2xf32>
    %49 = vector.shape_cast %48 : vector<1x8x2xf32> to vector<8x2xf32>
    %cst_36 = arith.constant dense<0.000000e+00> : vector<8x256xf32>
    %50 = tpu.matmul %49, %44, %cst_36 {dimension_numbers = #tpu.dot_dimension_numbers<[1], [0], [0], [1], [0, 0, 1, 1], [], []>} : vector<8x2xf32>, vector<2x256xf32>, vector<8x256xf32> -> vector<8x256xf32>
    %51 = arith.addf %47, %50 : vector<8x256xf32>
    %c1 = arith.constant 1 : index
    %c0_37 = arith.constant 0 : index
    %c0_38 = arith.constant 0 : index
    %52 = vector.load %arg9[%c1, %c0_37, %c0_38] : memref<5x128x256xbf16, #tpu.memory_space<vmem>>, vector<1x128x256xbf16>
    %53 = vector.shape_cast %52 : vector<1x128x256xbf16> to vector<128x256xbf16>
    %cst_39 = arith.constant dense<0.000000e+00> : vector<2x256xf32>
    %54 = tpu.matmul %37, %53, %cst_39 {dimension_numbers = #tpu.dot_dimension_numbers<[1], [0], [0], [1], [0, 0, 1, 1], [], []>} : vector<2x128xbf16>, vector<128x256xbf16>, vector<2x256xf32> -> vector<2x256xf32>
    %c1_40 = arith.constant 1 : index
    %c0_41 = arith.constant 0 : index
    %c0_42 = arith.constant 0 : index
    %55 = vector.load %arg9[%c1_40, %c0_41, %c0_42] : memref<5x128x256xbf16, #tpu.memory_space<vmem>>, vector<1x128x256xbf16>
    %56 = vector.shape_cast %55 : vector<1x128x256xbf16> to vector<128x256xbf16>
    %cst_43 = arith.constant dense<0.000000e+00> : vector<2x256xf32>
    %57 = tpu.matmul %38, %56, %cst_43 {dimension_numbers = #tpu.dot_dimension_numbers<[1], [0], [0], [1], [0, 0, 1, 1], [], []>} : vector<2x128xbf16>, vector<128x256xbf16>, vector<2x256xf32> -> vector<2x256xf32>
    %c1_44 = arith.constant 1 : index
    %c0_45 = arith.constant 0 : index
    %c0_46 = arith.constant 0 : index
    %58 = vector.load %arg7[%c1_44, %c0_45, %c0_46] : memref<5x8x2xf32, #tpu.memory_space<vmem>>, vector<1x8x2xf32>
    %59 = vector.shape_cast %58 : vector<1x8x2xf32> to vector<8x2xf32>
    %cst_47 = arith.constant dense<0.000000e+00> : vector<8x256xf32>
    %60 = tpu.matmul %59, %54, %cst_47 {dimension_numbers = #tpu.dot_dimension_numbers<[1], [0], [0], [1], [0, 0, 1, 1], [], []>} : vector<8x2xf32>, vector<2x256xf32>, vector<8x256xf32> -> vector<8x256xf32>
    %c1_48 = arith.constant 1 : index
    %c0_49 = arith.constant 0 : index
    %c0_50 = arith.constant 0 : index
    %61 = vector.load %arg8[%c1_48, %c0_49, %c0_50] : memref<5x8x2xf32, #tpu.memory_space<vmem>>, vector<1x8x2xf32>
    %62 = vector.shape_cast %61 : vector<1x8x2xf32> to vector<8x2xf32>
    %cst_51 = arith.constant dense<0.000000e+00> : vector<8x256xf32>
    %63 = tpu.matmul %62, %57, %cst_51 {dimension_numbers = #tpu.dot_dimension_numbers<[1], [0], [0], [1], [0, 0, 1, 1], [], []>} : vector<8x2xf32>, vector<2x256xf32>, vector<8x256xf32> -> vector<8x256xf32>
    %64 = arith.addf %60, %63 : vector<8x256xf32>
    %65 = arith.addf %51, %64 : vector<8x256xf32>
    %c2 = arith.constant 2 : index
    %c0_52 = arith.constant 0 : index
    %c0_53 = arith.constant 0 : index
    %66 = vector.load %arg9[%c2, %c0_52, %c0_53] : memref<5x128x256xbf16, #tpu.memory_space<vmem>>, vector<1x128x256xbf16>
    %67 = vector.shape_cast %66 : vector<1x128x256xbf16> to vector<128x256xbf16>
    %cst_54 = arith.constant dense<0.000000e+00> : vector<2x256xf32>
    %68 = tpu.matmul %37, %67, %cst_54 {dimension_numbers = #tpu.dot_dimension_numbers<[1], [0], [0], [1], [0, 0, 1, 1], [], []>} : vector<2x128xbf16>, vector<128x256xbf16>, vector<2x256xf32> -> vector<2x256xf32>
    %c2_55 = arith.constant 2 : index
    %c0_56 = arith.constant 0 : index
    %c0_57 = arith.constant 0 : index
    %69 = vector.load %arg9[%c2_55, %c0_56, %c0_57] : memref<5x128x256xbf16, #tpu.memory_space<vmem>>, vector<1x128x256xbf16>
    %70 = vector.shape_cast %69 : vector<1x128x256xbf16> to vector<128x256xbf16>
    %cst_58 = arith.constant dense<0.000000e+00> : vector<2x256xf32>
    %71 = tpu.matmul %38, %70, %cst_58 {dimension_numbers = #tpu.dot_dimension_numbers<[1], [0], [0], [1], [0, 0, 1, 1], [], []>} : vector<2x128xbf16>, vector<128x256xbf16>, vector<2x256xf32> -> vector<2x256xf32>
    %c2_59 = arith.constant 2 : index
    %c0_60 = arith.constant 0 : index
    %c0_61 = arith.constant 0 : index
    %72 = vector.load %arg7[%c2_59, %c0_60, %c0_61] : memref<5x8x2xf32, #tpu.memory_space<vmem>>, vector<1x8x2xf32>
    %73 = vector.shape_cast %72 : vector<1x8x2xf32> to vector<8x2xf32>
    %cst_62 = arith.constant dense<0.000000e+00> : vector<8x256xf32>
    %74 = tpu.matmul %73, %68, %cst_62 {dimension_numbers = #tpu.dot_dimension_numbers<[1], [0], [0], [1], [0, 0, 1, 1], [], []>} : vector<8x2xf32>, vector<2x256xf32>, vector<8x256xf32> -> vector<8x256xf32>
    %c2_63 = arith.constant 2 : index
    %c0_64 = arith.constant 0 : index
    %c0_65 = arith.constant 0 : index
    %75 = vector.load %arg8[%c2_63, %c0_64, %c0_65] : memref<5x8x2xf32, #tpu.memory_space<vmem>>, vector<1x8x2xf32>
    %76 = vector.shape_cast %75 : vector<1x8x2xf32> to vector<8x2xf32>
    %cst_66 = arith.constant dense<0.000000e+00> : vector<8x256xf32>
    %77 = tpu.matmul %76, %71, %cst_66 {dimension_numbers = #tpu.dot_dimension_numbers<[1], [0], [0], [1], [0, 0, 1, 1], [], []>} : vector<8x2xf32>, vector<2x256xf32>, vector<8x256xf32> -> vector<8x256xf32>
    %78 = arith.addf %74, %77 : vector<8x256xf32>
    %79 = arith.addf %65, %78 : vector<8x256xf32>
    %c3 = arith.constant 3 : index
    %c0_67 = arith.constant 0 : index
    %c0_68 = arith.constant 0 : index
    %80 = vector.load %arg9[%c3, %c0_67, %c0_68] : memref<5x128x256xbf16, #tpu.memory_space<vmem>>, vector<1x128x256xbf16>
    %81 = vector.shape_cast %80 : vector<1x128x256xbf16> to vector<128x256xbf16>
    %cst_69 = arith.constant dense<0.000000e+00> : vector<2x256xf32>
    %82 = tpu.matmul %37, %81, %cst_69 {dimension_numbers = #tpu.dot_dimension_numbers<[1], [0], [0], [1], [0, 0, 1, 1], [], []>} : vector<2x128xbf16>, vector<128x256xbf16>, vector<2x256xf32> -> vector<2x256xf32>
    %c3_70 = arith.constant 3 : index
    %c0_71 = arith.constant 0 : index
    %c0_72 = arith.constant 0 : index
    %83 = vector.load %arg9[%c3_70, %c0_71, %c0_72] : memref<5x128x256xbf16, #tpu.memory_space<vmem>>, vector<1x128x256xbf16>
    %84 = vector.shape_cast %83 : vector<1x128x256xbf16> to vector<128x256xbf16>
    %cst_73 = arith.constant dense<0.000000e+00> : vector<2x256xf32>
    %85 = tpu.matmul %38, %84, %cst_73 {dimension_numbers = #tpu.dot_dimension_numbers<[1], [0], [0], [1], [0, 0, 1, 1], [], []>} : vector<2x128xbf16>, vector<128x256xbf16>, vector<2x256xf32> -> vector<2x256xf32>
    %c3_74 = arith.constant 3 : index
    %c0_75 = arith.constant 0 : index
    %c0_76 = arith.constant 0 : index
    %86 = vector.load %arg7[%c3_74, %c0_75, %c0_76] : memref<5x8x2xf32, #tpu.memory_space<vmem>>, vector<1x8x2xf32>
    %87 = vector.shape_cast %86 : vector<1x8x2xf32> to vector<8x2xf32>
    %cst_77 = arith.constant dense<0.000000e+00> : vector<8x256xf32>
    %88 = tpu.matmul %87, %82, %cst_77 {dimension_numbers = #tpu.dot_dimension_numbers<[1], [0], [0], [1], [0, 0, 1, 1], [], []>} : vector<8x2xf32>, vector<2x256xf32>, vector<8x256xf32> -> vector<8x256xf32>
    %c3_78 = arith.constant 3 : index
    %c0_79 = arith.constant 0 : index
    %c0_80 = arith.constant 0 : index
    %89 = vector.load %arg8[%c3_78, %c0_79, %c0_80] : memref<5x8x2xf32, #tpu.memory_space<vmem>>, vector<1x8x2xf32>
    %90 = vector.shape_cast %89 : vector<1x8x2xf32> to vector<8x2xf32>
    %cst_81 = arith.constant dense<0.000000e+00> : vector<8x256xf32>
    %91 = tpu.matmul %90, %85, %cst_81 {dimension_numbers = #tpu.dot_dimension_numbers<[1], [0], [0], [1], [0, 0, 1, 1], [], []>} : vector<8x2xf32>, vector<2x256xf32>, vector<8x256xf32> -> vector<8x256xf32>
    %92 = arith.addf %88, %91 : vector<8x256xf32>
    %93 = arith.addf %79, %92 : vector<8x256xf32>
    %c4 = arith.constant 4 : index
    %c0_82 = arith.constant 0 : index
    %c0_83 = arith.constant 0 : index
    %94 = vector.load %arg9[%c4, %c0_82, %c0_83] : memref<5x128x256xbf16, #tpu.memory_space<vmem>>, vector<1x128x256xbf16>
    %95 = vector.shape_cast %94 : vector<1x128x256xbf16> to vector<128x256xbf16>
    %cst_84 = arith.constant dense<0.000000e+00> : vector<2x256xf32>
    %96 = tpu.matmul %37, %95, %cst_84 {dimension_numbers = #tpu.dot_dimension_numbers<[1], [0], [0], [1], [0, 0, 1, 1], [], []>} : vector<2x128xbf16>, vector<128x256xbf16>, vector<2x256xf32> -> vector<2x256xf32>
    %c4_85 = arith.constant 4 : index
    %c0_86 = arith.constant 0 : index
    %c0_87 = arith.constant 0 : index
    %97 = vector.load %arg9[%c4_85, %c0_86, %c0_87] : memref<5x128x256xbf16, #tpu.memory_space<vmem>>, vector<1x128x256xbf16>
    %98 = vector.shape_cast %97 : vector<1x128x256xbf16> to vector<128x256xbf16>
    %cst_88 = arith.constant dense<0.000000e+00> : vector<2x256xf32>
    %99 = tpu.matmul %38, %98, %cst_88 {dimension_numbers = #tpu.dot_dimension_numbers<[1], [0], [0], [1], [0, 0, 1, 1], [], []>} : vector<2x128xbf16>, vector<128x256xbf16>, vector<2x256xf32> -> vector<2x256xf32>
    %c4_89 = arith.constant 4 : index
    %c0_90 = arith.constant 0 : index
    %c0_91 = arith.constant 0 : index
    %100 = vector.load %arg7[%c4_89, %c0_90, %c0_91] : memref<5x8x2xf32, #tpu.memory_space<vmem>>, vector<1x8x2xf32>
    %101 = vector.shape_cast %100 : vector<1x8x2xf32> to vector<8x2xf32>
    %cst_92 = arith.constant dense<0.000000e+00> : vector<8x256xf32>
    %102 = tpu.matmul %101, %96, %cst_92 {dimension_numbers = #tpu.dot_dimension_numbers<[1], [0], [0], [1], [0, 0, 1, 1], [], []>} : vector<8x2xf32>, vector<2x256xf32>, vector<8x256xf32> -> vector<8x256xf32>
    %c4_93 = arith.constant 4 : index
    %c0_94 = arith.constant 0 : index
    %c0_95 = arith.constant 0 : index
    %103 = vector.load %arg8[%c4_93, %c0_94, %c0_95] : memref<5x8x2xf32, #tpu.memory_space<vmem>>, vector<1x8x2xf32>
    %104 = vector.shape_cast %103 : vector<1x8x2xf32> to vector<8x2xf32>
    %cst_96 = arith.constant dense<0.000000e+00> : vector<8x256xf32>
    %105 = tpu.matmul %104, %99, %cst_96 {dimension_numbers = #tpu.dot_dimension_numbers<[1], [0], [0], [1], [0, 0, 1, 1], [], []>} : vector<8x2xf32>, vector<2x256xf32>, vector<8x256xf32> -> vector<8x256xf32>
    %106 = arith.addf %102, %105 : vector<8x256xf32>
    %107 = arith.addf %93, %106 : vector<8x256xf32>
    %c0_97 = arith.constant 0 : index
    %c0_98 = arith.constant 0 : index
    %108 = vector.load %arg10[%c0_97, %c0_98] : memref<1x256xf32, #tpu.memory_space<vmem>>, vector<1x256xf32>
    %109 = vector.broadcast %108 : vector<1x256xf32> to vector<8x256xf32>
    %110 = arith.addf %107, %109 : vector<8x256xf32>
    %cst_99 = arith.constant 0.000000e+00 : f32
    %111 = vector.broadcast %cst_99 : f32 to vector<8x256xf32>
    %112 = arith.cmpf ogt, %110, %111 : vector<8x256xf32>
    %113 = math.exp %110 : vector<8x256xf32>
    %cst_100 = arith.constant 1.000000e+00 : f32
    %114 = vector.broadcast %cst_100 : f32 to vector<8x256xf32>
    %115 = arith.subf %113, %114 : vector<8x256xf32>
    %116 = arith.select %112, %110, %115 : vector<8x256xi1>, vector<8x256xf32>
    %117 = arith.truncf %116 : vector<8x256xf32> to vector<8x256xbf16>
    %c0_101 = arith.constant 0 : index
    %c0_102 = arith.constant 0 : index
    %c0_103 = arith.constant 0 : index
    %118 = vector.load %arg12[%c0_101, %c0_102, %c0_103] : memref<5x256x256xbf16, #tpu.memory_space<vmem>>, vector<1x256x256xbf16>
    %119 = vector.shape_cast %118 : vector<1x256x256xbf16> to vector<256x256xbf16>
    %cst_104 = arith.constant dense<0.000000e+00> : vector<8x256xf32>
    %120 = tpu.matmul %117, %119, %cst_104 {dimension_numbers = #tpu.dot_dimension_numbers<[1], [0], [0], [1], [0, 0, 1, 1], [], []>} : vector<8x256xbf16>, vector<256x256xbf16>, vector<8x256xf32> -> vector<8x256xf32>
    %c0_105 = arith.constant 0 : index
    %c0_106 = arith.constant 0 : index
    %c0_107 = arith.constant 0 : index
    %121 = vector.load %arg11[%c0_105, %c0_106, %c0_107] : memref<5x16x8xf32, #tpu.memory_space<vmem>>, vector<1x16x8xf32>
    %122 = vector.shape_cast %121 : vector<1x16x8xf32> to vector<16x8xf32>
    %cst_108 = arith.constant dense<0.000000e+00> : vector<16x256xf32>
    %123 = tpu.matmul %122, %120, %cst_108 {dimension_numbers = #tpu.dot_dimension_numbers<[1], [0], [0], [1], [0, 0, 1, 1], [], []>} : vector<16x8xf32>, vector<8x256xf32>, vector<16x256xf32> -> vector<16x256xf32>
    %c1_109 = arith.constant 1 : index
    %c0_110 = arith.constant 0 : index
    %c0_111 = arith.constant 0 : index
    %124 = vector.load %arg12[%c1_109, %c0_110, %c0_111] : memref<5x256x256xbf16, #tpu.memory_space<vmem>>, vector<1x256x256xbf16>
    %125 = vector.shape_cast %124 : vector<1x256x256xbf16> to vector<256x256xbf16>
    %cst_112 = arith.constant dense<0.000000e+00> : vector<8x256xf32>
    %126 = tpu.matmul %117, %125, %cst_112 {dimension_numbers = #tpu.dot_dimension_numbers<[1], [0], [0], [1], [0, 0, 1, 1], [], []>} : vector<8x256xbf16>, vector<256x256xbf16>, vector<8x256xf32> -> vector<8x256xf32>
    %c1_113 = arith.constant 1 : index
    %c0_114 = arith.constant 0 : index
    %c0_115 = arith.constant 0 : index
    %127 = vector.load %arg11[%c1_113, %c0_114, %c0_115] : memref<5x16x8xf32, #tpu.memory_space<vmem>>, vector<1x16x8xf32>
    %128 = vector.shape_cast %127 : vector<1x16x8xf32> to vector<16x8xf32>
    %cst_116 = arith.constant dense<0.000000e+00> : vector<16x256xf32>
    %129 = tpu.matmul %128, %126, %cst_116 {dimension_numbers = #tpu.dot_dimension_numbers<[1], [0], [0], [1], [0, 0, 1, 1], [], []>} : vector<16x8xf32>, vector<8x256xf32>, vector<16x256xf32> -> vector<16x256xf32>
    %130 = arith.addf %123, %129 : vector<16x256xf32>
    %c2_117 = arith.constant 2 : index
    %c0_118 = arith.constant 0 : index
    %c0_119 = arith.constant 0 : index
    %131 = vector.load %arg12[%c2_117, %c0_118, %c0_119] : memref<5x256x256xbf16, #tpu.memory_space<vmem>>, vector<1x256x256xbf16>
    %132 = vector.shape_cast %131 : vector<1x256x256xbf16> to vector<256x256xbf16>
    %cst_120 = arith.constant dense<0.000000e+00> : vector<8x256xf32>
    %133 = tpu.matmul %117, %132, %cst_120 {dimension_numbers = #tpu.dot_dimension_numbers<[1], [0], [0], [1], [0, 0, 1, 1], [], []>} : vector<8x256xbf16>, vector<256x256xbf16>, vector<8x256xf32> -> vector<8x256xf32>
    %c2_121 = arith.constant 2 : index
    %c0_122 = arith.constant 0 : index
    %c0_123 = arith.constant 0 : index
    %134 = vector.load %arg11[%c2_121, %c0_122, %c0_123] : memref<5x16x8xf32, #tpu.memory_space<vmem>>, vector<1x16x8xf32>
    %135 = vector.shape_cast %134 : vector<1x16x8xf32> to vector<16x8xf32>
    %cst_124 = arith.constant dense<0.000000e+00> : vector<16x256xf32>
    %136 = tpu.matmul %135, %133, %cst_124 {dimension_numbers = #tpu.dot_dimension_numbers<[1], [0], [0], [1], [0, 0, 1, 1], [], []>} : vector<16x8xf32>, vector<8x256xf32>, vector<16x256xf32> -> vector<16x256xf32>
    %137 = arith.addf %130, %136 : vector<16x256xf32>
    %c3_125 = arith.constant 3 : index
    %c0_126 = arith.constant 0 : index
    %c0_127 = arith.constant 0 : index
    %138 = vector.load %arg12[%c3_125, %c0_126, %c0_127] : memref<5x256x256xbf16, #tpu.memory_space<vmem>>, vector<1x256x256xbf16>
    %139 = vector.shape_cast %138 : vector<1x256x256xbf16> to vector<256x256xbf16>
    %cst_128 = arith.constant dense<0.000000e+00> : vector<8x256xf32>
    %140 = tpu.matmul %117, %139, %cst_128 {dimension_numbers = #tpu.dot_dimension_numbers<[1], [0], [0], [1], [0, 0, 1, 1], [], []>} : vector<8x256xbf16>, vector<256x256xbf16>, vector<8x256xf32> -> vector<8x256xf32>
    %c3_129 = arith.constant 3 : index
    %c0_130 = arith.constant 0 : index
    %c0_131 = arith.constant 0 : index
    %141 = vector.load %arg11[%c3_129, %c0_130, %c0_131] : memref<5x16x8xf32, #tpu.memory_space<vmem>>, vector<1x16x8xf32>
    %142 = vector.shape_cast %141 : vector<1x16x8xf32> to vector<16x8xf32>
    %cst_132 = arith.constant dense<0.000000e+00> : vector<16x256xf32>
    %143 = tpu.matmul %142, %140, %cst_132 {dimension_numbers = #tpu.dot_dimension_numbers<[1], [0], [0], [1], [0, 0, 1, 1], [], []>} : vector<16x8xf32>, vector<8x256xf32>, vector<16x256xf32> -> vector<16x256xf32>
    %144 = arith.addf %137, %143 : vector<16x256xf32>
    %c4_133 = arith.constant 4 : index
    %c0_134 = arith.constant 0 : index
    %c0_135 = arith.constant 0 : index
    %145 = vector.load %arg12[%c4_133, %c0_134, %c0_135] : memref<5x256x256xbf16, #tpu.memory_space<vmem>>, vector<1x256x256xbf16>
    %146 = vector.shape_cast %145 : vector<1x256x256xbf16> to vector<256x256xbf16>
    %cst_136 = arith.constant dense<0.000000e+00> : vector<8x256xf32>
    %147 = tpu.matmul %117, %146, %cst_136 {dimension_numbers = #tpu.dot_dimension_numbers<[1], [0], [0], [1], [0, 0, 1, 1], [], []>} : vector<8x256xbf16>, vector<256x256xbf16>, vector<8x256xf32> -> vector<8x256xf32>
    %c4_137 = arith.constant 4 : index
    %c0_138 = arith.constant 0 : index
    %c0_139 = arith.constant 0 : index
    %148 = vector.load %arg11[%c4_137, %c0_138, %c0_139] : memref<5x16x8xf32, #tpu.memory_space<vmem>>, vector<1x16x8xf32>
    %149 = vector.shape_cast %148 : vector<1x16x8xf32> to vector<16x8xf32>
    %cst_140 = arith.constant dense<0.000000e+00> : vector<16x256xf32>
    %150 = tpu.matmul %149, %147, %cst_140 {dimension_numbers = #tpu.dot_dimension_numbers<[1], [0], [0], [1], [0, 0, 1, 1], [], []>} : vector<16x8xf32>, vector<8x256xf32>, vector<16x256xf32> -> vector<16x256xf32>
    %151 = arith.addf %144, %150 : vector<16x256xf32>
    %c0_141 = arith.constant 0 : index
    %c0_142 = arith.constant 0 : index
    %152 = vector.load %arg13[%c0_141, %c0_142] : memref<1x256xf32, #tpu.memory_space<vmem>>, vector<1x256xf32>
    %153 = vector.broadcast %152 : vector<1x256xf32> to vector<16x256xf32>
    %154 = arith.addf %151, %153 : vector<16x256xf32>
    %cst_143 = arith.constant 0.000000e+00 : f32
    %155 = vector.broadcast %cst_143 : f32 to vector<16x256xf32>
    %156 = arith.cmpf ogt, %154, %155 : vector<16x256xf32>
    %157 = math.exp %154 : vector<16x256xf32>
    %cst_144 = arith.constant 1.000000e+00 : f32
    %158 = vector.broadcast %cst_144 : f32 to vector<16x256xf32>
    %159 = arith.subf %157, %158 : vector<16x256xf32>
    %160 = arith.select %156, %154, %159 : vector<16x256xi1>, vector<16x256xf32>
    %161 = arith.truncf %160 : vector<16x256xf32> to vector<16x256xbf16>
    %c0_145 = arith.constant 0 : index
    %c0_146 = arith.constant 0 : index
    %c0_147 = arith.constant 0 : index
    %162 = vector.load %arg15[%c0_145, %c0_146, %c0_147] : memref<5x256x256xbf16, #tpu.memory_space<vmem>>, vector<1x256x256xbf16>
    %163 = vector.shape_cast %162 : vector<1x256x256xbf16> to vector<256x256xbf16>
    %cst_148 = arith.constant dense<0.000000e+00> : vector<16x256xf32>
    %164 = tpu.matmul %161, %163, %cst_148 {dimension_numbers = #tpu.dot_dimension_numbers<[1], [0], [0], [1], [0, 0, 1, 1], [], []>} : vector<16x256xbf16>, vector<256x256xbf16>, vector<16x256xf32> -> vector<16x256xf32>
    %c0_149 = arith.constant 0 : index
    %c0_150 = arith.constant 0 : index
    %c0_151 = arith.constant 0 : index
    %165 = vector.load %arg14[%c0_149, %c0_150, %c0_151] : memref<5x32x16xf32, #tpu.memory_space<vmem>>, vector<1x32x16xf32>
    %166 = vector.shape_cast %165 : vector<1x32x16xf32> to vector<32x16xf32>
    %cst_152 = arith.constant dense<0.000000e+00> : vector<32x256xf32>
    %167 = tpu.matmul %166, %164, %cst_152 {dimension_numbers = #tpu.dot_dimension_numbers<[1], [0], [0], [1], [0, 0, 1, 1], [], []>} : vector<32x16xf32>, vector<16x256xf32>, vector<32x256xf32> -> vector<32x256xf32>
    %c1_153 = arith.constant 1 : index
    %c0_154 = arith.constant 0 : index
    %c0_155 = arith.constant 0 : index
    %168 = vector.load %arg15[%c1_153, %c0_154, %c0_155] : memref<5x256x256xbf16, #tpu.memory_space<vmem>>, vector<1x256x256xbf16>
    %169 = vector.shape_cast %168 : vector<1x256x256xbf16> to vector<256x256xbf16>
    %cst_156 = arith.constant dense<0.000000e+00> : vector<16x256xf32>
    %170 = tpu.matmul %161, %169, %cst_156 {dimension_numbers = #tpu.dot_dimension_numbers<[1], [0], [0], [1], [0, 0, 1, 1], [], []>} : vector<16x256xbf16>, vector<256x256xbf16>, vector<16x256xf32> -> vector<16x256xf32>
    %c1_157 = arith.constant 1 : index
    %c0_158 = arith.constant 0 : index
    %c0_159 = arith.constant 0 : index
    %171 = vector.load %arg14[%c1_157, %c0_158, %c0_159] : memref<5x32x16xf32, #tpu.memory_space<vmem>>, vector<1x32x16xf32>
    %172 = vector.shape_cast %171 : vector<1x32x16xf32> to vector<32x16xf32>
    %cst_160 = arith.constant dense<0.000000e+00> : vector<32x256xf32>
    %173 = tpu.matmul %172, %170, %cst_160 {dimension_numbers = #tpu.dot_dimension_numbers<[1], [0], [0], [1], [0, 0, 1, 1], [], []>} : vector<32x16xf32>, vector<16x256xf32>, vector<32x256xf32> -> vector<32x256xf32>
    %174 = arith.addf %167, %173 : vector<32x256xf32>
    %c2_161 = arith.constant 2 : index
    %c0_162 = arith.constant 0 : index
    %c0_163 = arith.constant 0 : index
    %175 = vector.load %arg15[%c2_161, %c0_162, %c0_163] : memref<5x256x256xbf16, #tpu.memory_space<vmem>>, vector<1x256x256xbf16>
    %176 = vector.shape_cast %175 : vector<1x256x256xbf16> to vector<256x256xbf16>
    %cst_164 = arith.constant dense<0.000000e+00> : vector<16x256xf32>
    %177 = tpu.matmul %161, %176, %cst_164 {dimension_numbers = #tpu.dot_dimension_numbers<[1], [0], [0], [1], [0, 0, 1, 1], [], []>} : vector<16x256xbf16>, vector<256x256xbf16>, vector<16x256xf32> -> vector<16x256xf32>
    %c2_165 = arith.constant 2 : index
    %c0_166 = arith.constant 0 : index
    %c0_167 = arith.constant 0 : index
    %178 = vector.load %arg14[%c2_165, %c0_166, %c0_167] : memref<5x32x16xf32, #tpu.memory_space<vmem>>, vector<1x32x16xf32>
    %179 = vector.shape_cast %178 : vector<1x32x16xf32> to vector<32x16xf32>
    %cst_168 = arith.constant dense<0.000000e+00> : vector<32x256xf32>
    %180 = tpu.matmul %179, %177, %cst_168 {dimension_numbers = #tpu.dot_dimension_numbers<[1], [0], [0], [1], [0, 0, 1, 1], [], []>} : vector<32x16xf32>, vector<16x256xf32>, vector<32x256xf32> -> vector<32x256xf32>
    %181 = arith.addf %174, %180 : vector<32x256xf32>
    %c3_169 = arith.constant 3 : index
    %c0_170 = arith.constant 0 : index
    %c0_171 = arith.constant 0 : index
    %182 = vector.load %arg15[%c3_169, %c0_170, %c0_171] : memref<5x256x256xbf16, #tpu.memory_space<vmem>>, vector<1x256x256xbf16>
    %183 = vector.shape_cast %182 : vector<1x256x256xbf16> to vector<256x256xbf16>
    %cst_172 = arith.constant dense<0.000000e+00> : vector<16x256xf32>
    %184 = tpu.matmul %161, %183, %cst_172 {dimension_numbers = #tpu.dot_dimension_numbers<[1], [0], [0], [1], [0, 0, 1, 1], [], []>} : vector<16x256xbf16>, vector<256x256xbf16>, vector<16x256xf32> -> vector<16x256xf32>
    %c3_173 = arith.constant 3 : index
    %c0_174 = arith.constant 0 : index
    %c0_175 = arith.constant 0 : index
    %185 = vector.load %arg14[%c3_173, %c0_174, %c0_175] : memref<5x32x16xf32, #tpu.memory_space<vmem>>, vector<1x32x16xf32>
    %186 = vector.shape_cast %185 : vector<1x32x16xf32> to vector<32x16xf32>
    %cst_176 = arith.constant dense<0.000000e+00> : vector<32x256xf32>
    %187 = tpu.matmul %186, %184, %cst_176 {dimension_numbers = #tpu.dot_dimension_numbers<[1], [0], [0], [1], [0, 0, 1, 1], [], []>} : vector<32x16xf32>, vector<16x256xf32>, vector<32x256xf32> -> vector<32x256xf32>
    %188 = arith.addf %181, %187 : vector<32x256xf32>
    %c4_177 = arith.constant 4 : index
    %c0_178 = arith.constant 0 : index
    %c0_179 = arith.constant 0 : index
    %189 = vector.load %arg15[%c4_177, %c0_178, %c0_179] : memref<5x256x256xbf16, #tpu.memory_space<vmem>>, vector<1x256x256xbf16>
    %190 = vector.shape_cast %189 : vector<1x256x256xbf16> to vector<256x256xbf16>
    %cst_180 = arith.constant dense<0.000000e+00> : vector<16x256xf32>
    %191 = tpu.matmul %161, %190, %cst_180 {dimension_numbers = #tpu.dot_dimension_numbers<[1], [0], [0], [1], [0, 0, 1, 1], [], []>} : vector<16x256xbf16>, vector<256x256xbf16>, vector<16x256xf32> -> vector<16x256xf32>
    %c4_181 = arith.constant 4 : index
    %c0_182 = arith.constant 0 : index
    %c0_183 = arith.constant 0 : index
    %192 = vector.load %arg14[%c4_181, %c0_182, %c0_183] : memref<5x32x16xf32, #tpu.memory_space<vmem>>, vector<1x32x16xf32>
    %193 = vector.shape_cast %192 : vector<1x32x16xf32> to vector<32x16xf32>
    %cst_184 = arith.constant dense<0.000000e+00> : vector<32x256xf32>
    %194 = tpu.matmul %193, %191, %cst_184 {dimension_numbers = #tpu.dot_dimension_numbers<[1], [0], [0], [1], [0, 0, 1, 1], [], []>} : vector<32x16xf32>, vector<16x256xf32>, vector<32x256xf32> -> vector<32x256xf32>
    %195 = arith.addf %188, %194 : vector<32x256xf32>
    %c0_185 = arith.constant 0 : index
    %c0_186 = arith.constant 0 : index
    %196 = vector.load %arg16[%c0_185, %c0_186] : memref<1x256xf32, #tpu.memory_space<vmem>>, vector<1x256xf32>
    %197 = vector.broadcast %196 : vector<1x256xf32> to vector<32x256xf32>
    %198 = arith.addf %195, %197 : vector<32x256xf32>
    %cst_187 = arith.constant 0.000000e+00 : f32
    %199 = vector.broadcast %cst_187 : f32 to vector<32x256xf32>
    %200 = arith.cmpf ogt, %198, %199 : vector<32x256xf32>
    %201 = math.exp %198 : vector<32x256xf32>
    %cst_188 = arith.constant 1.000000e+00 : f32
    %202 = vector.broadcast %cst_188 : f32 to vector<32x256xf32>
    %203 = arith.subf %201, %202 : vector<32x256xf32>
    %204 = arith.select %200, %198, %203 : vector<32x256xi1>, vector<32x256xf32>
    %205 = arith.truncf %204 : vector<32x256xf32> to vector<32x256xbf16>
    %c0_189 = arith.constant 0 : index
    %c0_190 = arith.constant 0 : index
    %c0_191 = arith.constant 0 : index
    %206 = vector.load %arg18[%c0_189, %c0_190, %c0_191] : memref<5x256x128xbf16, #tpu.memory_space<vmem>>, vector<1x256x128xbf16>
    %207 = vector.shape_cast %206 : vector<1x256x128xbf16> to vector<256x128xbf16>
    %cst_192 = arith.constant dense<0.000000e+00> : vector<32x128xf32>
    %208 = tpu.matmul %205, %207, %cst_192 {dimension_numbers = #tpu.dot_dimension_numbers<[1], [0], [0], [1], [0, 0, 1, 1], [], []>} : vector<32x256xbf16>, vector<256x128xbf16>, vector<32x128xf32> -> vector<32x128xf32>
    %c0_193 = arith.constant 0 : index
    %c0_194 = arith.constant 0 : index
    %c0_195 = arith.constant 0 : index
    %209 = vector.load %arg17[%c0_193, %c0_194, %c0_195] : memref<5x32x32xf32, #tpu.memory_space<vmem>>, vector<1x32x32xf32>
    %210 = vector.shape_cast %209 : vector<1x32x32xf32> to vector<32x32xf32>
    %cst_196 = arith.constant dense<0.000000e+00> : vector<32x128xf32>
    %211 = tpu.matmul %210, %208, %cst_196 {dimension_numbers = #tpu.dot_dimension_numbers<[1], [0], [0], [1], [0, 0, 1, 1], [], []>} : vector<32x32xf32>, vector<32x128xf32>, vector<32x128xf32> -> vector<32x128xf32>
    %c1_197 = arith.constant 1 : index
    %c0_198 = arith.constant 0 : index
    %c0_199 = arith.constant 0 : index
    %212 = vector.load %arg18[%c1_197, %c0_198, %c0_199] : memref<5x256x128xbf16, #tpu.memory_space<vmem>>, vector<1x256x128xbf16>
    %213 = vector.shape_cast %212 : vector<1x256x128xbf16> to vector<256x128xbf16>
    %cst_200 = arith.constant dense<0.000000e+00> : vector<32x128xf32>
    %214 = tpu.matmul %205, %213, %cst_200 {dimension_numbers = #tpu.dot_dimension_numbers<[1], [0], [0], [1], [0, 0, 1, 1], [], []>} : vector<32x256xbf16>, vector<256x128xbf16>, vector<32x128xf32> -> vector<32x128xf32>
    %c1_201 = arith.constant 1 : index
    %c0_202 = arith.constant 0 : index
    %c0_203 = arith.constant 0 : index
    %215 = vector.load %arg17[%c1_201, %c0_202, %c0_203] : memref<5x32x32xf32, #tpu.memory_space<vmem>>, vector<1x32x32xf32>
    %216 = vector.shape_cast %215 : vector<1x32x32xf32> to vector<32x32xf32>
    %cst_204 = arith.constant dense<0.000000e+00> : vector<32x128xf32>
    %217 = tpu.matmul %216, %214, %cst_204 {dimension_numbers = #tpu.dot_dimension_numbers<[1], [0], [0], [1], [0, 0, 1, 1], [], []>} : vector<32x32xf32>, vector<32x128xf32>, vector<32x128xf32> -> vector<32x128xf32>
    %218 = arith.addf %211, %217 : vector<32x128xf32>
    %c2_205 = arith.constant 2 : index
    %c0_206 = arith.constant 0 : index
    %c0_207 = arith.constant 0 : index
    %219 = vector.load %arg18[%c2_205, %c0_206, %c0_207] : memref<5x256x128xbf16, #tpu.memory_space<vmem>>, vector<1x256x128xbf16>
    %220 = vector.shape_cast %219 : vector<1x256x128xbf16> to vector<256x128xbf16>
    %cst_208 = arith.constant dense<0.000000e+00> : vector<32x128xf32>
    %221 = tpu.matmul %205, %220, %cst_208 {dimension_numbers = #tpu.dot_dimension_numbers<[1], [0], [0], [1], [0, 0, 1, 1], [], []>} : vector<32x256xbf16>, vector<256x128xbf16>, vector<32x128xf32> -> vector<32x128xf32>
    %c2_209 = arith.constant 2 : index
    %c0_210 = arith.constant 0 : index
    %c0_211 = arith.constant 0 : index
    %222 = vector.load %arg17[%c2_209, %c0_210, %c0_211] : memref<5x32x32xf32, #tpu.memory_space<vmem>>, vector<1x32x32xf32>
    %223 = vector.shape_cast %222 : vector<1x32x32xf32> to vector<32x32xf32>
    %cst_212 = arith.constant dense<0.000000e+00> : vector<32x128xf32>
    %224 = tpu.matmul %223, %221, %cst_212 {dimension_numbers = #tpu.dot_dimension_numbers<[1], [0], [0], [1], [0, 0, 1, 1], [], []>} : vector<32x32xf32>, vector<32x128xf32>, vector<32x128xf32> -> vector<32x128xf32>
    %225 = arith.addf %218, %224 : vector<32x128xf32>
    %c3_213 = arith.constant 3 : index
    %c0_214 = arith.constant 0 : index
    %c0_215 = arith.constant 0 : index
    %226 = vector.load %arg18[%c3_213, %c0_214, %c0_215] : memref<5x256x128xbf16, #tpu.memory_space<vmem>>, vector<1x256x128xbf16>
    %227 = vector.shape_cast %226 : vector<1x256x128xbf16> to vector<256x128xbf16>
    %cst_216 = arith.constant dense<0.000000e+00> : vector<32x128xf32>
    %228 = tpu.matmul %205, %227, %cst_216 {dimension_numbers = #tpu.dot_dimension_numbers<[1], [0], [0], [1], [0, 0, 1, 1], [], []>} : vector<32x256xbf16>, vector<256x128xbf16>, vector<32x128xf32> -> vector<32x128xf32>
    %c3_217 = arith.constant 3 : index
    %c0_218 = arith.constant 0 : index
    %c0_219 = arith.constant 0 : index
    %229 = vector.load %arg17[%c3_217, %c0_218, %c0_219] : memref<5x32x32xf32, #tpu.memory_space<vmem>>, vector<1x32x32xf32>
    %230 = vector.shape_cast %229 : vector<1x32x32xf32> to vector<32x32xf32>
    %cst_220 = arith.constant dense<0.000000e+00> : vector<32x128xf32>
    %231 = tpu.matmul %230, %228, %cst_220 {dimension_numbers = #tpu.dot_dimension_numbers<[1], [0], [0], [1], [0, 0, 1, 1], [], []>} : vector<32x32xf32>, vector<32x128xf32>, vector<32x128xf32> -> vector<32x128xf32>
    %232 = arith.addf %225, %231 : vector<32x128xf32>
    %c4_221 = arith.constant 4 : index
    %c0_222 = arith.constant 0 : index
    %c0_223 = arith.constant 0 : index
    %233 = vector.load %arg18[%c4_221, %c0_222, %c0_223] : memref<5x256x128xbf16, #tpu.memory_space<vmem>>, vector<1x256x128xbf16>
    %234 = vector.shape_cast %233 : vector<1x256x128xbf16> to vector<256x128xbf16>
    %cst_224 = arith.constant dense<0.000000e+00> : vector<32x128xf32>
    %235 = tpu.matmul %205, %234, %cst_224 {dimension_numbers = #tpu.dot_dimension_numbers<[1], [0], [0], [1], [0, 0, 1, 1], [], []>} : vector<32x256xbf16>, vector<256x128xbf16>, vector<32x128xf32> -> vector<32x128xf32>
    %c4_225 = arith.constant 4 : index
    %c0_226 = arith.constant 0 : index
    %c0_227 = arith.constant 0 : index
    %236 = vector.load %arg17[%c4_225, %c0_226, %c0_227] : memref<5x32x32xf32, #tpu.memory_space<vmem>>, vector<1x32x32xf32>
    %237 = vector.shape_cast %236 : vector<1x32x32xf32> to vector<32x32xf32>
    %cst_228 = arith.constant dense<0.000000e+00> : vector<32x128xf32>
    %238 = tpu.matmul %237, %235, %cst_228 {dimension_numbers = #tpu.dot_dimension_numbers<[1], [0], [0], [1], [0, 0, 1, 1], [], []>} : vector<32x32xf32>, vector<32x128xf32>, vector<32x128xf32> -> vector<32x128xf32>
    %239 = arith.addf %232, %238 : vector<32x128xf32>
    %c0_229 = arith.constant 0 : index
    %c0_230 = arith.constant 0 : index
    %240 = vector.load %arg19[%c0_229, %c0_230] : memref<1x128xf32, #tpu.memory_space<vmem>>, vector<1x128xf32>
    %241 = vector.broadcast %240 : vector<1x128xf32> to vector<32x128xf32>
    %242 = arith.addf %239, %241 : vector<32x128xf32>
    %cst_231 = arith.constant 0.000000e+00 : f32
    %243 = vector.broadcast %cst_231 : f32 to vector<32x128xf32>
    %244 = arith.cmpf ogt, %242, %243 : vector<32x128xf32>
    %245 = math.exp %242 : vector<32x128xf32>
    %cst_232 = arith.constant 1.000000e+00 : f32
    %246 = vector.broadcast %cst_232 : f32 to vector<32x128xf32>
    %247 = arith.subf %245, %246 : vector<32x128xf32>
    %248 = arith.select %244, %242, %247 : vector<32x128xi1>, vector<32x128xf32>
    %249 = arith.truncf %248 : vector<32x128xf32> to vector<32x128xbf16>
    %c0_233 = arith.constant 0 : index
    %c0_234 = arith.constant 0 : index
    %c0_235 = arith.constant 0 : index
    %250 = vector.load %arg21[%c0_233, %c0_234, %c0_235] : memref<5x128x128xbf16, #tpu.memory_space<vmem>>, vector<1x128x128xbf16>
    %251 = vector.shape_cast %250 : vector<1x128x128xbf16> to vector<128x128xbf16>
    %cst_236 = arith.constant dense<0.000000e+00> : vector<32x128xf32>
    %252 = tpu.matmul %249, %251, %cst_236 {dimension_numbers = #tpu.dot_dimension_numbers<[1], [0], [0], [1], [0, 0, 1, 1], [], []>} : vector<32x128xbf16>, vector<128x128xbf16>, vector<32x128xf32> -> vector<32x128xf32>
    %c0_237 = arith.constant 0 : index
    %c0_238 = arith.constant 0 : index
    %c0_239 = arith.constant 0 : index
    %253 = vector.load %arg20[%c0_237, %c0_238, %c0_239] : memref<5x32x32xf32, #tpu.memory_space<vmem>>, vector<1x32x32xf32>
    %254 = vector.shape_cast %253 : vector<1x32x32xf32> to vector<32x32xf32>
    %cst_240 = arith.constant dense<0.000000e+00> : vector<32x128xf32>
    %255 = tpu.matmul %254, %252, %cst_240 {dimension_numbers = #tpu.dot_dimension_numbers<[1], [0], [0], [1], [0, 0, 1, 1], [], []>} : vector<32x32xf32>, vector<32x128xf32>, vector<32x128xf32> -> vector<32x128xf32>
    %c1_241 = arith.constant 1 : index
    %c0_242 = arith.constant 0 : index
    %c0_243 = arith.constant 0 : index
    %256 = vector.load %arg21[%c1_241, %c0_242, %c0_243] : memref<5x128x128xbf16, #tpu.memory_space<vmem>>, vector<1x128x128xbf16>
    %257 = vector.shape_cast %256 : vector<1x128x128xbf16> to vector<128x128xbf16>
    %cst_244 = arith.constant dense<0.000000e+00> : vector<32x128xf32>
    %258 = tpu.matmul %249, %257, %cst_244 {dimension_numbers = #tpu.dot_dimension_numbers<[1], [0], [0], [1], [0, 0, 1, 1], [], []>} : vector<32x128xbf16>, vector<128x128xbf16>, vector<32x128xf32> -> vector<32x128xf32>
    %c1_245 = arith.constant 1 : index
    %c0_246 = arith.constant 0 : index
    %c0_247 = arith.constant 0 : index
    %259 = vector.load %arg20[%c1_245, %c0_246, %c0_247] : memref<5x32x32xf32, #tpu.memory_space<vmem>>, vector<1x32x32xf32>
    %260 = vector.shape_cast %259 : vector<1x32x32xf32> to vector<32x32xf32>
    %cst_248 = arith.constant dense<0.000000e+00> : vector<32x128xf32>
    %261 = tpu.matmul %260, %258, %cst_248 {dimension_numbers = #tpu.dot_dimension_numbers<[1], [0], [0], [1], [0, 0, 1, 1], [], []>} : vector<32x32xf32>, vector<32x128xf32>, vector<32x128xf32> -> vector<32x128xf32>
    %262 = arith.addf %255, %261 : vector<32x128xf32>
    %c2_249 = arith.constant 2 : index
    %c0_250 = arith.constant 0 : index
    %c0_251 = arith.constant 0 : index
    %263 = vector.load %arg21[%c2_249, %c0_250, %c0_251] : memref<5x128x128xbf16, #tpu.memory_space<vmem>>, vector<1x128x128xbf16>
    %264 = vector.shape_cast %263 : vector<1x128x128xbf16> to vector<128x128xbf16>
    %cst_252 = arith.constant dense<0.000000e+00> : vector<32x128xf32>
    %265 = tpu.matmul %249, %264, %cst_252 {dimension_numbers = #tpu.dot_dimension_numbers<[1], [0], [0], [1], [0, 0, 1, 1], [], []>} : vector<32x128xbf16>, vector<128x128xbf16>, vector<32x128xf32> -> vector<32x128xf32>
    %c2_253 = arith.constant 2 : index
    %c0_254 = arith.constant 0 : index
    %c0_255 = arith.constant 0 : index
    %266 = vector.load %arg20[%c2_253, %c0_254, %c0_255] : memref<5x32x32xf32, #tpu.memory_space<vmem>>, vector<1x32x32xf32>
    %267 = vector.shape_cast %266 : vector<1x32x32xf32> to vector<32x32xf32>
    %cst_256 = arith.constant dense<0.000000e+00> : vector<32x128xf32>
    %268 = tpu.matmul %267, %265, %cst_256 {dimension_numbers = #tpu.dot_dimension_numbers<[1], [0], [0], [1], [0, 0, 1, 1], [], []>} : vector<32x32xf32>, vector<32x128xf32>, vector<32x128xf32> -> vector<32x128xf32>
    %269 = arith.addf %262, %268 : vector<32x128xf32>
    %c3_257 = arith.constant 3 : index
    %c0_258 = arith.constant 0 : index
    %c0_259 = arith.constant 0 : index
    %270 = vector.load %arg21[%c3_257, %c0_258, %c0_259] : memref<5x128x128xbf16, #tpu.memory_space<vmem>>, vector<1x128x128xbf16>
    %271 = vector.shape_cast %270 : vector<1x128x128xbf16> to vector<128x128xbf16>
    %cst_260 = arith.constant dense<0.000000e+00> : vector<32x128xf32>
    %272 = tpu.matmul %249, %271, %cst_260 {dimension_numbers = #tpu.dot_dimension_numbers<[1], [0], [0], [1], [0, 0, 1, 1], [], []>} : vector<32x128xbf16>, vector<128x128xbf16>, vector<32x128xf32> -> vector<32x128xf32>
    %c3_261 = arith.constant 3 : index
    %c0_262 = arith.constant 0 : index
    %c0_263 = arith.constant 0 : index
    %273 = vector.load %arg20[%c3_261, %c0_262, %c0_263] : memref<5x32x32xf32, #tpu.memory_space<vmem>>, vector<1x32x32xf32>
    %274 = vector.shape_cast %273 : vector<1x32x32xf32> to vector<32x32xf32>
    %cst_264 = arith.constant dense<0.000000e+00> : vector<32x128xf32>
    %275 = tpu.matmul %274, %272, %cst_264 {dimension_numbers = #tpu.dot_dimension_numbers<[1], [0], [0], [1], [0, 0, 1, 1], [], []>} : vector<32x32xf32>, vector<32x128xf32>, vector<32x128xf32> -> vector<32x128xf32>
    %276 = arith.addf %269, %275 : vector<32x128xf32>
    %c4_265 = arith.constant 4 : index
    %c0_266 = arith.constant 0 : index
    %c0_267 = arith.constant 0 : index
    %277 = vector.load %arg21[%c4_265, %c0_266, %c0_267] : memref<5x128x128xbf16, #tpu.memory_space<vmem>>, vector<1x128x128xbf16>
    %278 = vector.shape_cast %277 : vector<1x128x128xbf16> to vector<128x128xbf16>
    %cst_268 = arith.constant dense<0.000000e+00> : vector<32x128xf32>
    %279 = tpu.matmul %249, %278, %cst_268 {dimension_numbers = #tpu.dot_dimension_numbers<[1], [0], [0], [1], [0, 0, 1, 1], [], []>} : vector<32x128xbf16>, vector<128x128xbf16>, vector<32x128xf32> -> vector<32x128xf32>
    %c4_269 = arith.constant 4 : index
    %c0_270 = arith.constant 0 : index
    %c0_271 = arith.constant 0 : index
    %280 = vector.load %arg20[%c4_269, %c0_270, %c0_271] : memref<5x32x32xf32, #tpu.memory_space<vmem>>, vector<1x32x32xf32>
    %281 = vector.shape_cast %280 : vector<1x32x32xf32> to vector<32x32xf32>
    %cst_272 = arith.constant dense<0.000000e+00> : vector<32x128xf32>
    %282 = tpu.matmul %281, %279, %cst_272 {dimension_numbers = #tpu.dot_dimension_numbers<[1], [0], [0], [1], [0, 0, 1, 1], [], []>} : vector<32x32xf32>, vector<32x128xf32>, vector<32x128xf32> -> vector<32x128xf32>
    %283 = arith.addf %276, %282 : vector<32x128xf32>
    %c0_273 = arith.constant 0 : index
    %c0_274 = arith.constant 0 : index
    %284 = vector.load %arg22[%c0_273, %c0_274] : memref<1x128xf32, #tpu.memory_space<vmem>>, vector<1x128xf32>
    %285 = vector.broadcast %284 : vector<1x128xf32> to vector<32x128xf32>
    %286 = arith.addf %283, %285 : vector<32x128xf32>
    %cst_275 = arith.constant 0.000000e+00 : f32
    %287 = vector.broadcast %cst_275 : f32 to vector<32x128xf32>
    %288 = arith.subf %287, %286 : vector<32x128xf32>
    %289 = math.exp %288 : vector<32x128xf32>
    %cst_276 = arith.constant 1.000000e+00 : f32
    %290 = vector.broadcast %cst_276 : f32 to vector<32x128xf32>
    %291 = arith.addf %290, %289 : vector<32x128xf32>
    %cst_277 = arith.constant 1.000000e+00 : f32
    %292 = vector.broadcast %cst_277 : f32 to vector<32x128xf32>
    %293 = arith.divf %292, %291 : vector<32x128xf32>
    %c0_278 = arith.constant 0 : index
    %c0_279 = arith.constant 0 : index
    %294 = vector.load %arg23[%c0_278, %c0_279] : memref<32x128xf32, #tpu.memory_space<vmem>>, vector<32x128xf32>
    tpu.vector_store %arg23[%c0_278, %c0_279], %293 {strides = array<i32>} : memref<32x128xf32, #tpu.memory_space<vmem>>, vector<32x128xf32>,
    return
  }
}

</mosaic_0001>

<llo_original>
// kernel: _lambda_.2
$region0: #{_lambda_.2}
  #allocation0 [shape = 'u32[]', space=smem, size = 0x4, offset = 0x4, fixed_abs, tag = 'smem constant byte address 0x4 - core index']
  #allocation1 [shape = 'u32[72,128]{1,0:T(1,128)}', space=vmem, size = 0x9000, scoped, tag = 'internal scratch']
  %s0 = inlined_call_operand.vmem [shape: bf16[32,128], index: 0, kind: input, shape index: {}]
  %s1 = inlined_call_operand.hbm [shape: f32[5,32,32], index: 1, kind: input, shape index: {}]
  %s2 = inlined_call_operand.hbm [shape: bf16[5,128,128], index: 2, kind: input, shape index: {}]
  %s3 = inlined_call_operand.vmem [shape: f32[1,128], index: 3, kind: input, shape index: {}]
  %s4 = inlined_call_operand.hbm [shape: f32[5,16,32], index: 4, kind: input, shape index: {}]
  %s5 = inlined_call_operand.hbm [shape: bf16[5,128,128], index: 5, kind: input, shape index: {}]
  %s6 = inlined_call_operand.vmem [shape: f32[1,128], index: 6, kind: input, shape index: {}]
  %s7 = inlined_call_operand.vmem [shape: f32[5,8,16], index: 7, kind: input, shape index: {}]
  %s8 = inlined_call_operand.hbm [shape: bf16[5,128,128], index: 8, kind: input, shape index: {}]
  %s9 = inlined_call_operand.vmem [shape: f32[1,128], index: 9, kind: input, shape index: {}]
  %s10 = inlined_call_operand.hbm [shape: f32[5,4,8], index: 10, kind: input, shape index: {}]
  %s11 = inlined_call_operand.hbm [shape: bf16[5,128,128], index: 11, kind: input, shape index: {}]
  %s12 = inlined_call_operand.vmem [shape: f32[1,128], index: 12, kind: input, shape index: {}]
  %s13 = inlined_call_operand.hbm [shape: bf16[256,256], index: 13, kind: input, shape index: {}]
  %s14 = inlined_call_operand.vmem [shape: f32[1,256], index: 14, kind: input, shape index: {}]
  %s15 = inlined_call_operand.hbm [shape: bf16[256,256], index: 15, kind: input, shape index: {}]
  %s16 = inlined_call_operand.vmem [shape: f32[1,256], index: 16, kind: input, shape index: {}]
  %s17 = inlined_call_operand.hbm [shape: bf16[256,128], index: 17, kind: input, shape index: {}]
  %s18 = inlined_call_operand.vmem [shape: f32[1,128], index: 18, kind: input, shape index: {}]
  %s19 = inlined_call_operand.vmem [shape: f32[2,128], index: 19, kind: output, shape index: {}]
  %s20 = sld [smem:[#allocation0]]
  $region126: #{_lambda_.2} parent=0
    _
  %s22 = ssub.s32 1, %s20
  %s23 = scalar_select 0, %s22, %s20
  $region1: #{_lambda_.2} parent=0
    #allocation2 [shape = 'u8[81920]{0}', space=vmem, size = 0x14000, scoped, tag = 'input window, operand 1, single buffered']
    #allocation3 [shape = 's32[1]{0}', space=sflag, size = 0x4, scoped, tag = 'scoped memory for _lambda_.2']
    #allocation4 [shape = 'u8[163840]{0}', space=vmem, size = 0x28000, scoped, tag = 'input window, operand 2, single buffered']
    #allocation5 [shape = 's32[1]{0}', space=sflag, size = 0x4, scoped, tag = 'scoped memory for _lambda_.2']
    #allocation6 [shape = 'u8[40960]{0}', space=vmem, size = 0xa000, scoped, tag = 'input window, operand 4, single buffered']
    #allocation7 [shape = 'u8[163840]{0}', space=vmem, size = 0x28000, scoped, tag = 'input window, operand 5, single buffered']
    #allocation8 [shape = 's32[1]{0}', space=sflag, size = 0x4, scoped, tag = 'scoped memory for _lambda_.2']
    #allocation9 [shape = 'u8[163840]{0}', space=vmem, size = 0x28000, scoped, tag = 'input window, operand 8, single buffered']
    #allocation10 [shape = 'u8[10240]{0}', space=vmem, size = 0x2800, scoped, tag = 'input window, operand 10, single buffered']
    #allocation11 [shape = 's32[1]{0}', space=sflag, size = 0x4, scoped, tag = 'scoped memory for _lambda_.2']
    #allocation12 [shape = 'u8[163840]{0}', space=vmem, size = 0x28000, scoped, tag = 'input window, operand 11, single buffered']
    #allocation13 [shape = 'u8[131072]{0}', space=vmem, size = 0x20000, scoped, tag = 'input window, operand 13, single buffered']
    #allocation14 [shape = 's32[1]{0}', space=sflag, size = 0x4, scoped, tag = 'scoped memory for _lambda_.2']
    #allocation15 [shape = 'u8[131072]{0}', space=vmem, size = 0x20000, scoped, tag = 'input window, operand 15, single buffered']
    #allocation16 [shape = 'u8[65536]{0}', space=vmem, size = 0x10000, scoped, tag = 'input window, operand 17, single buffered']
    #allocation17 [shape = 's32[1]{0}', space=sflag, size = 0x4, scoped, tag = 'scoped memory for _lambda_.2']
    %24 = vsyncpa [#allocation3], 0
    %25 = vsyncpa [#allocation5], 0
    %26 = vsyncpa [#allocation8], 0
    %27 = vsyncpa [#allocation11], 0
    %28 = vsyncpa [#allocation14], 0
    %29 = vsyncpa [#allocation17], 0
    // Predicated region
    $region2: #{_lambda_.2} parent=1 // pred_check
      _
    $region3: #{_lambda_.2} parent=1 // pred_check_branch
      %31 = sbr.rel (0) target = $region5
    $region4: #{_lambda_.2} parent=1 // pred_region
      _
    $region5: #{_lambda_.2} parent=1 // pred_fallthru
      _
    // Predicated region
    $region6: #{_lambda_.2} parent=1 // pred_check
      _
    $region7: #{_lambda_.2} parent=1 // pred_check_branch
      %33 = sbr.rel (0) target = $region9
    $region8: #{_lambda_.2} parent=1 // pred_region
      %35 = vsyncadd [#allocation3], 0
      %s36 = sshll.u32 %s1, 4
      %s37 = int_to_ptr.hbm [resolvable:$true] %s36
      %s38 = sshll.u32 [#allocation2], 4
      %s39 = int_to_ptr.vmem [resolvable:$true] %s38
      %44 = dma.hbm_to_vmem [thread:$0]  %s37, 2560, %s39, [#allocation3], 128, 128, 8
    $region9: #{_lambda_.2} parent=1 // pred_fallthru
      _
    // Predicated region
    $region10: #{_lambda_.2} parent=1 // pred_check
      _
    $region11: #{_lambda_.2} parent=1 // pred_check_branch
      %46 = sbr.rel (0) target = $region13
    $region12: #{_lambda_.2} parent=1 // pred_region
      %48 = vsyncadd [#allocation5], 0
      %s49 = sshll.u32 %s2, 4
      %s50 = int_to_ptr.hbm [resolvable:$true] %s49
      %s51 = sshll.u32 [#allocation4], 4
      %s52 = int_to_ptr.vmem [resolvable:$true] %s51
      %57 = dma.hbm_to_vmem [thread:$0]  %s50, 5120, %s52, [#allocation5], 64, 64, 4
    $region13: #{_lambda_.2} parent=1 // pred_fallthru
      _
    // Predicated region
    $region14: #{_lambda_.2} parent=1 // pred_check
      _
    $region15: #{_lambda_.2} parent=1 // pred_check_branch
      %59 = sbr.rel (0) target = $region17
    $region16: #{_lambda_.2} parent=1 // pred_region
      _
    $region17: #{_lambda_.2} parent=1 // pred_fallthru
      _
    // Predicated region
    $region18: #{_lambda_.2} parent=1 // pred_check
      _
    $region19: #{_lambda_.2} parent=1 // pred_check_branch
      %61 = sbr.rel (0) target = $region21
    $region20: #{_lambda_.2} parent=1 // pred_region
      %63 = vsyncadd [#allocation5], 0
      %s64 = sshll.u32 %s4, 4
      %s65 = int_to_ptr.hbm [resolvable:$true] %s64
      %s66 = sshll.u32 [#allocation6], 4
      %s67 = int_to_ptr.vmem [resolvable:$true] %s66
      %72 = dma.hbm_to_vmem [thread:$0]  %s65, 1280, %s67, [#allocation5], 128, 128, 8
    $region21: #{_lambda_.2} parent=1 // pred_fallthru
      _
    // Predicated region
    $region22: #{_lambda_.2} parent=1 // pred_check
      _
    $region23: #{_lambda_.2} parent=1 // pred_check_branch
      %74 = sbr.rel (0) target = $region25
    $region24: #{_lambda_.2} parent=1 // pred_region
      %76 = vsyncadd [#allocation8], 0
      %s77 = sshll.u32 %s5, 4
      %s78 = int_to_ptr.hbm [resolvable:$true] %s77
      %s79 = sshll.u32 [#allocation7], 4
      %s80 = int_to_ptr.vmem [resolvable:$true] %s79
      %85 = dma.hbm_to_vmem [thread:$0]  %s78, 5120, %s80, [#allocation8], 64, 64, 4
    $region25: #{_lambda_.2} parent=1 // pred_fallthru
      _
    // Predicated region
    $region26: #{_lambda_.2} parent=1 // pred_check
      _
    $region27: #{_lambda_.2} parent=1 // pred_check_branch
      %87 = sbr.rel (0) target = $region29
    $region28: #{_lambda_.2} parent=1 // pred_region
      _
    $region29: #{_lambda_.2} parent=1 // pred_fallthru
      _
    // Predicated region
    $region30: #{_lambda_.2} parent=1 // pred_check
      _
    $region31: #{_lambda_.2} parent=1 // pred_check_branch
      %89 = sbr.rel (0) target = $region33
    $region32: #{_lambda_.2} parent=1 // pred_region
      _
    $region33: #{_lambda_.2} parent=1 // pred_fallthru
      _
    // Predicated region
    $region34: #{_lambda_.2} parent=1 // pred_check
      _
    $region35: #{_lambda_.2} parent=1 // pred_check_branch
      %91 = sbr.rel (0) target = $region37
    $region36: #{_lambda_.2} parent=1 // pred_region
      %93 = vsyncadd [#allocation8], 0
      %s94 = sshll.u32 %s8, 4
      %s95 = int_to_ptr.hbm [resolvable:$true] %s94
      %s96 = sshll.u32 [#allocation9], 4
      %s97 = int_to_ptr.vmem [resolvable:$true] %s96
      %102 = dma.hbm_to_vmem [thread:$0]  %s95, 5120, %s97, [#allocation8], 64, 64, 4
    $region37: #{_lambda_.2} parent=1 // pred_fallthru
      _
    // Predicated region
    $region38: #{_lambda_.2} parent=1 // pred_check
      _
    $region39: #{_lambda_.2} parent=1 // pred_check_branch
      %104 = sbr.rel (0) target = $region41
    $region40: #{_lambda_.2} parent=1 // pred_region
      _
    $region41: #{_lambda_.2} parent=1 // pred_fallthru
      _
    // Predicated region
    $region42: #{_lambda_.2} parent=1 // pred_check
      _
    $region43: #{_lambda_.2} parent=1 // pred_check_branch
      %106 = sbr.rel (0) target = $region45
    $region44: #{_lambda_.2} parent=1 // pred_region
      %108 = vsyncadd [#allocation11], 0
      %s109 = sshll.u32 %s10, 4
      %s110 = int_to_ptr.hbm [resolvable:$true] %s109
      %s111 = sshll.u32 [#allocation10], 4
      %s112 = int_to_ptr.vmem [resolvable:$true] %s111
      %117 = dma.hbm_to_vmem [thread:$0]  %s110, 320, %s112, [#allocation11], 64, 64, 4
    $region45: #{_lambda_.2} parent=1 // pred_fallthru
      _
    // Predicated region
    $region46: #{_lambda_.2} parent=1 // pred_check
      _
    $region47: #{_lambda_.2} parent=1 // pred_check_branch
      %119 = sbr.rel (0) target = $region49
    $region48: #{_lambda_.2} parent=1 // pred_region
      %121 = vsyncadd [#allocation11], 0
      %s122 = sshll.u32 %s11, 4
      %s123 = int_to_ptr.hbm [resolvable:$true] %s122
      %s124 = sshll.u32 [#allocation12], 4
      %s125 = int_to_ptr.vmem [resolvable:$true] %s124
      %130 = dma.hbm_to_vmem [thread:$0]  %s123, 5120, %s125, [#allocation11], 64, 64, 4
    $region49: #{_lambda_.2} parent=1 // pred_fallthru
      _
    // Predicated region
    $region50: #{_lambda_.2} parent=1 // pred_check
      _
    $region51: #{_lambda_.2} parent=1 // pred_check_branch
      %132 = sbr.rel (0) target = $region53
    $region52: #{_lambda_.2} parent=1 // pred_region
      _
    $region53: #{_lambda_.2} parent=1 // pred_fallthru
      _
    // Predicated region
    $region54: #{_lambda_.2} parent=1 // pred_check
      _
    $region55: #{_lambda_.2} parent=1 // pred_check_branch
      %134 = sbr.rel (0) target = $region57
    $region56: #{_lambda_.2} parent=1 // pred_region
      %136 = vsyncadd [#allocation14], 0
      %s137 = sshll.u32 %s13, 4
      %s138 = int_to_ptr.hbm [resolvable:$true] %s137
      %s139 = sshll.u32 [#allocation13], 4
      %s140 = int_to_ptr.vmem [resolvable:$true] %s139
      %145 = dma.hbm_to_vmem [thread:$0]  %s138, 4096, %s140, [#allocation14], 128, 128, 8
    $region57: #{_lambda_.2} parent=1 // pred_fallthru
      _
    // Predicated region
    $region58: #{_lambda_.2} parent=1 // pred_check
      _
    $region59: #{_lambda_.2} parent=1 // pred_check_branch
      %147 = sbr.rel (0) target = $region61
    $region60: #{_lambda_.2} parent=1 // pred_region
      _
    $region61: #{_lambda_.2} parent=1 // pred_fallthru
      _
    // Predicated region
    $region62: #{_lambda_.2} parent=1 // pred_check
      _
    $region63: #{_lambda_.2} parent=1 // pred_check_branch
      %149 = sbr.rel (0) target = $region65
    $region64: #{_lambda_.2} parent=1 // pred_region
      %151 = vsyncadd [#allocation14], 0
      %s152 = sshll.u32 %s15, 4
      %s153 = int_to_ptr.hbm [resolvable:$true] %s152
      %s154 = sshll.u32 [#allocation15], 4
      %s155 = int_to_ptr.vmem [resolvable:$true] %s154
      %160 = dma.hbm_to_vmem [thread:$0]  %s153, 4096, %s155, [#allocation14], 128, 128, 8
    $region65: #{_lambda_.2} parent=1 // pred_fallthru
      _
    // Predicated region
    $region66: #{_lambda_.2} parent=1 // pred_check
      _
    $region67: #{_lambda_.2} parent=1 // pred_check_branch
      %162 = sbr.rel (0) target = $region69
    $region68: #{_lambda_.2} parent=1 // pred_region
      _
    $region69: #{_lambda_.2} parent=1 // pred_fallthru
      _
    // Predicated region
    $region70: #{_lambda_.2} parent=1 // pred_check
      _
    $region71: #{_lambda_.2} parent=1 // pred_check_branch
      %164 = sbr.rel (0) target = $region73
    $region72: #{_lambda_.2} parent=1 // pred_region
      %166 = vsyncadd [#allocation17], 0
      %s167 = sshll.u32 %s17, 4
      %s168 = int_to_ptr.hbm [resolvable:$true] %s167
      %s169 = sshll.u32 [#allocation16], 4
      %s170 = int_to_ptr.vmem [resolvable:$true] %s169
      %175 = dma.hbm_to_vmem [thread:$0]  %s168, 2048, %s170, [#allocation17], 64, 64, 4
    $region73: #{_lambda_.2} parent=1 // pred_fallthru
      _
    // Predicated region
    $region74: #{_lambda_.2} parent=1 // pred_check
      _
    $region75: #{_lambda_.2} parent=1 // pred_check_branch
      %177 = sbr.rel (0) target = $region77
    $region76: #{_lambda_.2} parent=1 // pred_region
      _
    $region77: #{_lambda_.2} parent=1 // pred_fallthru
      _
    // Predicated region
    $region78: #{_lambda_.2} parent=1 // pred_check
      _
    $region79: #{_lambda_.2} parent=1 // pred_check_branch
      %179 = sbr.rel (0) target = $region81
    $region80: #{_lambda_.2} parent=1 // pred_region
      %181 = dma.done [#allocation3], 2560
    $region81: #{_lambda_.2} parent=1 // pred_fallthru
      _
    // Predicated region
    $region82: #{_lambda_.2} parent=1 // pred_check
      _
    $region83: #{_lambda_.2} parent=1 // pred_check_branch
      %183 = sbr.rel (0) target = $region85
    $region84: #{_lambda_.2} parent=1 // pred_region
      %185 = dma.done [#allocation5], 5120
    $region85: #{_lambda_.2} parent=1 // pred_fallthru
      _
    // Predicated region
    $region86: #{_lambda_.2} parent=1 // pred_check
      _
    $region87: #{_lambda_.2} parent=1 // pred_check_branch
      %187 = sbr.rel (0) target = $region89
    $region88: #{_lambda_.2} parent=1 // pred_region
      %189 = dma.done [#allocation5], 1280
    $region89: #{_lambda_.2} parent=1 // pred_fallthru
      _
    // Predicated region
    $region90: #{_lambda_.2} parent=1 // pred_check
      _
    $region91: #{_lambda_.2} parent=1 // pred_check_branch
      %191 = sbr.rel (0) target = $region93
    $region92: #{_lambda_.2} parent=1 // pred_region
      %193 = dma.done [#allocation8], 5120
    $region93: #{_lambda_.2} parent=1 // pred_fallthru
      _
    // Predicated region
    $region94: #{_lambda_.2} parent=1 // pred_check
      _
    $region95: #{_lambda_.2} parent=1 // pred_check_branch
      %195 = sbr.rel (0) target = $region97
    $region96: #{_lambda_.2} parent=1 // pred_region
      %197 = dma.done [#allocation8], 5120
    $region97: #{_lambda_.2} parent=1 // pred_fallthru
      _
    // Predicated region
    $region98: #{_lambda_.2} parent=1 // pred_check
      _
    $region99: #{_lambda_.2} parent=1 // pred_check_branch
      %199 = sbr.rel (0) target = $region101
    $region100: #{_lambda_.2} parent=1 // pred_region
      %201 = dma.done [#allocation11], 320
    $region101: #{_lambda_.2} parent=1 // pred_fallthru
      _
    // Predicated region
    $region102: #{_lambda_.2} parent=1 // pred_check
      _
    $region103: #{_lambda_.2} parent=1 // pred_check_branch
      %203 = sbr.rel (0) target = $region105
    $region104: #{_lambda_.2} parent=1 // pred_region
      %205 = dma.done [#allocation11], 5120
    $region105: #{_lambda_.2} parent=1 // pred_fallthru
      _
    // Predicated region
    $region106: #{_lambda_.2} parent=1 // pred_check
      _
    $region107: #{_lambda_.2} parent=1 // pred_check_branch
      %207 = sbr.rel (0) target = $region109
    $region108: #{_lambda_.2} parent=1 // pred_region
      %209 = dma.done [#allocation14], 4096
    $region109: #{_lambda_.2} parent=1 // pred_fallthru
      _
    // Predicated region
    $region110: #{_lambda_.2} parent=1 // pred_check
      _
    $region111: #{_lambda_.2} parent=1 // pred_check_branch
      %211 = sbr.rel (0) target = $region113
    $region112: #{_lambda_.2} parent=1 // pred_region
      %213 = dma.done [#allocation14], 4096
    $region113: #{_lambda_.2} parent=1 // pred_fallthru
      _
    // Predicated region
    $region114: #{_lambda_.2} parent=1 // pred_check
      _
    $region115: #{_lambda_.2} parent=1 // pred_check_branch
      %215 = sbr.rel (0) target = $region117
    $region116: #{_lambda_.2} parent=1 // pred_region
      %217 = dma.done [#allocation17], 2048
    $region117: #{_lambda_.2} parent=1 // pred_fallthru
      _
    %v218 = vld [vmem:[%s0] sm:$0xf]
    %v219 = vld [vmem:[%s0 + $0x4] sm:$0xf]
    %v220 = vld [vmem:[%s0 + $0x8] sm:$0xf]
    %v221 = vld [vmem:[%s0 + $0xc] sm:$0xf]
    %v222 = vld [vmem:[#allocation4] sm:$0xf]
    %v223 = vld [vmem:[#allocation4 + $0x4] sm:$0xf]
    %v224 = vld [vmem:[#allocation4 + $0x8] sm:$0xf]
    %v225 = vld [vmem:[#allocation4 + $0xc] sm:$0xf]
    %v226 = vld [vmem:[#allocation4 + $0x10] sm:$0xf]
    %v227 = vld [vmem:[#allocation4 + $0x14] sm:$0xf]
    %v228 = vld [vmem:[#allocation4 + $0x18] sm:$0xf]
    %v229 = vld [vmem:[#allocation4 + $0x1c] sm:$0xf]
    %v230 = vld [vmem:[#allocation4 + $0x20] sm:$0xf]
    %v231 = vld [vmem:[#allocation4 + $0x24] sm:$0xf]
    %v232 = vld [vmem:[#allocation4 + $0x28] sm:$0xf]
    %v233 = vld [vmem:[#allocation4 + $0x2c] sm:$0xf]
    %v234 = vld [vmem:[#allocation4 + $0x30] sm:$0xf]
    %v235 = vld [vmem:[#allocation4 + $0x34] sm:$0xf]
    %v236 = vld [vmem:[#allocation4 + $0x38] sm:$0xf]
    %v237 = vld [vmem:[#allocation4 + $0x3c] sm:$0xf]
    %v242 = vunpack.c.l.b16 %v218
    %v243 = vunpack.c.l.b16 %v219
    %v244 = vunpack.c.l.b16 %v220
    %v245 = vunpack.c.l.b16 %v221
    %v246 = vpack.c.b16 %v243, %v242
    %v247 = vpack.c.b16 %v245, %v244
    %v266 = vunpack.c.l.b16 %v222
    %v267 = vunpack.c.l.b16 %v223
    %v268 = vunpack.c.l.b16 %v224
    %v269 = vunpack.c.l.b16 %v225
    %v270 = vunpack.c.l.b16 %v226
    %v271 = vunpack.c.l.b16 %v227
    %v272 = vunpack.c.l.b16 %v228
    %v273 = vunpack.c.l.b16 %v229
    %v274 = vunpack.c.l.b16 %v230
    %v275 = vunpack.c.l.b16 %v231
    %v276 = vunpack.c.l.b16 %v232
    %v277 = vunpack.c.l.b16 %v233
    %v278 = vunpack.c.l.b16 %v234
    %v279 = vunpack.c.l.b16 %v235
    %v280 = vunpack.c.l.b16 %v236
    %v281 = vunpack.c.l.b16 %v237
    %v282 = vpack.c.b16 %v267, %v266
    %v283 = vpack.c.b16 %v269, %v268
    %v284 = vpack.c.b16 %v271, %v270
    %v285 = vpack.c.b16 %v273, %v272
    %v286 = vpack.c.b16 %v275, %v274
    %v287 = vpack.c.b16 %v277, %v276
    %v288 = vpack.c.b16 %v279, %v278
    %v289 = vpack.c.b16 %v281, %v280
    %298 = vmatpush.bf16.msra.mxu0 %v289
    %299 = vmatpush.bf16.msra.mxu0 %v288
    %300 = vmatpush.bf16.msra.mxu0 %v287
    %301 = vmatpush.bf16.msra.mxu0 %v286
    %302 = vmatpush.bf16.msra.mxu0 %v285
    %303 = vmatpush.bf16.msra.mxu0 %v284
    %304 = vmatpush.bf16.msra.mxu0 %v283
    %305 = vmatpush.bf16.msra.mxu0 %v282
    %306 = vmatmul.bf16.gmra.mxu0 %v246
    %v307 = vpop.f32.mrf.mxu0
    %v308 = vadd.f32 0.0, %v307
    %v309 = vpop.f32.mrf.mxu0
    %v310 = vadd.f32 0.0, %v309
    %311 = vmatmul.bf16.gmra.mxu0 %v247
    %v312 = vpop.f32.mrf.mxu0
    %v313 = vadd.f32 0.0, %v312
    %v314 = vpop.f32.mrf.mxu0
    %v315 = vadd.f32 0.0, %v314
    %316 = vdwg.mxu0
    %v317 = vld [vmem:[#allocation2] sm:$0xff]
    %v318 = vld [vmem:[#allocation2 + $0x8] sm:$0xff]
    %v319 = vld [vmem:[#allocation2 + $0x10] sm:$0xff]
    %v320 = vld [vmem:[#allocation2 + $0x18] sm:$0xff]
    %s321 = scalar_lea.vmem [#allocation4], 64
    %v322 = vld [vmem:[%s321] sm:$0xf]
    %v323 = vld [vmem:[%s321 + $0x4] sm:$0xf]
    %v324 = vld [vmem:[%s321 + $0x8] sm:$0xf]
    %v325 = vld [vmem:[%s321 + $0xc] sm:$0xf]
    %v326 = vld [vmem:[%s321 + $0x10] sm:$0xf]
    %v327 = vld [vmem:[%s321 + $0x14] sm:$0xf]
    %v328 = vld [vmem:[%s321 + $0x18] sm:$0xf]
    %v329 = vld [vmem:[%s321 + $0x1c] sm:$0xf]
    %v330 = vld [vmem:[%s321 + $0x20] sm:$0xf]
    %v331 = vld [vmem:[%s321 + $0x24] sm:$0xf]
    %v332 = vld [vmem:[%s321 + $0x28] sm:$0xf]
    %v333 = vld [vmem:[%s321 + $0x2c] sm:$0xf]
    %v334 = vld [vmem:[%s321 + $0x30] sm:$0xf]
    %v335 = vld [vmem:[%s321 + $0x34] sm:$0xf]
    %v336 = vld [vmem:[%s321 + $0x38] sm:$0xf]
    %v337 = vld [vmem:[%s321 + $0x3c] sm:$0xf]
    %v354 = vunpack.c.l.b16 %v322
    %v355 = vunpack.c.l.b16 %v323
    %v356 = vunpack.c.l.b16 %v324
    %v357 = vunpack.c.l.b16 %v325
    %v358 = vunpack.c.l.b16 %v326
    %v359 = vunpack.c.l.b16 %v327
    %v360 = vunpack.c.l.b16 %v328
    %v361 = vunpack.c.l.b16 %v329
    %v362 = vunpack.c.l.b16 %v330
    %v363 = vunpack.c.l.b16 %v331
    %v364 = vunpack.c.l.b16 %v332
    %v365 = vunpack.c.l.b16 %v333
    %v366 = vunpack.c.l.b16 %v334
    %v367 = vunpack.c.l.b16 %v335
    %v368 = vunpack.c.l.b16 %v336
    %v369 = vunpack.c.l.b16 %v337
    %v370 = vpack.c.b16 %v355, %v354
    %v371 = vpack.c.b16 %v357, %v356
    %v372 = vpack.c.b16 %v359, %v358
    %v373 = vpack.c.b16 %v361, %v360
    %v374 = vpack.c.b16 %v363, %v362
    %v375 = vpack.c.b16 %v365, %v364
    %v376 = vpack.c.b16 %v367, %v366
    %v377 = vpack.c.b16 %v369, %v368
    %386 = vmatpush.bf16.msra.mxu0 %v377
    %387 = vmatpush.bf16.msra.mxu0 %v376
    %388 = vmatpush.bf16.msra.mxu0 %v375
    %389 = vmatpush.bf16.msra.mxu0 %v374
    %390 = vmatpush.bf16.msra.mxu0 %v373
    %391 = vmatpush.bf16.msra.mxu0 %v372
    %392 = vmatpush.bf16.msra.mxu0 %v371
    %393 = vmatpush.bf16.msra.mxu0 %v370
    %394 = vmatmul.bf16.gmra.mxu0 %v246
    %v395 = vpop.f32.mrf.mxu0
    %v396 = vadd.f32 0.0, %v395
    %v397 = vpop.f32.mrf.mxu0
    %v398 = vadd.f32 0.0, %v397
    %399 = vmatmul.bf16.gmra.mxu0 %v247
    %v400 = vpop.f32.mrf.mxu0
    %v401 = vadd.f32 0.0, %v400
    %v402 = vpop.f32.mrf.mxu0
    %v403 = vadd.f32 0.0, %v402
    %404 = vdwg.mxu0
    %s405 = scalar_lea.vmem [#allocation2], 32
    %v406 = vld [vmem:[%s405] sm:$0xff]
    %v407 = vld [vmem:[%s405 + $0x8] sm:$0xff]
    %v408 = vld [vmem:[%s405 + $0x10] sm:$0xff]
    %v409 = vld [vmem:[%s405 + $0x18] sm:$0xff]
    %vm410 = vcmask 261120
    %v412 = vsel %vm410, %v406, 0
    %v415 = vsel %vm410, %v407, 0
    %v418 = vsel %vm410, %v408, 0
    %v421 = vsel %vm410, %v409, 0
    %423 = vmatpush.msra.mxu0 0.0
    %424 = vmatpush.msra.mxu0 0.0
    %425 = vmatpush.msra.mxu0 0.0
    %426 = vmatpush.msra.mxu0 0.0
    %427 = vmatpush.msra.mxu0 0.0
    %428 = vmatpush.msra.mxu0 0.0
    %429 = vmatpush.msra.mxu0 0.0
    %430 = vmatpush.msra.mxu0 0.0
    %431 = vmatpush.msra.mxu0 0.0
    %432 = vmatpush.msra.mxu0 0.0
    %433 = vmatpush.msra.mxu0 0.0
    %434 = vmatpush.msra.mxu0 0.0
    %435 = vmatpush.msra.mxu0 %v403
    %436 = vmatpush.msra.mxu0 %v401
    %437 = vmatpush.msra.mxu0 %v398
    %438 = vmatpush.msra.mxu0 %v396
    %439 = vmatmul.f32.gmra.mxu0 %v412
    %v440 = vpop.f32.mrf.mxu0
    %v441 = vadd.f32 0.0, %v440
    %442 = vmatmul.f32.gmra.mxu0 %v415
    %v443 = vpop.f32.mrf.mxu0
    %v444 = vadd.f32 0.0, %v443
    %445 = vmatmul.f32.gmra.mxu0 %v418
    %v446 = vpop.f32.mrf.mxu0
    %v447 = vadd.f32 0.0, %v446
    %448 = vmatmul.f32.gmra.mxu0 %v421
    %v449 = vpop.f32.mrf.mxu0
    %v450 = vadd.f32 0.0, %v449
    %451 = vdwg.mxu0
    %v453 = vsel %vm410, %v317, 0
    %v456 = vsel %vm410, %v318, 0
    %v459 = vsel %vm410, %v319, 0
    %v462 = vsel %vm410, %v320, 0
    %464 = vmatpush.msra.mxu0 0.0
    %465 = vmatpush.msra.mxu0 0.0
    %466 = vmatpush.msra.mxu0 0.0
    %467 = vmatpush.msra.mxu0 0.0
    %468 = vmatpush.msra.mxu0 0.0
    %469 = vmatpush.msra.mxu0 0.0
    %470 = vmatpush.msra.mxu0 0.0
    %471 = vmatpush.msra.mxu0 0.0
    %472 = vmatpush.msra.mxu0 0.0
    %473 = vmatpush.msra.mxu0 0.0
    %474 = vmatpush.msra.mxu0 0.0
    %475 = vmatpush.msra.mxu0 0.0
    %476 = vmatpush.msra.mxu0 %v315
    %477 = vmatpush.msra.mxu0 %v313
    %478 = vmatpush.msra.mxu0 %v310
    %479 = vmatpush.msra.mxu0 %v308
    %480 = vmatmul.f32.gmra.mxu0 %v453
    %v481 = vpop.f32.mrf.mxu0
    %v482 = vadd.f32 %v441, %v481
    %483 = vmatmul.f32.gmra.mxu0 %v456
    %v484 = vpop.f32.mrf.mxu0
    %v485 = vadd.f32 %v444, %v484
    %486 = vmatmul.f32.gmra.mxu0 %v459
    %v487 = vpop.f32.mrf.mxu0
    %v488 = vadd.f32 %v447, %v487
    %489 = vmatmul.f32.gmra.mxu0 %v462
    %v490 = vpop.f32.mrf.mxu0
    %v491 = vadd.f32 %v450, %v490
    %492 = vdwg.mxu0
    %s493 = scalar_lea.vmem [#allocation4], 128
    %v494 = vld [vmem:[%s493] sm:$0xf]
    %v495 = vld [vmem:[%s493 + $0x4] sm:$0xf]
    %v496 = vld [vmem:[%s493 + $0x8] sm:$0xf]
    %v497 = vld [vmem:[%s493 + $0xc] sm:$0xf]
    %v498 = vld [vmem:[%s493 + $0x10] sm:$0xf]
    %v499 = vld [vmem:[%s493 + $0x14] sm:$0xf]
    %v500 = vld [vmem:[%s493 + $0x18] sm:$0xf]
    %v501 = vld [vmem:[%s493 + $0x1c] sm:$0xf]
    %v502 = vld [vmem:[%s493 + $0x20] sm:$0xf]
    %v503 = vld [vmem:[%s493 + $0x24] sm:$0xf]
    %v504 = vld [vmem:[%s493 + $0x28] sm:$0xf]
    %v505 = vld [vmem:[%s493 + $0x2c] sm:$0xf]
    %v506 = vld [vmem:[%s493 + $0x30] sm:$0xf]
    %v507 = vld [vmem:[%s493 + $0x34] sm:$0xf]
    %v508 = vld [vmem:[%s493 + $0x38] sm:$0xf]
    %v509 = vld [vmem:[%s493 + $0x3c] sm:$0xf]
    %v526 = vunpack.c.l.b16 %v494
    %v527 = vunpack.c.l.b16 %v495
    %v528 = vunpack.c.l.b16 %v496
    %v529 = vunpack.c.l.b16 %v497
    %v530 = vunpack.c.l.b16 %v498
    %v531 = vunpack.c.l.b16 %v499
    %v532 = vunpack.c.l.b16 %v500
    %v533 = vunpack.c.l.b16 %v501
    %v534 = vunpack.c.l.b16 %v502
    %v535 = vunpack.c.l.b16 %v503
    %v536 = vunpack.c.l.b16 %v504
    %v537 = vunpack.c.l.b16 %v505
    %v538 = vunpack.c.l.b16 %v506
    %v539 = vunpack.c.l.b16 %v507
    %v540 = vunpack.c.l.b16 %v508
    %v541 = vunpack.c.l.b16 %v509
    %v542 = vpack.c.b16 %v527, %v526
    %v543 = vpack.c.b16 %v529, %v528
    %v544 = vpack.c.b16 %v531, %v530
    %v545 = vpack.c.b16 %v533, %v532
    %v546 = vpack.c.b16 %v535, %v534
    %v547 = vpack.c.b16 %v537, %v536
    %v548 = vpack.c.b16 %v539, %v538
    %v549 = vpack.c.b16 %v541, %v540
    %558 = vmatpush.bf16.msra.mxu0 %v549
    %559 = vmatpush.bf16.msra.mxu0 %v548
    %560 = vmatpush.bf16.msra.mxu0 %v547
    %561 = vmatpush.bf16.msra.mxu0 %v546
    %562 = vmatpush.bf16.msra.mxu0 %v545
    %563 = vmatpush.bf16.msra.mxu0 %v544
    %564 = vmatpush.bf16.msra.mxu0 %v543
    %565 = vmatpush.bf16.msra.mxu0 %v542
    %566 = vmatmul.bf16.gmra.mxu0 %v246
    %v567 = vpop.f32.mrf.mxu0
    %v568 = vadd.f32 0.0, %v567
    %v569 = vpop.f32.mrf.mxu0
    %v570 = vadd.f32 0.0, %v569
    %571 = vmatmul.bf16.gmra.mxu0 %v247
    %v572 = vpop.f32.mrf.mxu0
    %v573 = vadd.f32 0.0, %v572
    %v574 = vpop.f32.mrf.mxu0
    %v575 = vadd.f32 0.0, %v574
    %576 = vdwg.mxu0
    %s577 = scalar_lea.vmem [#allocation2], 64
    %v578 = vld [vmem:[%s577] sm:$0xff]
    %v579 = vld [vmem:[%s577 + $0x8] sm:$0xff]
    %v580 = vld [vmem:[%s577 + $0x10] sm:$0xff]
    %v581 = vld [vmem:[%s577 + $0x18] sm:$0xff]
    %v583 = vsel %vm410, %v578, 0
    %v586 = vsel %vm410, %v579, 0
    %v589 = vsel %vm410, %v580, 0
    %v592 = vsel %vm410, %v581, 0
    %594 = vmatpush.msra.mxu0 0.0
    %595 = vmatpush.msra.mxu0 0.0
    %596 = vmatpush.msra.mxu0 0.0
    %597 = vmatpush.msra.mxu0 0.0
    %598 = vmatpush.msra.mxu0 0.0
    %599 = vmatpush.msra.mxu0 0.0
    %600 = vmatpush.msra.mxu0 0.0
    %601 = vmatpush.msra.mxu0 0.0
    %602 = vmatpush.msra.mxu0 0.0
    %603 = vmatpush.msra.mxu0 0.0
    %604 = vmatpush.msra.mxu0 0.0
    %605 = vmatpush.msra.mxu0 0.0
    %606 = vmatpush.msra.mxu0 %v575
    %607 = vmatpush.msra.mxu0 %v573
    %608 = vmatpush.msra.mxu0 %v570
    %609 = vmatpush.msra.mxu0 %v568
    %610 = vmatmul.f32.gmra.mxu0 %v583
    %v611 = vpop.f32.mrf.mxu0
    %v612 = vadd.f32 0.0, %v611
    %613 = vmatmul.f32.gmra.mxu0 %v586
    %v614 = vpop.f32.mrf.mxu0
    %v615 = vadd.f32 0.0, %v614
    %616 = vmatmul.f32.gmra.mxu0 %v589
    %v617 = vpop.f32.mrf.mxu0
    %v618 = vadd.f32 0.0, %v617
    %619 = vmatmul.f32.gmra.mxu0 %v592
    %v620 = vpop.f32.mrf.mxu0
    %v621 = vadd.f32 0.0, %v620
    %622 = vdwg.mxu0
    %v623 = vadd.f32 %v482, %v612
    %v624 = vadd.f32 %v485, %v615
    %v625 = vadd.f32 %v488, %v618
    %v626 = vadd.f32 %v491, %v621
    %s627 = scalar_lea.vmem [#allocation4], 192
    %v628 = vld [vmem:[%s627] sm:$0xf]
    %v629 = vld [vmem:[%s627 + $0x4] sm:$0xf]
    %v630 = vld [vmem:[%s627 + $0x8] sm:$0xf]
    %v631 = vld [vmem:[%s627 + $0xc] sm:$0xf]
    %v632 = vld [vmem:[%s627 + $0x10] sm:$0xf]
    %v633 = vld [vmem:[%s627 + $0x14] sm:$0xf]
    %v634 = vld [vmem:[%s627 + $0x18] sm:$0xf]
    %v635 = vld [vmem:[%s627 + $0x1c] sm:$0xf]
    %v636 = vld [vmem:[%s627 + $0x20] sm:$0xf]
    %v637 = vld [vmem:[%s627 + $0x24] sm:$0xf]
    %v638 = vld [vmem:[%s627 + $0x28] sm:$0xf]
    %v639 = vld [vmem:[%s627 + $0x2c] sm:$0xf]
    %v640 = vld [vmem:[%s627 + $0x30] sm:$0xf]
    %v641 = vld [vmem:[%s627 + $0x34] sm:$0xf]
    %v642 = vld [vmem:[%s627 + $0x38] sm:$0xf]
    %v643 = vld [vmem:[%s627 + $0x3c] sm:$0xf]
    %v660 = vunpack.c.l.b16 %v628
    %v661 = vunpack.c.l.b16 %v629
    %v662 = vunpack.c.l.b16 %v630
    %v663 = vunpack.c.l.b16 %v631
    %v664 = vunpack.c.l.b16 %v632
    %v665 = vunpack.c.l.b16 %v633
    %v666 = vunpack.c.l.b16 %v634
    %v667 = vunpack.c.l.b16 %v635
    %v668 = vunpack.c.l.b16 %v636
    %v669 = vunpack.c.l.b16 %v637
    %v670 = vunpack.c.l.b16 %v638
    %v671 = vunpack.c.l.b16 %v639
    %v672 = vunpack.c.l.b16 %v640
    %v673 = vunpack.c.l.b16 %v641
    %v674 = vunpack.c.l.b16 %v642
    %v675 = vunpack.c.l.b16 %v643
    %v676 = vpack.c.b16 %v661, %v660
    %v677 = vpack.c.b16 %v663, %v662
    %v678 = vpack.c.b16 %v665, %v664
    %v679 = vpack.c.b16 %v667, %v666
    %v680 = vpack.c.b16 %v669, %v668
    %v681 = vpack.c.b16 %v671, %v670
    %v682 = vpack.c.b16 %v673, %v672
    %v683 = vpack.c.b16 %v675, %v674
    %692 = vmatpush.bf16.msra.mxu0 %v683
    %693 = vmatpush.bf16.msra.mxu0 %v682
    %694 = vmatpush.bf16.msra.mxu0 %v681
    %695 = vmatpush.bf16.msra.mxu0 %v680
    %696 = vmatpush.bf16.msra.mxu0 %v679
    %697 = vmatpush.bf16.msra.mxu0 %v678
    %698 = vmatpush.bf16.msra.mxu0 %v677
    %699 = vmatpush.bf16.msra.mxu0 %v676
    %700 = vmatmul.bf16.gmra.mxu0 %v246
    %v701 = vpop.f32.mrf.mxu0
    %v702 = vadd.f32 0.0, %v701
    %v703 = vpop.f32.mrf.mxu0
    %v704 = vadd.f32 0.0, %v703
    %705 = vmatmul.bf16.gmra.mxu0 %v247
    %v706 = vpop.f32.mrf.mxu0
    %v707 = vadd.f32 0.0, %v706
    %v708 = vpop.f32.mrf.mxu0
    %v709 = vadd.f32 0.0, %v708
    %710 = vdwg.mxu0
    %s711 = scalar_lea.vmem [#allocation2], 96
    %v712 = vld [vmem:[%s711] sm:$0xff]
    %v713 = vld [vmem:[%s711 + $0x8] sm:$0xff]
    %v714 = vld [vmem:[%s711 + $0x10] sm:$0xff]
    %v715 = vld [vmem:[%s711 + $0x18] sm:$0xff]
    %v717 = vsel %vm410, %v712, 0
    %v720 = vsel %vm410, %v713, 0
    %v723 = vsel %vm410, %v714, 0
    %v726 = vsel %vm410, %v715, 0
    %728 = vmatpush.msra.mxu0 0.0
    %729 = vmatpush.msra.mxu0 0.0
    %730 = vmatpush.msra.mxu0 0.0
    %731 = vmatpush.msra.mxu0 0.0
    %732 = vmatpush.msra.mxu0 0.0
    %733 = vmatpush.msra.mxu0 0.0
    %734 = vmatpush.msra.mxu0 0.0
    %735 = vmatpush.msra.mxu0 0.0
    %736 = vmatpush.msra.mxu0 0.0
    %737 = vmatpush.msra.mxu0 0.0
    %738 = vmatpush.msra.mxu0 0.0
    %739 = vmatpush.msra.mxu0 0.0
    %740 = vmatpush.msra.mxu0 %v709
    %741 = vmatpush.msra.mxu0 %v707
    %742 = vmatpush.msra.mxu0 %v704
    %743 = vmatpush.msra.mxu0 %v702
    %744 = vmatmul.f32.gmra.mxu0 %v717
    %v745 = vpop.f32.mrf.mxu0
    %v746 = vadd.f32 0.0, %v745
    %747 = vmatmul.f32.gmra.mxu0 %v720
    %v748 = vpop.f32.mrf.mxu0
    %v749 = vadd.f32 0.0, %v748
    %750 = vmatmul.f32.gmra.mxu0 %v723
    %v751 = vpop.f32.mrf.mxu0
    %v752 = vadd.f32 0.0, %v751
    %753 = vmatmul.f32.gmra.mxu0 %v726
    %v754 = vpop.f32.mrf.mxu0
    %v755 = vadd.f32 0.0, %v754
    %756 = vdwg.mxu0
    %v757 = vadd.f32 %v623, %v746
    %v758 = vadd.f32 %v624, %v749
    %v759 = vadd.f32 %v625, %v752
    %v760 = vadd.f32 %v626, %v755
    %s761 = scalar_lea.vmem [#allocation4], 256
    %v762 = vld [vmem:[%s761] sm:$0xf]
    %v763 = vld [vmem:[%s761 + $0x4] sm:$0xf]
    %v764 = vld [vmem:[%s761 + $0x8] sm:$0xf]
    %v765 = vld [vmem:[%s761 + $0xc] sm:$0xf]
    %v766 = vld [vmem:[%s761 + $0x10] sm:$0xf]
    %v767 = vld [vmem:[%s761 + $0x14] sm:$0xf]
    %v768 = vld [vmem:[%s761 + $0x18] sm:$0xf]
    %v769 = vld [vmem:[%s761 + $0x1c] sm:$0xf]
    %v770 = vld [vmem:[%s761 + $0x20] sm:$0xf]
    %v771 = vld [vmem:[%s761 + $0x24] sm:$0xf]
    %v772 = vld [vmem:[%s761 + $0x28] sm:$0xf]
    %v773 = vld [vmem:[%s761 + $0x2c] sm:$0xf]
    %v774 = vld [vmem:[%s761 + $0x30] sm:$0xf]
    %v775 = vld [vmem:[%s761 + $0x34] sm:$0xf]
    %v776 = vld [vmem:[%s761 + $0x38] sm:$0xf]
    %v777 = vld [vmem:[%s761 + $0x3c] sm:$0xf]
    %v794 = vunpack.c.l.b16 %v762
    %v795 = vunpack.c.l.b16 %v763
    %v796 = vunpack.c.l.b16 %v764
    %v797 = vunpack.c.l.b16 %v765
    %v798 = vunpack.c.l.b16 %v766
    %v799 = vunpack.c.l.b16 %v767
    %v800 = vunpack.c.l.b16 %v768
    %v801 = vunpack.c.l.b16 %v769
    %v802 = vunpack.c.l.b16 %v770
    %v803 = vunpack.c.l.b16 %v771
    %v804 = vunpack.c.l.b16 %v772
    %v805 = vunpack.c.l.b16 %v773
    %v806 = vunpack.c.l.b16 %v774
    %v807 = vunpack.c.l.b16 %v775
    %v808 = vunpack.c.l.b16 %v776
    %v809 = vunpack.c.l.b16 %v777
    %v810 = vpack.c.b16 %v795, %v794
    %v811 = vpack.c.b16 %v797, %v796
    %v812 = vpack.c.b16 %v799, %v798
    %v813 = vpack.c.b16 %v801, %v800
    %v814 = vpack.c.b16 %v803, %v802
    %v815 = vpack.c.b16 %v805, %v804
    %v816 = vpack.c.b16 %v807, %v806
    %v817 = vpack.c.b16 %v809, %v808
    %826 = vmatpush.bf16.msra.mxu0 %v817
    %827 = vmatpush.bf16.msra.mxu0 %v816
    %828 = vmatpush.bf16.msra.mxu0 %v815
    %829 = vmatpush.bf16.msra.mxu0 %v814
    %830 = vmatpush.bf16.msra.mxu0 %v813
    %831 = vmatpush.bf16.msra.mxu0 %v812
    %832 = vmatpush.bf16.msra.mxu0 %v811
    %833 = vmatpush.bf16.msra.mxu0 %v810
    %834 = vmatmul.bf16.gmra.mxu0 %v246
    %v835 = vpop.f32.mrf.mxu0
    %v836 = vadd.f32 0.0, %v835
    %v837 = vpop.f32.mrf.mxu0
    %v838 = vadd.f32 0.0, %v837
    %839 = vmatmul.bf16.gmra.mxu0 %v247
    %v840 = vpop.f32.mrf.mxu0
    %v841 = vadd.f32 0.0, %v840
    %v842 = vpop.f32.mrf.mxu0
    %v843 = vadd.f32 0.0, %v842
    %844 = vdwg.mxu0
    %s845 = scalar_lea.vmem [#allocation2], 128
    %v846 = vld [vmem:[%s845] sm:$0xff]
    %v847 = vld [vmem:[%s845 + $0x8] sm:$0xff]
    %v848 = vld [vmem:[%s845 + $0x10] sm:$0xff]
    %v849 = vld [vmem:[%s845 + $0x18] sm:$0xff]
    %v851 = vsel %vm410, %v846, 0
    %v854 = vsel %vm410, %v847, 0
    %v857 = vsel %vm410, %v848, 0
    %v860 = vsel %vm410, %v849, 0
    %862 = vmatpush.msra.mxu0 0.0
    %863 = vmatpush.msra.mxu0 0.0
    %864 = vmatpush.msra.mxu0 0.0
    %865 = vmatpush.msra.mxu0 0.0
    %866 = vmatpush.msra.mxu0 0.0
    %867 = vmatpush.msra.mxu0 0.0
    %868 = vmatpush.msra.mxu0 0.0
    %869 = vmatpush.msra.mxu0 0.0
    %870 = vmatpush.msra.mxu0 0.0
    %871 = vmatpush.msra.mxu0 0.0
    %872 = vmatpush.msra.mxu0 0.0
    %873 = vmatpush.msra.mxu0 0.0
    %874 = vmatpush.msra.mxu0 %v843
    %875 = vmatpush.msra.mxu0 %v841
    %876 = vmatpush.msra.mxu0 %v838
    %877 = vmatpush.msra.mxu0 %v836
    %878 = vmatmul.f32.gmra.mxu0 %v851
    %v879 = vpop.f32.mrf.mxu0
    %v880 = vadd.f32 0.0, %v879
    %881 = vmatmul.f32.gmra.mxu0 %v854
    %v882 = vpop.f32.mrf.mxu0
    %v883 = vadd.f32 0.0, %v882
    %884 = vmatmul.f32.gmra.mxu0 %v857
    %v885 = vpop.f32.mrf.mxu0
    %v886 = vadd.f32 0.0, %v885
    %887 = vmatmul.f32.gmra.mxu0 %v860
    %v888 = vpop.f32.mrf.mxu0
    %v889 = vadd.f32 0.0, %v888
    %890 = vdwg.mxu0
    %v891 = vadd.f32 %v757, %v880
    %v892 = vadd.f32 %v758, %v883
    %v893 = vadd.f32 %v759, %v886
    %v894 = vadd.f32 %v760, %v889
    %v895 = vld [vmem:[%s3] sm:$0x1]
    %v897 = vperm.slane %v895, 0
    %v899 = vadd.f32 %v891, %v897
    %v900 = vadd.f32 %v892, %v897
    %v901 = vadd.f32 %v893, %v897
    %v902 = vadd.f32 %v894, %v897
    %vm903 = vcmp.gt.f32.partialorder %v899, 0.0
    %vm904 = vcmp.gt.f32.partialorder %v900, 0.0
    %vm905 = vcmp.gt.f32.partialorder %v901, 0.0
    %vm906 = vcmp.gt.f32.partialorder %v902, 0.0
    %v907 = vmul.f32 %v899, 1.442695
    %v908 = vpow.pop %v907
    %v909 = vmul.f32 %v900, 1.442695
    %v910 = vpow.pop %v909
    %v911 = vmul.f32 %v901, 1.442695
    %v912 = vpow.pop %v911
    %v913 = vmul.f32 %v902, 1.442695
    %v914 = vpow.pop %v913
    %v915 = vsub.f32 %v908, 1.0
    %v916 = vsub.f32 %v910, 1.0
    %v917 = vsub.f32 %v912, 1.0
    %v918 = vsub.f32 %v914, 1.0
    %v919 = vsel %vm903, %v899, %v915
    %v920 = vsel %vm904, %v900, %v916
    %v921 = vsel %vm905, %v901, %v917
    %v922 = vsel %vm906, %v902, %v918
    %v923 = vpack.c.bf16 %v920, %v919
    %v924 = vpack.c.bf16 %v922, %v921
    %v925 = vld [vmem:[#allocation7] sm:$0xf]
    %v926 = vld [vmem:[#allocation7 + $0x4] sm:$0xf]
    %v927 = vld [vmem:[#allocation7 + $0x8] sm:$0xf]
    %v928 = vld [vmem:[#allocation7 + $0xc] sm:$0xf]
    %v929 = vld [vmem:[#allocation7 + $0x10] sm:$0xf]
    %v930 = vld [vmem:[#allocation7 + $0x14] sm:$0xf]
    %v931 = vld [vmem:[#allocation7 + $0x18] sm:$0xf]
    %v932 = vld [vmem:[#allocation7 + $0x1c] sm:$0xf]
    %v933 = vld [vmem:[#allocation7 + $0x20] sm:$0xf]
    %v934 = vld [vmem:[#allocation7 + $0x24] sm:$0xf]
    %v935 = vld [vmem:[#allocation7 + $0x28] sm:$0xf]
    %v936 = vld [vmem:[#allocation7 + $0x2c] sm:$0xf]
    %v937 = vld [vmem:[#allocation7 + $0x30] sm:$0xf]
    %v938 = vld [vmem:[#allocation7 + $0x34] sm:$0xf]
    %v939 = vld [vmem:[#allocation7 + $0x38] sm:$0xf]
    %v940 = vld [vmem:[#allocation7 + $0x3c] sm:$0xf]
    %v957 = vunpack.c.l.b16 %v925
    %v958 = vunpack.c.l.b16 %v926
    %v959 = vunpack.c.l.b16 %v927
    %v960 = vunpack.c.l.b16 %v928
    %v961 = vunpack.c.l.b16 %v929
    %v962 = vunpack.c.l.b16 %v930
    %v963 = vunpack.c.l.b16 %v931
    %v964 = vunpack.c.l.b16 %v932
    %v965 = vunpack.c.l.b16 %v933
    %v966 = vunpack.c.l.b16 %v934
    %v967 = vunpack.c.l.b16 %v935
    %v968 = vunpack.c.l.b16 %v936
    %v969 = vunpack.c.l.b16 %v937
    %v970 = vunpack.c.l.b16 %v938
    %v971 = vunpack.c.l.b16 %v939
    %v972 = vunpack.c.l.b16 %v940
    %v973 = vpack.c.b16 %v958, %v957
    %v974 = vpack.c.b16 %v960, %v959
    %v975 = vpack.c.b16 %v962, %v961
    %v976 = vpack.c.b16 %v964, %v963
    %v977 = vpack.c.b16 %v966, %v965
    %v978 = vpack.c.b16 %v968, %v967
    %v979 = vpack.c.b16 %v970, %v969
    %v980 = vpack.c.b16 %v972, %v971
    %989 = vmatpush.bf16.msra.mxu0 %v980
    %990 = vmatpush.bf16.msra.mxu0 %v979
    %991 = vmatpush.bf16.msra.mxu0 %v978
    %992 = vmatpush.bf16.msra.mxu0 %v977
    %993 = vmatpush.bf16.msra.mxu0 %v976
    %994 = vmatpush.bf16.msra.mxu0 %v975
    %995 = vmatpush.bf16.msra.mxu0 %v974
    %996 = vmatpush.bf16.msra.mxu0 %v973
    %997 = vmatmul.bf16.gmra.mxu0 %v923
    %v998 = vpop.f32.mrf.mxu0
    %v999 = vadd.f32 0.0, %v998
    %v1000 = vpop.f32.mrf.mxu0
    %v1001 = vadd.f32 0.0, %v1000
    %1002 = vmatmul.bf16.gmra.mxu0 %v924
    %v1003 = vpop.f32.mrf.mxu0
    %v1004 = vadd.f32 0.0, %v1003
    %v1005 = vpop.f32.mrf.mxu0
    %v1006 = vadd.f32 0.0, %v1005
    %1007 = vdwg.mxu0
    %v1008 = vld [vmem:[#allocation6] sm:$0xff]
    %v1009 = vld [vmem:[#allocation6 + $0x8] sm:$0xff]
    %s1010 = scalar_lea.vmem [#allocation7], 64
    %v1011 = vld [vmem:[%s1010] sm:$0xf]
    %v1012 = vld [vmem:[%s1010 + $0x4] sm:$0xf]
    %v1013 = vld [vmem:[%s1010 + $0x8] sm:$0xf]
    %v1014 = vld [vmem:[%s1010 + $0xc] sm:$0xf]
    %v1015 = vld [vmem:[%s1010 + $0x10] sm:$0xf]
    %v1016 = vld [vmem:[%s1010 + $0x14] sm:$0xf]
    %v1017 = vld [vmem:[%s1010 + $0x18] sm:$0xf]
    %v1018 = vld [vmem:[%s1010 + $0x1c] sm:$0xf]
    %v1019 = vld [vmem:[%s1010 + $0x20] sm:$0xf]
    %v1020 = vld [vmem:[%s1010 + $0x24] sm:$0xf]
    %v1021 = vld [vmem:[%s1010 + $0x28] sm:$0xf]
    %v1022 = vld [vmem:[%s1010 + $0x2c] sm:$0xf]
    %v1023 = vld [vmem:[%s1010 + $0x30] sm:$0xf]
    %v1024 = vld [vmem:[%s1010 + $0x34] sm:$0xf]
    %v1025 = vld [vmem:[%s1010 + $0x38] sm:$0xf]
    %v1026 = vld [vmem:[%s1010 + $0x3c] sm:$0xf]
    %v1043 = vunpack.c.l.b16 %v1011
    %v1044 = vunpack.c.l.b16 %v1012
    %v1045 = vunpack.c.l.b16 %v1013
    %v1046 = vunpack.c.l.b16 %v1014
    %v1047 = vunpack.c.l.b16 %v1015
    %v1048 = vunpack.c.l.b16 %v1016
    %v1049 = vunpack.c.l.b16 %v1017
    %v1050 = vunpack.c.l.b16 %v1018
    %v1051 = vunpack.c.l.b16 %v1019
    %v1052 = vunpack.c.l.b16 %v1020
    %v1053 = vunpack.c.l.b16 %v1021
    %v1054 = vunpack.c.l.b16 %v1022
    %v1055 = vunpack.c.l.b16 %v1023
    %v1056 = vunpack.c.l.b16 %v1024
    %v1057 = vunpack.c.l.b16 %v1025
    %v1058 = vunpack.c.l.b16 %v1026
    %v1059 = vpack.c.b16 %v1044, %v1043
    %v1060 = vpack.c.b16 %v1046, %v1045
    %v1061 = vpack.c.b16 %v1048, %v1047
    %v1062 = vpack.c.b16 %v1050, %v1049
    %v1063 = vpack.c.b16 %v1052, %v1051
    %v1064 = vpack.c.b16 %v1054, %v1053
    %v1065 = vpack.c.b16 %v1056, %v1055
    %v1066 = vpack.c.b16 %v1058, %v1057
    %1075 = vmatpush.bf16.msra.mxu0 %v1066
    %1076 = vmatpush.bf16.msra.mxu0 %v1065
    %1077 = vmatpush.bf16.msra.mxu0 %v1064
    %1078 = vmatpush.bf16.msra.mxu0 %v1063
    %1079 = vmatpush.bf16.msra.mxu0 %v1062
    %1080 = vmatpush.bf16.msra.mxu0 %v1061
    %1081 = vmatpush.bf16.msra.mxu0 %v1060
    %1082 = vmatpush.bf16.msra.mxu0 %v1059
    %1083 = vmatmul.bf16.gmra.mxu0 %v923
    %v1084 = vpop.f32.mrf.mxu0
    %v1085 = vadd.f32 0.0, %v1084
    %v1086 = vpop.f32.mrf.mxu0
    %v1087 = vadd.f32 0.0, %v1086
    %1088 = vmatmul.bf16.gmra.mxu0 %v924
    %v1089 = vpop.f32.mrf.mxu0
    %v1090 = vadd.f32 0.0, %v1089
    %v1091 = vpop.f32.mrf.mxu0
    %v1092 = vadd.f32 0.0, %v1091
    %1093 = vdwg.mxu0
    %s1094 = scalar_lea.vmem [#allocation6], 16
    %v1095 = vld [vmem:[%s1094] sm:$0xff]
    %v1096 = vld [vmem:[%s1094 + $0x8] sm:$0xff]
    %v1098 = vsel %vm410, %v1095, 0
    %v1101 = vsel %vm410, %v1096, 0
    %1103 = vmatpush.msra.mxu0 0.0
    %1104 = vmatpush.msra.mxu0 0.0
    %1105 = vmatpush.msra.mxu0 0.0
    %1106 = vmatpush.msra.mxu0 0.0
    %1107 = vmatpush.msra.mxu0 0.0
    %1108 = vmatpush.msra.mxu0 0.0
    %1109 = vmatpush.msra.mxu0 0.0
    %1110 = vmatpush.msra.mxu0 0.0
    %1111 = vmatpush.msra.mxu0 0.0
    %1112 = vmatpush.msra.mxu0 0.0
    %1113 = vmatpush.msra.mxu0 0.0
    %1114 = vmatpush.msra.mxu0 0.0
    %1115 = vmatpush.msra.mxu0 %v1092
    %1116 = vmatpush.msra.mxu0 %v1090
    %1117 = vmatpush.msra.mxu0 %v1087
    %1118 = vmatpush.msra.mxu0 %v1085
    %1119 = vmatmul.f32.gmra.mxu0 %v1098
    %v1120 = vpop.f32.mrf.mxu0
    %v1121 = vadd.f32 0.0, %v1120
    %1122 = vmatmul.f32.gmra.mxu0 %v1101
    %v1123 = vpop.f32.mrf.mxu0
    %v1124 = vadd.f32 0.0, %v1123
    %1125 = vdwg.mxu0
    %v1127 = vsel %vm410, %v1008, 0
    %v1130 = vsel %vm410, %v1009, 0
    %1132 = vmatpush.msra.mxu0 0.0
    %1133 = vmatpush.msra.mxu0 0.0
    %1134 = vmatpush.msra.mxu0 0.0
    %1135 = vmatpush.msra.mxu0 0.0
    %1136 = vmatpush.msra.mxu0 0.0
    %1137 = vmatpush.msra.mxu0 0.0
    %1138 = vmatpush.msra.mxu0 0.0
    %1139 = vmatpush.msra.mxu0 0.0
    %1140 = vmatpush.msra.mxu0 0.0
    %1141 = vmatpush.msra.mxu0 0.0
    %1142 = vmatpush.msra.mxu0 0.0
    %1143 = vmatpush.msra.mxu0 0.0
    %1144 = vmatpush.msra.mxu0 %v1006
    %1145 = vmatpush.msra.mxu0 %v1004
    %1146 = vmatpush.msra.mxu0 %v1001
    %1147 = vmatpush.msra.mxu0 %v999
    %1148 = vmatmul.f32.gmra.mxu0 %v1127
    %v1149 = vpop.f32.mrf.mxu0
    %v1150 = vadd.f32 %v1121, %v1149
    %1151 = vmatmul.f32.gmra.mxu0 %v1130
    %v1152 = vpop.f32.mrf.mxu0
    %v1153 = vadd.f32 %v1124, %v1152
    %1154 = vdwg.mxu0
    %s1155 = scalar_lea.vmem [#allocation7], 128
    %v1156 = vld [vmem:[%s1155] sm:$0xf]
    %v1157 = vld [vmem:[%s1155 + $0x4] sm:$0xf]
    %v1158 = vld [vmem:[%s1155 + $0x8] sm:$0xf]
    %v1159 = vld [vmem:[%s1155 + $0xc] sm:$0xf]
    %v1160 = vld [vmem:[%s1155 + $0x10] sm:$0xf]
    %v1161 = vld [vmem:[%s1155 + $0x14] sm:$0xf]
    %v1162 = vld [vmem:[%s1155 + $0x18] sm:$0xf]
    %v1163 = vld [vmem:[%s1155 + $0x1c] sm:$0xf]
    %v1164 = vld [vmem:[%s1155 + $0x20] sm:$0xf]
    %v1165 = vld [vmem:[%s1155 + $0x24] sm:$0xf]
    %v1166 = vld [vmem:[%s1155 + $0x28] sm:$0xf]
    %v1167 = vld [vmem:[%s1155 + $0x2c] sm:$0xf]
    %v1168 = vld [vmem:[%s1155 + $0x30] sm:$0xf]
    %v1169 = vld [vmem:[%s1155 + $0x34] sm:$0xf]
    %v1170 = vld [vmem:[%s1155 + $0x38] sm:$0xf]
    %v1171 = vld [vmem:[%s1155 + $0x3c] sm:$0xf]
    %v1188 = vunpack.c.l.b16 %v1156
    %v1189 = vunpack.c.l.b16 %v1157
    %v1190 = vunpack.c.l.b16 %v1158
    %v1191 = vunpack.c.l.b16 %v1159
    %v1192 = vunpack.c.l.b16 %v1160
    %v1193 = vunpack.c.l.b16 %v1161
    %v1194 = vunpack.c.l.b16 %v1162
    %v1195 = vunpack.c.l.b16 %v1163
    %v1196 = vunpack.c.l.b16 %v1164
    %v1197 = vunpack.c.l.b16 %v1165
    %v1198 = vunpack.c.l.b16 %v1166
    %v1199 = vunpack.c.l.b16 %v1167
    %v1200 = vunpack.c.l.b16 %v1168
    %v1201 = vunpack.c.l.b16 %v1169
    %v1202 = vunpack.c.l.b16 %v1170
    %v1203 = vunpack.c.l.b16 %v1171
    %v1204 = vpack.c.b16 %v1189, %v1188
    %v1205 = vpack.c.b16 %v1191, %v1190
    %v1206 = vpack.c.b16 %v1193, %v1192
    %v1207 = vpack.c.b16 %v1195, %v1194
    %v1208 = vpack.c.b16 %v1197, %v1196
    %v1209 = vpack.c.b16 %v1199, %v1198
    %v1210 = vpack.c.b16 %v1201, %v1200
    %v1211 = vpack.c.b16 %v1203, %v1202
    %1220 = vmatpush.bf16.msra.mxu0 %v1211
    %1221 = vmatpush.bf16.msra.mxu0 %v1210
    %1222 = vmatpush.bf16.msra.mxu0 %v1209
    %1223 = vmatpush.bf16.msra.mxu0 %v1208
    %1224 = vmatpush.bf16.msra.mxu0 %v1207
    %1225 = vmatpush.bf16.msra.mxu0 %v1206
    %1226 = vmatpush.bf16.msra.mxu0 %v1205
    %1227 = vmatpush.bf16.msra.mxu0 %v1204
    %1228 = vmatmul.bf16.gmra.mxu0 %v923
    %v1229 = vpop.f32.mrf.mxu0
    %v1230 = vadd.f32 0.0, %v1229
    %v1231 = vpop.f32.mrf.mxu0
    %v1232 = vadd.f32 0.0, %v1231
    %1233 = vmatmul.bf16.gmra.mxu0 %v924
    %v1234 = vpop.f32.mrf.mxu0
    %v1235 = vadd.f32 0.0, %v1234
    %v1236 = vpop.f32.mrf.mxu0
    %v1237 = vadd.f32 0.0, %v1236
    %1238 = vdwg.mxu0
    %s1239 = scalar_lea.vmem [#allocation6], 32
    %v1240 = vld [vmem:[%s1239] sm:$0xff]
    %v1241 = vld [vmem:[%s1239 + $0x8] sm:$0xff]
    %v1243 = vsel %vm410, %v1240, 0
    %v1246 = vsel %vm410, %v1241, 0
    %1248 = vmatpush.msra.mxu0 0.0
    %1249 = vmatpush.msra.mxu0 0.0
    %1250 = vmatpush.msra.mxu0 0.0
    %1251 = vmatpush.msra.mxu0 0.0
    %1252 = vmatpush.msra.mxu0 0.0
    %1253 = vmatpush.msra.mxu0 0.0
    %1254 = vmatpush.msra.mxu0 0.0
    %1255 = vmatpush.msra.mxu0 0.0
    %1256 = vmatpush.msra.mxu0 0.0
    %1257 = vmatpush.msra.mxu0 0.0
    %1258 = vmatpush.msra.mxu0 0.0
    %1259 = vmatpush.msra.mxu0 0.0
    %1260 = vmatpush.msra.mxu0 %v1237
    %1261 = vmatpush.msra.mxu0 %v1235
    %1262 = vmatpush.msra.mxu0 %v1232
    %1263 = vmatpush.msra.mxu0 %v1230
    %1264 = vmatmul.f32.gmra.mxu0 %v1243
    %v1265 = vpop.f32.mrf.mxu0
    %v1266 = vadd.f32 0.0, %v1265
    %1267 = vmatmul.f32.gmra.mxu0 %v1246
    %v1268 = vpop.f32.mrf.mxu0
    %v1269 = vadd.f32 0.0, %v1268
    %1270 = vdwg.mxu0
    %v1271 = vadd.f32 %v1150, %v1266
    %v1272 = vadd.f32 %v1153, %v1269
    %s1273 = scalar_lea.vmem [#allocation7], 192
    %v1274 = vld [vmem:[%s1273] sm:$0xf]
    %v1275 = vld [vmem:[%s1273 + $0x4] sm:$0xf]
    %v1276 = vld [vmem:[%s1273 + $0x8] sm:$0xf]
    %v1277 = vld [vmem:[%s1273 + $0xc] sm:$0xf]
    %v1278 = vld [vmem:[%s1273 + $0x10] sm:$0xf]
    %v1279 = vld [vmem:[%s1273 + $0x14] sm:$0xf]
    %v1280 = vld [vmem:[%s1273 + $0x18] sm:$0xf]
    %v1281 = vld [vmem:[%s1273 + $0x1c] sm:$0xf]
    %v1282 = vld [vmem:[%s1273 + $0x20] sm:$0xf]
    %v1283 = vld [vmem:[%s1273 + $0x24] sm:$0xf]
    %v1284 = vld [vmem:[%s1273 + $0x28] sm:$0xf]
    %v1285 = vld [vmem:[%s1273 + $0x2c] sm:$0xf]
    %v1286 = vld [vmem:[%s1273 + $0x30] sm:$0xf]
    %v1287 = vld [vmem:[%s1273 + $0x34] sm:$0xf]
    %v1288 = vld [vmem:[%s1273 + $0x38] sm:$0xf]
    %v1289 = vld [vmem:[%s1273 + $0x3c] sm:$0xf]
    %v1306 = vunpack.c.l.b16 %v1274
    %v1307 = vunpack.c.l.b16 %v1275
    %v1308 = vunpack.c.l.b16 %v1276
    %v1309 = vunpack.c.l.b16 %v1277
    %v1310 = vunpack.c.l.b16 %v1278
    %v1311 = vunpack.c.l.b16 %v1279
    %v1312 = vunpack.c.l.b16 %v1280
    %v1313 = vunpack.c.l.b16 %v1281
    %v1314 = vunpack.c.l.b16 %v1282
    %v1315 = vunpack.c.l.b16 %v1283
    %v1316 = vunpack.c.l.b16 %v1284
    %v1317 = vunpack.c.l.b16 %v1285
    %v1318 = vunpack.c.l.b16 %v1286
    %v1319 = vunpack.c.l.b16 %v1287
    %v1320 = vunpack.c.l.b16 %v1288
    %v1321 = vunpack.c.l.b16 %v1289
    %v1322 = vpack.c.b16 %v1307, %v1306
    %v1323 = vpack.c.b16 %v1309, %v1308
    %v1324 = vpack.c.b16 %v1311, %v1310
    %v1325 = vpack.c.b16 %v1313, %v1312
    %v1326 = vpack.c.b16 %v1315, %v1314
    %v1327 = vpack.c.b16 %v1317, %v1316
    %v1328 = vpack.c.b16 %v1319, %v1318
    %v1329 = vpack.c.b16 %v1321, %v1320
    %1338 = vmatpush.bf16.msra.mxu0 %v1329
    %1339 = vmatpush.bf16.msra.mxu0 %v1328
    %1340 = vmatpush.bf16.msra.mxu0 %v1327
    %1341 = vmatpush.bf16.msra.mxu0 %v1326
    %1342 = vmatpush.bf16.msra.mxu0 %v1325
    %1343 = vmatpush.bf16.msra.mxu0 %v1324
    %1344 = vmatpush.bf16.msra.mxu0 %v1323
    %1345 = vmatpush.bf16.msra.mxu0 %v1322
    %1346 = vmatmul.bf16.gmra.mxu0 %v923
    %v1347 = vpop.f32.mrf.mxu0
    %v1348 = vadd.f32 0.0, %v1347
    %v1349 = vpop.f32.mrf.mxu0
    %v1350 = vadd.f32 0.0, %v1349
    %1351 = vmatmul.bf16.gmra.mxu0 %v924
    %v1352 = vpop.f32.mrf.mxu0
    %v1353 = vadd.f32 0.0, %v1352
    %v1354 = vpop.f32.mrf.mxu0
    %v1355 = vadd.f32 0.0, %v1354
    %1356 = vdwg.mxu0
    %s1357 = scalar_lea.vmem [#allocation6], 48
    %v1358 = vld [vmem:[%s1357] sm:$0xff]
    %v1359 = vld [vmem:[%s1357 + $0x8] sm:$0xff]
    %v1361 = vsel %vm410, %v1358, 0
    %v1364 = vsel %vm410, %v1359, 0
    %1366 = vmatpush.msra.mxu0 0.0
    %1367 = vmatpush.msra.mxu0 0.0
    %1368 = vmatpush.msra.mxu0 0.0
    %1369 = vmatpush.msra.mxu0 0.0
    %1370 = vmatpush.msra.mxu0 0.0
    %1371 = vmatpush.msra.mxu0 0.0
    %1372 = vmatpush.msra.mxu0 0.0
    %1373 = vmatpush.msra.mxu0 0.0
    %1374 = vmatpush.msra.mxu0 0.0
    %1375 = vmatpush.msra.mxu0 0.0
    %1376 = vmatpush.msra.mxu0 0.0
    %1377 = vmatpush.msra.mxu0 0.0
    %1378 = vmatpush.msra.mxu0 %v1355
    %1379 = vmatpush.msra.mxu0 %v1353
    %1380 = vmatpush.msra.mxu0 %v1350
    %1381 = vmatpush.msra.mxu0 %v1348
    %1382 = vmatmul.f32.gmra.mxu0 %v1361
    %v1383 = vpop.f32.mrf.mxu0
    %v1384 = vadd.f32 0.0, %v1383
    %1385 = vmatmul.f32.gmra.mxu0 %v1364
    %v1386 = vpop.f32.mrf.mxu0
    %v1387 = vadd.f32 0.0, %v1386
    %1388 = vdwg.mxu0
    %v1389 = vadd.f32 %v1271, %v1384
    %v1390 = vadd.f32 %v1272, %v1387
    %s1391 = scalar_lea.vmem [#allocation7], 256
    %v1392 = vld [vmem:[%s1391] sm:$0xf]
    %v1393 = vld [vmem:[%s1391 + $0x4] sm:$0xf]
    %v1394 = vld [vmem:[%s1391 + $0x8] sm:$0xf]
    %v1395 = vld [vmem:[%s1391 + $0xc] sm:$0xf]
    %v1396 = vld [vmem:[%s1391 + $0x10] sm:$0xf]
    %v1397 = vld [vmem:[%s1391 + $0x14] sm:$0xf]
    %v1398 = vld [vmem:[%s1391 + $0x18] sm:$0xf]
    %v1399 = vld [vmem:[%s1391 + $0x1c] sm:$0xf]
    %v1400 = vld [vmem:[%s1391 + $0x20] sm:$0xf]
    %v1401 = vld [vmem:[%s1391 + $0x24] sm:$0xf]
    %v1402 = vld [vmem:[%s1391 + $0x28] sm:$0xf]
    %v1403 = vld [vmem:[%s1391 + $0x2c] sm:$0xf]
    %v1404 = vld [vmem:[%s1391 + $0x30] sm:$0xf]
    %v1405 = vld [vmem:[%s1391 + $0x34] sm:$0xf]
    %v1406 = vld [vmem:[%s1391 + $0x38] sm:$0xf]
    %v1407 = vld [vmem:[%s1391 + $0x3c] sm:$0xf]
    %v1424 = vunpack.c.l.b16 %v1392
    %v1425 = vunpack.c.l.b16 %v1393
    %v1426 = vunpack.c.l.b16 %v1394
    %v1427 = vunpack.c.l.b16 %v1395
    %v1428 = vunpack.c.l.b16 %v1396
    %v1429 = vunpack.c.l.b16 %v1397
    %v1430 = vunpack.c.l.b16 %v1398
    %v1431 = vunpack.c.l.b16 %v1399
    %v1432 = vunpack.c.l.b16 %v1400
    %v1433 = vunpack.c.l.b16 %v1401
    %v1434 = vunpack.c.l.b16 %v1402
    %v1435 = vunpack.c.l.b16 %v1403
    %v1436 = vunpack.c.l.b16 %v1404
    %v1437 = vunpack.c.l.b16 %v1405
    %v1438 = vunpack.c.l.b16 %v1406
    %v1439 = vunpack.c.l.b16 %v1407
    %v1440 = vpack.c.b16 %v1425, %v1424
    %v1441 = vpack.c.b16 %v1427, %v1426
    %v1442 = vpack.c.b16 %v1429, %v1428
    %v1443 = vpack.c.b16 %v1431, %v1430
    %v1444 = vpack.c.b16 %v1433, %v1432
    %v1445 = vpack.c.b16 %v1435, %v1434
    %v1446 = vpack.c.b16 %v1437, %v1436
    %v1447 = vpack.c.b16 %v1439, %v1438
    %1456 = vmatpush.bf16.msra.mxu0 %v1447
    %1457 = vmatpush.bf16.msra.mxu0 %v1446
    %1458 = vmatpush.bf16.msra.mxu0 %v1445
    %1459 = vmatpush.bf16.msra.mxu0 %v1444
    %1460 = vmatpush.bf16.msra.mxu0 %v1443
    %1461 = vmatpush.bf16.msra.mxu0 %v1442
    %1462 = vmatpush.bf16.msra.mxu0 %v1441
    %1463 = vmatpush.bf16.msra.mxu0 %v1440
    %1464 = vmatmul.bf16.gmra.mxu0 %v923
    %v1465 = vpop.f32.mrf.mxu0
    %v1466 = vadd.f32 0.0, %v1465
    %v1467 = vpop.f32.mrf.mxu0
    %v1468 = vadd.f32 0.0, %v1467
    %1469 = vmatmul.bf16.gmra.mxu0 %v924
    %v1470 = vpop.f32.mrf.mxu0
    %v1471 = vadd.f32 0.0, %v1470
    %v1472 = vpop.f32.mrf.mxu0
    %v1473 = vadd.f32 0.0, %v1472
    %1474 = vdwg.mxu0
    %s1475 = scalar_lea.vmem [#allocation6], 64
    %v1476 = vld [vmem:[%s1475] sm:$0xff]
    %v1477 = vld [vmem:[%s1475 + $0x8] sm:$0xff]
    %v1479 = vsel %vm410, %v1476, 0
    %v1482 = vsel %vm410, %v1477, 0
    %1484 = vmatpush.msra.mxu0 0.0
    %1485 = vmatpush.msra.mxu0 0.0
    %1486 = vmatpush.msra.mxu0 0.0
    %1487 = vmatpush.msra.mxu0 0.0
    %1488 = vmatpush.msra.mxu0 0.0
    %1489 = vmatpush.msra.mxu0 0.0
    %1490 = vmatpush.msra.mxu0 0.0
    %1491 = vmatpush.msra.mxu0 0.0
    %1492 = vmatpush.msra.mxu0 0.0
    %1493 = vmatpush.msra.mxu0 0.0
    %1494 = vmatpush.msra.mxu0 0.0
    %1495 = vmatpush.msra.mxu0 0.0
    %1496 = vmatpush.msra.mxu0 %v1473
    %1497 = vmatpush.msra.mxu0 %v1471
    %1498 = vmatpush.msra.mxu0 %v1468
    %1499 = vmatpush.msra.mxu0 %v1466
    %1500 = vmatmul.f32.gmra.mxu0 %v1479
    %v1501 = vpop.f32.mrf.mxu0
    %v1502 = vadd.f32 0.0, %v1501
    %1503 = vmatmul.f32.gmra.mxu0 %v1482
    %v1504 = vpop.f32.mrf.mxu0
    %v1505 = vadd.f32 0.0, %v1504
    %1506 = vdwg.mxu0
    %v1507 = vadd.f32 %v1389, %v1502
    %v1508 = vadd.f32 %v1390, %v1505
    %v1509 = vld [vmem:[%s6] sm:$0x1]
    %v1511 = vperm.slane %v1509, 0
    %v1513 = vadd.f32 %v1507, %v1511
    %v1514 = vadd.f32 %v1508, %v1511
    %vm1515 = vcmp.gt.f32.partialorder %v1513, 0.0
    %vm1516 = vcmp.gt.f32.partialorder %v1514, 0.0
    %v1517 = vmul.f32 %v1513, 1.442695
    %v1518 = vpow.pop %v1517
    %v1519 = vmul.f32 %v1514, 1.442695
    %v1520 = vpow.pop %v1519
    %v1521 = vsub.f32 %v1518, 1.0
    %v1522 = vsub.f32 %v1520, 1.0
    %v1523 = vsel %vm1515, %v1513, %v1521
    %v1524 = vsel %vm1516, %v1514, %v1522
    %v1525 = vpack.c.bf16 %v1524, %v1523
    %v1526 = vld [vmem:[#allocation9] sm:$0xf]
    %v1527 = vld [vmem:[#allocation9 + $0x4] sm:$0xf]
    %v1528 = vld [vmem:[#allocation9 + $0x8] sm:$0xf]
    %v1529 = vld [vmem:[#allocation9 + $0xc] sm:$0xf]
    %v1530 = vld [vmem:[#allocation9 + $0x10] sm:$0xf]
    %v1531 = vld [vmem:[#allocation9 + $0x14] sm:$0xf]
    %v1532 = vld [vmem:[#allocation9 + $0x18] sm:$0xf]
    %v1533 = vld [vmem:[#allocation9 + $0x1c] sm:$0xf]
    %v1534 = vld [vmem:[#allocation9 + $0x20] sm:$0xf]
    %v1535 = vld [vmem:[#allocation9 + $0x24] sm:$0xf]
    %v1536 = vld [vmem:[#allocation9 + $0x28] sm:$0xf]
    %v1537 = vld [vmem:[#allocation9 + $0x2c] sm:$0xf]
    %v1538 = vld [vmem:[#allocation9 + $0x30] sm:$0xf]
    %v1539 = vld [vmem:[#allocation9 + $0x34] sm:$0xf]
    %v1540 = vld [vmem:[#allocation9 + $0x38] sm:$0xf]
    %v1541 = vld [vmem:[#allocation9 + $0x3c] sm:$0xf]
    %v1558 = vunpack.c.l.b16 %v1526
    %v1559 = vunpack.c.l.b16 %v1527
    %v1560 = vunpack.c.l.b16 %v1528
    %v1561 = vunpack.c.l.b16 %v1529
    %v1562 = vunpack.c.l.b16 %v1530
    %v1563 = vunpack.c.l.b16 %v1531
    %v1564 = vunpack.c.l.b16 %v1532
    %v1565 = vunpack.c.l.b16 %v1533
    %v1566 = vunpack.c.l.b16 %v1534
    %v1567 = vunpack.c.l.b16 %v1535
    %v1568 = vunpack.c.l.b16 %v1536
    %v1569 = vunpack.c.l.b16 %v1537
    %v1570 = vunpack.c.l.b16 %v1538
    %v1571 = vunpack.c.l.b16 %v1539
    %v1572 = vunpack.c.l.b16 %v1540
    %v1573 = vunpack.c.l.b16 %v1541
    %v1574 = vpack.c.b16 %v1559, %v1558
    %v1575 = vpack.c.b16 %v1561, %v1560
    %v1576 = vpack.c.b16 %v1563, %v1562
    %v1577 = vpack.c.b16 %v1565, %v1564
    %v1578 = vpack.c.b16 %v1567, %v1566
    %v1579 = vpack.c.b16 %v1569, %v1568
    %v1580 = vpack.c.b16 %v1571, %v1570
    %v1581 = vpack.c.b16 %v1573, %v1572
    %1590 = vmatpush.bf16.msra.mxu0 %v1581
    %1591 = vmatpush.bf16.msra.mxu0 %v1580
    %1592 = vmatpush.bf16.msra.mxu0 %v1579
    %1593 = vmatpush.bf16.msra.mxu0 %v1578
    %1594 = vmatpush.bf16.msra.mxu0 %v1577
    %1595 = vmatpush.bf16.msra.mxu0 %v1576
    %1596 = vmatpush.bf16.msra.mxu0 %v1575
    %1597 = vmatpush.bf16.msra.mxu0 %v1574
    %1598 = vmatmul.bf16.gmra.mxu0 %v1525
    %v1599 = vpop.f32.mrf.mxu0
    %v1600 = vadd.f32 0.0, %v1599
    %v1601 = vpop.f32.mrf.mxu0
    %v1602 = vadd.f32 0.0, %v1601
    %1603 = vdwg.mxu0
    %v1604 = vld [vmem:[%s7] sm:$0xff]
    %s1605 = scalar_lea.vmem [#allocation9], 64
    %v1606 = vld [vmem:[%s1605] sm:$0xf]
    %v1607 = vld [vmem:[%s1605 + $0x4] sm:$0xf]
    %v1608 = vld [vmem:[%s1605 + $0x8] sm:$0xf]
    %v1609 = vld [vmem:[%s1605 + $0xc] sm:$0xf]
    %v1610 = vld [vmem:[%s1605 + $0x10] sm:$0xf]
    %v1611 = vld [vmem:[%s1605 + $0x14] sm:$0xf]
    %v1612 = vld [vmem:[%s1605 + $0x18] sm:$0xf]
    %v1613 = vld [vmem:[%s1605 + $0x1c] sm:$0xf]
    %v1614 = vld [vmem:[%s1605 + $0x20] sm:$0xf]
    %v1615 = vld [vmem:[%s1605 + $0x24] sm:$0xf]
    %v1616 = vld [vmem:[%s1605 + $0x28] sm:$0xf]
    %v1617 = vld [vmem:[%s1605 + $0x2c] sm:$0xf]
    %v1618 = vld [vmem:[%s1605 + $0x30] sm:$0xf]
    %v1619 = vld [vmem:[%s1605 + $0x34] sm:$0xf]
    %v1620 = vld [vmem:[%s1605 + $0x38] sm:$0xf]
    %v1621 = vld [vmem:[%s1605 + $0x3c] sm:$0xf]
    %v1638 = vunpack.c.l.b16 %v1606
    %v1639 = vunpack.c.l.b16 %v1607
    %v1640 = vunpack.c.l.b16 %v1608
    %v1641 = vunpack.c.l.b16 %v1609
    %v1642 = vunpack.c.l.b16 %v1610
    %v1643 = vunpack.c.l.b16 %v1611
    %v1644 = vunpack.c.l.b16 %v1612
    %v1645 = vunpack.c.l.b16 %v1613
    %v1646 = vunpack.c.l.b16 %v1614
    %v1647 = vunpack.c.l.b16 %v1615
    %v1648 = vunpack.c.l.b16 %v1616
    %v1649 = vunpack.c.l.b16 %v1617
    %v1650 = vunpack.c.l.b16 %v1618
    %v1651 = vunpack.c.l.b16 %v1619
    %v1652 = vunpack.c.l.b16 %v1620
    %v1653 = vunpack.c.l.b16 %v1621
    %v1654 = vpack.c.b16 %v1639, %v1638
    %v1655 = vpack.c.b16 %v1641, %v1640
    %v1656 = vpack.c.b16 %v1643, %v1642
    %v1657 = vpack.c.b16 %v1645, %v1644
    %v1658 = vpack.c.b16 %v1647, %v1646
    %v1659 = vpack.c.b16 %v1649, %v1648
    %v1660 = vpack.c.b16 %v1651, %v1650
    %v1661 = vpack.c.b16 %v1653, %v1652
    %1670 = vmatpush.bf16.msra.mxu0 %v1661
    %1671 = vmatpush.bf16.msra.mxu0 %v1660
    %1672 = vmatpush.bf16.msra.mxu0 %v1659
    %1673 = vmatpush.bf16.msra.mxu0 %v1658
    %1674 = vmatpush.bf16.msra.mxu0 %v1657
    %1675 = vmatpush.bf16.msra.mxu0 %v1656
    %1676 = vmatpush.bf16.msra.mxu0 %v1655
    %1677 = vmatpush.bf16.msra.mxu0 %v1654
    %1678 = vmatmul.bf16.gmra.mxu0 %v1525
    %v1679 = vpop.f32.mrf.mxu0
    %v1680 = vadd.f32 0.0, %v1679
    %v1681 = vpop.f32.mrf.mxu0
    %v1682 = vadd.f32 0.0, %v1681
    %1683 = vdwg.mxu0
    %s1684 = scalar_lea.vmem %s7, 8
    %v1685 = vld [vmem:[%s1684] sm:$0xff]
    %vm1686 = vcmask 130048
    %v1688 = vsel %vm1686, %v1685, 0
    %1690 = vmatpush.msra.mxu0 0.0
    %1691 = vmatpush.msra.mxu0 0.0
    %1692 = vmatpush.msra.mxu0 0.0
    %1693 = vmatpush.msra.mxu0 0.0
    %1694 = vmatpush.msra.mxu0 0.0
    %1695 = vmatpush.msra.mxu0 0.0
    %1696 = vmatpush.msra.mxu0 0.0
    %1697 = vmatpush.msra.mxu0 0.0
    %1698 = vmatpush.msra.mxu0 0.0
    %1699 = vmatpush.msra.mxu0 0.0
    %1700 = vmatpush.msra.mxu0 0.0
    %1701 = vmatpush.msra.mxu0 0.0
    %1702 = vmatpush.msra.mxu0 0.0
    %1703 = vmatpush.msra.mxu0 0.0
    %1704 = vmatpush.msra.mxu0 %v1682
    %1705 = vmatpush.msra.mxu0 %v1680
    %1706 = vmatmul.f32.gmra.mxu0 %v1688
    %v1707 = vpop.f32.mrf.mxu0
    %v1708 = vadd.f32 0.0, %v1707
    %1709 = vdwg.mxu0
    %v1711 = vsel %vm1686, %v1604, 0
    %1713 = vmatpush.msra.mxu0 0.0
    %1714 = vmatpush.msra.mxu0 0.0
    %1715 = vmatpush.msra.mxu0 0.0
    %1716 = vmatpush.msra.mxu0 0.0
    %1717 = vmatpush.msra.mxu0 0.0
    %1718 = vmatpush.msra.mxu0 0.0
    %1719 = vmatpush.msra.mxu0 0.0
    %1720 = vmatpush.msra.mxu0 0.0
    %1721 = vmatpush.msra.mxu0 0.0
    %1722 = vmatpush.msra.mxu0 0.0
    %1723 = vmatpush.msra.mxu0 0.0
    %1724 = vmatpush.msra.mxu0 0.0
    %1725 = vmatpush.msra.mxu0 0.0
    %1726 = vmatpush.msra.mxu0 0.0
    %1727 = vmatpush.msra.mxu0 %v1602
    %1728 = vmatpush.msra.mxu0 %v1600
    %1729 = vmatmul.f32.gmra.mxu0 %v1711
    %v1730 = vpop.f32.mrf.mxu0
    %v1731 = vadd.f32 %v1708, %v1730
    %1732 = vdwg.mxu0
    %s1733 = scalar_lea.vmem [#allocation9], 128
    %v1734 = vld [vmem:[%s1733] sm:$0xf]
    %v1735 = vld [vmem:[%s1733 + $0x4] sm:$0xf]
    %v1736 = vld [vmem:[%s1733 + $0x8] sm:$0xf]
    %v1737 = vld [vmem:[%s1733 + $0xc] sm:$0xf]
    %v1738 = vld [vmem:[%s1733 + $0x10] sm:$0xf]
    %v1739 = vld [vmem:[%s1733 + $0x14] sm:$0xf]
    %v1740 = vld [vmem:[%s1733 + $0x18] sm:$0xf]
    %v1741 = vld [vmem:[%s1733 + $0x1c] sm:$0xf]
    %v1742 = vld [vmem:[%s1733 + $0x20] sm:$0xf]
    %v1743 = vld [vmem:[%s1733 + $0x24] sm:$0xf]
    %v1744 = vld [vmem:[%s1733 + $0x28] sm:$0xf]
    %v1745 = vld [vmem:[%s1733 + $0x2c] sm:$0xf]
    %v1746 = vld [vmem:[%s1733 + $0x30] sm:$0xf]
    %v1747 = vld [vmem:[%s1733 + $0x34] sm:$0xf]
    %v1748 = vld [vmem:[%s1733 + $0x38] sm:$0xf]
    %v1749 = vld [vmem:[%s1733 + $0x3c] sm:$0xf]
    %v1766 = vunpack.c.l.b16 %v1734
    %v1767 = vunpack.c.l.b16 %v1735
    %v1768 = vunpack.c.l.b16 %v1736
    %v1769 = vunpack.c.l.b16 %v1737
    %v1770 = vunpack.c.l.b16 %v1738
    %v1771 = vunpack.c.l.b16 %v1739
    %v1772 = vunpack.c.l.b16 %v1740
    %v1773 = vunpack.c.l.b16 %v1741
    %v1774 = vunpack.c.l.b16 %v1742
    %v1775 = vunpack.c.l.b16 %v1743
    %v1776 = vunpack.c.l.b16 %v1744
    %v1777 = vunpack.c.l.b16 %v1745
    %v1778 = vunpack.c.l.b16 %v1746
    %v1779 = vunpack.c.l.b16 %v1747
    %v1780 = vunpack.c.l.b16 %v1748
    %v1781 = vunpack.c.l.b16 %v1749
    %v1782 = vpack.c.b16 %v1767, %v1766
    %v1783 = vpack.c.b16 %v1769, %v1768
    %v1784 = vpack.c.b16 %v1771, %v1770
    %v1785 = vpack.c.b16 %v1773, %v1772
    %v1786 = vpack.c.b16 %v1775, %v1774
    %v1787 = vpack.c.b16 %v1777, %v1776
    %v1788 = vpack.c.b16 %v1779, %v1778
    %v1789 = vpack.c.b16 %v1781, %v1780
    %1798 = vmatpush.bf16.msra.mxu0 %v1789
    %1799 = vmatpush.bf16.msra.mxu0 %v1788
    %1800 = vmatpush.bf16.msra.mxu0 %v1787
    %1801 = vmatpush.bf16.msra.mxu0 %v1786
    %1802 = vmatpush.bf16.msra.mxu0 %v1785
    %1803 = vmatpush.bf16.msra.mxu0 %v1784
    %1804 = vmatpush.bf16.msra.mxu0 %v1783
    %1805 = vmatpush.bf16.msra.mxu0 %v1782
    %1806 = vmatmul.bf16.gmra.mxu0 %v1525
    %v1807 = vpop.f32.mrf.mxu0
    %v1808 = vadd.f32 0.0, %v1807
    %v1809 = vpop.f32.mrf.mxu0
    %v1810 = vadd.f32 0.0, %v1809
    %1811 = vdwg.mxu0
    %s1812 = scalar_lea.vmem %s7, 16
    %v1813 = vld [vmem:[%s1812] sm:$0xff]
    %v1815 = vsel %vm1686, %v1813, 0
    %1817 = vmatpush.msra.mxu0 0.0
    %1818 = vmatpush.msra.mxu0 0.0
    %1819 = vmatpush.msra.mxu0 0.0
    %1820 = vmatpush.msra.mxu0 0.0
    %1821 = vmatpush.msra.mxu0 0.0
    %1822 = vmatpush.msra.mxu0 0.0
    %1823 = vmatpush.msra.mxu0 0.0
    %1824 = vmatpush.msra.mxu0 0.0
    %1825 = vmatpush.msra.mxu0 0.0
    %1826 = vmatpush.msra.mxu0 0.0
    %1827 = vmatpush.msra.mxu0 0.0
    %1828 = vmatpush.msra.mxu0 0.0
    %1829 = vmatpush.msra.mxu0 0.0
    %1830 = vmatpush.msra.mxu0 0.0
    %1831 = vmatpush.msra.mxu0 %v1810
    %1832 = vmatpush.msra.mxu0 %v1808
    %1833 = vmatmul.f32.gmra.mxu0 %v1815
    %v1834 = vpop.f32.mrf.mxu0
    %v1835 = vadd.f32 0.0, %v1834
    %1836 = vdwg.mxu0
    %v1837 = vadd.f32 %v1731, %v1835
    %s1838 = scalar_lea.vmem [#allocation9], 192
    %v1839 = vld [vmem:[%s1838] sm:$0xf]
    %v1840 = vld [vmem:[%s1838 + $0x4] sm:$0xf]
    %v1841 = vld [vmem:[%s1838 + $0x8] sm:$0xf]
    %v1842 = vld [vmem:[%s1838 + $0xc] sm:$0xf]
    %v1843 = vld [vmem:[%s1838 + $0x10] sm:$0xf]
    %v1844 = vld [vmem:[%s1838 + $0x14] sm:$0xf]
    %v1845 = vld [vmem:[%s1838 + $0x18] sm:$0xf]
    %v1846 = vld [vmem:[%s1838 + $0x1c] sm:$0xf]
    %v1847 = vld [vmem:[%s1838 + $0x20] sm:$0xf]
    %v1848 = vld [vmem:[%s1838 + $0x24] sm:$0xf]
    %v1849 = vld [vmem:[%s1838 + $0x28] sm:$0xf]
    %v1850 = vld [vmem:[%s1838 + $0x2c] sm:$0xf]
    %v1851 = vld [vmem:[%s1838 + $0x30] sm:$0xf]
    %v1852 = vld [vmem:[%s1838 + $0x34] sm:$0xf]
    %v1853 = vld [vmem:[%s1838 + $0x38] sm:$0xf]
    %v1854 = vld [vmem:[%s1838 + $0x3c] sm:$0xf]
    %v1871 = vunpack.c.l.b16 %v1839
    %v1872 = vunpack.c.l.b16 %v1840
    %v1873 = vunpack.c.l.b16 %v1841
    %v1874 = vunpack.c.l.b16 %v1842
    %v1875 = vunpack.c.l.b16 %v1843
    %v1876 = vunpack.c.l.b16 %v1844
    %v1877 = vunpack.c.l.b16 %v1845
    %v1878 = vunpack.c.l.b16 %v1846
    %v1879 = vunpack.c.l.b16 %v1847
    %v1880 = vunpack.c.l.b16 %v1848
    %v1881 = vunpack.c.l.b16 %v1849
    %v1882 = vunpack.c.l.b16 %v1850
    %v1883 = vunpack.c.l.b16 %v1851
    %v1884 = vunpack.c.l.b16 %v1852
    %v1885 = vunpack.c.l.b16 %v1853
    %v1886 = vunpack.c.l.b16 %v1854
    %v1887 = vpack.c.b16 %v1872, %v1871
    %v1888 = vpack.c.b16 %v1874, %v1873
    %v1889 = vpack.c.b16 %v1876, %v1875
    %v1890 = vpack.c.b16 %v1878, %v1877
    %v1891 = vpack.c.b16 %v1880, %v1879
    %v1892 = vpack.c.b16 %v1882, %v1881
    %v1893 = vpack.c.b16 %v1884, %v1883
    %v1894 = vpack.c.b16 %v1886, %v1885
    %1903 = vmatpush.bf16.msra.mxu0 %v1894
    %1904 = vmatpush.bf16.msra.mxu0 %v1893
    %1905 = vmatpush.bf16.msra.mxu0 %v1892
    %1906 = vmatpush.bf16.msra.mxu0 %v1891
    %1907 = vmatpush.bf16.msra.mxu0 %v1890
    %1908 = vmatpush.bf16.msra.mxu0 %v1889
    %1909 = vmatpush.bf16.msra.mxu0 %v1888
    %1910 = vmatpush.bf16.msra.mxu0 %v1887
    %1911 = vmatmul.bf16.gmra.mxu0 %v1525
    %v1912 = vpop.f32.mrf.mxu0
    %v1913 = vadd.f32 0.0, %v1912
    %v1914 = vpop.f32.mrf.mxu0
    %v1915 = vadd.f32 0.0, %v1914
    %1916 = vdwg.mxu0
    %s1917 = scalar_lea.vmem %s7, 24
    %v1918 = vld [vmem:[%s1917] sm:$0xff]
    %v1920 = vsel %vm1686, %v1918, 0
    %1922 = vmatpush.msra.mxu0 0.0
    %1923 = vmatpush.msra.mxu0 0.0
    %1924 = vmatpush.msra.mxu0 0.0
    %1925 = vmatpush.msra.mxu0 0.0
    %1926 = vmatpush.msra.mxu0 0.0
    %1927 = vmatpush.msra.mxu0 0.0
    %1928 = vmatpush.msra.mxu0 0.0
    %1929 = vmatpush.msra.mxu0 0.0
    %1930 = vmatpush.msra.mxu0 0.0
    %1931 = vmatpush.msra.mxu0 0.0
    %1932 = vmatpush.msra.mxu0 0.0
    %1933 = vmatpush.msra.mxu0 0.0
    %1934 = vmatpush.msra.mxu0 0.0
    %1935 = vmatpush.msra.mxu0 0.0
    %1936 = vmatpush.msra.mxu0 %v1915
    %1937 = vmatpush.msra.mxu0 %v1913
    %1938 = vmatmul.f32.gmra.mxu0 %v1920
    %v1939 = vpop.f32.mrf.mxu0
    %v1940 = vadd.f32 0.0, %v1939
    %1941 = vdwg.mxu0
    %v1942 = vadd.f32 %v1837, %v1940
    %s1943 = scalar_lea.vmem [#allocation9], 256
    %v1944 = vld [vmem:[%s1943] sm:$0xf]
    %v1945 = vld [vmem:[%s1943 + $0x4] sm:$0xf]
    %v1946 = vld [vmem:[%s1943 + $0x8] sm:$0xf]
    %v1947 = vld [vmem:[%s1943 + $0xc] sm:$0xf]
    %v1948 = vld [vmem:[%s1943 + $0x10] sm:$0xf]
    %v1949 = vld [vmem:[%s1943 + $0x14] sm:$0xf]
    %v1950 = vld [vmem:[%s1943 + $0x18] sm:$0xf]
    %v1951 = vld [vmem:[%s1943 + $0x1c] sm:$0xf]
    %v1952 = vld [vmem:[%s1943 + $0x20] sm:$0xf]
    %v1953 = vld [vmem:[%s1943 + $0x24] sm:$0xf]
    %v1954 = vld [vmem:[%s1943 + $0x28] sm:$0xf]
    %v1955 = vld [vmem:[%s1943 + $0x2c] sm:$0xf]
    %v1956 = vld [vmem:[%s1943 + $0x30] sm:$0xf]
    %v1957 = vld [vmem:[%s1943 + $0x34] sm:$0xf]
    %v1958 = vld [vmem:[%s1943 + $0x38] sm:$0xf]
    %v1959 = vld [vmem:[%s1943 + $0x3c] sm:$0xf]
    %v1976 = vunpack.c.l.b16 %v1944
    %v1977 = vunpack.c.l.b16 %v1945
    %v1978 = vunpack.c.l.b16 %v1946
    %v1979 = vunpack.c.l.b16 %v1947
    %v1980 = vunpack.c.l.b16 %v1948
    %v1981 = vunpack.c.l.b16 %v1949
    %v1982 = vunpack.c.l.b16 %v1950
    %v1983 = vunpack.c.l.b16 %v1951
    %v1984 = vunpack.c.l.b16 %v1952
    %v1985 = vunpack.c.l.b16 %v1953
    %v1986 = vunpack.c.l.b16 %v1954
    %v1987 = vunpack.c.l.b16 %v1955
    %v1988 = vunpack.c.l.b16 %v1956
    %v1989 = vunpack.c.l.b16 %v1957
    %v1990 = vunpack.c.l.b16 %v1958
    %v1991 = vunpack.c.l.b16 %v1959
    %v1992 = vpack.c.b16 %v1977, %v1976
    %v1993 = vpack.c.b16 %v1979, %v1978
    %v1994 = vpack.c.b16 %v1981, %v1980
    %v1995 = vpack.c.b16 %v1983, %v1982
    %v1996 = vpack.c.b16 %v1985, %v1984
    %v1997 = vpack.c.b16 %v1987, %v1986
    %v1998 = vpack.c.b16 %v1989, %v1988
    %v1999 = vpack.c.b16 %v1991, %v1990
    %2008 = vmatpush.bf16.msra.mxu0 %v1999
    %2009 = vmatpush.bf16.msra.mxu0 %v1998
    %2010 = vmatpush.bf16.msra.mxu0 %v1997
    %2011 = vmatpush.bf16.msra.mxu0 %v1996
    %2012 = vmatpush.bf16.msra.mxu0 %v1995
    %2013 = vmatpush.bf16.msra.mxu0 %v1994
    %2014 = vmatpush.bf16.msra.mxu0 %v1993
    %2015 = vmatpush.bf16.msra.mxu0 %v1992
    %2016 = vmatmul.bf16.gmra.mxu0 %v1525
    %v2017 = vpop.f32.mrf.mxu0
    %v2018 = vadd.f32 0.0, %v2017
    %v2019 = vpop.f32.mrf.mxu0
    %v2020 = vadd.f32 0.0, %v2019
    %2021 = vdwg.mxu0
    %s2022 = scalar_lea.vmem %s7, 32
    %v2023 = vld [vmem:[%s2022] sm:$0xff]
    %v2025 = vsel %vm1686, %v2023, 0
    %2027 = vmatpush.msra.mxu0 0.0
    %2028 = vmatpush.msra.mxu0 0.0
    %2029 = vmatpush.msra.mxu0 0.0
    %2030 = vmatpush.msra.mxu0 0.0
    %2031 = vmatpush.msra.mxu0 0.0
    %2032 = vmatpush.msra.mxu0 0.0
    %2033 = vmatpush.msra.mxu0 0.0
    %2034 = vmatpush.msra.mxu0 0.0
    %2035 = vmatpush.msra.mxu0 0.0
    %2036 = vmatpush.msra.mxu0 0.0
    %2037 = vmatpush.msra.mxu0 0.0
    %2038 = vmatpush.msra.mxu0 0.0
    %2039 = vmatpush.msra.mxu0 0.0
    %2040 = vmatpush.msra.mxu0 0.0
    %2041 = vmatpush.msra.mxu0 %v2020
    %2042 = vmatpush.msra.mxu0 %v2018
    %2043 = vmatmul.f32.gmra.mxu0 %v2025
    %v2044 = vpop.f32.mrf.mxu0
    %v2045 = vadd.f32 0.0, %v2044
    %2046 = vdwg.mxu0
    %v2047 = vadd.f32 %v1942, %v2045
    %v2048 = vld [vmem:[%s9] sm:$0x1]
    %v2050 = vperm.slane %v2048, 0
    %v2052 = vadd.f32 %v2047, %v2050
    %vm2053 = vcmp.gt.f32.partialorder %v2052, 0.0
    %v2054 = vmul.f32 %v2052, 1.442695
    %v2055 = vpow.pop %v2054
    %v2056 = vsub.f32 %v2055, 1.0
    %v2057 = vsel %vm2053, %v2052, %v2056
    %v2058 = vpack.c.bf16 %v2057, %v2057
    %v2059 = vld [vmem:[#allocation12] sm:$0xf]
    %v2060 = vld [vmem:[#allocation12 + $0x4] sm:$0xf]
    %v2061 = vld [vmem:[#allocation12 + $0x8] sm:$0xf]
    %v2062 = vld [vmem:[#allocation12 + $0xc] sm:$0xf]
    %v2063 = vld [vmem:[#allocation12 + $0x10] sm:$0xf]
    %v2064 = vld [vmem:[#allocation12 + $0x14] sm:$0xf]
    %v2065 = vld [vmem:[#allocation12 + $0x18] sm:$0xf]
    %v2066 = vld [vmem:[#allocation12 + $0x1c] sm:$0xf]
    %v2067 = vld [vmem:[#allocation12 + $0x20] sm:$0xf]
    %v2068 = vld [vmem:[#allocation12 + $0x24] sm:$0xf]
    %v2069 = vld [vmem:[#allocation12 + $0x28] sm:$0xf]
    %v2070 = vld [vmem:[#allocation12 + $0x2c] sm:$0xf]
    %v2071 = vld [vmem:[#allocation12 + $0x30] sm:$0xf]
    %v2072 = vld [vmem:[#allocation12 + $0x34] sm:$0xf]
    %v2073 = vld [vmem:[#allocation12 + $0x38] sm:$0xf]
    %v2074 = vld [vmem:[#allocation12 + $0x3c] sm:$0xf]
    %v2091 = vunpack.c.l.b16 %v2059
    %v2092 = vunpack.c.l.b16 %v2060
    %v2093 = vunpack.c.l.b16 %v2061
    %v2094 = vunpack.c.l.b16 %v2062
    %v2095 = vunpack.c.l.b16 %v2063
    %v2096 = vunpack.c.l.b16 %v2064
    %v2097 = vunpack.c.l.b16 %v2065
    %v2098 = vunpack.c.l.b16 %v2066
    %v2099 = vunpack.c.l.b16 %v2067
    %v2100 = vunpack.c.l.b16 %v2068
    %v2101 = vunpack.c.l.b16 %v2069
    %v2102 = vunpack.c.l.b16 %v2070
    %v2103 = vunpack.c.l.b16 %v2071
    %v2104 = vunpack.c.l.b16 %v2072
    %v2105 = vunpack.c.l.b16 %v2073
    %v2106 = vunpack.c.l.b16 %v2074
    %v2107 = vpack.c.b16 %v2092, %v2091
    %v2108 = vpack.c.b16 %v2094, %v2093
    %v2109 = vpack.c.b16 %v2096, %v2095
    %v2110 = vpack.c.b16 %v2098, %v2097
    %v2111 = vpack.c.b16 %v2100, %v2099
    %v2112 = vpack.c.b16 %v2102, %v2101
    %v2113 = vpack.c.b16 %v2104, %v2103
    %v2114 = vpack.c.b16 %v2106, %v2105
    %2123 = vmatpush.bf16.msra.mxu0 %v2114
    %2124 = vmatpush.bf16.msra.mxu0 %v2113
    %2125 = vmatpush.bf16.msra.mxu0 %v2112
    %2126 = vmatpush.bf16.msra.mxu0 %v2111
    %2127 = vmatpush.bf16.msra.mxu0 %v2110
    %2128 = vmatpush.bf16.msra.mxu0 %v2109
    %2129 = vmatpush.bf16.msra.mxu0 %v2108
    %2130 = vmatpush.bf16.msra.mxu0 %v2107
    %2131 = vmatmul.bf16.gmra.mxu0 %v2058
    %v2132 = vpop.f32.mrf.mxu0
    %v2133 = vadd.f32 0.0, %v2132
    %v2134 = vpop.f32.mrf.mxu0
    %2135 = vdwg.mxu0
    %v2136 = vld [vmem:[#allocation10] sm:$0xf]
    %s2137 = scalar_lea.vmem [#allocation12], 64
    %v2138 = vld [vmem:[%s2137] sm:$0xf]
    %v2139 = vld [vmem:[%s2137 + $0x4] sm:$0xf]
    %v2140 = vld [vmem:[%s2137 + $0x8] sm:$0xf]
    %v2141 = vld [vmem:[%s2137 + $0xc] sm:$0xf]
    %v2142 = vld [vmem:[%s2137 + $0x10] sm:$0xf]
    %v2143 = vld [vmem:[%s2137 + $0x14] sm:$0xf]
    %v2144 = vld [vmem:[%s2137 + $0x18] sm:$0xf]
    %v2145 = vld [vmem:[%s2137 + $0x1c] sm:$0xf]
    %v2146 = vld [vmem:[%s2137 + $0x20] sm:$0xf]
    %v2147 = vld [vmem:[%s2137 + $0x24] sm:$0xf]
    %v2148 = vld [vmem:[%s2137 + $0x28] sm:$0xf]
    %v2149 = vld [vmem:[%s2137 + $0x2c] sm:$0xf]
    %v2150 = vld [vmem:[%s2137 + $0x30] sm:$0xf]
    %v2151 = vld [vmem:[%s2137 + $0x34] sm:$0xf]
    %v2152 = vld [vmem:[%s2137 + $0x38] sm:$0xf]
    %v2153 = vld [vmem:[%s2137 + $0x3c] sm:$0xf]
    %v2170 = vunpack.c.l.b16 %v2138
    %v2171 = vunpack.c.l.b16 %v2139
    %v2172 = vunpack.c.l.b16 %v2140
    %v2173 = vunpack.c.l.b16 %v2141
    %v2174 = vunpack.c.l.b16 %v2142
    %v2175 = vunpack.c.l.b16 %v2143
    %v2176 = vunpack.c.l.b16 %v2144
    %v2177 = vunpack.c.l.b16 %v2145
    %v2178 = vunpack.c.l.b16 %v2146
    %v2179 = vunpack.c.l.b16 %v2147
    %v2180 = vunpack.c.l.b16 %v2148
    %v2181 = vunpack.c.l.b16 %v2149
    %v2182 = vunpack.c.l.b16 %v2150
    %v2183 = vunpack.c.l.b16 %v2151
    %v2184 = vunpack.c.l.b16 %v2152
    %v2185 = vunpack.c.l.b16 %v2153
    %v2186 = vpack.c.b16 %v2171, %v2170
    %v2187 = vpack.c.b16 %v2173, %v2172
    %v2188 = vpack.c.b16 %v2175, %v2174
    %v2189 = vpack.c.b16 %v2177, %v2176
    %v2190 = vpack.c.b16 %v2179, %v2178
    %v2191 = vpack.c.b16 %v2181, %v2180
    %v2192 = vpack.c.b16 %v2183, %v2182
    %v2193 = vpack.c.b16 %v2185, %v2184
    %2202 = vmatpush.bf16.msra.mxu0 %v2193
    %2203 = vmatpush.bf16.msra.mxu0 %v2192
    %2204 = vmatpush.bf16.msra.mxu0 %v2191
    %2205 = vmatpush.bf16.msra.mxu0 %v2190
    %2206 = vmatpush.bf16.msra.mxu0 %v2189
    %2207 = vmatpush.bf16.msra.mxu0 %v2188
    %2208 = vmatpush.bf16.msra.mxu0 %v2187
    %2209 = vmatpush.bf16.msra.mxu0 %v2186
    %2210 = vmatmul.bf16.gmra.mxu0 %v2058
    %v2211 = vpop.f32.mrf.mxu0
    %v2212 = vadd.f32 0.0, %v2211
    %v2213 = vpop.f32.mrf.mxu0
    %2214 = vdwg.mxu0
    %s2215 = scalar_lea.vmem [#allocation10], 4
    %v2216 = vld [vmem:[%s2215] sm:$0xf]
    %vm2217 = vcmask 64512
    %v2219 = vsel %vm2217, %v2216, 0
    %2221 = vmatpush.msra.mxu0 0.0
    %2222 = vmatpush.msra.mxu0 0.0
    %2223 = vmatpush.msra.mxu0 0.0
    %2224 = vmatpush.msra.mxu0 0.0
    %2225 = vmatpush.msra.mxu0 0.0
    %2226 = vmatpush.msra.mxu0 0.0
    %2227 = vmatpush.msra.mxu0 0.0
    %2228 = vmatpush.msra.mxu0 0.0
    %2229 = vmatpush.msra.mxu0 0.0
    %2230 = vmatpush.msra.mxu0 0.0
    %2231 = vmatpush.msra.mxu0 0.0
    %2232 = vmatpush.msra.mxu0 0.0
    %2233 = vmatpush.msra.mxu0 0.0
    %2234 = vmatpush.msra.mxu0 0.0
    %2235 = vmatpush.msra.mxu0 0.0
    %2236 = vmatpush.msra.mxu0 %v2212
    %2237 = vmatmul.f32.gmra.mxu0 %v2219
    %v2238 = vpop.f32.mrf.mxu0
    %v2239 = vadd.f32 0.0, %v2238
    %2240 = vdwg.mxu0
    %v2242 = vsel %vm2217, %v2136, 0
    %2244 = vmatpush.msra.mxu0 0.0
    %2245 = vmatpush.msra.mxu0 0.0
    %2246 = vmatpush.msra.mxu0 0.0
    %2247 = vmatpush.msra.mxu0 0.0
    %2248 = vmatpush.msra.mxu0 0.0
    %2249 = vmatpush.msra.mxu0 0.0
    %2250 = vmatpush.msra.mxu0 0.0
    %2251 = vmatpush.msra.mxu0 0.0
    %2252 = vmatpush.msra.mxu0 0.0
    %2253 = vmatpush.msra.mxu0 0.0
    %2254 = vmatpush.msra.mxu0 0.0
    %2255 = vmatpush.msra.mxu0 0.0
    %2256 = vmatpush.msra.mxu0 0.0
    %2257 = vmatpush.msra.mxu0 0.0
    %2258 = vmatpush.msra.mxu0 0.0
    %2259 = vmatpush.msra.mxu0 %v2133
    %2260 = vmatmul.f32.gmra.mxu0 %v2242
    %v2261 = vpop.f32.mrf.mxu0
    %v2262 = vadd.f32 %v2239, %v2261
    %2263 = vdwg.mxu0
    %s2264 = scalar_lea.vmem [#allocation12], 128
    %v2265 = vld [vmem:[%s2264] sm:$0xf]
    %v2266 = vld [vmem:[%s2264 + $0x4] sm:$0xf]
    %v2267 = vld [vmem:[%s2264 + $0x8] sm:$0xf]
    %v2268 = vld [vmem:[%s2264 + $0xc] sm:$0xf]
    %v2269 = vld [vmem:[%s2264 + $0x10] sm:$0xf]
    %v2270 = vld [vmem:[%s2264 + $0x14] sm:$0xf]
    %v2271 = vld [vmem:[%s2264 + $0x18] sm:$0xf]
    %v2272 = vld [vmem:[%s2264 + $0x1c] sm:$0xf]
    %v2273 = vld [vmem:[%s2264 + $0x20] sm:$0xf]
    %v2274 = vld [vmem:[%s2264 + $0x24] sm:$0xf]
    %v2275 = vld [vmem:[%s2264 + $0x28] sm:$0xf]
    %v2276 = vld [vmem:[%s2264 + $0x2c] sm:$0xf]
    %v2277 = vld [vmem:[%s2264 + $0x30] sm:$0xf]
    %v2278 = vld [vmem:[%s2264 + $0x34] sm:$0xf]
    %v2279 = vld [vmem:[%s2264 + $0x38] sm:$0xf]
    %v2280 = vld [vmem:[%s2264 + $0x3c] sm:$0xf]
    %v2297 = vunpack.c.l.b16 %v2265
    %v2298 = vunpack.c.l.b16 %v2266
    %v2299 = vunpack.c.l.b16 %v2267
    %v2300 = vunpack.c.l.b16 %v2268
    %v2301 = vunpack.c.l.b16 %v2269
    %v2302 = vunpack.c.l.b16 %v2270
    %v2303 = vunpack.c.l.b16 %v2271
    %v2304 = vunpack.c.l.b16 %v2272
    %v2305 = vunpack.c.l.b16 %v2273
    %v2306 = vunpack.c.l.b16 %v2274
    %v2307 = vunpack.c.l.b16 %v2275
    %v2308 = vunpack.c.l.b16 %v2276
    %v2309 = vunpack.c.l.b16 %v2277
    %v2310 = vunpack.c.l.b16 %v2278
    %v2311 = vunpack.c.l.b16 %v2279
    %v2312 = vunpack.c.l.b16 %v2280
    %v2313 = vpack.c.b16 %v2298, %v2297
    %v2314 = vpack.c.b16 %v2300, %v2299
    %v2315 = vpack.c.b16 %v2302, %v2301
    %v2316 = vpack.c.b16 %v2304, %v2303
    %v2317 = vpack.c.b16 %v2306, %v2305
    %v2318 = vpack.c.b16 %v2308, %v2307
    %v2319 = vpack.c.b16 %v2310, %v2309
    %v2320 = vpack.c.b16 %v2312, %v2311
    %2329 = vmatpush.bf16.msra.mxu0 %v2320
    %2330 = vmatpush.bf16.msra.mxu0 %v2319
    %2331 = vmatpush.bf16.msra.mxu0 %v2318
    %2332 = vmatpush.bf16.msra.mxu0 %v2317
    %2333 = vmatpush.bf16.msra.mxu0 %v2316
    %2334 = vmatpush.bf16.msra.mxu0 %v2315
    %2335 = vmatpush.bf16.msra.mxu0 %v2314
    %2336 = vmatpush.bf16.msra.mxu0 %v2313
    %2337 = vmatmul.bf16.gmra.mxu0 %v2058
    %v2338 = vpop.f32.mrf.mxu0
    %v2339 = vadd.f32 0.0, %v2338
    %v2340 = vpop.f32.mrf.mxu0
    %2341 = vdwg.mxu0
    %s2342 = scalar_lea.vmem [#allocation10], 8
    %v2343 = vld [vmem:[%s2342] sm:$0xf]
    %v2345 = vsel %vm2217, %v2343, 0
    %2347 = vmatpush.msra.mxu0 0.0
    %2348 = vmatpush.msra.mxu0 0.0
    %2349 = vmatpush.msra.mxu0 0.0
    %2350 = vmatpush.msra.mxu0 0.0
    %2351 = vmatpush.msra.mxu0 0.0
    %2352 = vmatpush.msra.mxu0 0.0
    %2353 = vmatpush.msra.mxu0 0.0
    %2354 = vmatpush.msra.mxu0 0.0
    %2355 = vmatpush.msra.mxu0 0.0
    %2356 = vmatpush.msra.mxu0 0.0
    %2357 = vmatpush.msra.mxu0 0.0
    %2358 = vmatpush.msra.mxu0 0.0
    %2359 = vmatpush.msra.mxu0 0.0
    %2360 = vmatpush.msra.mxu0 0.0
    %2361 = vmatpush.msra.mxu0 0.0
    %2362 = vmatpush.msra.mxu0 %v2339
    %2363 = vmatmul.f32.gmra.mxu0 %v2345
    %v2364 = vpop.f32.mrf.mxu0
    %v2365 = vadd.f32 0.0, %v2364
    %2366 = vdwg.mxu0
    %v2367 = vadd.f32 %v2262, %v2365
    %s2368 = scalar_lea.vmem [#allocation12], 192
    %v2369 = vld [vmem:[%s2368] sm:$0xf]
    %v2370 = vld [vmem:[%s2368 + $0x4] sm:$0xf]
    %v2371 = vld [vmem:[%s2368 + $0x8] sm:$0xf]
    %v2372 = vld [vmem:[%s2368 + $0xc] sm:$0xf]
    %v2373 = vld [vmem:[%s2368 + $0x10] sm:$0xf]
    %v2374 = vld [vmem:[%s2368 + $0x14] sm:$0xf]
    %v2375 = vld [vmem:[%s2368 + $0x18] sm:$0xf]
    %v2376 = vld [vmem:[%s2368 + $0x1c] sm:$0xf]
    %v2377 = vld [vmem:[%s2368 + $0x20] sm:$0xf]
    %v2378 = vld [vmem:[%s2368 + $0x24] sm:$0xf]
    %v2379 = vld [vmem:[%s2368 + $0x28] sm:$0xf]
    %v2380 = vld [vmem:[%s2368 + $0x2c] sm:$0xf]
    %v2381 = vld [vmem:[%s2368 + $0x30] sm:$0xf]
    %v2382 = vld [vmem:[%s2368 + $0x34] sm:$0xf]
    %v2383 = vld [vmem:[%s2368 + $0x38] sm:$0xf]
    %v2384 = vld [vmem:[%s2368 + $0x3c] sm:$0xf]
    %v2401 = vunpack.c.l.b16 %v2369
    %v2402 = vunpack.c.l.b16 %v2370
    %v2403 = vunpack.c.l.b16 %v2371
    %v2404 = vunpack.c.l.b16 %v2372
    %v2405 = vunpack.c.l.b16 %v2373
    %v2406 = vunpack.c.l.b16 %v2374
    %v2407 = vunpack.c.l.b16 %v2375
    %v2408 = vunpack.c.l.b16 %v2376
    %v2409 = vunpack.c.l.b16 %v2377
    %v2410 = vunpack.c.l.b16 %v2378
    %v2411 = vunpack.c.l.b16 %v2379
    %v2412 = vunpack.c.l.b16 %v2380
    %v2413 = vunpack.c.l.b16 %v2381
    %v2414 = vunpack.c.l.b16 %v2382
    %v2415 = vunpack.c.l.b16 %v2383
    %v2416 = vunpack.c.l.b16 %v2384
    %v2417 = vpack.c.b16 %v2402, %v2401
    %v2418 = vpack.c.b16 %v2404, %v2403
    %v2419 = vpack.c.b16 %v2406, %v2405
    %v2420 = vpack.c.b16 %v2408, %v2407
    %v2421 = vpack.c.b16 %v2410, %v2409
    %v2422 = vpack.c.b16 %v2412, %v2411
    %v2423 = vpack.c.b16 %v2414, %v2413
    %v2424 = vpack.c.b16 %v2416, %v2415
    %2433 = vmatpush.bf16.msra.mxu0 %v2424
    %2434 = vmatpush.bf16.msra.mxu0 %v2423
    %2435 = vmatpush.bf16.msra.mxu0 %v2422
    %2436 = vmatpush.bf16.msra.mxu0 %v2421
    %2437 = vmatpush.bf16.msra.mxu0 %v2420
    %2438 = vmatpush.bf16.msra.mxu0 %v2419
    %2439 = vmatpush.bf16.msra.mxu0 %v2418
    %2440 = vmatpush.bf16.msra.mxu0 %v2417
    %2441 = vmatmul.bf16.gmra.mxu0 %v2058
    %v2442 = vpop.f32.mrf.mxu0
    %v2443 = vadd.f32 0.0, %v2442
    %v2444 = vpop.f32.mrf.mxu0
    %2445 = vdwg.mxu0
    %s2446 = scalar_lea.vmem [#allocation10], 12
    %v2447 = vld [vmem:[%s2446] sm:$0xf]
    %v2449 = vsel %vm2217, %v2447, 0
    %2451 = vmatpush.msra.mxu0 0.0
    %2452 = vmatpush.msra.mxu0 0.0
    %2453 = vmatpush.msra.mxu0 0.0
    %2454 = vmatpush.msra.mxu0 0.0
    %2455 = vmatpush.msra.mxu0 0.0
    %2456 = vmatpush.msra.mxu0 0.0
    %2457 = vmatpush.msra.mxu0 0.0
    %2458 = vmatpush.msra.mxu0 0.0
    %2459 = vmatpush.msra.mxu0 0.0
    %2460 = vmatpush.msra.mxu0 0.0
    %2461 = vmatpush.msra.mxu0 0.0
    %2462 = vmatpush.msra.mxu0 0.0
    %2463 = vmatpush.msra.mxu0 0.0
    %2464 = vmatpush.msra.mxu0 0.0
    %2465 = vmatpush.msra.mxu0 0.0
    %2466 = vmatpush.msra.mxu0 %v2443
    %2467 = vmatmul.f32.gmra.mxu0 %v2449
    %v2468 = vpop.f32.mrf.mxu0
    %v2469 = vadd.f32 0.0, %v2468
    %2470 = vdwg.mxu0
    %v2471 = vadd.f32 %v2367, %v2469
    %s2472 = scalar_lea.vmem [#allocation12], 256
    %v2473 = vld [vmem:[%s2472] sm:$0xf]
    %v2474 = vld [vmem:[%s2472 + $0x4] sm:$0xf]
    %v2475 = vld [vmem:[%s2472 + $0x8] sm:$0xf]
    %v2476 = vld [vmem:[%s2472 + $0xc] sm:$0xf]
    %v2477 = vld [vmem:[%s2472 + $0x10] sm:$0xf]
    %v2478 = vld [vmem:[%s2472 + $0x14] sm:$0xf]
    %v2479 = vld [vmem:[%s2472 + $0x18] sm:$0xf]
    %v2480 = vld [vmem:[%s2472 + $0x1c] sm:$0xf]
    %v2481 = vld [vmem:[%s2472 + $0x20] sm:$0xf]
    %v2482 = vld [vmem:[%s2472 + $0x24] sm:$0xf]
    %v2483 = vld [vmem:[%s2472 + $0x28] sm:$0xf]
    %v2484 = vld [vmem:[%s2472 + $0x2c] sm:$0xf]
    %v2485 = vld [vmem:[%s2472 + $0x30] sm:$0xf]
    %v2486 = vld [vmem:[%s2472 + $0x34] sm:$0xf]
    %v2487 = vld [vmem:[%s2472 + $0x38] sm:$0xf]
    %v2488 = vld [vmem:[%s2472 + $0x3c] sm:$0xf]
    %v2505 = vunpack.c.l.b16 %v2473
    %v2506 = vunpack.c.l.b16 %v2474
    %v2507 = vunpack.c.l.b16 %v2475
    %v2508 = vunpack.c.l.b16 %v2476
    %v2509 = vunpack.c.l.b16 %v2477
    %v2510 = vunpack.c.l.b16 %v2478
    %v2511 = vunpack.c.l.b16 %v2479
    %v2512 = vunpack.c.l.b16 %v2480
    %v2513 = vunpack.c.l.b16 %v2481
    %v2514 = vunpack.c.l.b16 %v2482
    %v2515 = vunpack.c.l.b16 %v2483
    %v2516 = vunpack.c.l.b16 %v2484
    %v2517 = vunpack.c.l.b16 %v2485
    %v2518 = vunpack.c.l.b16 %v2486
    %v2519 = vunpack.c.l.b16 %v2487
    %v2520 = vunpack.c.l.b16 %v2488
    %v2521 = vpack.c.b16 %v2506, %v2505
    %v2522 = vpack.c.b16 %v2508, %v2507
    %v2523 = vpack.c.b16 %v2510, %v2509
    %v2524 = vpack.c.b16 %v2512, %v2511
    %v2525 = vpack.c.b16 %v2514, %v2513
    %v2526 = vpack.c.b16 %v2516, %v2515
    %v2527 = vpack.c.b16 %v2518, %v2517
    %v2528 = vpack.c.b16 %v2520, %v2519
    %2537 = vmatpush.bf16.msra.mxu0 %v2528
    %2538 = vmatpush.bf16.msra.mxu0 %v2527
    %2539 = vmatpush.bf16.msra.mxu0 %v2526
    %2540 = vmatpush.bf16.msra.mxu0 %v2525
    %2541 = vmatpush.bf16.msra.mxu0 %v2524
    %2542 = vmatpush.bf16.msra.mxu0 %v2523
    %2543 = vmatpush.bf16.msra.mxu0 %v2522
    %2544 = vmatpush.bf16.msra.mxu0 %v2521
    %2545 = vmatmul.bf16.gmra.mxu0 %v2058
    %v2546 = vpop.f32.mrf.mxu0
    %v2547 = vadd.f32 0.0, %v2546
    %v2548 = vpop.f32.mrf.mxu0
    %2549 = vdwg.mxu0
    %s2550 = scalar_lea.vmem [#allocation10], 16
    %v2551 = vld [vmem:[%s2550] sm:$0xf]
    %v2553 = vsel %vm2217, %v2551, 0
    %2555 = vmatpush.msra.mxu0 0.0
    %2556 = vmatpush.msra.mxu0 0.0
    %2557 = vmatpush.msra.mxu0 0.0
    %2558 = vmatpush.msra.mxu0 0.0
    %2559 = vmatpush.msra.mxu0 0.0
    %2560 = vmatpush.msra.mxu0 0.0
    %2561 = vmatpush.msra.mxu0 0.0
    %2562 = vmatpush.msra.mxu0 0.0
    %2563 = vmatpush.msra.mxu0 0.0
    %2564 = vmatpush.msra.mxu0 0.0
    %2565 = vmatpush.msra.mxu0 0.0
    %2566 = vmatpush.msra.mxu0 0.0
    %2567 = vmatpush.msra.mxu0 0.0
    %2568 = vmatpush.msra.mxu0 0.0
    %2569 = vmatpush.msra.mxu0 0.0
    %2570 = vmatpush.msra.mxu0 %v2547
    %2571 = vmatmul.f32.gmra.mxu0 %v2553
    %v2572 = vpop.f32.mrf.mxu0
    %v2573 = vadd.f32 0.0, %v2572
    %2574 = vdwg.mxu0
    %v2575 = vadd.f32 %v2471, %v2573
    %v2576 = vld [vmem:[%s12] sm:$0x1]
    %v2578 = vperm.slane %v2576, 0
    %v2580 = vadd.f32 %v2575, %v2578
    %vm2581 = vcmp.gt.f32.partialorder %v2580, 0.0
    %v2582 = vmul.f32 %v2580, 1.442695
    %v2583 = vpow.pop %v2582
    %v2584 = vsub.f32 %v2583, 1.0
    %v2585 = vsel %vm2581, %v2580, %v2584
    %v2586 = vpack.c.bf16 %v2585, %v2585
    %v2587 = vld [vmem:[#allocation13] sm:$0xff]
    %v2588 = vld [vmem:[#allocation13 + $0x8] sm:$0xff]
    %v2589 = vld [vmem:[#allocation13 + $0x10] sm:$0xff]
    %v2590 = vld [vmem:[#allocation13 + $0x18] sm:$0xff]
    %v2591 = vld [vmem:[#allocation13 + $0x20] sm:$0xff]
    %v2592 = vld [vmem:[#allocation13 + $0x28] sm:$0xff]
    %v2593 = vld [vmem:[#allocation13 + $0x30] sm:$0xff]
    %v2594 = vld [vmem:[#allocation13 + $0x38] sm:$0xff]
    %v2595 = vld [vmem:[#allocation13 + $0x40] sm:$0xff]
    %v2596 = vld [vmem:[#allocation13 + $0x48] sm:$0xff]
    %v2597 = vld [vmem:[#allocation13 + $0x50] sm:$0xff]
    %v2598 = vld [vmem:[#allocation13 + $0x58] sm:$0xff]
    %v2599 = vld [vmem:[#allocation13 + $0x60] sm:$0xff]
    %v2600 = vld [vmem:[#allocation13 + $0x68] sm:$0xff]
    %v2601 = vld [vmem:[#allocation13 + $0x70] sm:$0xff]
    %v2602 = vld [vmem:[#allocation13 + $0x78] sm:$0xff]
    %v2603 = vld [vmem:[#allocation13 + $0x80] sm:$0xff]
    %v2604 = vld [vmem:[#allocation13 + $0x88] sm:$0xff]
    %v2605 = vld [vmem:[#allocation13 + $0x90] sm:$0xff]
    %v2606 = vld [vmem:[#allocation13 + $0x98] sm:$0xff]
    %v2607 = vld [vmem:[#allocation13 + $0xa0] sm:$0xff]
    %v2608 = vld [vmem:[#allocation13 + $0xa8] sm:$0xff]
    %v2609 = vld [vmem:[#allocation13 + $0xb0] sm:$0xff]
    %v2610 = vld [vmem:[#allocation13 + $0xb8] sm:$0xff]
    %v2611 = vld [vmem:[#allocation13 + $0xc0] sm:$0xff]
    %v2612 = vld [vmem:[#allocation13 + $0xc8] sm:$0xff]
    %v2613 = vld [vmem:[#allocation13 + $0xd0] sm:$0xff]
    %v2614 = vld [vmem:[#allocation13 + $0xd8] sm:$0xff]
    %v2615 = vld [vmem:[#allocation13 + $0xe0] sm:$0xff]
    %v2616 = vld [vmem:[#allocation13 + $0xe8] sm:$0xff]
    %v2617 = vld [vmem:[#allocation13 + $0xf0] sm:$0xff]
    %v2618 = vld [vmem:[#allocation13 + $0xf8] sm:$0xff]
    %v2620 = vunpack.c.l.b16 %v2586
    %v2621 = vpack.c.b16 %v2620, %v2620
    %v2622 = vrot.slane %v2621, 1
    %v2640 = vunpack.c.l.b16 %v2603
    %v2641 = vunpack.c.h.b16 %v2603
    %v2642 = vunpack.c.l.b16 %v2604
    %v2643 = vunpack.c.h.b16 %v2604
    %v2644 = vunpack.c.l.b16 %v2605
    %v2645 = vunpack.c.h.b16 %v2605
    %v2646 = vunpack.c.l.b16 %v2606
    %v2647 = vunpack.c.h.b16 %v2606
    %v2648 = vunpack.c.l.b16 %v2607
    %v2649 = vunpack.c.h.b16 %v2607
    %v2650 = vunpack.c.l.b16 %v2608
    %v2651 = vunpack.c.h.b16 %v2608
    %v2652 = vunpack.c.l.b16 %v2609
    %v2653 = vunpack.c.h.b16 %v2609
    %v2654 = vunpack.c.l.b16 %v2610
    %v2655 = vunpack.c.h.b16 %v2610
    %v2656 = vunpack.c.l.b16 %v2611
    %v2657 = vunpack.c.h.b16 %v2611
    %v2658 = vunpack.c.l.b16 %v2612
    %v2659 = vunpack.c.h.b16 %v2612
    %v2660 = vunpack.c.l.b16 %v2613
    %v2661 = vunpack.c.h.b16 %v2613
    %v2662 = vunpack.c.l.b16 %v2614
    %v2663 = vunpack.c.h.b16 %v2614
    %v2664 = vunpack.c.l.b16 %v2615
    %v2665 = vunpack.c.h.b16 %v2615
    %v2666 = vunpack.c.l.b16 %v2616
    %v2667 = vunpack.c.h.b16 %v2616
    %v2668 = vunpack.c.l.b16 %v2617
    %v2669 = vunpack.c.h.b16 %v2617
    %v2670 = vunpack.c.l.b16 %v2618
    %v2671 = vunpack.c.h.b16 %v2618
    %v2672 = vpack.c.b16 %v2642, %v2640
    %v2673 = vpack.c.b16 %v2643, %v2641
    %v2674 = vpack.c.b16 %v2646, %v2644
    %v2675 = vpack.c.b16 %v2647, %v2645
    %v2676 = vpack.c.b16 %v2650, %v2648
    %v2677 = vpack.c.b16 %v2651, %v2649
    %v2678 = vpack.c.b16 %v2654, %v2652
    %v2679 = vpack.c.b16 %v2655, %v2653
    %v2680 = vpack.c.b16 %v2658, %v2656
    %v2681 = vpack.c.b16 %v2659, %v2657
    %v2682 = vpack.c.b16 %v2662, %v2660
    %v2683 = vpack.c.b16 %v2663, %v2661
    %v2684 = vpack.c.b16 %v2666, %v2664
    %v2685 = vpack.c.b16 %v2667, %v2665
    %v2686 = vpack.c.b16 %v2670, %v2668
    %v2687 = vpack.c.b16 %v2671, %v2669
    %2704 = vmatpush.bf16.msra.mxu0 %v2686
    %2705 = vmatpush.bf16.msra.mxu0 %v2684
    %2706 = vmatpush.bf16.msra.mxu0 %v2682
    %2707 = vmatpush.bf16.msra.mxu0 %v2680
    %2708 = vmatpush.bf16.msra.mxu0 %v2678
    %2709 = vmatpush.bf16.msra.mxu0 %v2676
    %2710 = vmatpush.bf16.msra.mxu0 %v2674
    %2711 = vmatpush.bf16.msra.mxu0 %v2672
    %2712 = vmatmul.bf16.gmra.mxu0 %v2622
    %v2713 = vpop.f32.mrf.mxu0
    %v2714 = vadd.f32 0.0, %v2713
    %v2715 = vpop.f32.mrf.mxu0
    %2716 = vdwg.mxu0
    %2717 = vmatpush.bf16.msra.mxu0 %v2687
    %2718 = vmatpush.bf16.msra.mxu0 %v2685
    %2719 = vmatpush.bf16.msra.mxu0 %v2683
    %2720 = vmatpush.bf16.msra.mxu0 %v2681
    %2721 = vmatpush.bf16.msra.mxu0 %v2679
    %2722 = vmatpush.bf16.msra.mxu0 %v2677
    %2723 = vmatpush.bf16.msra.mxu0 %v2675
    %2724 = vmatpush.bf16.msra.mxu0 %v2673
    %2725 = vmatmul.bf16.gmra.mxu0 %v2622
    %v2726 = vpop.f32.mrf.mxu0
    %v2727 = vadd.f32 0.0, %v2726
    %v2728 = vpop.f32.mrf.mxu0
    %2729 = vdwg.mxu0
    %v2746 = vunpack.c.l.b16 %v2587
    %v2747 = vunpack.c.h.b16 %v2587
    %v2748 = vunpack.c.l.b16 %v2588
    %v2749 = vunpack.c.h.b16 %v2588
    %v2750 = vunpack.c.l.b16 %v2589
    %v2751 = vunpack.c.h.b16 %v2589
    %v2752 = vunpack.c.l.b16 %v2590
    %v2753 = vunpack.c.h.b16 %v2590
    %v2754 = vunpack.c.l.b16 %v2591
    %v2755 = vunpack.c.h.b16 %v2591
    %v2756 = vunpack.c.l.b16 %v2592
    %v2757 = vunpack.c.h.b16 %v2592
    %v2758 = vunpack.c.l.b16 %v2593
    %v2759 = vunpack.c.h.b16 %v2593
    %v2760 = vunpack.c.l.b16 %v2594
    %v2761 = vunpack.c.h.b16 %v2594
    %v2762 = vunpack.c.l.b16 %v2595
    %v2763 = vunpack.c.h.b16 %v2595
    %v2764 = vunpack.c.l.b16 %v2596
    %v2765 = vunpack.c.h.b16 %v2596
    %v2766 = vunpack.c.l.b16 %v2597
    %v2767 = vunpack.c.h.b16 %v2597
    %v2768 = vunpack.c.l.b16 %v2598
    %v2769 = vunpack.c.h.b16 %v2598
    %v2770 = vunpack.c.l.b16 %v2599
    %v2771 = vunpack.c.h.b16 %v2599
    %v2772 = vunpack.c.l.b16 %v2600
    %v2773 = vunpack.c.h.b16 %v2600
    %v2774 = vunpack.c.l.b16 %v2601
    %v2775 = vunpack.c.h.b16 %v2601
    %v2776 = vunpack.c.l.b16 %v2602
    %v2777 = vunpack.c.h.b16 %v2602
    %v2778 = vpack.c.b16 %v2748, %v2746
    %v2779 = vpack.c.b16 %v2749, %v2747
    %v2780 = vpack.c.b16 %v2752, %v2750
    %v2781 = vpack.c.b16 %v2753, %v2751
    %v2782 = vpack.c.b16 %v2756, %v2754
    %v2783 = vpack.c.b16 %v2757, %v2755
    %v2784 = vpack.c.b16 %v2760, %v2758
    %v2785 = vpack.c.b16 %v2761, %v2759
    %v2786 = vpack.c.b16 %v2764, %v2762
    %v2787 = vpack.c.b16 %v2765, %v2763
    %v2788 = vpack.c.b16 %v2768, %v2766
    %v2789 = vpack.c.b16 %v2769, %v2767
    %v2790 = vpack.c.b16 %v2772, %v2770
    %v2791 = vpack.c.b16 %v2773, %v2771
    %v2792 = vpack.c.b16 %v2776, %v2774
    %v2793 = vpack.c.b16 %v2777, %v2775
    %2810 = vmatpush.bf16.msra.mxu0 %v2792
    %2811 = vmatpush.bf16.msra.mxu0 %v2790
    %2812 = vmatpush.bf16.msra.mxu0 %v2788
    %2813 = vmatpush.bf16.msra.mxu0 %v2786
    %2814 = vmatpush.bf16.msra.mxu0 %v2784
    %2815 = vmatpush.bf16.msra.mxu0 %v2782
    %2816 = vmatpush.bf16.msra.mxu0 %v2780
    %2817 = vmatpush.bf16.msra.mxu0 %v2778
    %2818 = vmatmul.bf16.gmra.mxu0 %v2586
    %v2819 = vpop.f32.mrf.mxu0
    %v2820 = vadd.f32 %v2714, %v2819
    %v2821 = vpop.f32.mrf.mxu0
    %2822 = vdwg.mxu0
    %2823 = vmatpush.bf16.msra.mxu0 %v2793
    %2824 = vmatpush.bf16.msra.mxu0 %v2791
    %2825 = vmatpush.bf16.msra.mxu0 %v2789
    %2826 = vmatpush.bf16.msra.mxu0 %v2787
    %2827 = vmatpush.bf16.msra.mxu0 %v2785
    %2828 = vmatpush.bf16.msra.mxu0 %v2783
    %2829 = vmatpush.bf16.msra.mxu0 %v2781
    %2830 = vmatpush.bf16.msra.mxu0 %v2779
    %2831 = vmatmul.bf16.gmra.mxu0 %v2586
    %v2832 = vpop.f32.mrf.mxu0
    %v2833 = vadd.f32 %v2727, %v2832
    %v2834 = vpop.f32.mrf.mxu0
    %2835 = vdwg.mxu0
    %v2836 = vld [vmem:[%s14] sm:$0x3]
    %v2838 = vperm.slane %v2836, 0
    %v2839 = vperm.slane %v2836, 1
    %v2842 = vadd.f32 %v2820, %v2838
    %v2843 = vadd.f32 %v2833, %v2839
    %vm2844 = vcmp.gt.f32.partialorder %v2842, 0.0
    %vm2845 = vcmp.gt.f32.partialorder %v2843, 0.0
    %v2846 = vmul.f32 %v2842, 1.442695
    %v2847 = vpow.pop %v2846
    %v2848 = vmul.f32 %v2843, 1.442695
    %v2849 = vpow.pop %v2848
    %v2850 = vsub.f32 %v2847, 1.0
    %v2851 = vsub.f32 %v2849, 1.0
    %v2852 = vsel %vm2844, %v2842, %v2850
    %v2853 = vsel %vm2845, %v2843, %v2851
    %v2854 = vpack.c.bf16 %v2852, %v2852
    %v2855 = vpack.c.bf16 %v2853, %v2853
    %v2856 = vld [vmem:[#allocation15] sm:$0xff]
    %v2857 = vld [vmem:[#allocation15 + $0x8] sm:$0xff]
    %v2858 = vld [vmem:[#allocation15 + $0x10] sm:$0xff]
    %v2859 = vld [vmem:[#allocation15 + $0x18] sm:$0xff]
    %v2860 = vld [vmem:[#allocation15 + $0x20] sm:$0xff]
    %v2861 = vld [vmem:[#allocation15 + $0x28] sm:$0xff]
    %v2862 = vld [vmem:[#allocation15 + $0x30] sm:$0xff]
    %v2863 = vld [vmem:[#allocation15 + $0x38] sm:$0xff]
    %v2864 = vld [vmem:[#allocation15 + $0x40] sm:$0xff]
    %v2865 = vld [vmem:[#allocation15 + $0x48] sm:$0xff]
    %v2866 = vld [vmem:[#allocation15 + $0x50] sm:$0xff]
    %v2867 = vld [vmem:[#allocation15 + $0x58] sm:$0xff]
    %v2868 = vld [vmem:[#allocation15 + $0x60] sm:$0xff]
    %v2869 = vld [vmem:[#allocation15 + $0x68] sm:$0xff]
    %v2870 = vld [vmem:[#allocation15 + $0x70] sm:$0xff]
    %v2871 = vld [vmem:[#allocation15 + $0x78] sm:$0xff]
    %v2872 = vld [vmem:[#allocation15 + $0x80] sm:$0xff]
    %v2873 = vld [vmem:[#allocation15 + $0x88] sm:$0xff]
    %v2874 = vld [vmem:[#allocation15 + $0x90] sm:$0xff]
    %v2875 = vld [vmem:[#allocation15 + $0x98] sm:$0xff]
    %v2876 = vld [vmem:[#allocation15 + $0xa0] sm:$0xff]
    %v2877 = vld [vmem:[#allocation15 + $0xa8] sm:$0xff]
    %v2878 = vld [vmem:[#allocation15 + $0xb0] sm:$0xff]
    %v2879 = vld [vmem:[#allocation15 + $0xb8] sm:$0xff]
    %v2880 = vld [vmem:[#allocation15 + $0xc0] sm:$0xff]
    %v2881 = vld [vmem:[#allocation15 + $0xc8] sm:$0xff]
    %v2882 = vld [vmem:[#allocation15 + $0xd0] sm:$0xff]
    %v2883 = vld [vmem:[#allocation15 + $0xd8] sm:$0xff]
    %v2884 = vld [vmem:[#allocation15 + $0xe0] sm:$0xff]
    %v2885 = vld [vmem:[#allocation15 + $0xe8] sm:$0xff]
    %v2886 = vld [vmem:[#allocation15 + $0xf0] sm:$0xff]
    %v2887 = vld [vmem:[#allocation15 + $0xf8] sm:$0xff]
    %v2888 = vld [vmem:[%s16] sm:$0x3]
    %v2890 = vperm.slane %v2888, 0
    %v2891 = vperm.slane %v2888, 1
    %v2926 = vunpack.c.l.b16 %v2856
    %v2927 = vunpack.c.h.b16 %v2856
    %v2928 = vunpack.c.l.b16 %v2857
    %v2929 = vunpack.c.h.b16 %v2857
    %v2930 = vunpack.c.l.b16 %v2858
    %v2931 = vunpack.c.h.b16 %v2858
    %v2932 = vunpack.c.l.b16 %v2859
    %v2933 = vunpack.c.h.b16 %v2859
    %v2934 = vunpack.c.l.b16 %v2860
    %v2935 = vunpack.c.h.b16 %v2860
    %v2936 = vunpack.c.l.b16 %v2861
    %v2937 = vunpack.c.h.b16 %v2861
    %v2938 = vunpack.c.l.b16 %v2862
    %v2939 = vunpack.c.h.b16 %v2862
    %v2940 = vunpack.c.l.b16 %v2863
    %v2941 = vunpack.c.h.b16 %v2863
    %v2942 = vunpack.c.l.b16 %v2864
    %v2943 = vunpack.c.h.b16 %v2864
    %v2944 = vunpack.c.l.b16 %v2865
    %v2945 = vunpack.c.h.b16 %v2865
    %v2946 = vunpack.c.l.b16 %v2866
    %v2947 = vunpack.c.h.b16 %v2866
    %v2948 = vunpack.c.l.b16 %v2867
    %v2949 = vunpack.c.h.b16 %v2867
    %v2950 = vunpack.c.l.b16 %v2868
    %v2951 = vunpack.c.h.b16 %v2868
    %v2952 = vunpack.c.l.b16 %v2869
    %v2953 = vunpack.c.h.b16 %v2869
    %v2954 = vunpack.c.l.b16 %v2870
    %v2955 = vunpack.c.h.b16 %v2870
    %v2956 = vunpack.c.l.b16 %v2871
    %v2957 = vunpack.c.h.b16 %v2871
    %v2958 = vunpack.c.l.b16 %v2872
    %v2959 = vunpack.c.h.b16 %v2872
    %v2960 = vunpack.c.l.b16 %v2873
    %v2961 = vunpack.c.h.b16 %v2873
    %v2962 = vunpack.c.l.b16 %v2874
    %v2963 = vunpack.c.h.b16 %v2874
    %v2964 = vunpack.c.l.b16 %v2875
    %v2965 = vunpack.c.h.b16 %v2875
    %v2966 = vunpack.c.l.b16 %v2876
    %v2967 = vunpack.c.h.b16 %v2876
    %v2968 = vunpack.c.l.b16 %v2877
    %v2969 = vunpack.c.h.b16 %v2877
    %v2970 = vunpack.c.l.b16 %v2878
    %v2971 = vunpack.c.h.b16 %v2878
    %v2972 = vunpack.c.l.b16 %v2879
    %v2973 = vunpack.c.h.b16 %v2879
    %v2974 = vunpack.c.l.b16 %v2880
    %v2975 = vunpack.c.h.b16 %v2880
    %v2976 = vunpack.c.l.b16 %v2881
    %v2977 = vunpack.c.h.b16 %v2881
    %v2978 = vunpack.c.l.b16 %v2882
    %v2979 = vunpack.c.h.b16 %v2882
    %v2980 = vunpack.c.l.b16 %v2883
    %v2981 = vunpack.c.h.b16 %v2883
    %v2982 = vunpack.c.l.b16 %v2884
    %v2983 = vunpack.c.h.b16 %v2884
    %v2984 = vunpack.c.l.b16 %v2885
    %v2985 = vunpack.c.h.b16 %v2885
    %v2986 = vunpack.c.l.b16 %v2886
    %v2987 = vunpack.c.h.b16 %v2886
    %v2988 = vunpack.c.l.b16 %v2887
    %v2989 = vunpack.c.h.b16 %v2887
    %v2990 = vpack.c.b16 %v2928, %v2926
    %v2991 = vpack.c.b16 %v2929, %v2927
    %v2992 = vpack.c.b16 %v2932, %v2930
    %v2993 = vpack.c.b16 %v2933, %v2931
    %v2994 = vpack.c.b16 %v2936, %v2934
    %v2995 = vpack.c.b16 %v2937, %v2935
    %v2996 = vpack.c.b16 %v2940, %v2938
    %v2997 = vpack.c.b16 %v2941, %v2939
    %v2998 = vpack.c.b16 %v2944, %v2942
    %v2999 = vpack.c.b16 %v2945, %v2943
    %v3000 = vpack.c.b16 %v2948, %v2946
    %v3001 = vpack.c.b16 %v2949, %v2947
    %v3002 = vpack.c.b16 %v2952, %v2950
    %v3003 = vpack.c.b16 %v2953, %v2951
    %v3004 = vpack.c.b16 %v2956, %v2954
    %v3005 = vpack.c.b16 %v2957, %v2955
    %v3006 = vpack.c.b16 %v2960, %v2958
    %v3007 = vpack.c.b16 %v2961, %v2959
    %v3008 = vpack.c.b16 %v2964, %v2962
    %v3009 = vpack.c.b16 %v2965, %v2963
    %v3010 = vpack.c.b16 %v2968, %v2966
    %v3011 = vpack.c.b16 %v2969, %v2967
    %v3012 = vpack.c.b16 %v2972, %v2970
    %v3013 = vpack.c.b16 %v2973, %v2971
    %v3014 = vpack.c.b16 %v2976, %v2974
    %v3015 = vpack.c.b16 %v2977, %v2975
    %v3016 = vpack.c.b16 %v2980, %v2978
    %v3017 = vpack.c.b16 %v2981, %v2979
    %v3018 = vpack.c.b16 %v2984, %v2982
    %v3019 = vpack.c.b16 %v2985, %v2983
    %v3020 = vpack.c.b16 %v2988, %v2986
    %v3021 = vpack.c.b16 %v2989, %v2987
    %3054 = vmatpush.bf16.msra.mxu0 %v3004
    %3055 = vmatpush.bf16.msra.mxu0 %v3002
    %3056 = vmatpush.bf16.msra.mxu0 %v3000
    %3057 = vmatpush.bf16.msra.mxu0 %v2998
    %3058 = vmatpush.bf16.msra.mxu0 %v2996
    %3059 = vmatpush.bf16.msra.mxu0 %v2994
    %3060 = vmatpush.bf16.msra.mxu0 %v2992
    %3061 = vmatpush.bf16.msra.mxu0 %v2990
    %3062 = vmatmul.bf16.gmra.mxu0 %v2854
    %v3063 = vpop.f32.mrf.mxu0
    %v3064 = vadd.f32 %v2890, %v3063
    %v3065 = vpop.f32.mrf.mxu0
    %3066 = vdwg.mxu0
    %3067 = vmatpush.bf16.msra.mxu0 %v3020
    %3068 = vmatpush.bf16.msra.mxu0 %v3018
    %3069 = vmatpush.bf16.msra.mxu0 %v3016
    %3070 = vmatpush.bf16.msra.mxu0 %v3014
    %3071 = vmatpush.bf16.msra.mxu0 %v3012
    %3072 = vmatpush.bf16.msra.mxu0 %v3010
    %3073 = vmatpush.bf16.msra.mxu0 %v3008
    %3074 = vmatpush.bf16.msra.mxu0 %v3006
    %3075 = vmatmul.bf16.gmra.mxu0 %v2855
    %v3076 = vpop.f32.mrf.mxu0
    %v3077 = vadd.f32 %v3064, %v3076
    %v3078 = vpop.f32.mrf.mxu0
    %3079 = vdwg.mxu0
    %3080 = vmatpush.bf16.msra.mxu0 %v3005
    %3081 = vmatpush.bf16.msra.mxu0 %v3003
    %3082 = vmatpush.bf16.msra.mxu0 %v3001
    %3083 = vmatpush.bf16.msra.mxu0 %v2999
    %3084 = vmatpush.bf16.msra.mxu0 %v2997
    %3085 = vmatpush.bf16.msra.mxu0 %v2995
    %3086 = vmatpush.bf16.msra.mxu0 %v2993
    %3087 = vmatpush.bf16.msra.mxu0 %v2991
    %3088 = vmatmul.bf16.gmra.mxu0 %v2854
    %v3089 = vpop.f32.mrf.mxu0
    %v3090 = vadd.f32 %v2891, %v3089
    %v3091 = vpop.f32.mrf.mxu0
    %3092 = vdwg.mxu0
    %3093 = vmatpush.bf16.msra.mxu0 %v3021
    %3094 = vmatpush.bf16.msra.mxu0 %v3019
    %3095 = vmatpush.bf16.msra.mxu0 %v3017
    %3096 = vmatpush.bf16.msra.mxu0 %v3015
    %3097 = vmatpush.bf16.msra.mxu0 %v3013
    %3098 = vmatpush.bf16.msra.mxu0 %v3011
    %3099 = vmatpush.bf16.msra.mxu0 %v3009
    %3100 = vmatpush.bf16.msra.mxu0 %v3007
    %3101 = vmatmul.bf16.gmra.mxu0 %v2855
    %v3102 = vpop.f32.mrf.mxu0
    %v3103 = vadd.f32 %v3090, %v3102
    %v3104 = vpop.f32.mrf.mxu0
    %3105 = vdwg.mxu0
    %vm3106 = vcmp.gt.f32.partialorder %v3077, 0.0
    %vm3107 = vcmp.gt.f32.partialorder %v3103, 0.0
    %v3108 = vmul.f32 %v3077, 1.442695
    %v3109 = vpow.pop %v3108
    %v3110 = vmul.f32 %v3103, 1.442695
    %v3111 = vpow.pop %v3110
    %v3112 = vsub.f32 %v3109, 1.0
    %v3113 = vsub.f32 %v3111, 1.0
    %v3114 = vsel %vm3106, %v3077, %v3112
    %v3115 = vsel %vm3107, %v3103, %v3113
    %v3116 = vpack.c.bf16 %v3114, %v3114
    %v3117 = vpack.c.bf16 %v3115, %v3115
    %v3118 = vld [vmem:[#allocation16] sm:$0xf]
    %v3119 = vld [vmem:[#allocation16 + $0x4] sm:$0xf]
    %v3120 = vld [vmem:[#allocation16 + $0x8] sm:$0xf]
    %v3121 = vld [vmem:[#allocation16 + $0xc] sm:$0xf]
    %v3122 = vld [vmem:[#allocation16 + $0x10] sm:$0xf]
    %v3123 = vld [vmem:[#allocation16 + $0x14] sm:$0xf]
    %v3124 = vld [vmem:[#allocation16 + $0x18] sm:$0xf]
    %v3125 = vld [vmem:[#allocation16 + $0x1c] sm:$0xf]
    %v3126 = vld [vmem:[#allocation16 + $0x20] sm:$0xf]
    %v3127 = vld [vmem:[#allocation16 + $0x24] sm:$0xf]
    %v3128 = vld [vmem:[#allocation16 + $0x28] sm:$0xf]
    %v3129 = vld [vmem:[#allocation16 + $0x2c] sm:$0xf]
    %v3130 = vld [vmem:[#allocation16 + $0x30] sm:$0xf]
    %v3131 = vld [vmem:[#allocation16 + $0x34] sm:$0xf]
    %v3132 = vld [vmem:[#allocation16 + $0x38] sm:$0xf]
    %v3133 = vld [vmem:[#allocation16 + $0x3c] sm:$0xf]
    %v3134 = vld [vmem:[#allocation16 + $0x40] sm:$0xf]
    %v3135 = vld [vmem:[#allocation16 + $0x44] sm:$0xf]
    %v3136 = vld [vmem:[#allocation16 + $0x48] sm:$0xf]
    %v3137 = vld [vmem:[#allocation16 + $0x4c] sm:$0xf]
    %v3138 = vld [vmem:[#allocation16 + $0x50] sm:$0xf]
    %v3139 = vld [vmem:[#allocation16 + $0x54] sm:$0xf]
    %v3140 = vld [vmem:[#allocation16 + $0x58] sm:$0xf]
    %v3141 = vld [vmem:[#allocation16 + $0x5c] sm:$0xf]
    %v3142 = vld [vmem:[#allocation16 + $0x60] sm:$0xf]
    %v3143 = vld [vmem:[#allocation16 + $0x64] sm:$0xf]
    %v3144 = vld [vmem:[#allocation16 + $0x68] sm:$0xf]
    %v3145 = vld [vmem:[#allocation16 + $0x6c] sm:$0xf]
    %v3146 = vld [vmem:[#allocation16 + $0x70] sm:$0xf]
    %v3147 = vld [vmem:[#allocation16 + $0x74] sm:$0xf]
    %v3148 = vld [vmem:[#allocation16 + $0x78] sm:$0xf]
    %v3149 = vld [vmem:[#allocation16 + $0x7c] sm:$0xf]
    %v3150 = vld [vmem:[%s18] sm:$0x1]
    %v3152 = vperm.slane %v3150, 0
    %v3186 = vunpack.c.l.b16 %v3118
    %v3187 = vunpack.c.l.b16 %v3119
    %v3188 = vunpack.c.l.b16 %v3120
    %v3189 = vunpack.c.l.b16 %v3121
    %v3190 = vunpack.c.l.b16 %v3122
    %v3191 = vunpack.c.l.b16 %v3123
    %v3192 = vunpack.c.l.b16 %v3124
    %v3193 = vunpack.c.l.b16 %v3125
    %v3194 = vunpack.c.l.b16 %v3126
    %v3195 = vunpack.c.l.b16 %v3127
    %v3196 = vunpack.c.l.b16 %v3128
    %v3197 = vunpack.c.l.b16 %v3129
    %v3198 = vunpack.c.l.b16 %v3130
    %v3199 = vunpack.c.l.b16 %v3131
    %v3200 = vunpack.c.l.b16 %v3132
    %v3201 = vunpack.c.l.b16 %v3133
    %v3202 = vunpack.c.l.b16 %v3134
    %v3203 = vunpack.c.l.b16 %v3135
    %v3204 = vunpack.c.l.b16 %v3136
    %v3205 = vunpack.c.l.b16 %v3137
    %v3206 = vunpack.c.l.b16 %v3138
    %v3207 = vunpack.c.l.b16 %v3139
    %v3208 = vunpack.c.l.b16 %v3140
    %v3209 = vunpack.c.l.b16 %v3141
    %v3210 = vunpack.c.l.b16 %v3142
    %v3211 = vunpack.c.l.b16 %v3143
    %v3212 = vunpack.c.l.b16 %v3144
    %v3213 = vunpack.c.l.b16 %v3145
    %v3214 = vunpack.c.l.b16 %v3146
    %v3215 = vunpack.c.l.b16 %v3147
    %v3216 = vunpack.c.l.b16 %v3148
    %v3217 = vunpack.c.l.b16 %v3149
    %v3218 = vpack.c.b16 %v3187, %v3186
    %v3219 = vpack.c.b16 %v3189, %v3188
    %v3220 = vpack.c.b16 %v3191, %v3190
    %v3221 = vpack.c.b16 %v3193, %v3192
    %v3222 = vpack.c.b16 %v3195, %v3194
    %v3223 = vpack.c.b16 %v3197, %v3196
    %v3224 = vpack.c.b16 %v3199, %v3198
    %v3225 = vpack.c.b16 %v3201, %v3200
    %v3226 = vpack.c.b16 %v3203, %v3202
    %v3227 = vpack.c.b16 %v3205, %v3204
    %v3228 = vpack.c.b16 %v3207, %v3206
    %v3229 = vpack.c.b16 %v3209, %v3208
    %v3230 = vpack.c.b16 %v3211, %v3210
    %v3231 = vpack.c.b16 %v3213, %v3212
    %v3232 = vpack.c.b16 %v3215, %v3214
    %v3233 = vpack.c.b16 %v3217, %v3216
    %3250 = vmatpush.bf16.msra.mxu0 %v3225
    %3251 = vmatpush.bf16.msra.mxu0 %v3224
    %3252 = vmatpush.bf16.msra.mxu0 %v3223
    %3253 = vmatpush.bf16.msra.mxu0 %v3222
    %3254 = vmatpush.bf16.msra.mxu0 %v3221
    %3255 = vmatpush.bf16.msra.mxu0 %v3220
    %3256 = vmatpush.bf16.msra.mxu0 %v3219
    %3257 = vmatpush.bf16.msra.mxu0 %v3218
    %3258 = vmatmul.bf16.gmra.mxu0 %v3116
    %v3259 = vpop.f32.mrf.mxu0
    %v3260 = vadd.f32 %v3152, %v3259
    %v3261 = vpop.f32.mrf.mxu0
    %3262 = vdwg.mxu0
    %3263 = vmatpush.bf16.msra.mxu0 %v3233
    %3264 = vmatpush.bf16.msra.mxu0 %v3232
    %3265 = vmatpush.bf16.msra.mxu0 %v3231
    %3266 = vmatpush.bf16.msra.mxu0 %v3230
    %3267 = vmatpush.bf16.msra.mxu0 %v3229
    %3268 = vmatpush.bf16.msra.mxu0 %v3228
    %3269 = vmatpush.bf16.msra.mxu0 %v3227
    %3270 = vmatpush.bf16.msra.mxu0 %v3226
    %3271 = vmatmul.bf16.gmra.mxu0 %v3117
    %v3272 = vpop.f32.mrf.mxu0
    %v3273 = vadd.f32 %v3260, %v3272
    %v3274 = vpop.f32.mrf.mxu0
    %3275 = vdwg.mxu0
    %v3276 = vsub.f32 0.0, %v3273
    %v3277 = vmul.f32 %v3276, 1.442695
    %v3278 = vpow.pop %v3277
    %v3279 = vadd.f32 %v3278, 1.0
    %v3280 = vrcp.pop %v3279
    %v3281 = vmul.f32 %v3279, %v3280
    %v3282 = vsub.f32 1.0, %v3281
    %v3283 = vmul.f32 %v3280, %v3282
    %v3284 = vadd.f32 %v3280, %v3283
    %vm3285 = vweird.f32 %v3279
    %vm3286 = vweird.f32 %v3280
    %vm3287 = vmor %vm3285, %vm3286
    %v3288 = vsel %vm3287, %v3280, %v3284
    %v3289 = vand.u32 2147483647, %v3279
    %vm3290 = vcmp.eq.f32.partialorder %v3289, 8.507059e+37
    %v3291 = vand.u32 %v3279, 2147483648
    %v3292 = vor.u32 1.1754944e-38, %v3291
    %v3293 = vsel %vm3290, %v3292, %v3288
    %v3294 = vmul.f32 1.0, %v3293
    %3295 = vst [vmem:[%s19] sm:$0x3] %v3294
    // Predicated region
    $region118: #{_lambda_.2} parent=1 // pred_check
      _
    $region119: #{_lambda_.2} parent=1 // pred_check_branch
      %3297 = sbr.rel (0) target = $region121
    $region120: #{_lambda_.2} parent=1 // pred_region
      _
    $region121: #{_lambda_.2} parent=1 // pred_fallthru
      _
    // Predicated region
    $region122: #{_lambda_.2} parent=1 // pred_check
      _
    $region123: #{_lambda_.2} parent=1 // pred_check_branch
      %3299 = sbr.rel (0) target = $region125
    $region124: #{_lambda_.2} parent=1 // pred_region
      _
    $region125: #{_lambda_.2} parent=1 // pred_fallthru
      _
    %3300 = vsyncpa [#allocation3], 1
    %3301 = vsyncpa [#allocation5], 1
    %3302 = vsyncpa [#allocation8], 1
    %3303 = vsyncpa [#allocation11], 1
    %3304 = vsyncpa [#allocation14], 1
    %3305 = vsyncpa [#allocation17], 1

// kernel: _lambda_.3
$region0: #{_lambda_.3}
  #allocation0 [shape = 'u32[]', space=smem, size = 0x4, offset = 0x4, fixed_abs, tag = 'smem constant byte address 0x4 - core index']
  #allocation1 [shape = 'u32[72,128]{1,0:T(1,128)}', space=vmem, size = 0x9000, scoped, tag = 'internal scratch']
  %s0 = inlined_call_operand.vmem [shape: bf16[2,128], index: 0, kind: input, shape index: {}]
  %s1 = inlined_call_operand.hbm [shape: bf16[128,256], index: 1, kind: input, shape index: {}]
  %s2 = inlined_call_operand.vmem [shape: f32[1,256], index: 2, kind: input, shape index: {}]
  %s3 = inlined_call_operand.vmem [shape: bf16[256,256], index: 3, kind: input, shape index: {}]
  %s4 = inlined_call_operand.vmem [shape: f32[1,256], index: 4, kind: input, shape index: {}]
  %s5 = inlined_call_operand.hbm [shape: bf16[256,256], index: 5, kind: input, shape index: {}]
  %s6 = inlined_call_operand.vmem [shape: f32[1,256], index: 6, kind: input, shape index: {}]
  %s7 = inlined_call_operand.vmem [shape: f32[5,8,2], index: 7, kind: input, shape index: {}]
  %s8 = inlined_call_operand.vmem [shape: f32[5,8,2], index: 8, kind: input, shape index: {}]
  %s9 = inlined_call_operand.vmem [shape: bf16[5,128,256], index: 9, kind: input, shape index: {}]
  %s10 = inlined_call_operand.vmem [shape: f32[1,256], index: 10, kind: input, shape index: {}]
  %s11 = inlined_call_operand.vmem [shape: f32[5,16,8], index: 11, kind: input, shape index: {}]
  %s12 = inlined_call_operand.hbm [shape: bf16[5,256,256], index: 12, kind: input, shape index: {}]
  %s13 = inlined_call_operand.vmem [shape: f32[1,256], index: 13, kind: input, shape index: {}]
  %s14 = inlined_call_operand.vmem [shape: f32[5,32,16], index: 14, kind: input, shape index: {}]
  %s15 = inlined_call_operand.hbm [shape: bf16[5,256,256], index: 15, kind: input, shape index: {}]
  %s16 = inlined_call_operand.vmem [shape: f32[1,256], index: 16, kind: input, shape index: {}]
  %s17 = inlined_call_operand.hbm [shape: f32[5,32,32], index: 17, kind: input, shape index: {}]
  %s18 = inlined_call_operand.hbm [shape: bf16[5,256,128], index: 18, kind: input, shape index: {}]
  %s19 = inlined_call_operand.vmem [shape: f32[1,128], index: 19, kind: input, shape index: {}]
  %s20 = inlined_call_operand.hbm [shape: f32[5,32,32], index: 20, kind: input, shape index: {}]
  %s21 = inlined_call_operand.hbm [shape: bf16[5,128,128], index: 21, kind: input, shape index: {}]
  %s22 = inlined_call_operand.vmem [shape: f32[1,128], index: 22, kind: input, shape index: {}]
  %s23 = inlined_call_operand.vmem [shape: f32[32,128], index: 23, kind: output, shape index: {}]
  %s24 = sld [smem:[#allocation0]]
  $region134: #{_lambda_.3} parent=0
    _
  %s26 = ssub.s32 1, %s24
  %s27 = scalar_select 0, %s26, %s24
  $region1: #{_lambda_.3} parent=0
    #allocation2 [shape = 'u8[65536]{0}', space=vmem, size = 0x10000, scoped, tag = 'input window, operand 1, single buffered']
    #allocation3 [shape = 's32[1]{0}', space=sflag, size = 0x4, scoped, tag = 'scoped memory for _lambda_.3']
    #allocation4 [shape = 'u8[131072]{0}', space=vmem, size = 0x20000, scoped, tag = 'input window, operand 5, single buffered']
    #allocation5 [shape = 's32[1]{0}', space=sflag, size = 0x4, scoped, tag = 'scoped memory for _lambda_.3']
    #allocation6 [shape = 'u8[655360]{0}', space=vmem, size = 0xa0000, scoped, tag = 'input window, operand 12, single buffered']
    #allocation7 [shape = 'u8[655360]{0}', space=vmem, size = 0xa0000, scoped, tag = 'input window, operand 15, single buffered']
    #allocation8 [shape = 's32[1]{0}', space=sflag, size = 0x4, scoped, tag = 'scoped memory for _lambda_.3']
    #allocation9 [shape = 'u8[81920]{0}', space=vmem, size = 0x14000, scoped, tag = 'input window, operand 17, single buffered']
    #allocation10 [shape = 'u8[327680]{0}', space=vmem, size = 0x50000, scoped, tag = 'input window, operand 18, single buffered']
    #allocation11 [shape = 's32[1]{0}', space=sflag, size = 0x4, scoped, tag = 'scoped memory for _lambda_.3']
    #allocation12 [shape = 'u8[81920]{0}', space=vmem, size = 0x14000, scoped, tag = 'input window, operand 20, single buffered']
    #allocation13 [shape = 'u8[163840]{0}', space=vmem, size = 0x28000, scoped, tag = 'input window, operand 21, single buffered']
    #allocation14 [shape = 's32[1]{0}', space=sflag, size = 0x4, scoped, tag = 'scoped memory for _lambda_.3']
    %28 = vsyncpa [#allocation3], 0
    %29 = vsyncpa [#allocation5], 0
    %30 = vsyncpa [#allocation8], 0
    %31 = vsyncpa [#allocation11], 0
    %32 = vsyncpa [#allocation14], 0
    // Predicated region
    $region2: #{_lambda_.3} parent=1 // pred_check
      _
    $region3: #{_lambda_.3} parent=1 // pred_check_branch
      %34 = sbr.rel (0) target = $region5
    $region4: #{_lambda_.3} parent=1 // pred_region
      _
    $region5: #{_lambda_.3} parent=1 // pred_fallthru
      _
    // Predicated region
    $region6: #{_lambda_.3} parent=1 // pred_check
      _
    $region7: #{_lambda_.3} parent=1 // pred_check_branch
      %36 = sbr.rel (0) target = $region9
    $region8: #{_lambda_.3} parent=1 // pred_region
      %38 = vsyncadd [#allocation3], 0
      %s39 = sshll.u32 %s1, 4
      %s40 = int_to_ptr.hbm [resolvable:$true] %s39
      %s41 = sshll.u32 [#allocation2], 4
      %s42 = int_to_ptr.vmem [resolvable:$true] %s41
      %47 = dma.hbm_to_vmem [thread:$0]  %s40, 2048, %s42, [#allocation3], 128, 128, 8
    $region9: #{_lambda_.3} parent=1 // pred_fallthru
      _
    // Predicated region
    $region10: #{_lambda_.3} parent=1 // pred_check
      _
    $region11: #{_lambda_.3} parent=1 // pred_check_branch
      %49 = sbr.rel (0) target = $region13
    $region12: #{_lambda_.3} parent=1 // pred_region
      _
    $region13: #{_lambda_.3} parent=1 // pred_fallthru
      _
    // Predicated region
    $region14: #{_lambda_.3} parent=1 // pred_check
      _
    $region15: #{_lambda_.3} parent=1 // pred_check_branch
      %51 = sbr.rel (0) target = $region17
    $region16: #{_lambda_.3} parent=1 // pred_region
      _
    $region17: #{_lambda_.3} parent=1 // pred_fallthru
      _
    // Predicated region
    $region18: #{_lambda_.3} parent=1 // pred_check
      _
    $region19: #{_lambda_.3} parent=1 // pred_check_branch
      %53 = sbr.rel (0) target = $region21
    $region20: #{_lambda_.3} parent=1 // pred_region
      _
    $region21: #{_lambda_.3} parent=1 // pred_fallthru
      _
    // Predicated region
    $region22: #{_lambda_.3} parent=1 // pred_check
      _
    $region23: #{_lambda_.3} parent=1 // pred_check_branch
      %55 = sbr.rel (0) target = $region25
    $region24: #{_lambda_.3} parent=1 // pred_region
      %57 = vsyncadd [#allocation5], 0
      %s58 = sshll.u32 %s5, 4
      %s59 = int_to_ptr.hbm [resolvable:$true] %s58
      %s60 = sshll.u32 [#allocation4], 4
      %s61 = int_to_ptr.vmem [resolvable:$true] %s60
      %66 = dma.hbm_to_vmem [thread:$0]  %s59, 4096, %s61, [#allocation5], 128, 128, 8
    $region25: #{_lambda_.3} parent=1 // pred_fallthru
      _
    // Predicated region
    $region26: #{_lambda_.3} parent=1 // pred_check
      _
    $region27: #{_lambda_.3} parent=1 // pred_check_branch
      %68 = sbr.rel (0) target = $region29
    $region28: #{_lambda_.3} parent=1 // pred_region
      _
    $region29: #{_lambda_.3} parent=1 // pred_fallthru
      _
    // Predicated region
    $region30: #{_lambda_.3} parent=1 // pred_check
      _
    $region31: #{_lambda_.3} parent=1 // pred_check_branch
      %70 = sbr.rel (0) target = $region33
    $region32: #{_lambda_.3} parent=1 // pred_region
      _
    $region33: #{_lambda_.3} parent=1 // pred_fallthru
      _
    // Predicated region
    $region34: #{_lambda_.3} parent=1 // pred_check
      _
    $region35: #{_lambda_.3} parent=1 // pred_check_branch
      %72 = sbr.rel (0) target = $region37
    $region36: #{_lambda_.3} parent=1 // pred_region
      _
    $region37: #{_lambda_.3} parent=1 // pred_fallthru
      _
    // Predicated region
    $region38: #{_lambda_.3} parent=1 // pred_check
      _
    $region39: #{_lambda_.3} parent=1 // pred_check_branch
      %74 = sbr.rel (0) target = $region41
    $region40: #{_lambda_.3} parent=1 // pred_region
      _
    $region41: #{_lambda_.3} parent=1 // pred_fallthru
      _
    // Predicated region
    $region42: #{_lambda_.3} parent=1 // pred_check
      _
    $region43: #{_lambda_.3} parent=1 // pred_check_branch
      %76 = sbr.rel (0) target = $region45
    $region44: #{_lambda_.3} parent=1 // pred_region
      _
    $region45: #{_lambda_.3} parent=1 // pred_fallthru
      _
    // Predicated region
    $region46: #{_lambda_.3} parent=1 // pred_check
      _
    $region47: #{_lambda_.3} parent=1 // pred_check_branch
      %78 = sbr.rel (0) target = $region49
    $region48: #{_lambda_.3} parent=1 // pred_region
      _
    $region49: #{_lambda_.3} parent=1 // pred_fallthru
      _
    // Predicated region
    $region50: #{_lambda_.3} parent=1 // pred_check
      _
    $region51: #{_lambda_.3} parent=1 // pred_check_branch
      %80 = sbr.rel (0) target = $region53
    $region52: #{_lambda_.3} parent=1 // pred_region
      %82 = vsyncadd [#allocation5], 0
      %s83 = sshll.u32 %s12, 4
      %s84 = int_to_ptr.hbm [resolvable:$true] %s83
      %s85 = sshll.u32 [#allocation6], 4
      %s86 = int_to_ptr.vmem [resolvable:$true] %s85
      %91 = dma.hbm_to_vmem [thread:$0]  %s84, 20480, %s86, [#allocation5], 128, 128, 8
    $region53: #{_lambda_.3} parent=1 // pred_fallthru
      _
    // Predicated region
    $region54: #{_lambda_.3} parent=1 // pred_check
      _
    $region55: #{_lambda_.3} parent=1 // pred_check_branch
      %93 = sbr.rel (0) target = $region57
    $region56: #{_lambda_.3} parent=1 // pred_region
      _
    $region57: #{_lambda_.3} parent=1 // pred_fallthru
      _
    // Predicated region
    $region58: #{_lambda_.3} parent=1 // pred_check
      _
    $region59: #{_lambda_.3} parent=1 // pred_check_branch
      %95 = sbr.rel (0) target = $region61
    $region60: #{_lambda_.3} parent=1 // pred_region
      _
    $region61: #{_lambda_.3} parent=1 // pred_fallthru
      _
    // Predicated region
    $region62: #{_lambda_.3} parent=1 // pred_check
      _
    $region63: #{_lambda_.3} parent=1 // pred_check_branch
      %97 = sbr.rel (0) target = $region65
    $region64: #{_lambda_.3} parent=1 // pred_region
      %99 = vsyncadd [#allocation8], 0
      %s100 = sshll.u32 %s15, 4
      %s101 = int_to_ptr.hbm [resolvable:$true] %s100
      %s102 = sshll.u32 [#allocation7], 4
      %s103 = int_to_ptr.vmem [resolvable:$true] %s102
      %108 = dma.hbm_to_vmem [thread:$0]  %s101, 20480, %s103, [#allocation8], 128, 128, 8
    $region65: #{_lambda_.3} parent=1 // pred_fallthru
      _
    // Predicated region
    $region66: #{_lambda_.3} parent=1 // pred_check
      _
    $region67: #{_lambda_.3} parent=1 // pred_check_branch
      %110 = sbr.rel (0) target = $region69
    $region68: #{_lambda_.3} parent=1 // pred_region
      _
    $region69: #{_lambda_.3} parent=1 // pred_fallthru
      _
    // Predicated region
    $region70: #{_lambda_.3} parent=1 // pred_check
      _
    $region71: #{_lambda_.3} parent=1 // pred_check_branch
      %112 = sbr.rel (0) target = $region73
    $region72: #{_lambda_.3} parent=1 // pred_region
      %114 = vsyncadd [#allocation8], 0
      %s115 = sshll.u32 %s17, 4
      %s116 = int_to_ptr.hbm [resolvable:$true] %s115
      %s117 = sshll.u32 [#allocation9], 4
      %s118 = int_to_ptr.vmem [resolvable:$true] %s117
      %123 = dma.hbm_to_vmem [thread:$0]  %s116, 2560, %s118, [#allocation8], 128, 128, 8
    $region73: #{_lambda_.3} parent=1 // pred_fallthru
      _
    // Predicated region
    $region74: #{_lambda_.3} parent=1 // pred_check
      _
    $region75: #{_lambda_.3} parent=1 // pred_check_branch
      %125 = sbr.rel (0) target = $region77
    $region76: #{_lambda_.3} parent=1 // pred_region
      %127 = vsyncadd [#allocation11], 0
      %s128 = sshll.u32 %s18, 4
      %s129 = int_to_ptr.hbm [resolvable:$true] %s128
      %s130 = sshll.u32 [#allocation10], 4
      %s131 = int_to_ptr.vmem [resolvable:$true] %s130
      %136 = dma.hbm_to_vmem [thread:$0]  %s129, 10240, %s131, [#allocation11], 64, 64, 4
    $region77: #{_lambda_.3} parent=1 // pred_fallthru
      _
    // Predicated region
    $region78: #{_lambda_.3} parent=1 // pred_check
      _
    $region79: #{_lambda_.3} parent=1 // pred_check_branch
      %138 = sbr.rel (0) target = $region81
    $region80: #{_lambda_.3} parent=1 // pred_region
      _
    $region81: #{_lambda_.3} parent=1 // pred_fallthru
      _
    // Predicated region
    $region82: #{_lambda_.3} parent=1 // pred_check
      _
    $region83: #{_lambda_.3} parent=1 // pred_check_branch
      %140 = sbr.rel (0) target = $region85
    $region84: #{_lambda_.3} parent=1 // pred_region
      %142 = vsyncadd [#allocation11], 0
      %s143 = sshll.u32 %s20, 4
      %s144 = int_to_ptr.hbm [resolvable:$true] %s143
      %s145 = sshll.u32 [#allocation12], 4
      %s146 = int_to_ptr.vmem [resolvable:$true] %s145
      %151 = dma.hbm_to_vmem [thread:$0]  %s144, 2560, %s146, [#allocation11], 128, 128, 8
    $region85: #{_lambda_.3} parent=1 // pred_fallthru
      _
    // Predicated region
    $region86: #{_lambda_.3} parent=1 // pred_check
      _
    $region87: #{_lambda_.3} parent=1 // pred_check_branch
      %153 = sbr.rel (0) target = $region89
    $region88: #{_lambda_.3} parent=1 // pred_region
      %155 = vsyncadd [#allocation14], 0
      %s156 = sshll.u32 %s21, 4
      %s157 = int_to_ptr.hbm [resolvable:$true] %s156
      %s158 = sshll.u32 [#allocation13], 4
      %s159 = int_to_ptr.vmem [resolvable:$true] %s158
      %164 = dma.hbm_to_vmem [thread:$0]  %s157, 5120, %s159, [#allocation14], 64, 64, 4
    $region89: #{_lambda_.3} parent=1 // pred_fallthru
      _
    // Predicated region
    $region90: #{_lambda_.3} parent=1 // pred_check
      _
    $region91: #{_lambda_.3} parent=1 // pred_check_branch
      %166 = sbr.rel (0) target = $region93
    $region92: #{_lambda_.3} parent=1 // pred_region
      _
    $region93: #{_lambda_.3} parent=1 // pred_fallthru
      _
    // Predicated region
    $region94: #{_lambda_.3} parent=1 // pred_check
      _
    $region95: #{_lambda_.3} parent=1 // pred_check_branch
      %168 = sbr.rel (0) target = $region97
    $region96: #{_lambda_.3} parent=1 // pred_region
      %170 = dma.done [#allocation3], 2048
    $region97: #{_lambda_.3} parent=1 // pred_fallthru
      _
    // Predicated region
    $region98: #{_lambda_.3} parent=1 // pred_check
      _
    $region99: #{_lambda_.3} parent=1 // pred_check_branch
      %172 = sbr.rel (0) target = $region101
    $region100: #{_lambda_.3} parent=1 // pred_region
      %174 = dma.done [#allocation5], 4096
    $region101: #{_lambda_.3} parent=1 // pred_fallthru
      _
    // Predicated region
    $region102: #{_lambda_.3} parent=1 // pred_check
      _
    $region103: #{_lambda_.3} parent=1 // pred_check_branch
      %176 = sbr.rel (0) target = $region105
    $region104: #{_lambda_.3} parent=1 // pred_region
      %178 = dma.done [#allocation5], 20480
    $region105: #{_lambda_.3} parent=1 // pred_fallthru
      _
    // Predicated region
    $region106: #{_lambda_.3} parent=1 // pred_check
      _
    $region107: #{_lambda_.3} parent=1 // pred_check_branch
      %180 = sbr.rel (0) target = $region109
    $region108: #{_lambda_.3} parent=1 // pred_region
      %182 = dma.done [#allocation8], 20480
    $region109: #{_lambda_.3} parent=1 // pred_fallthru
      _
    // Predicated region
    $region110: #{_lambda_.3} parent=1 // pred_check
      _
    $region111: #{_lambda_.3} parent=1 // pred_check_branch
      %184 = sbr.rel (0) target = $region113
    $region112: #{_lambda_.3} parent=1 // pred_region
      %186 = dma.done [#allocation8], 2560
    $region113: #{_lambda_.3} parent=1 // pred_fallthru
      _
    // Predicated region
    $region114: #{_lambda_.3} parent=1 // pred_check
      _
    $region115: #{_lambda_.3} parent=1 // pred_check_branch
      %188 = sbr.rel (0) target = $region117
    $region116: #{_lambda_.3} parent=1 // pred_region
      %190 = dma.done [#allocation11], 10240
    $region117: #{_lambda_.3} parent=1 // pred_fallthru
      _
    // Predicated region
    $region118: #{_lambda_.3} parent=1 // pred_check
      _
    $region119: #{_lambda_.3} parent=1 // pred_check_branch
      %192 = sbr.rel (0) target = $region121
    $region120: #{_lambda_.3} parent=1 // pred_region
      %194 = dma.done [#allocation11], 2560
    $region121: #{_lambda_.3} parent=1 // pred_fallthru
      _
    // Predicated region
    $region122: #{_lambda_.3} parent=1 // pred_check
      _
    $region123: #{_lambda_.3} parent=1 // pred_check_branch
      %196 = sbr.rel (0) target = $region125
    $region124: #{_lambda_.3} parent=1 // pred_region
      %198 = dma.done [#allocation14], 5120
    $region125: #{_lambda_.3} parent=1 // pred_fallthru
      _
    %v199 = vld [vmem:[%s0] sm:$0x1]
    %v200 = vld [vmem:[#allocation2] sm:$0xff]
    %v201 = vld [vmem:[#allocation2 + $0x8] sm:$0xff]
    %v202 = vld [vmem:[#allocation2 + $0x10] sm:$0xff]
    %v203 = vld [vmem:[#allocation2 + $0x18] sm:$0xff]
    %v204 = vld [vmem:[#allocation2 + $0x20] sm:$0xff]
    %v205 = vld [vmem:[#allocation2 + $0x28] sm:$0xff]
    %v206 = vld [vmem:[#allocation2 + $0x30] sm:$0xff]
    %v207 = vld [vmem:[#allocation2 + $0x38] sm:$0xff]
    %v208 = vld [vmem:[#allocation2 + $0x40] sm:$0xff]
    %v209 = vld [vmem:[#allocation2 + $0x48] sm:$0xff]
    %v210 = vld [vmem:[#allocation2 + $0x50] sm:$0xff]
    %v211 = vld [vmem:[#allocation2 + $0x58] sm:$0xff]
    %v212 = vld [vmem:[#allocation2 + $0x60] sm:$0xff]
    %v213 = vld [vmem:[#allocation2 + $0x68] sm:$0xff]
    %v214 = vld [vmem:[#allocation2 + $0x70] sm:$0xff]
    %v215 = vld [vmem:[#allocation2 + $0x78] sm:$0xff]
    %v216 = vld [vmem:[%s2] sm:$0x3]
    %v218 = vperm.slane %v216, 0
    %v219 = vperm.slane %v216, 1
    %v238 = vunpack.c.l.b16 %v200
    %v239 = vunpack.c.h.b16 %v200
    %v240 = vunpack.c.l.b16 %v201
    %v241 = vunpack.c.h.b16 %v201
    %v242 = vunpack.c.l.b16 %v202
    %v243 = vunpack.c.h.b16 %v202
    %v244 = vunpack.c.l.b16 %v203
    %v245 = vunpack.c.h.b16 %v203
    %v246 = vunpack.c.l.b16 %v204
    %v247 = vunpack.c.h.b16 %v204
    %v248 = vunpack.c.l.b16 %v205
    %v249 = vunpack.c.h.b16 %v205
    %v250 = vunpack.c.l.b16 %v206
    %v251 = vunpack.c.h.b16 %v206
    %v252 = vunpack.c.l.b16 %v207
    %v253 = vunpack.c.h.b16 %v207
    %v254 = vunpack.c.l.b16 %v208
    %v255 = vunpack.c.h.b16 %v208
    %v256 = vunpack.c.l.b16 %v209
    %v257 = vunpack.c.h.b16 %v209
    %v258 = vunpack.c.l.b16 %v210
    %v259 = vunpack.c.h.b16 %v210
    %v260 = vunpack.c.l.b16 %v211
    %v261 = vunpack.c.h.b16 %v211
    %v262 = vunpack.c.l.b16 %v212
    %v263 = vunpack.c.h.b16 %v212
    %v264 = vunpack.c.l.b16 %v213
    %v265 = vunpack.c.h.b16 %v213
    %v266 = vunpack.c.l.b16 %v214
    %v267 = vunpack.c.h.b16 %v214
    %v268 = vunpack.c.l.b16 %v215
    %v269 = vunpack.c.h.b16 %v215
    %v270 = vpack.c.b16 %v240, %v238
    %v271 = vpack.c.b16 %v241, %v239
    %v272 = vpack.c.b16 %v244, %v242
    %v273 = vpack.c.b16 %v245, %v243
    %v274 = vpack.c.b16 %v248, %v246
    %v275 = vpack.c.b16 %v249, %v247
    %v276 = vpack.c.b16 %v252, %v250
    %v277 = vpack.c.b16 %v253, %v251
    %v278 = vpack.c.b16 %v256, %v254
    %v279 = vpack.c.b16 %v257, %v255
    %v280 = vpack.c.b16 %v260, %v258
    %v281 = vpack.c.b16 %v261, %v259
    %v282 = vpack.c.b16 %v264, %v262
    %v283 = vpack.c.b16 %v265, %v263
    %v284 = vpack.c.b16 %v268, %v266
    %v285 = vpack.c.b16 %v269, %v267
    %302 = vmatpush.bf16.msra.mxu0 %v284
    %303 = vmatpush.bf16.msra.mxu0 %v282
    %304 = vmatpush.bf16.msra.mxu0 %v280
    %305 = vmatpush.bf16.msra.mxu0 %v278
    %306 = vmatpush.bf16.msra.mxu0 %v276
    %307 = vmatpush.bf16.msra.mxu0 %v274
    %308 = vmatpush.bf16.msra.mxu0 %v272
    %309 = vmatpush.bf16.msra.mxu0 %v270
    %310 = vmatmul.bf16.gmra.mxu0 %v199
    %v311 = vpop.f32.mrf.mxu0
    %v312 = vadd.f32 %v218, %v311
    %v313 = vpop.f32.mrf.mxu0
    %314 = vdwg.mxu0
    %315 = vmatpush.bf16.msra.mxu0 %v285
    %316 = vmatpush.bf16.msra.mxu0 %v283
    %317 = vmatpush.bf16.msra.mxu0 %v281
    %318 = vmatpush.bf16.msra.mxu0 %v279
    %319 = vmatpush.bf16.msra.mxu0 %v277
    %320 = vmatpush.bf16.msra.mxu0 %v275
    %321 = vmatpush.bf16.msra.mxu0 %v273
    %322 = vmatpush.bf16.msra.mxu0 %v271
    %323 = vmatmul.bf16.gmra.mxu0 %v199
    %v324 = vpop.f32.mrf.mxu0
    %v325 = vadd.f32 %v219, %v324
    %v326 = vpop.f32.mrf.mxu0
    %327 = vdwg.mxu0
    %vm328 = vcmp.gt.f32.partialorder %v312, 0.0
    %vm329 = vcmp.gt.f32.partialorder %v325, 0.0
    %v330 = vmul.f32 %v312, 1.442695
    %v331 = vpow.pop %v330
    %v332 = vmul.f32 %v325, 1.442695
    %v333 = vpow.pop %v332
    %v334 = vsub.f32 %v331, 1.0
    %v335 = vsub.f32 %v333, 1.0
    %v336 = vsel %vm328, %v312, %v334
    %v337 = vsel %vm329, %v325, %v335
    %v338 = vpack.c.bf16 %v336, %v336
    %v339 = vpack.c.bf16 %v337, %v337
    %v340 = vld [vmem:[%s3] sm:$0xff]
    %v341 = vld [vmem:[%s3 + $0x8] sm:$0xff]
    %v342 = vld [vmem:[%s3 + $0x10] sm:$0xff]
    %v343 = vld [vmem:[%s3 + $0x18] sm:$0xff]
    %v344 = vld [vmem:[%s3 + $0x20] sm:$0xff]
    %v345 = vld [vmem:[%s3 + $0x28] sm:$0xff]
    %v346 = vld [vmem:[%s3 + $0x30] sm:$0xff]
    %v347 = vld [vmem:[%s3 + $0x38] sm:$0xff]
    %v348 = vld [vmem:[%s3 + $0x40] sm:$0xff]
    %v349 = vld [vmem:[%s3 + $0x48] sm:$0xff]
    %v350 = vld [vmem:[%s3 + $0x50] sm:$0xff]
    %v351 = vld [vmem:[%s3 + $0x58] sm:$0xff]
    %v352 = vld [vmem:[%s3 + $0x60] sm:$0xff]
    %v353 = vld [vmem:[%s3 + $0x68] sm:$0xff]
    %v354 = vld [vmem:[%s3 + $0x70] sm:$0xff]
    %v355 = vld [vmem:[%s3 + $0x78] sm:$0xff]
    %v356 = vld [vmem:[%s3 + $0x80] sm:$0xff]
    %v357 = vld [vmem:[%s3 + $0x88] sm:$0xff]
    %v358 = vld [vmem:[%s3 + $0x90] sm:$0xff]
    %v359 = vld [vmem:[%s3 + $0x98] sm:$0xff]
    %v360 = vld [vmem:[%s3 + $0xa0] sm:$0xff]
    %v361 = vld [vmem:[%s3 + $0xa8] sm:$0xff]
    %v362 = vld [vmem:[%s3 + $0xb0] sm:$0xff]
    %v363 = vld [vmem:[%s3 + $0xb8] sm:$0xff]
    %v364 = vld [vmem:[%s3 + $0xc0] sm:$0xff]
    %v365 = vld [vmem:[%s3 + $0xc8] sm:$0xff]
    %v366 = vld [vmem:[%s3 + $0xd0] sm:$0xff]
    %v367 = vld [vmem:[%s3 + $0xd8] sm:$0xff]
    %v368 = vld [vmem:[%s3 + $0xe0] sm:$0xff]
    %v369 = vld [vmem:[%s3 + $0xe8] sm:$0xff]
    %v370 = vld [vmem:[%s3 + $0xf0] sm:$0xff]
    %v371 = vld [vmem:[%s3 + $0xf8] sm:$0xff]
    %v372 = vld [vmem:[%s4] sm:$0x3]
    %v374 = vperm.slane %v372, 0
    %v375 = vperm.slane %v372, 1
    %v410 = vunpack.c.l.b16 %v340
    %v411 = vunpack.c.h.b16 %v340
    %v412 = vunpack.c.l.b16 %v341
    %v413 = vunpack.c.h.b16 %v341
    %v414 = vunpack.c.l.b16 %v342
    %v415 = vunpack.c.h.b16 %v342
    %v416 = vunpack.c.l.b16 %v343
    %v417 = vunpack.c.h.b16 %v343
    %v418 = vunpack.c.l.b16 %v344
    %v419 = vunpack.c.h.b16 %v344
    %v420 = vunpack.c.l.b16 %v345
    %v421 = vunpack.c.h.b16 %v345
    %v422 = vunpack.c.l.b16 %v346
    %v423 = vunpack.c.h.b16 %v346
    %v424 = vunpack.c.l.b16 %v347
    %v425 = vunpack.c.h.b16 %v347
    %v426 = vunpack.c.l.b16 %v348
    %v427 = vunpack.c.h.b16 %v348
    %v428 = vunpack.c.l.b16 %v349
    %v429 = vunpack.c.h.b16 %v349
    %v430 = vunpack.c.l.b16 %v350
    %v431 = vunpack.c.h.b16 %v350
    %v432 = vunpack.c.l.b16 %v351
    %v433 = vunpack.c.h.b16 %v351
    %v434 = vunpack.c.l.b16 %v352
    %v435 = vunpack.c.h.b16 %v352
    %v436 = vunpack.c.l.b16 %v353
    %v437 = vunpack.c.h.b16 %v353
    %v438 = vunpack.c.l.b16 %v354
    %v439 = vunpack.c.h.b16 %v354
    %v440 = vunpack.c.l.b16 %v355
    %v441 = vunpack.c.h.b16 %v355
    %v442 = vunpack.c.l.b16 %v356
    %v443 = vunpack.c.h.b16 %v356
    %v444 = vunpack.c.l.b16 %v357
    %v445 = vunpack.c.h.b16 %v357
    %v446 = vunpack.c.l.b16 %v358
    %v447 = vunpack.c.h.b16 %v358
    %v448 = vunpack.c.l.b16 %v359
    %v449 = vunpack.c.h.b16 %v359
    %v450 = vunpack.c.l.b16 %v360
    %v451 = vunpack.c.h.b16 %v360
    %v452 = vunpack.c.l.b16 %v361
    %v453 = vunpack.c.h.b16 %v361
    %v454 = vunpack.c.l.b16 %v362
    %v455 = vunpack.c.h.b16 %v362
    %v456 = vunpack.c.l.b16 %v363
    %v457 = vunpack.c.h.b16 %v363
    %v458 = vunpack.c.l.b16 %v364
    %v459 = vunpack.c.h.b16 %v364
    %v460 = vunpack.c.l.b16 %v365
    %v461 = vunpack.c.h.b16 %v365
    %v462 = vunpack.c.l.b16 %v366
    %v463 = vunpack.c.h.b16 %v366
    %v464 = vunpack.c.l.b16 %v367
    %v465 = vunpack.c.h.b16 %v367
    %v466 = vunpack.c.l.b16 %v368
    %v467 = vunpack.c.h.b16 %v368
    %v468 = vunpack.c.l.b16 %v369
    %v469 = vunpack.c.h.b16 %v369
    %v470 = vunpack.c.l.b16 %v370
    %v471 = vunpack.c.h.b16 %v370
    %v472 = vunpack.c.l.b16 %v371
    %v473 = vunpack.c.h.b16 %v371
    %v474 = vpack.c.b16 %v412, %v410
    %v475 = vpack.c.b16 %v413, %v411
    %v476 = vpack.c.b16 %v416, %v414
    %v477 = vpack.c.b16 %v417, %v415
    %v478 = vpack.c.b16 %v420, %v418
    %v479 = vpack.c.b16 %v421, %v419
    %v480 = vpack.c.b16 %v424, %v422
    %v481 = vpack.c.b16 %v425, %v423
    %v482 = vpack.c.b16 %v428, %v426
    %v483 = vpack.c.b16 %v429, %v427
    %v484 = vpack.c.b16 %v432, %v430
    %v485 = vpack.c.b16 %v433, %v431
    %v486 = vpack.c.b16 %v436, %v434
    %v487 = vpack.c.b16 %v437, %v435
    %v488 = vpack.c.b16 %v440, %v438
    %v489 = vpack.c.b16 %v441, %v439
    %v490 = vpack.c.b16 %v444, %v442
    %v491 = vpack.c.b16 %v445, %v443
    %v492 = vpack.c.b16 %v448, %v446
    %v493 = vpack.c.b16 %v449, %v447
    %v494 = vpack.c.b16 %v452, %v450
    %v495 = vpack.c.b16 %v453, %v451
    %v496 = vpack.c.b16 %v456, %v454
    %v497 = vpack.c.b16 %v457, %v455
    %v498 = vpack.c.b16 %v460, %v458
    %v499 = vpack.c.b16 %v461, %v459
    %v500 = vpack.c.b16 %v464, %v462
    %v501 = vpack.c.b16 %v465, %v463
    %v502 = vpack.c.b16 %v468, %v466
    %v503 = vpack.c.b16 %v469, %v467
    %v504 = vpack.c.b16 %v472, %v470
    %v505 = vpack.c.b16 %v473, %v471
    %538 = vmatpush.bf16.msra.mxu0 %v488
    %539 = vmatpush.bf16.msra.mxu0 %v486
    %540 = vmatpush.bf16.msra.mxu0 %v484
    %541 = vmatpush.bf16.msra.mxu0 %v482
    %542 = vmatpush.bf16.msra.mxu0 %v480
    %543 = vmatpush.bf16.msra.mxu0 %v478
    %544 = vmatpush.bf16.msra.mxu0 %v476
    %545 = vmatpush.bf16.msra.mxu0 %v474
    %546 = vmatmul.bf16.gmra.mxu0 %v338
    %v547 = vpop.f32.mrf.mxu0
    %v548 = vadd.f32 %v374, %v547
    %v549 = vpop.f32.mrf.mxu0
    %550 = vdwg.mxu0
    %551 = vmatpush.bf16.msra.mxu0 %v504
    %552 = vmatpush.bf16.msra.mxu0 %v502
    %553 = vmatpush.bf16.msra.mxu0 %v500
    %554 = vmatpush.bf16.msra.mxu0 %v498
    %555 = vmatpush.bf16.msra.mxu0 %v496
    %556 = vmatpush.bf16.msra.mxu0 %v494
    %557 = vmatpush.bf16.msra.mxu0 %v492
    %558 = vmatpush.bf16.msra.mxu0 %v490
    %559 = vmatmul.bf16.gmra.mxu0 %v339
    %v560 = vpop.f32.mrf.mxu0
    %v561 = vadd.f32 %v548, %v560
    %v562 = vpop.f32.mrf.mxu0
    %563 = vdwg.mxu0
    %564 = vmatpush.bf16.msra.mxu0 %v489
    %565 = vmatpush.bf16.msra.mxu0 %v487
    %566 = vmatpush.bf16.msra.mxu0 %v485
    %567 = vmatpush.bf16.msra.mxu0 %v483
    %568 = vmatpush.bf16.msra.mxu0 %v481
    %569 = vmatpush.bf16.msra.mxu0 %v479
    %570 = vmatpush.bf16.msra.mxu0 %v477
    %571 = vmatpush.bf16.msra.mxu0 %v475
    %572 = vmatmul.bf16.gmra.mxu0 %v338
    %v573 = vpop.f32.mrf.mxu0
    %v574 = vadd.f32 %v375, %v573
    %v575 = vpop.f32.mrf.mxu0
    %576 = vdwg.mxu0
    %577 = vmatpush.bf16.msra.mxu0 %v505
    %578 = vmatpush.bf16.msra.mxu0 %v503
    %579 = vmatpush.bf16.msra.mxu0 %v501
    %580 = vmatpush.bf16.msra.mxu0 %v499
    %581 = vmatpush.bf16.msra.mxu0 %v497
    %582 = vmatpush.bf16.msra.mxu0 %v495
    %583 = vmatpush.bf16.msra.mxu0 %v493
    %584 = vmatpush.bf16.msra.mxu0 %v491
    %585 = vmatmul.bf16.gmra.mxu0 %v339
    %v586 = vpop.f32.mrf.mxu0
    %v587 = vadd.f32 %v574, %v586
    %v588 = vpop.f32.mrf.mxu0
    %589 = vdwg.mxu0
    %vm590 = vcmp.gt.f32.partialorder %v561, 0.0
    %vm591 = vcmp.gt.f32.partialorder %v587, 0.0
    %v592 = vmul.f32 %v561, 1.442695
    %v593 = vpow.pop %v592
    %v594 = vmul.f32 %v587, 1.442695
    %v595 = vpow.pop %v594
    %v596 = vsub.f32 %v593, 1.0
    %v597 = vsub.f32 %v595, 1.0
    %v598 = vsel %vm590, %v561, %v596
    %v599 = vsel %vm591, %v587, %v597
    %v600 = vpack.c.bf16 %v598, %v598
    %v601 = vpack.c.bf16 %v599, %v599
    %v602 = vld [vmem:[#allocation4] sm:$0xff]
    %v603 = vld [vmem:[#allocation4 + $0x8] sm:$0xff]
    %v604 = vld [vmem:[#allocation4 + $0x10] sm:$0xff]
    %v605 = vld [vmem:[#allocation4 + $0x18] sm:$0xff]
    %v606 = vld [vmem:[#allocation4 + $0x20] sm:$0xff]
    %v607 = vld [vmem:[#allocation4 + $0x28] sm:$0xff]
    %v608 = vld [vmem:[#allocation4 + $0x30] sm:$0xff]
    %v609 = vld [vmem:[#allocation4 + $0x38] sm:$0xff]
    %v610 = vld [vmem:[#allocation4 + $0x40] sm:$0xff]
    %v611 = vld [vmem:[#allocation4 + $0x48] sm:$0xff]
    %v612 = vld [vmem:[#allocation4 + $0x50] sm:$0xff]
    %v613 = vld [vmem:[#allocation4 + $0x58] sm:$0xff]
    %v614 = vld [vmem:[#allocation4 + $0x60] sm:$0xff]
    %v615 = vld [vmem:[#allocation4 + $0x68] sm:$0xff]
    %v616 = vld [vmem:[#allocation4 + $0x70] sm:$0xff]
    %v617 = vld [vmem:[#allocation4 + $0x78] sm:$0xff]
    %v618 = vld [vmem:[#allocation4 + $0x80] sm:$0xff]
    %v619 = vld [vmem:[#allocation4 + $0x88] sm:$0xff]
    %v620 = vld [vmem:[#allocation4 + $0x90] sm:$0xff]
    %v621 = vld [vmem:[#allocation4 + $0x98] sm:$0xff]
    %v622 = vld [vmem:[#allocation4 + $0xa0] sm:$0xff]
    %v623 = vld [vmem:[#allocation4 + $0xa8] sm:$0xff]
    %v624 = vld [vmem:[#allocation4 + $0xb0] sm:$0xff]
    %v625 = vld [vmem:[#allocation4 + $0xb8] sm:$0xff]
    %v626 = vld [vmem:[#allocation4 + $0xc0] sm:$0xff]
    %v627 = vld [vmem:[#allocation4 + $0xc8] sm:$0xff]
    %v628 = vld [vmem:[#allocation4 + $0xd0] sm:$0xff]
    %v629 = vld [vmem:[#allocation4 + $0xd8] sm:$0xff]
    %v630 = vld [vmem:[#allocation4 + $0xe0] sm:$0xff]
    %v631 = vld [vmem:[#allocation4 + $0xe8] sm:$0xff]
    %v632 = vld [vmem:[#allocation4 + $0xf0] sm:$0xff]
    %v633 = vld [vmem:[#allocation4 + $0xf8] sm:$0xff]
    %v634 = vld [vmem:[%s6] sm:$0x3]
    %v636 = vperm.slane %v634, 0
    %v637 = vperm.slane %v634, 1
    %v672 = vunpack.c.l.b16 %v602
    %v673 = vunpack.c.h.b16 %v602
    %v674 = vunpack.c.l.b16 %v603
    %v675 = vunpack.c.h.b16 %v603
    %v676 = vunpack.c.l.b16 %v604
    %v677 = vunpack.c.h.b16 %v604
    %v678 = vunpack.c.l.b16 %v605
    %v679 = vunpack.c.h.b16 %v605
    %v680 = vunpack.c.l.b16 %v606
    %v681 = vunpack.c.h.b16 %v606
    %v682 = vunpack.c.l.b16 %v607
    %v683 = vunpack.c.h.b16 %v607
    %v684 = vunpack.c.l.b16 %v608
    %v685 = vunpack.c.h.b16 %v608
    %v686 = vunpack.c.l.b16 %v609
    %v687 = vunpack.c.h.b16 %v609
    %v688 = vunpack.c.l.b16 %v610
    %v689 = vunpack.c.h.b16 %v610
    %v690 = vunpack.c.l.b16 %v611
    %v691 = vunpack.c.h.b16 %v611
    %v692 = vunpack.c.l.b16 %v612
    %v693 = vunpack.c.h.b16 %v612
    %v694 = vunpack.c.l.b16 %v613
    %v695 = vunpack.c.h.b16 %v613
    %v696 = vunpack.c.l.b16 %v614
    %v697 = vunpack.c.h.b16 %v614
    %v698 = vunpack.c.l.b16 %v615
    %v699 = vunpack.c.h.b16 %v615
    %v700 = vunpack.c.l.b16 %v616
    %v701 = vunpack.c.h.b16 %v616
    %v702 = vunpack.c.l.b16 %v617
    %v703 = vunpack.c.h.b16 %v617
    %v704 = vunpack.c.l.b16 %v618
    %v705 = vunpack.c.h.b16 %v618
    %v706 = vunpack.c.l.b16 %v619
    %v707 = vunpack.c.h.b16 %v619
    %v708 = vunpack.c.l.b16 %v620
    %v709 = vunpack.c.h.b16 %v620
    %v710 = vunpack.c.l.b16 %v621
    %v711 = vunpack.c.h.b16 %v621
    %v712 = vunpack.c.l.b16 %v622
    %v713 = vunpack.c.h.b16 %v622
    %v714 = vunpack.c.l.b16 %v623
    %v715 = vunpack.c.h.b16 %v623
    %v716 = vunpack.c.l.b16 %v624
    %v717 = vunpack.c.h.b16 %v624
    %v718 = vunpack.c.l.b16 %v625
    %v719 = vunpack.c.h.b16 %v625
    %v720 = vunpack.c.l.b16 %v626
    %v721 = vunpack.c.h.b16 %v626
    %v722 = vunpack.c.l.b16 %v627
    %v723 = vunpack.c.h.b16 %v627
    %v724 = vunpack.c.l.b16 %v628
    %v725 = vunpack.c.h.b16 %v628
    %v726 = vunpack.c.l.b16 %v629
    %v727 = vunpack.c.h.b16 %v629
    %v728 = vunpack.c.l.b16 %v630
    %v729 = vunpack.c.h.b16 %v630
    %v730 = vunpack.c.l.b16 %v631
    %v731 = vunpack.c.h.b16 %v631
    %v732 = vunpack.c.l.b16 %v632
    %v733 = vunpack.c.h.b16 %v632
    %v734 = vunpack.c.l.b16 %v633
    %v735 = vunpack.c.h.b16 %v633
    %v736 = vpack.c.b16 %v674, %v672
    %v737 = vpack.c.b16 %v675, %v673
    %v738 = vpack.c.b16 %v678, %v676
    %v739 = vpack.c.b16 %v679, %v677
    %v740 = vpack.c.b16 %v682, %v680
    %v741 = vpack.c.b16 %v683, %v681
    %v742 = vpack.c.b16 %v686, %v684
    %v743 = vpack.c.b16 %v687, %v685
    %v744 = vpack.c.b16 %v690, %v688
    %v745 = vpack.c.b16 %v691, %v689
    %v746 = vpack.c.b16 %v694, %v692
    %v747 = vpack.c.b16 %v695, %v693
    %v748 = vpack.c.b16 %v698, %v696
    %v749 = vpack.c.b16 %v699, %v697
    %v750 = vpack.c.b16 %v702, %v700
    %v751 = vpack.c.b16 %v703, %v701
    %v752 = vpack.c.b16 %v706, %v704
    %v753 = vpack.c.b16 %v707, %v705
    %v754 = vpack.c.b16 %v710, %v708
    %v755 = vpack.c.b16 %v711, %v709
    %v756 = vpack.c.b16 %v714, %v712
    %v757 = vpack.c.b16 %v715, %v713
    %v758 = vpack.c.b16 %v718, %v716
    %v759 = vpack.c.b16 %v719, %v717
    %v760 = vpack.c.b16 %v722, %v720
    %v761 = vpack.c.b16 %v723, %v721
    %v762 = vpack.c.b16 %v726, %v724
    %v763 = vpack.c.b16 %v727, %v725
    %v764 = vpack.c.b16 %v730, %v728
    %v765 = vpack.c.b16 %v731, %v729
    %v766 = vpack.c.b16 %v734, %v732
    %v767 = vpack.c.b16 %v735, %v733
    %800 = vmatpush.bf16.msra.mxu0 %v750
    %801 = vmatpush.bf16.msra.mxu0 %v748
    %802 = vmatpush.bf16.msra.mxu0 %v746
    %803 = vmatpush.bf16.msra.mxu0 %v744
    %804 = vmatpush.bf16.msra.mxu0 %v742
    %805 = vmatpush.bf16.msra.mxu0 %v740
    %806 = vmatpush.bf16.msra.mxu0 %v738
    %807 = vmatpush.bf16.msra.mxu0 %v736
    %808 = vmatmul.bf16.gmra.mxu0 %v600
    %v809 = vpop.f32.mrf.mxu0
    %v810 = vadd.f32 %v636, %v809
    %v811 = vpop.f32.mrf.mxu0
    %812 = vdwg.mxu0
    %813 = vmatpush.bf16.msra.mxu0 %v766
    %814 = vmatpush.bf16.msra.mxu0 %v764
    %815 = vmatpush.bf16.msra.mxu0 %v762
    %816 = vmatpush.bf16.msra.mxu0 %v760
    %817 = vmatpush.bf16.msra.mxu0 %v758
    %818 = vmatpush.bf16.msra.mxu0 %v756
    %819 = vmatpush.bf16.msra.mxu0 %v754
    %820 = vmatpush.bf16.msra.mxu0 %v752
    %821 = vmatmul.bf16.gmra.mxu0 %v601
    %v822 = vpop.f32.mrf.mxu0
    %v823 = vadd.f32 %v810, %v822
    %v824 = vpop.f32.mrf.mxu0
    %825 = vdwg.mxu0
    %826 = vmatpush.bf16.msra.mxu0 %v751
    %827 = vmatpush.bf16.msra.mxu0 %v749
    %828 = vmatpush.bf16.msra.mxu0 %v747
    %829 = vmatpush.bf16.msra.mxu0 %v745
    %830 = vmatpush.bf16.msra.mxu0 %v743
    %831 = vmatpush.bf16.msra.mxu0 %v741
    %832 = vmatpush.bf16.msra.mxu0 %v739
    %833 = vmatpush.bf16.msra.mxu0 %v737
    %834 = vmatmul.bf16.gmra.mxu0 %v600
    %v835 = vpop.f32.mrf.mxu0
    %v836 = vadd.f32 %v637, %v835
    %v837 = vpop.f32.mrf.mxu0
    %838 = vdwg.mxu0
    %839 = vmatpush.bf16.msra.mxu0 %v767
    %840 = vmatpush.bf16.msra.mxu0 %v765
    %841 = vmatpush.bf16.msra.mxu0 %v763
    %842 = vmatpush.bf16.msra.mxu0 %v761
    %843 = vmatpush.bf16.msra.mxu0 %v759
    %844 = vmatpush.bf16.msra.mxu0 %v757
    %845 = vmatpush.bf16.msra.mxu0 %v755
    %846 = vmatpush.bf16.msra.mxu0 %v753
    %847 = vmatmul.bf16.gmra.mxu0 %v601
    %v848 = vpop.f32.mrf.mxu0
    %v849 = vadd.f32 %v836, %v848
    %v850 = vpop.f32.mrf.mxu0
    %851 = vdwg.mxu0
    %vm852 = vcmp.gt.f32.partialorder %v823, 0.0
    %vm853 = vcmp.gt.f32.partialorder %v849, 0.0
    %v854 = vmul.f32 %v823, 1.442695
    %v855 = vpow.pop %v854
    %v856 = vmul.f32 %v849, 1.442695
    %v857 = vpow.pop %v856
    %v858 = vsub.f32 %v855, 1.0
    %v859 = vsub.f32 %v857, 1.0
    %v860 = vsel %vm852, %v823, %v858
    %v861 = vsel %vm853, %v849, %v859
    %v862 = vpack.c.bf16 %v861, %v860
    %v863 = vld [vmem:[%s9] sm:$0xff]
    %v864 = vld [vmem:[%s9 + $0x8] sm:$0xff]
    %v865 = vld [vmem:[%s9 + $0x10] sm:$0xff]
    %v866 = vld [vmem:[%s9 + $0x18] sm:$0xff]
    %v867 = vld [vmem:[%s9 + $0x20] sm:$0xff]
    %v868 = vld [vmem:[%s9 + $0x28] sm:$0xff]
    %v869 = vld [vmem:[%s9 + $0x30] sm:$0xff]
    %v870 = vld [vmem:[%s9 + $0x38] sm:$0xff]
    %v871 = vld [vmem:[%s9 + $0x40] sm:$0xff]
    %v872 = vld [vmem:[%s9 + $0x48] sm:$0xff]
    %v873 = vld [vmem:[%s9 + $0x50] sm:$0xff]
    %v874 = vld [vmem:[%s9 + $0x58] sm:$0xff]
    %v875 = vld [vmem:[%s9 + $0x60] sm:$0xff]
    %v876 = vld [vmem:[%s9 + $0x68] sm:$0xff]
    %v877 = vld [vmem:[%s9 + $0x70] sm:$0xff]
    %v878 = vld [vmem:[%s9 + $0x78] sm:$0xff]
    %v895 = vunpack.c.l.b16 %v863
    %v896 = vunpack.c.h.b16 %v863
    %v897 = vunpack.c.l.b16 %v864
    %v898 = vunpack.c.h.b16 %v864
    %v899 = vunpack.c.l.b16 %v865
    %v900 = vunpack.c.h.b16 %v865
    %v901 = vunpack.c.l.b16 %v866
    %v902 = vunpack.c.h.b16 %v866
    %v903 = vunpack.c.l.b16 %v867
    %v904 = vunpack.c.h.b16 %v867
    %v905 = vunpack.c.l.b16 %v868
    %v906 = vunpack.c.h.b16 %v868
    %v907 = vunpack.c.l.b16 %v869
    %v908 = vunpack.c.h.b16 %v869
    %v909 = vunpack.c.l.b16 %v870
    %v910 = vunpack.c.h.b16 %v870
    %v911 = vunpack.c.l.b16 %v871
    %v912 = vunpack.c.h.b16 %v871
    %v913 = vunpack.c.l.b16 %v872
    %v914 = vunpack.c.h.b16 %v872
    %v915 = vunpack.c.l.b16 %v873
    %v916 = vunpack.c.h.b16 %v873
    %v917 = vunpack.c.l.b16 %v874
    %v918 = vunpack.c.h.b16 %v874
    %v919 = vunpack.c.l.b16 %v875
    %v920 = vunpack.c.h.b16 %v875
    %v921 = vunpack.c.l.b16 %v876
    %v922 = vunpack.c.h.b16 %v876
    %v923 = vunpack.c.l.b16 %v877
    %v924 = vunpack.c.h.b16 %v877
    %v925 = vunpack.c.l.b16 %v878
    %v926 = vunpack.c.h.b16 %v878
    %v927 = vpack.c.b16 %v897, %v895
    %v928 = vpack.c.b16 %v898, %v896
    %v929 = vpack.c.b16 %v901, %v899
    %v930 = vpack.c.b16 %v902, %v900
    %v931 = vpack.c.b16 %v905, %v903
    %v932 = vpack.c.b16 %v906, %v904
    %v933 = vpack.c.b16 %v909, %v907
    %v934 = vpack.c.b16 %v910, %v908
    %v935 = vpack.c.b16 %v913, %v911
    %v936 = vpack.c.b16 %v914, %v912
    %v937 = vpack.c.b16 %v917, %v915
    %v938 = vpack.c.b16 %v918, %v916
    %v939 = vpack.c.b16 %v921, %v919
    %v940 = vpack.c.b16 %v922, %v920
    %v941 = vpack.c.b16 %v925, %v923
    %v942 = vpack.c.b16 %v926, %v924
    %959 = vmatpush.bf16.msra.mxu0 %v941
    %960 = vmatpush.bf16.msra.mxu0 %v939
    %961 = vmatpush.bf16.msra.mxu0 %v937
    %962 = vmatpush.bf16.msra.mxu0 %v935
    %963 = vmatpush.bf16.msra.mxu0 %v933
    %964 = vmatpush.bf16.msra.mxu0 %v931
    %965 = vmatpush.bf16.msra.mxu0 %v929
    %966 = vmatpush.bf16.msra.mxu0 %v927
    %967 = vmatmul.bf16.gmra.mxu0 %v862
    %v968 = vpop.f32.mrf.mxu0
    %v969 = vadd.f32 0.0, %v968
    %v970 = vpop.f32.mrf.mxu0
    %971 = vdwg.mxu0
    %972 = vmatpush.bf16.msra.mxu0 %v942
    %973 = vmatpush.bf16.msra.mxu0 %v940
    %974 = vmatpush.bf16.msra.mxu0 %v938
    %975 = vmatpush.bf16.msra.mxu0 %v936
    %976 = vmatpush.bf16.msra.mxu0 %v934
    %977 = vmatpush.bf16.msra.mxu0 %v932
    %978 = vmatpush.bf16.msra.mxu0 %v930
    %979 = vmatpush.bf16.msra.mxu0 %v928
    %980 = vmatmul.bf16.gmra.mxu0 %v862
    %v981 = vpop.f32.mrf.mxu0
    %v982 = vadd.f32 0.0, %v981
    %v983 = vpop.f32.mrf.mxu0
    %984 = vdwg.mxu0
    %v986 = vunpack.c.h.b16 %v862
    %v987 = vpack.c.b16 %v986, %v986
    %989 = vmatpush.bf16.msra.mxu0 %v941
    %990 = vmatpush.bf16.msra.mxu0 %v939
    %991 = vmatpush.bf16.msra.mxu0 %v937
    %992 = vmatpush.bf16.msra.mxu0 %v935
    %993 = vmatpush.bf16.msra.mxu0 %v933
    %994 = vmatpush.bf16.msra.mxu0 %v931
    %995 = vmatpush.bf16.msra.mxu0 %v929
    %996 = vmatpush.bf16.msra.mxu0 %v927
    %997 = vmatmul.bf16.gmra.mxu0 %v987
    %v998 = vpop.f32.mrf.mxu0
    %v999 = vadd.f32 0.0, %v998
    %v1000 = vpop.f32.mrf.mxu0
    %1001 = vdwg.mxu0
    %1002 = vmatpush.bf16.msra.mxu0 %v942
    %1003 = vmatpush.bf16.msra.mxu0 %v940
    %1004 = vmatpush.bf16.msra.mxu0 %v938
    %1005 = vmatpush.bf16.msra.mxu0 %v936
    %1006 = vmatpush.bf16.msra.mxu0 %v934
    %1007 = vmatpush.bf16.msra.mxu0 %v932
    %1008 = vmatpush.bf16.msra.mxu0 %v930
    %1009 = vmatpush.bf16.msra.mxu0 %v928
    %1010 = vmatmul.bf16.gmra.mxu0 %v987
    %v1011 = vpop.f32.mrf.mxu0
    %v1012 = vadd.f32 0.0, %v1011
    %v1013 = vpop.f32.mrf.mxu0
    %1014 = vdwg.mxu0
    %v1015 = vld [vmem:[%s7] sm:$0xff]
    %v1016 = vld [vmem:[%s8] sm:$0xff]
    %vm1017 = vcmask 15360
    %v1019 = vsel %vm1017, %v1016, 0
    %vm1021 = vcmask 1041408
    %v1023 = vsel %vm1021, %v999, 0
    %v1026 = vsel %vm1021, %v1012, 0
    %1028 = vmatpush.msra.mxu0 0.0
    %1029 = vmatpush.msra.mxu0 0.0
    %1030 = vmatpush.msra.mxu0 0.0
    %1031 = vmatpush.msra.mxu0 0.0
    %1032 = vmatpush.msra.mxu0 0.0
    %1033 = vmatpush.msra.mxu0 0.0
    %1034 = vmatpush.msra.mxu0 0.0
    %1035 = vmatpush.msra.mxu0 0.0
    %1036 = vmatpush.msra.mxu0 0.0
    %1037 = vmatpush.msra.mxu0 0.0
    %1038 = vmatpush.msra.mxu0 0.0
    %1039 = vmatpush.msra.mxu0 0.0
    %1040 = vmatpush.msra.mxu0 0.0
    %1041 = vmatpush.msra.mxu0 0.0
    %1042 = vmatpush.msra.mxu0 0.0
    %1043 = vmatpush.msra.mxu0 %v1023
    %1044 = vmatmul.f32.gmra.mxu0 %v1019
    %v1045 = vpop.f32.mrf.mxu0
    %v1046 = vadd.f32 0.0, %v1045
    %1047 = vdwg.mxu0
    %1048 = vmatpush.msra.mxu0 0.0
    %1049 = vmatpush.msra.mxu0 0.0
    %1050 = vmatpush.msra.mxu0 0.0
    %1051 = vmatpush.msra.mxu0 0.0
    %1052 = vmatpush.msra.mxu0 0.0
    %1053 = vmatpush.msra.mxu0 0.0
    %1054 = vmatpush.msra.mxu0 0.0
    %1055 = vmatpush.msra.mxu0 0.0
    %1056 = vmatpush.msra.mxu0 0.0
    %1057 = vmatpush.msra.mxu0 0.0
    %1058 = vmatpush.msra.mxu0 0.0
    %1059 = vmatpush.msra.mxu0 0.0
    %1060 = vmatpush.msra.mxu0 0.0
    %1061 = vmatpush.msra.mxu0 0.0
    %1062 = vmatpush.msra.mxu0 0.0
    %1063 = vmatpush.msra.mxu0 %v1026
    %1064 = vmatmul.f32.gmra.mxu0 %v1019
    %v1065 = vpop.f32.mrf.mxu0
    %v1066 = vadd.f32 0.0, %v1065
    %1067 = vdwg.mxu0
    %v1069 = vsel %vm1017, %v1015, 0
    %v1072 = vsel %vm1021, %v969, 0
    %v1075 = vsel %vm1021, %v982, 0
    %1077 = vmatpush.msra.mxu0 0.0
    %1078 = vmatpush.msra.mxu0 0.0
    %1079 = vmatpush.msra.mxu0 0.0
    %1080 = vmatpush.msra.mxu0 0.0
    %1081 = vmatpush.msra.mxu0 0.0
    %1082 = vmatpush.msra.mxu0 0.0
    %1083 = vmatpush.msra.mxu0 0.0
    %1084 = vmatpush.msra.mxu0 0.0
    %1085 = vmatpush.msra.mxu0 0.0
    %1086 = vmatpush.msra.mxu0 0.0
    %1087 = vmatpush.msra.mxu0 0.0
    %1088 = vmatpush.msra.mxu0 0.0
    %1089 = vmatpush.msra.mxu0 0.0
    %1090 = vmatpush.msra.mxu0 0.0
    %1091 = vmatpush.msra.mxu0 0.0
    %1092 = vmatpush.msra.mxu0 %v1072
    %1093 = vmatmul.f32.gmra.mxu0 %v1069
    %v1094 = vpop.f32.mrf.mxu0
    %v1095 = vadd.f32 %v1046, %v1094
    %1096 = vdwg.mxu0
    %1097 = vmatpush.msra.mxu0 0.0
    %1098 = vmatpush.msra.mxu0 0.0
    %1099 = vmatpush.msra.mxu0 0.0
    %1100 = vmatpush.msra.mxu0 0.0
    %1101 = vmatpush.msra.mxu0 0.0
    %1102 = vmatpush.msra.mxu0 0.0
    %1103 = vmatpush.msra.mxu0 0.0
    %1104 = vmatpush.msra.mxu0 0.0
    %1105 = vmatpush.msra.mxu0 0.0
    %1106 = vmatpush.msra.mxu0 0.0
    %1107 = vmatpush.msra.mxu0 0.0
    %1108 = vmatpush.msra.mxu0 0.0
    %1109 = vmatpush.msra.mxu0 0.0
    %1110 = vmatpush.msra.mxu0 0.0
    %1111 = vmatpush.msra.mxu0 0.0
    %1112 = vmatpush.msra.mxu0 %v1075
    %1113 = vmatmul.f32.gmra.mxu0 %v1069
    %v1114 = vpop.f32.mrf.mxu0
    %v1115 = vadd.f32 %v1066, %v1114
    %1116 = vdwg.mxu0
    %s1117 = scalar_lea.vmem %s9, 128
    %v1118 = vld [vmem:[%s1117] sm:$0xff]
    %v1119 = vld [vmem:[%s1117 + $0x8] sm:$0xff]
    %v1120 = vld [vmem:[%s1117 + $0x10] sm:$0xff]
    %v1121 = vld [vmem:[%s1117 + $0x18] sm:$0xff]
    %v1122 = vld [vmem:[%s1117 + $0x20] sm:$0xff]
    %v1123 = vld [vmem:[%s1117 + $0x28] sm:$0xff]
    %v1124 = vld [vmem:[%s1117 + $0x30] sm:$0xff]
    %v1125 = vld [vmem:[%s1117 + $0x38] sm:$0xff]
    %v1126 = vld [vmem:[%s1117 + $0x40] sm:$0xff]
    %v1127 = vld [vmem:[%s1117 + $0x48] sm:$0xff]
    %v1128 = vld [vmem:[%s1117 + $0x50] sm:$0xff]
    %v1129 = vld [vmem:[%s1117 + $0x58] sm:$0xff]
    %v1130 = vld [vmem:[%s1117 + $0x60] sm:$0xff]
    %v1131 = vld [vmem:[%s1117 + $0x68] sm:$0xff]
    %v1132 = vld [vmem:[%s1117 + $0x70] sm:$0xff]
    %v1133 = vld [vmem:[%s1117 + $0x78] sm:$0xff]
    %v1150 = vunpack.c.l.b16 %v1118
    %v1151 = vunpack.c.h.b16 %v1118
    %v1152 = vunpack.c.l.b16 %v1119
    %v1153 = vunpack.c.h.b16 %v1119
    %v1154 = vunpack.c.l.b16 %v1120
    %v1155 = vunpack.c.h.b16 %v1120
    %v1156 = vunpack.c.l.b16 %v1121
    %v1157 = vunpack.c.h.b16 %v1121
    %v1158 = vunpack.c.l.b16 %v1122
    %v1159 = vunpack.c.h.b16 %v1122
    %v1160 = vunpack.c.l.b16 %v1123
    %v1161 = vunpack.c.h.b16 %v1123
    %v1162 = vunpack.c.l.b16 %v1124
    %v1163 = vunpack.c.h.b16 %v1124
    %v1164 = vunpack.c.l.b16 %v1125
    %v1165 = vunpack.c.h.b16 %v1125
    %v1166 = vunpack.c.l.b16 %v1126
    %v1167 = vunpack.c.h.b16 %v1126
    %v1168 = vunpack.c.l.b16 %v1127
    %v1169 = vunpack.c.h.b16 %v1127
    %v1170 = vunpack.c.l.b16 %v1128
    %v1171 = vunpack.c.h.b16 %v1128
    %v1172 = vunpack.c.l.b16 %v1129
    %v1173 = vunpack.c.h.b16 %v1129
    %v1174 = vunpack.c.l.b16 %v1130
    %v1175 = vunpack.c.h.b16 %v1130
    %v1176 = vunpack.c.l.b16 %v1131
    %v1177 = vunpack.c.h.b16 %v1131
    %v1178 = vunpack.c.l.b16 %v1132
    %v1179 = vunpack.c.h.b16 %v1132
    %v1180 = vunpack.c.l.b16 %v1133
    %v1181 = vunpack.c.h.b16 %v1133
    %v1182 = vpack.c.b16 %v1152, %v1150
    %v1183 = vpack.c.b16 %v1153, %v1151
    %v1184 = vpack.c.b16 %v1156, %v1154
    %v1185 = vpack.c.b16 %v1157, %v1155
    %v1186 = vpack.c.b16 %v1160, %v1158
    %v1187 = vpack.c.b16 %v1161, %v1159
    %v1188 = vpack.c.b16 %v1164, %v1162
    %v1189 = vpack.c.b16 %v1165, %v1163
    %v1190 = vpack.c.b16 %v1168, %v1166
    %v1191 = vpack.c.b16 %v1169, %v1167
    %v1192 = vpack.c.b16 %v1172, %v1170
    %v1193 = vpack.c.b16 %v1173, %v1171
    %v1194 = vpack.c.b16 %v1176, %v1174
    %v1195 = vpack.c.b16 %v1177, %v1175
    %v1196 = vpack.c.b16 %v1180, %v1178
    %v1197 = vpack.c.b16 %v1181, %v1179
    %1214 = vmatpush.bf16.msra.mxu0 %v1196
    %1215 = vmatpush.bf16.msra.mxu0 %v1194
    %1216 = vmatpush.bf16.msra.mxu0 %v1192
    %1217 = vmatpush.bf16.msra.mxu0 %v1190
    %1218 = vmatpush.bf16.msra.mxu0 %v1188
    %1219 = vmatpush.bf16.msra.mxu0 %v1186
    %1220 = vmatpush.bf16.msra.mxu0 %v1184
    %1221 = vmatpush.bf16.msra.mxu0 %v1182
    %1222 = vmatmul.bf16.gmra.mxu0 %v862
    %v1223 = vpop.f32.mrf.mxu0
    %v1224 = vadd.f32 0.0, %v1223
    %v1225 = vpop.f32.mrf.mxu0
    %1226 = vdwg.mxu0
    %1227 = vmatpush.bf16.msra.mxu0 %v1197
    %1228 = vmatpush.bf16.msra.mxu0 %v1195
    %1229 = vmatpush.bf16.msra.mxu0 %v1193
    %1230 = vmatpush.bf16.msra.mxu0 %v1191
    %1231 = vmatpush.bf16.msra.mxu0 %v1189
    %1232 = vmatpush.bf16.msra.mxu0 %v1187
    %1233 = vmatpush.bf16.msra.mxu0 %v1185
    %1234 = vmatpush.bf16.msra.mxu0 %v1183
    %1235 = vmatmul.bf16.gmra.mxu0 %v862
    %v1236 = vpop.f32.mrf.mxu0
    %v1237 = vadd.f32 0.0, %v1236
    %v1238 = vpop.f32.mrf.mxu0
    %1239 = vdwg.mxu0
    %1240 = vmatpush.bf16.msra.mxu0 %v1196
    %1241 = vmatpush.bf16.msra.mxu0 %v1194
    %1242 = vmatpush.bf16.msra.mxu0 %v1192
    %1243 = vmatpush.bf16.msra.mxu0 %v1190
    %1244 = vmatpush.bf16.msra.mxu0 %v1188
    %1245 = vmatpush.bf16.msra.mxu0 %v1186
    %1246 = vmatpush.bf16.msra.mxu0 %v1184
    %1247 = vmatpush.bf16.msra.mxu0 %v1182
    %1248 = vmatmul.bf16.gmra.mxu0 %v987
    %v1249 = vpop.f32.mrf.mxu0
    %v1250 = vadd.f32 0.0, %v1249
    %v1251 = vpop.f32.mrf.mxu0
    %1252 = vdwg.mxu0
    %1253 = vmatpush.bf16.msra.mxu0 %v1197
    %1254 = vmatpush.bf16.msra.mxu0 %v1195
    %1255 = vmatpush.bf16.msra.mxu0 %v1193
    %1256 = vmatpush.bf16.msra.mxu0 %v1191
    %1257 = vmatpush.bf16.msra.mxu0 %v1189
    %1258 = vmatpush.bf16.msra.mxu0 %v1187
    %1259 = vmatpush.bf16.msra.mxu0 %v1185
    %1260 = vmatpush.bf16.msra.mxu0 %v1183
    %1261 = vmatmul.bf16.gmra.mxu0 %v987
    %v1262 = vpop.f32.mrf.mxu0
    %v1263 = vadd.f32 0.0, %v1262
    %v1264 = vpop.f32.mrf.mxu0
    %1265 = vdwg.mxu0
    %s1266 = scalar_lea.vmem %s7, 8
    %v1267 = vld [vmem:[%s1266] sm:$0xff]
    %s1268 = scalar_lea.vmem %s8, 8
    %v1269 = vld [vmem:[%s1268] sm:$0xff]
    %v1271 = vsel %vm1017, %v1269, 0
    %v1274 = vsel %vm1021, %v1250, 0
    %v1277 = vsel %vm1021, %v1263, 0
    %1279 = vmatpush.msra.mxu0 0.0
    %1280 = vmatpush.msra.mxu0 0.0
    %1281 = vmatpush.msra.mxu0 0.0
    %1282 = vmatpush.msra.mxu0 0.0
    %1283 = vmatpush.msra.mxu0 0.0
    %1284 = vmatpush.msra.mxu0 0.0
    %1285 = vmatpush.msra.mxu0 0.0
    %1286 = vmatpush.msra.mxu0 0.0
    %1287 = vmatpush.msra.mxu0 0.0
    %1288 = vmatpush.msra.mxu0 0.0
    %1289 = vmatpush.msra.mxu0 0.0
    %1290 = vmatpush.msra.mxu0 0.0
    %1291 = vmatpush.msra.mxu0 0.0
    %1292 = vmatpush.msra.mxu0 0.0
    %1293 = vmatpush.msra.mxu0 0.0
    %1294 = vmatpush.msra.mxu0 %v1274
    %1295 = vmatmul.f32.gmra.mxu0 %v1271
    %v1296 = vpop.f32.mrf.mxu0
    %v1297 = vadd.f32 0.0, %v1296
    %1298 = vdwg.mxu0
    %1299 = vmatpush.msra.mxu0 0.0
    %1300 = vmatpush.msra.mxu0 0.0
    %1301 = vmatpush.msra.mxu0 0.0
    %1302 = vmatpush.msra.mxu0 0.0
    %1303 = vmatpush.msra.mxu0 0.0
    %1304 = vmatpush.msra.mxu0 0.0
    %1305 = vmatpush.msra.mxu0 0.0
    %1306 = vmatpush.msra.mxu0 0.0
    %1307 = vmatpush.msra.mxu0 0.0
    %1308 = vmatpush.msra.mxu0 0.0
    %1309 = vmatpush.msra.mxu0 0.0
    %1310 = vmatpush.msra.mxu0 0.0
    %1311 = vmatpush.msra.mxu0 0.0
    %1312 = vmatpush.msra.mxu0 0.0
    %1313 = vmatpush.msra.mxu0 0.0
    %1314 = vmatpush.msra.mxu0 %v1277
    %1315 = vmatmul.f32.gmra.mxu0 %v1271
    %v1316 = vpop.f32.mrf.mxu0
    %v1317 = vadd.f32 0.0, %v1316
    %1318 = vdwg.mxu0
    %v1320 = vsel %vm1017, %v1267, 0
    %v1323 = vsel %vm1021, %v1224, 0
    %v1326 = vsel %vm1021, %v1237, 0
    %1328 = vmatpush.msra.mxu0 0.0
    %1329 = vmatpush.msra.mxu0 0.0
    %1330 = vmatpush.msra.mxu0 0.0
    %1331 = vmatpush.msra.mxu0 0.0
    %1332 = vmatpush.msra.mxu0 0.0
    %1333 = vmatpush.msra.mxu0 0.0
    %1334 = vmatpush.msra.mxu0 0.0
    %1335 = vmatpush.msra.mxu0 0.0
    %1336 = vmatpush.msra.mxu0 0.0
    %1337 = vmatpush.msra.mxu0 0.0
    %1338 = vmatpush.msra.mxu0 0.0
    %1339 = vmatpush.msra.mxu0 0.0
    %1340 = vmatpush.msra.mxu0 0.0
    %1341 = vmatpush.msra.mxu0 0.0
    %1342 = vmatpush.msra.mxu0 0.0
    %1343 = vmatpush.msra.mxu0 %v1323
    %1344 = vmatmul.f32.gmra.mxu0 %v1320
    %v1345 = vpop.f32.mrf.mxu0
    %v1346 = vadd.f32 %v1297, %v1345
    %1347 = vdwg.mxu0
    %1348 = vmatpush.msra.mxu0 0.0
    %1349 = vmatpush.msra.mxu0 0.0
    %1350 = vmatpush.msra.mxu0 0.0
    %1351 = vmatpush.msra.mxu0 0.0
    %1352 = vmatpush.msra.mxu0 0.0
    %1353 = vmatpush.msra.mxu0 0.0
    %1354 = vmatpush.msra.mxu0 0.0
    %1355 = vmatpush.msra.mxu0 0.0
    %1356 = vmatpush.msra.mxu0 0.0
    %1357 = vmatpush.msra.mxu0 0.0
    %1358 = vmatpush.msra.mxu0 0.0
    %1359 = vmatpush.msra.mxu0 0.0
    %1360 = vmatpush.msra.mxu0 0.0
    %1361 = vmatpush.msra.mxu0 0.0
    %1362 = vmatpush.msra.mxu0 0.0
    %1363 = vmatpush.msra.mxu0 %v1326
    %1364 = vmatmul.f32.gmra.mxu0 %v1320
    %v1365 = vpop.f32.mrf.mxu0
    %v1366 = vadd.f32 %v1317, %v1365
    %1367 = vdwg.mxu0
    %v1368 = vadd.f32 %v1095, %v1346
    %v1369 = vadd.f32 %v1115, %v1366
    %s1370 = scalar_lea.vmem %s9, 256
    %v1371 = vld [vmem:[%s1370] sm:$0xff]
    %v1372 = vld [vmem:[%s1370 + $0x8] sm:$0xff]
    %v1373 = vld [vmem:[%s1370 + $0x10] sm:$0xff]
    %v1374 = vld [vmem:[%s1370 + $0x18] sm:$0xff]
    %v1375 = vld [vmem:[%s1370 + $0x20] sm:$0xff]
    %v1376 = vld [vmem:[%s1370 + $0x28] sm:$0xff]
    %v1377 = vld [vmem:[%s1370 + $0x30] sm:$0xff]
    %v1378 = vld [vmem:[%s1370 + $0x38] sm:$0xff]
    %v1379 = vld [vmem:[%s1370 + $0x40] sm:$0xff]
    %v1380 = vld [vmem:[%s1370 + $0x48] sm:$0xff]
    %v1381 = vld [vmem:[%s1370 + $0x50] sm:$0xff]
    %v1382 = vld [vmem:[%s1370 + $0x58] sm:$0xff]
    %v1383 = vld [vmem:[%s1370 + $0x60] sm:$0xff]
    %v1384 = vld [vmem:[%s1370 + $0x68] sm:$0xff]
    %v1385 = vld [vmem:[%s1370 + $0x70] sm:$0xff]
    %v1386 = vld [vmem:[%s1370 + $0x78] sm:$0xff]
    %v1403 = vunpack.c.l.b16 %v1371
    %v1404 = vunpack.c.h.b16 %v1371
    %v1405 = vunpack.c.l.b16 %v1372
    %v1406 = vunpack.c.h.b16 %v1372
    %v1407 = vunpack.c.l.b16 %v1373
    %v1408 = vunpack.c.h.b16 %v1373
    %v1409 = vunpack.c.l.b16 %v1374
    %v1410 = vunpack.c.h.b16 %v1374
    %v1411 = vunpack.c.l.b16 %v1375
    %v1412 = vunpack.c.h.b16 %v1375
    %v1413 = vunpack.c.l.b16 %v1376
    %v1414 = vunpack.c.h.b16 %v1376
    %v1415 = vunpack.c.l.b16 %v1377
    %v1416 = vunpack.c.h.b16 %v1377
    %v1417 = vunpack.c.l.b16 %v1378
    %v1418 = vunpack.c.h.b16 %v1378
    %v1419 = vunpack.c.l.b16 %v1379
    %v1420 = vunpack.c.h.b16 %v1379
    %v1421 = vunpack.c.l.b16 %v1380
    %v1422 = vunpack.c.h.b16 %v1380
    %v1423 = vunpack.c.l.b16 %v1381
    %v1424 = vunpack.c.h.b16 %v1381
    %v1425 = vunpack.c.l.b16 %v1382
    %v1426 = vunpack.c.h.b16 %v1382
    %v1427 = vunpack.c.l.b16 %v1383
    %v1428 = vunpack.c.h.b16 %v1383
    %v1429 = vunpack.c.l.b16 %v1384
    %v1430 = vunpack.c.h.b16 %v1384
    %v1431 = vunpack.c.l.b16 %v1385
    %v1432 = vunpack.c.h.b16 %v1385
    %v1433 = vunpack.c.l.b16 %v1386
    %v1434 = vunpack.c.h.b16 %v1386
    %v1435 = vpack.c.b16 %v1405, %v1403
    %v1436 = vpack.c.b16 %v1406, %v1404
    %v1437 = vpack.c.b16 %v1409, %v1407
    %v1438 = vpack.c.b16 %v1410, %v1408
    %v1439 = vpack.c.b16 %v1413, %v1411
    %v1440 = vpack.c.b16 %v1414, %v1412
    %v1441 = vpack.c.b16 %v1417, %v1415
    %v1442 = vpack.c.b16 %v1418, %v1416
    %v1443 = vpack.c.b16 %v1421, %v1419
    %v1444 = vpack.c.b16 %v1422, %v1420
    %v1445 = vpack.c.b16 %v1425, %v1423
    %v1446 = vpack.c.b16 %v1426, %v1424
    %v1447 = vpack.c.b16 %v1429, %v1427
    %v1448 = vpack.c.b16 %v1430, %v1428
    %v1449 = vpack.c.b16 %v1433, %v1431
    %v1450 = vpack.c.b16 %v1434, %v1432
    %1467 = vmatpush.bf16.msra.mxu0 %v1449
    %1468 = vmatpush.bf16.msra.mxu0 %v1447
    %1469 = vmatpush.bf16.msra.mxu0 %v1445
    %1470 = vmatpush.bf16.msra.mxu0 %v1443
    %1471 = vmatpush.bf16.msra.mxu0 %v1441
    %1472 = vmatpush.bf16.msra.mxu0 %v1439
    %1473 = vmatpush.bf16.msra.mxu0 %v1437
    %1474 = vmatpush.bf16.msra.mxu0 %v1435
    %1475 = vmatmul.bf16.gmra.mxu0 %v862
    %v1476 = vpop.f32.mrf.mxu0
    %v1477 = vadd.f32 0.0, %v1476
    %v1478 = vpop.f32.mrf.mxu0
    %1479 = vdwg.mxu0
    %1480 = vmatpush.bf16.msra.mxu0 %v1450
    %1481 = vmatpush.bf16.msra.mxu0 %v1448
    %1482 = vmatpush.bf16.msra.mxu0 %v1446
    %1483 = vmatpush.bf16.msra.mxu0 %v1444
    %1484 = vmatpush.bf16.msra.mxu0 %v1442
    %1485 = vmatpush.bf16.msra.mxu0 %v1440
    %1486 = vmatpush.bf16.msra.mxu0 %v1438
    %1487 = vmatpush.bf16.msra.mxu0 %v1436
    %1488 = vmatmul.bf16.gmra.mxu0 %v862
    %v1489 = vpop.f32.mrf.mxu0
    %v1490 = vadd.f32 0.0, %v1489
    %v1491 = vpop.f32.mrf.mxu0
    %1492 = vdwg.mxu0
    %1493 = vmatpush.bf16.msra.mxu0 %v1449
    %1494 = vmatpush.bf16.msra.mxu0 %v1447
    %1495 = vmatpush.bf16.msra.mxu0 %v1445
    %1496 = vmatpush.bf16.msra.mxu0 %v1443
    %1497 = vmatpush.bf16.msra.mxu0 %v1441
    %1498 = vmatpush.bf16.msra.mxu0 %v1439
    %1499 = vmatpush.bf16.msra.mxu0 %v1437
    %1500 = vmatpush.bf16.msra.mxu0 %v1435
    %1501 = vmatmul.bf16.gmra.mxu0 %v987
    %v1502 = vpop.f32.mrf.mxu0
    %v1503 = vadd.f32 0.0, %v1502
    %v1504 = vpop.f32.mrf.mxu0
    %1505 = vdwg.mxu0
    %1506 = vmatpush.bf16.msra.mxu0 %v1450
    %1507 = vmatpush.bf16.msra.mxu0 %v1448
    %1508 = vmatpush.bf16.msra.mxu0 %v1446
    %1509 = vmatpush.bf16.msra.mxu0 %v1444
    %1510 = vmatpush.bf16.msra.mxu0 %v1442
    %1511 = vmatpush.bf16.msra.mxu0 %v1440
    %1512 = vmatpush.bf16.msra.mxu0 %v1438
    %1513 = vmatpush.bf16.msra.mxu0 %v1436
    %1514 = vmatmul.bf16.gmra.mxu0 %v987
    %v1515 = vpop.f32.mrf.mxu0
    %v1516 = vadd.f32 0.0, %v1515
    %v1517 = vpop.f32.mrf.mxu0
    %1518 = vdwg.mxu0
    %s1519 = scalar_lea.vmem %s7, 16
    %v1520 = vld [vmem:[%s1519] sm:$0xff]
    %s1521 = scalar_lea.vmem %s8, 16
    %v1522 = vld [vmem:[%s1521] sm:$0xff]
    %v1524 = vsel %vm1017, %v1522, 0
    %v1527 = vsel %vm1021, %v1503, 0
    %v1530 = vsel %vm1021, %v1516, 0
    %1532 = vmatpush.msra.mxu0 0.0
    %1533 = vmatpush.msra.mxu0 0.0
    %1534 = vmatpush.msra.mxu0 0.0
    %1535 = vmatpush.msra.mxu0 0.0
    %1536 = vmatpush.msra.mxu0 0.0
    %1537 = vmatpush.msra.mxu0 0.0
    %1538 = vmatpush.msra.mxu0 0.0
    %1539 = vmatpush.msra.mxu0 0.0
    %1540 = vmatpush.msra.mxu0 0.0
    %1541 = vmatpush.msra.mxu0 0.0
    %1542 = vmatpush.msra.mxu0 0.0
    %1543 = vmatpush.msra.mxu0 0.0
    %1544 = vmatpush.msra.mxu0 0.0
    %1545 = vmatpush.msra.mxu0 0.0
    %1546 = vmatpush.msra.mxu0 0.0
    %1547 = vmatpush.msra.mxu0 %v1527
    %1548 = vmatmul.f32.gmra.mxu0 %v1524
    %v1549 = vpop.f32.mrf.mxu0
    %v1550 = vadd.f32 0.0, %v1549
    %1551 = vdwg.mxu0
    %1552 = vmatpush.msra.mxu0 0.0
    %1553 = vmatpush.msra.mxu0 0.0
    %1554 = vmatpush.msra.mxu0 0.0
    %1555 = vmatpush.msra.mxu0 0.0
    %1556 = vmatpush.msra.mxu0 0.0
    %1557 = vmatpush.msra.mxu0 0.0
    %1558 = vmatpush.msra.mxu0 0.0
    %1559 = vmatpush.msra.mxu0 0.0
    %1560 = vmatpush.msra.mxu0 0.0
    %1561 = vmatpush.msra.mxu0 0.0
    %1562 = vmatpush.msra.mxu0 0.0
    %1563 = vmatpush.msra.mxu0 0.0
    %1564 = vmatpush.msra.mxu0 0.0
    %1565 = vmatpush.msra.mxu0 0.0
    %1566 = vmatpush.msra.mxu0 0.0
    %1567 = vmatpush.msra.mxu0 %v1530
    %1568 = vmatmul.f32.gmra.mxu0 %v1524
    %v1569 = vpop.f32.mrf.mxu0
    %v1570 = vadd.f32 0.0, %v1569
    %1571 = vdwg.mxu0
    %v1573 = vsel %vm1017, %v1520, 0
    %v1576 = vsel %vm1021, %v1477, 0
    %v1579 = vsel %vm1021, %v1490, 0
    %1581 = vmatpush.msra.mxu0 0.0
    %1582 = vmatpush.msra.mxu0 0.0
    %1583 = vmatpush.msra.mxu0 0.0
    %1584 = vmatpush.msra.mxu0 0.0
    %1585 = vmatpush.msra.mxu0 0.0
    %1586 = vmatpush.msra.mxu0 0.0
    %1587 = vmatpush.msra.mxu0 0.0
    %1588 = vmatpush.msra.mxu0 0.0
    %1589 = vmatpush.msra.mxu0 0.0
    %1590 = vmatpush.msra.mxu0 0.0
    %1591 = vmatpush.msra.mxu0 0.0
    %1592 = vmatpush.msra.mxu0 0.0
    %1593 = vmatpush.msra.mxu0 0.0
    %1594 = vmatpush.msra.mxu0 0.0
    %1595 = vmatpush.msra.mxu0 0.0
    %1596 = vmatpush.msra.mxu0 %v1576
    %1597 = vmatmul.f32.gmra.mxu0 %v1573
    %v1598 = vpop.f32.mrf.mxu0
    %v1599 = vadd.f32 %v1550, %v1598
    %1600 = vdwg.mxu0
    %1601 = vmatpush.msra.mxu0 0.0
    %1602 = vmatpush.msra.mxu0 0.0
    %1603 = vmatpush.msra.mxu0 0.0
    %1604 = vmatpush.msra.mxu0 0.0
    %1605 = vmatpush.msra.mxu0 0.0
    %1606 = vmatpush.msra.mxu0 0.0
    %1607 = vmatpush.msra.mxu0 0.0
    %1608 = vmatpush.msra.mxu0 0.0
    %1609 = vmatpush.msra.mxu0 0.0
    %1610 = vmatpush.msra.mxu0 0.0
    %1611 = vmatpush.msra.mxu0 0.0
    %1612 = vmatpush.msra.mxu0 0.0
    %1613 = vmatpush.msra.mxu0 0.0
    %1614 = vmatpush.msra.mxu0 0.0
    %1615 = vmatpush.msra.mxu0 0.0
    %1616 = vmatpush.msra.mxu0 %v1579
    %1617 = vmatmul.f32.gmra.mxu0 %v1573
    %v1618 = vpop.f32.mrf.mxu0
    %v1619 = vadd.f32 %v1570, %v1618
    %1620 = vdwg.mxu0
    %v1621 = vadd.f32 %v1368, %v1599
    %v1622 = vadd.f32 %v1369, %v1619
    %s1623 = scalar_lea.vmem %s9, 384
    %v1624 = vld [vmem:[%s1623] sm:$0xff]
    %v1625 = vld [vmem:[%s1623 + $0x8] sm:$0xff]
    %v1626 = vld [vmem:[%s1623 + $0x10] sm:$0xff]
    %v1627 = vld [vmem:[%s1623 + $0x18] sm:$0xff]
    %v1628 = vld [vmem:[%s1623 + $0x20] sm:$0xff]
    %v1629 = vld [vmem:[%s1623 + $0x28] sm:$0xff]
    %v1630 = vld [vmem:[%s1623 + $0x30] sm:$0xff]
    %v1631 = vld [vmem:[%s1623 + $0x38] sm:$0xff]
    %v1632 = vld [vmem:[%s1623 + $0x40] sm:$0xff]
    %v1633 = vld [vmem:[%s1623 + $0x48] sm:$0xff]
    %v1634 = vld [vmem:[%s1623 + $0x50] sm:$0xff]
    %v1635 = vld [vmem:[%s1623 + $0x58] sm:$0xff]
    %v1636 = vld [vmem:[%s1623 + $0x60] sm:$0xff]
    %v1637 = vld [vmem:[%s1623 + $0x68] sm:$0xff]
    %v1638 = vld [vmem:[%s1623 + $0x70] sm:$0xff]
    %v1639 = vld [vmem:[%s1623 + $0x78] sm:$0xff]
    %v1656 = vunpack.c.l.b16 %v1624
    %v1657 = vunpack.c.h.b16 %v1624
    %v1658 = vunpack.c.l.b16 %v1625
    %v1659 = vunpack.c.h.b16 %v1625
    %v1660 = vunpack.c.l.b16 %v1626
    %v1661 = vunpack.c.h.b16 %v1626
    %v1662 = vunpack.c.l.b16 %v1627
    %v1663 = vunpack.c.h.b16 %v1627
    %v1664 = vunpack.c.l.b16 %v1628
    %v1665 = vunpack.c.h.b16 %v1628
    %v1666 = vunpack.c.l.b16 %v1629
    %v1667 = vunpack.c.h.b16 %v1629
    %v1668 = vunpack.c.l.b16 %v1630
    %v1669 = vunpack.c.h.b16 %v1630
    %v1670 = vunpack.c.l.b16 %v1631
    %v1671 = vunpack.c.h.b16 %v1631
    %v1672 = vunpack.c.l.b16 %v1632
    %v1673 = vunpack.c.h.b16 %v1632
    %v1674 = vunpack.c.l.b16 %v1633
    %v1675 = vunpack.c.h.b16 %v1633
    %v1676 = vunpack.c.l.b16 %v1634
    %v1677 = vunpack.c.h.b16 %v1634
    %v1678 = vunpack.c.l.b16 %v1635
    %v1679 = vunpack.c.h.b16 %v1635
    %v1680 = vunpack.c.l.b16 %v1636
    %v1681 = vunpack.c.h.b16 %v1636
    %v1682 = vunpack.c.l.b16 %v1637
    %v1683 = vunpack.c.h.b16 %v1637
    %v1684 = vunpack.c.l.b16 %v1638
    %v1685 = vunpack.c.h.b16 %v1638
    %v1686 = vunpack.c.l.b16 %v1639
    %v1687 = vunpack.c.h.b16 %v1639
    %v1688 = vpack.c.b16 %v1658, %v1656
    %v1689 = vpack.c.b16 %v1659, %v1657
    %v1690 = vpack.c.b16 %v1662, %v1660
    %v1691 = vpack.c.b16 %v1663, %v1661
    %v1692 = vpack.c.b16 %v1666, %v1664
    %v1693 = vpack.c.b16 %v1667, %v1665
    %v1694 = vpack.c.b16 %v1670, %v1668
    %v1695 = vpack.c.b16 %v1671, %v1669
    %v1696 = vpack.c.b16 %v1674, %v1672
    %v1697 = vpack.c.b16 %v1675, %v1673
    %v1698 = vpack.c.b16 %v1678, %v1676
    %v1699 = vpack.c.b16 %v1679, %v1677
    %v1700 = vpack.c.b16 %v1682, %v1680
    %v1701 = vpack.c.b16 %v1683, %v1681
    %v1702 = vpack.c.b16 %v1686, %v1684
    %v1703 = vpack.c.b16 %v1687, %v1685
    %1720 = vmatpush.bf16.msra.mxu0 %v1702
    %1721 = vmatpush.bf16.msra.mxu0 %v1700
    %1722 = vmatpush.bf16.msra.mxu0 %v1698
    %1723 = vmatpush.bf16.msra.mxu0 %v1696
    %1724 = vmatpush.bf16.msra.mxu0 %v1694
    %1725 = vmatpush.bf16.msra.mxu0 %v1692
    %1726 = vmatpush.bf16.msra.mxu0 %v1690
    %1727 = vmatpush.bf16.msra.mxu0 %v1688
    %1728 = vmatmul.bf16.gmra.mxu0 %v862
    %v1729 = vpop.f32.mrf.mxu0
    %v1730 = vadd.f32 0.0, %v1729
    %v1731 = vpop.f32.mrf.mxu0
    %1732 = vdwg.mxu0
    %1733 = vmatpush.bf16.msra.mxu0 %v1703
    %1734 = vmatpush.bf16.msra.mxu0 %v1701
    %1735 = vmatpush.bf16.msra.mxu0 %v1699
    %1736 = vmatpush.bf16.msra.mxu0 %v1697
    %1737 = vmatpush.bf16.msra.mxu0 %v1695
    %1738 = vmatpush.bf16.msra.mxu0 %v1693
    %1739 = vmatpush.bf16.msra.mxu0 %v1691
    %1740 = vmatpush.bf16.msra.mxu0 %v1689
    %1741 = vmatmul.bf16.gmra.mxu0 %v862
    %v1742 = vpop.f32.mrf.mxu0
    %v1743 = vadd.f32 0.0, %v1742
    %v1744 = vpop.f32.mrf.mxu0
    %1745 = vdwg.mxu0
    %1746 = vmatpush.bf16.msra.mxu0 %v1702
    %1747 = vmatpush.bf16.msra.mxu0 %v1700
    %1748 = vmatpush.bf16.msra.mxu0 %v1698
    %1749 = vmatpush.bf16.msra.mxu0 %v1696
    %1750 = vmatpush.bf16.msra.mxu0 %v1694
    %1751 = vmatpush.bf16.msra.mxu0 %v1692
    %1752 = vmatpush.bf16.msra.mxu0 %v1690
    %1753 = vmatpush.bf16.msra.mxu0 %v1688
    %1754 = vmatmul.bf16.gmra.mxu0 %v987
    %v1755 = vpop.f32.mrf.mxu0
    %v1756 = vadd.f32 0.0, %v1755
    %v1757 = vpop.f32.mrf.mxu0
    %1758 = vdwg.mxu0
    %1759 = vmatpush.bf16.msra.mxu0 %v1703
    %1760 = vmatpush.bf16.msra.mxu0 %v1701
    %1761 = vmatpush.bf16.msra.mxu0 %v1699
    %1762 = vmatpush.bf16.msra.mxu0 %v1697
    %1763 = vmatpush.bf16.msra.mxu0 %v1695
    %1764 = vmatpush.bf16.msra.mxu0 %v1693
    %1765 = vmatpush.bf16.msra.mxu0 %v1691
    %1766 = vmatpush.bf16.msra.mxu0 %v1689
    %1767 = vmatmul.bf16.gmra.mxu0 %v987
    %v1768 = vpop.f32.mrf.mxu0
    %v1769 = vadd.f32 0.0, %v1768
    %v1770 = vpop.f32.mrf.mxu0
    %1771 = vdwg.mxu0
    %s1772 = scalar_lea.vmem %s7, 24
    %v1773 = vld [vmem:[%s1772] sm:$0xff]
    %s1774 = scalar_lea.vmem %s8, 24
    %v1775 = vld [vmem:[%s1774] sm:$0xff]
    %v1777 = vsel %vm1017, %v1775, 0
    %v1780 = vsel %vm1021, %v1756, 0
    %v1783 = vsel %vm1021, %v1769, 0
    %1785 = vmatpush.msra.mxu0 0.0
    %1786 = vmatpush.msra.mxu0 0.0
    %1787 = vmatpush.msra.mxu0 0.0
    %1788 = vmatpush.msra.mxu0 0.0
    %1789 = vmatpush.msra.mxu0 0.0
    %1790 = vmatpush.msra.mxu0 0.0
    %1791 = vmatpush.msra.mxu0 0.0
    %1792 = vmatpush.msra.mxu0 0.0
    %1793 = vmatpush.msra.mxu0 0.0
    %1794 = vmatpush.msra.mxu0 0.0
    %1795 = vmatpush.msra.mxu0 0.0
    %1796 = vmatpush.msra.mxu0 0.0
    %1797 = vmatpush.msra.mxu0 0.0
    %1798 = vmatpush.msra.mxu0 0.0
    %1799 = vmatpush.msra.mxu0 0.0
    %1800 = vmatpush.msra.mxu0 %v1780
    %1801 = vmatmul.f32.gmra.mxu0 %v1777
    %v1802 = vpop.f32.mrf.mxu0
    %v1803 = vadd.f32 0.0, %v1802
    %1804 = vdwg.mxu0
    %1805 = vmatpush.msra.mxu0 0.0
    %1806 = vmatpush.msra.mxu0 0.0
    %1807 = vmatpush.msra.mxu0 0.0
    %1808 = vmatpush.msra.mxu0 0.0
    %1809 = vmatpush.msra.mxu0 0.0
    %1810 = vmatpush.msra.mxu0 0.0
    %1811 = vmatpush.msra.mxu0 0.0
    %1812 = vmatpush.msra.mxu0 0.0
    %1813 = vmatpush.msra.mxu0 0.0
    %1814 = vmatpush.msra.mxu0 0.0
    %1815 = vmatpush.msra.mxu0 0.0
    %1816 = vmatpush.msra.mxu0 0.0
    %1817 = vmatpush.msra.mxu0 0.0
    %1818 = vmatpush.msra.mxu0 0.0
    %1819 = vmatpush.msra.mxu0 0.0
    %1820 = vmatpush.msra.mxu0 %v1783
    %1821 = vmatmul.f32.gmra.mxu0 %v1777
    %v1822 = vpop.f32.mrf.mxu0
    %v1823 = vadd.f32 0.0, %v1822
    %1824 = vdwg.mxu0
    %v1826 = vsel %vm1017, %v1773, 0
    %v1829 = vsel %vm1021, %v1730, 0
    %v1832 = vsel %vm1021, %v1743, 0
    %1834 = vmatpush.msra.mxu0 0.0
    %1835 = vmatpush.msra.mxu0 0.0
    %1836 = vmatpush.msra.mxu0 0.0
    %1837 = vmatpush.msra.mxu0 0.0
    %1838 = vmatpush.msra.mxu0 0.0
    %1839 = vmatpush.msra.mxu0 0.0
    %1840 = vmatpush.msra.mxu0 0.0
    %1841 = vmatpush.msra.mxu0 0.0
    %1842 = vmatpush.msra.mxu0 0.0
    %1843 = vmatpush.msra.mxu0 0.0
    %1844 = vmatpush.msra.mxu0 0.0
    %1845 = vmatpush.msra.mxu0 0.0
    %1846 = vmatpush.msra.mxu0 0.0
    %1847 = vmatpush.msra.mxu0 0.0
    %1848 = vmatpush.msra.mxu0 0.0
    %1849 = vmatpush.msra.mxu0 %v1829
    %1850 = vmatmul.f32.gmra.mxu0 %v1826
    %v1851 = vpop.f32.mrf.mxu0
    %v1852 = vadd.f32 %v1803, %v1851
    %1853 = vdwg.mxu0
    %1854 = vmatpush.msra.mxu0 0.0
    %1855 = vmatpush.msra.mxu0 0.0
    %1856 = vmatpush.msra.mxu0 0.0
    %1857 = vmatpush.msra.mxu0 0.0
    %1858 = vmatpush.msra.mxu0 0.0
    %1859 = vmatpush.msra.mxu0 0.0
    %1860 = vmatpush.msra.mxu0 0.0
    %1861 = vmatpush.msra.mxu0 0.0
    %1862 = vmatpush.msra.mxu0 0.0
    %1863 = vmatpush.msra.mxu0 0.0
    %1864 = vmatpush.msra.mxu0 0.0
    %1865 = vmatpush.msra.mxu0 0.0
    %1866 = vmatpush.msra.mxu0 0.0
    %1867 = vmatpush.msra.mxu0 0.0
    %1868 = vmatpush.msra.mxu0 0.0
    %1869 = vmatpush.msra.mxu0 %v1832
    %1870 = vmatmul.f32.gmra.mxu0 %v1826
    %v1871 = vpop.f32.mrf.mxu0
    %v1872 = vadd.f32 %v1823, %v1871
    %1873 = vdwg.mxu0
    %v1874 = vadd.f32 %v1621, %v1852
    %v1875 = vadd.f32 %v1622, %v1872
    %s1876 = scalar_lea.vmem %s9, 512
    %v1877 = vld [vmem:[%s1876] sm:$0xff]
    %v1878 = vld [vmem:[%s1876 + $0x8] sm:$0xff]
    %v1879 = vld [vmem:[%s1876 + $0x10] sm:$0xff]
    %v1880 = vld [vmem:[%s1876 + $0x18] sm:$0xff]
    %v1881 = vld [vmem:[%s1876 + $0x20] sm:$0xff]
    %v1882 = vld [vmem:[%s1876 + $0x28] sm:$0xff]
    %v1883 = vld [vmem:[%s1876 + $0x30] sm:$0xff]
    %v1884 = vld [vmem:[%s1876 + $0x38] sm:$0xff]
    %v1885 = vld [vmem:[%s1876 + $0x40] sm:$0xff]
    %v1886 = vld [vmem:[%s1876 + $0x48] sm:$0xff]
    %v1887 = vld [vmem:[%s1876 + $0x50] sm:$0xff]
    %v1888 = vld [vmem:[%s1876 + $0x58] sm:$0xff]
    %v1889 = vld [vmem:[%s1876 + $0x60] sm:$0xff]
    %v1890 = vld [vmem:[%s1876 + $0x68] sm:$0xff]
    %v1891 = vld [vmem:[%s1876 + $0x70] sm:$0xff]
    %v1892 = vld [vmem:[%s1876 + $0x78] sm:$0xff]
    %v1909 = vunpack.c.l.b16 %v1877
    %v1910 = vunpack.c.h.b16 %v1877
    %v1911 = vunpack.c.l.b16 %v1878
    %v1912 = vunpack.c.h.b16 %v1878
    %v1913 = vunpack.c.l.b16 %v1879
    %v1914 = vunpack.c.h.b16 %v1879
    %v1915 = vunpack.c.l.b16 %v1880
    %v1916 = vunpack.c.h.b16 %v1880
    %v1917 = vunpack.c.l.b16 %v1881
    %v1918 = vunpack.c.h.b16 %v1881
    %v1919 = vunpack.c.l.b16 %v1882
    %v1920 = vunpack.c.h.b16 %v1882
    %v1921 = vunpack.c.l.b16 %v1883
    %v1922 = vunpack.c.h.b16 %v1883
    %v1923 = vunpack.c.l.b16 %v1884
    %v1924 = vunpack.c.h.b16 %v1884
    %v1925 = vunpack.c.l.b16 %v1885
    %v1926 = vunpack.c.h.b16 %v1885
    %v1927 = vunpack.c.l.b16 %v1886
    %v1928 = vunpack.c.h.b16 %v1886
    %v1929 = vunpack.c.l.b16 %v1887
    %v1930 = vunpack.c.h.b16 %v1887
    %v1931 = vunpack.c.l.b16 %v1888
    %v1932 = vunpack.c.h.b16 %v1888
    %v1933 = vunpack.c.l.b16 %v1889
    %v1934 = vunpack.c.h.b16 %v1889
    %v1935 = vunpack.c.l.b16 %v1890
    %v1936 = vunpack.c.h.b16 %v1890
    %v1937 = vunpack.c.l.b16 %v1891
    %v1938 = vunpack.c.h.b16 %v1891
    %v1939 = vunpack.c.l.b16 %v1892
    %v1940 = vunpack.c.h.b16 %v1892
    %v1941 = vpack.c.b16 %v1911, %v1909
    %v1942 = vpack.c.b16 %v1912, %v1910
    %v1943 = vpack.c.b16 %v1915, %v1913
    %v1944 = vpack.c.b16 %v1916, %v1914
    %v1945 = vpack.c.b16 %v1919, %v1917
    %v1946 = vpack.c.b16 %v1920, %v1918
    %v1947 = vpack.c.b16 %v1923, %v1921
    %v1948 = vpack.c.b16 %v1924, %v1922
    %v1949 = vpack.c.b16 %v1927, %v1925
    %v1950 = vpack.c.b16 %v1928, %v1926
    %v1951 = vpack.c.b16 %v1931, %v1929
    %v1952 = vpack.c.b16 %v1932, %v1930
    %v1953 = vpack.c.b16 %v1935, %v1933
    %v1954 = vpack.c.b16 %v1936, %v1934
    %v1955 = vpack.c.b16 %v1939, %v1937
    %v1956 = vpack.c.b16 %v1940, %v1938
    %1973 = vmatpush.bf16.msra.mxu0 %v1955
    %1974 = vmatpush.bf16.msra.mxu0 %v1953
    %1975 = vmatpush.bf16.msra.mxu0 %v1951
    %1976 = vmatpush.bf16.msra.mxu0 %v1949
    %1977 = vmatpush.bf16.msra.mxu0 %v1947
    %1978 = vmatpush.bf16.msra.mxu0 %v1945
    %1979 = vmatpush.bf16.msra.mxu0 %v1943
    %1980 = vmatpush.bf16.msra.mxu0 %v1941
    %1981 = vmatmul.bf16.gmra.mxu0 %v862
    %v1982 = vpop.f32.mrf.mxu0
    %v1983 = vadd.f32 0.0, %v1982
    %v1984 = vpop.f32.mrf.mxu0
    %1985 = vdwg.mxu0
    %1986 = vmatpush.bf16.msra.mxu0 %v1956
    %1987 = vmatpush.bf16.msra.mxu0 %v1954
    %1988 = vmatpush.bf16.msra.mxu0 %v1952
    %1989 = vmatpush.bf16.msra.mxu0 %v1950
    %1990 = vmatpush.bf16.msra.mxu0 %v1948
    %1991 = vmatpush.bf16.msra.mxu0 %v1946
    %1992 = vmatpush.bf16.msra.mxu0 %v1944
    %1993 = vmatpush.bf16.msra.mxu0 %v1942
    %1994 = vmatmul.bf16.gmra.mxu0 %v862
    %v1995 = vpop.f32.mrf.mxu0
    %v1996 = vadd.f32 0.0, %v1995
    %v1997 = vpop.f32.mrf.mxu0
    %1998 = vdwg.mxu0
    %1999 = vmatpush.bf16.msra.mxu0 %v1955
    %2000 = vmatpush.bf16.msra.mxu0 %v1953
    %2001 = vmatpush.bf16.msra.mxu0 %v1951
    %2002 = vmatpush.bf16.msra.mxu0 %v1949
    %2003 = vmatpush.bf16.msra.mxu0 %v1947
    %2004 = vmatpush.bf16.msra.mxu0 %v1945
    %2005 = vmatpush.bf16.msra.mxu0 %v1943
    %2006 = vmatpush.bf16.msra.mxu0 %v1941
    %2007 = vmatmul.bf16.gmra.mxu0 %v987
    %v2008 = vpop.f32.mrf.mxu0
    %v2009 = vadd.f32 0.0, %v2008
    %v2010 = vpop.f32.mrf.mxu0
    %2011 = vdwg.mxu0
    %2012 = vmatpush.bf16.msra.mxu0 %v1956
    %2013 = vmatpush.bf16.msra.mxu0 %v1954
    %2014 = vmatpush.bf16.msra.mxu0 %v1952
    %2015 = vmatpush.bf16.msra.mxu0 %v1950
    %2016 = vmatpush.bf16.msra.mxu0 %v1948
    %2017 = vmatpush.bf16.msra.mxu0 %v1946
    %2018 = vmatpush.bf16.msra.mxu0 %v1944
    %2019 = vmatpush.bf16.msra.mxu0 %v1942
    %2020 = vmatmul.bf16.gmra.mxu0 %v987
    %v2021 = vpop.f32.mrf.mxu0
    %v2022 = vadd.f32 0.0, %v2021
    %v2023 = vpop.f32.mrf.mxu0
    %2024 = vdwg.mxu0
    %s2025 = scalar_lea.vmem %s7, 32
    %v2026 = vld [vmem:[%s2025] sm:$0xff]
    %s2027 = scalar_lea.vmem %s8, 32
    %v2028 = vld [vmem:[%s2027] sm:$0xff]
    %v2030 = vsel %vm1017, %v2028, 0
    %v2033 = vsel %vm1021, %v2009, 0
    %v2036 = vsel %vm1021, %v2022, 0
    %2038 = vmatpush.msra.mxu0 0.0
    %2039 = vmatpush.msra.mxu0 0.0
    %2040 = vmatpush.msra.mxu0 0.0
    %2041 = vmatpush.msra.mxu0 0.0
    %2042 = vmatpush.msra.mxu0 0.0
    %2043 = vmatpush.msra.mxu0 0.0
    %2044 = vmatpush.msra.mxu0 0.0
    %2045 = vmatpush.msra.mxu0 0.0
    %2046 = vmatpush.msra.mxu0 0.0
    %2047 = vmatpush.msra.mxu0 0.0
    %2048 = vmatpush.msra.mxu0 0.0
    %2049 = vmatpush.msra.mxu0 0.0
    %2050 = vmatpush.msra.mxu0 0.0
    %2051 = vmatpush.msra.mxu0 0.0
    %2052 = vmatpush.msra.mxu0 0.0
    %2053 = vmatpush.msra.mxu0 %v2033
    %2054 = vmatmul.f32.gmra.mxu0 %v2030
    %v2055 = vpop.f32.mrf.mxu0
    %v2056 = vadd.f32 0.0, %v2055
    %2057 = vdwg.mxu0
    %2058 = vmatpush.msra.mxu0 0.0
    %2059 = vmatpush.msra.mxu0 0.0
    %2060 = vmatpush.msra.mxu0 0.0
    %2061 = vmatpush.msra.mxu0 0.0
    %2062 = vmatpush.msra.mxu0 0.0
    %2063 = vmatpush.msra.mxu0 0.0
    %2064 = vmatpush.msra.mxu0 0.0
    %2065 = vmatpush.msra.mxu0 0.0
    %2066 = vmatpush.msra.mxu0 0.0
    %2067 = vmatpush.msra.mxu0 0.0
    %2068 = vmatpush.msra.mxu0 0.0
    %2069 = vmatpush.msra.mxu0 0.0
    %2070 = vmatpush.msra.mxu0 0.0
    %2071 = vmatpush.msra.mxu0 0.0
    %2072 = vmatpush.msra.mxu0 0.0
    %2073 = vmatpush.msra.mxu0 %v2036
    %2074 = vmatmul.f32.gmra.mxu0 %v2030
    %v2075 = vpop.f32.mrf.mxu0
    %v2076 = vadd.f32 0.0, %v2075
    %2077 = vdwg.mxu0
    %v2079 = vsel %vm1017, %v2026, 0
    %v2082 = vsel %vm1021, %v1983, 0
    %v2085 = vsel %vm1021, %v1996, 0
    %2087 = vmatpush.msra.mxu0 0.0
    %2088 = vmatpush.msra.mxu0 0.0
    %2089 = vmatpush.msra.mxu0 0.0
    %2090 = vmatpush.msra.mxu0 0.0
    %2091 = vmatpush.msra.mxu0 0.0
    %2092 = vmatpush.msra.mxu0 0.0
    %2093 = vmatpush.msra.mxu0 0.0
    %2094 = vmatpush.msra.mxu0 0.0
    %2095 = vmatpush.msra.mxu0 0.0
    %2096 = vmatpush.msra.mxu0 0.0
    %2097 = vmatpush.msra.mxu0 0.0
    %2098 = vmatpush.msra.mxu0 0.0
    %2099 = vmatpush.msra.mxu0 0.0
    %2100 = vmatpush.msra.mxu0 0.0
    %2101 = vmatpush.msra.mxu0 0.0
    %2102 = vmatpush.msra.mxu0 %v2082
    %2103 = vmatmul.f32.gmra.mxu0 %v2079
    %v2104 = vpop.f32.mrf.mxu0
    %v2105 = vadd.f32 %v2056, %v2104
    %2106 = vdwg.mxu0
    %2107 = vmatpush.msra.mxu0 0.0
    %2108 = vmatpush.msra.mxu0 0.0
    %2109 = vmatpush.msra.mxu0 0.0
    %2110 = vmatpush.msra.mxu0 0.0
    %2111 = vmatpush.msra.mxu0 0.0
    %2112 = vmatpush.msra.mxu0 0.0
    %2113 = vmatpush.msra.mxu0 0.0
    %2114 = vmatpush.msra.mxu0 0.0
    %2115 = vmatpush.msra.mxu0 0.0
    %2116 = vmatpush.msra.mxu0 0.0
    %2117 = vmatpush.msra.mxu0 0.0
    %2118 = vmatpush.msra.mxu0 0.0
    %2119 = vmatpush.msra.mxu0 0.0
    %2120 = vmatpush.msra.mxu0 0.0
    %2121 = vmatpush.msra.mxu0 0.0
    %2122 = vmatpush.msra.mxu0 %v2085
    %2123 = vmatmul.f32.gmra.mxu0 %v2079
    %v2124 = vpop.f32.mrf.mxu0
    %v2125 = vadd.f32 %v2076, %v2124
    %2126 = vdwg.mxu0
    %v2127 = vadd.f32 %v1874, %v2105
    %v2128 = vadd.f32 %v1875, %v2125
    %v2129 = vld [vmem:[%s10] sm:$0x3]
    %v2131 = vperm.slane %v2129, 0
    %v2132 = vperm.slane %v2129, 1
    %v2135 = vadd.f32 %v2127, %v2131
    %v2136 = vadd.f32 %v2128, %v2132
    %vm2137 = vcmp.gt.f32.partialorder %v2135, 0.0
    %vm2138 = vcmp.gt.f32.partialorder %v2136, 0.0
    %v2139 = vmul.f32 %v2135, 1.442695
    %v2140 = vpow.pop %v2139
    %v2141 = vmul.f32 %v2136, 1.442695
    %v2142 = vpow.pop %v2141
    %v2143 = vsub.f32 %v2140, 1.0
    %v2144 = vsub.f32 %v2142, 1.0
    %v2145 = vsel %vm2137, %v2135, %v2143
    %v2146 = vsel %vm2138, %v2136, %v2144
    %v2147 = vpack.c.bf16 %v2145, %v2145
    %v2148 = vpack.c.bf16 %v2146, %v2146
    %v2149 = vld [vmem:[#allocation6] sm:$0xff]
    %v2150 = vld [vmem:[#allocation6 + $0x8] sm:$0xff]
    %v2151 = vld [vmem:[#allocation6 + $0x10] sm:$0xff]
    %v2152 = vld [vmem:[#allocation6 + $0x18] sm:$0xff]
    %v2153 = vld [vmem:[#allocation6 + $0x20] sm:$0xff]
    %v2154 = vld [vmem:[#allocation6 + $0x28] sm:$0xff]
    %v2155 = vld [vmem:[#allocation6 + $0x30] sm:$0xff]
    %v2156 = vld [vmem:[#allocation6 + $0x38] sm:$0xff]
    %v2157 = vld [vmem:[#allocation6 + $0x40] sm:$0xff]
    %v2158 = vld [vmem:[#allocation6 + $0x48] sm:$0xff]
    %v2159 = vld [vmem:[#allocation6 + $0x50] sm:$0xff]
    %v2160 = vld [vmem:[#allocation6 + $0x58] sm:$0xff]
    %v2161 = vld [vmem:[#allocation6 + $0x60] sm:$0xff]
    %v2162 = vld [vmem:[#allocation6 + $0x68] sm:$0xff]
    %v2163 = vld [vmem:[#allocation6 + $0x70] sm:$0xff]
    %v2164 = vld [vmem:[#allocation6 + $0x78] sm:$0xff]
    %v2165 = vld [vmem:[#allocation6 + $0x80] sm:$0xff]
    %v2166 = vld [vmem:[#allocation6 + $0x88] sm:$0xff]
    %v2167 = vld [vmem:[#allocation6 + $0x90] sm:$0xff]
    %v2168 = vld [vmem:[#allocation6 + $0x98] sm:$0xff]
    %v2169 = vld [vmem:[#allocation6 + $0xa0] sm:$0xff]
    %v2170 = vld [vmem:[#allocation6 + $0xa8] sm:$0xff]
    %v2171 = vld [vmem:[#allocation6 + $0xb0] sm:$0xff]
    %v2172 = vld [vmem:[#allocation6 + $0xb8] sm:$0xff]
    %v2173 = vld [vmem:[#allocation6 + $0xc0] sm:$0xff]
    %v2174 = vld [vmem:[#allocation6 + $0xc8] sm:$0xff]
    %v2175 = vld [vmem:[#allocation6 + $0xd0] sm:$0xff]
    %v2176 = vld [vmem:[#allocation6 + $0xd8] sm:$0xff]
    %v2177 = vld [vmem:[#allocation6 + $0xe0] sm:$0xff]
    %v2178 = vld [vmem:[#allocation6 + $0xe8] sm:$0xff]
    %v2179 = vld [vmem:[#allocation6 + $0xf0] sm:$0xff]
    %v2180 = vld [vmem:[#allocation6 + $0xf8] sm:$0xff]
    %v2213 = vunpack.c.l.b16 %v2149
    %v2214 = vunpack.c.h.b16 %v2149
    %v2215 = vunpack.c.l.b16 %v2150
    %v2216 = vunpack.c.h.b16 %v2150
    %v2217 = vunpack.c.l.b16 %v2151
    %v2218 = vunpack.c.h.b16 %v2151
    %v2219 = vunpack.c.l.b16 %v2152
    %v2220 = vunpack.c.h.b16 %v2152
    %v2221 = vunpack.c.l.b16 %v2153
    %v2222 = vunpack.c.h.b16 %v2153
    %v2223 = vunpack.c.l.b16 %v2154
    %v2224 = vunpack.c.h.b16 %v2154
    %v2225 = vunpack.c.l.b16 %v2155
    %v2226 = vunpack.c.h.b16 %v2155
    %v2227 = vunpack.c.l.b16 %v2156
    %v2228 = vunpack.c.h.b16 %v2156
    %v2229 = vunpack.c.l.b16 %v2157
    %v2230 = vunpack.c.h.b16 %v2157
    %v2231 = vunpack.c.l.b16 %v2158
    %v2232 = vunpack.c.h.b16 %v2158
    %v2233 = vunpack.c.l.b16 %v2159
    %v2234 = vunpack.c.h.b16 %v2159
    %v2235 = vunpack.c.l.b16 %v2160
    %v2236 = vunpack.c.h.b16 %v2160
    %v2237 = vunpack.c.l.b16 %v2161
    %v2238 = vunpack.c.h.b16 %v2161
    %v2239 = vunpack.c.l.b16 %v2162
    %v2240 = vunpack.c.h.b16 %v2162
    %v2241 = vunpack.c.l.b16 %v2163
    %v2242 = vunpack.c.h.b16 %v2163
    %v2243 = vunpack.c.l.b16 %v2164
    %v2244 = vunpack.c.h.b16 %v2164
    %v2245 = vunpack.c.l.b16 %v2165
    %v2246 = vunpack.c.h.b16 %v2165
    %v2247 = vunpack.c.l.b16 %v2166
    %v2248 = vunpack.c.h.b16 %v2166
    %v2249 = vunpack.c.l.b16 %v2167
    %v2250 = vunpack.c.h.b16 %v2167
    %v2251 = vunpack.c.l.b16 %v2168
    %v2252 = vunpack.c.h.b16 %v2168
    %v2253 = vunpack.c.l.b16 %v2169
    %v2254 = vunpack.c.h.b16 %v2169
    %v2255 = vunpack.c.l.b16 %v2170
    %v2256 = vunpack.c.h.b16 %v2170
    %v2257 = vunpack.c.l.b16 %v2171
    %v2258 = vunpack.c.h.b16 %v2171
    %v2259 = vunpack.c.l.b16 %v2172
    %v2260 = vunpack.c.h.b16 %v2172
    %v2261 = vunpack.c.l.b16 %v2173
    %v2262 = vunpack.c.h.b16 %v2173
    %v2263 = vunpack.c.l.b16 %v2174
    %v2264 = vunpack.c.h.b16 %v2174
    %v2265 = vunpack.c.l.b16 %v2175
    %v2266 = vunpack.c.h.b16 %v2175
    %v2267 = vunpack.c.l.b16 %v2176
    %v2268 = vunpack.c.h.b16 %v2176
    %v2269 = vunpack.c.l.b16 %v2177
    %v2270 = vunpack.c.h.b16 %v2177
    %v2271 = vunpack.c.l.b16 %v2178
    %v2272 = vunpack.c.h.b16 %v2178
    %v2273 = vunpack.c.l.b16 %v2179
    %v2274 = vunpack.c.h.b16 %v2179
    %v2275 = vunpack.c.l.b16 %v2180
    %v2276 = vunpack.c.h.b16 %v2180
    %v2277 = vpack.c.b16 %v2215, %v2213
    %v2278 = vpack.c.b16 %v2216, %v2214
    %v2279 = vpack.c.b16 %v2219, %v2217
    %v2280 = vpack.c.b16 %v2220, %v2218
    %v2281 = vpack.c.b16 %v2223, %v2221
    %v2282 = vpack.c.b16 %v2224, %v2222
    %v2283 = vpack.c.b16 %v2227, %v2225
    %v2284 = vpack.c.b16 %v2228, %v2226
    %v2285 = vpack.c.b16 %v2231, %v2229
    %v2286 = vpack.c.b16 %v2232, %v2230
    %v2287 = vpack.c.b16 %v2235, %v2233
    %v2288 = vpack.c.b16 %v2236, %v2234
    %v2289 = vpack.c.b16 %v2239, %v2237
    %v2290 = vpack.c.b16 %v2240, %v2238
    %v2291 = vpack.c.b16 %v2243, %v2241
    %v2292 = vpack.c.b16 %v2244, %v2242
    %v2293 = vpack.c.b16 %v2247, %v2245
    %v2294 = vpack.c.b16 %v2248, %v2246
    %v2295 = vpack.c.b16 %v2251, %v2249
    %v2296 = vpack.c.b16 %v2252, %v2250
    %v2297 = vpack.c.b16 %v2255, %v2253
    %v2298 = vpack.c.b16 %v2256, %v2254
    %v2299 = vpack.c.b16 %v2259, %v2257
    %v2300 = vpack.c.b16 %v2260, %v2258
    %v2301 = vpack.c.b16 %v2263, %v2261
    %v2302 = vpack.c.b16 %v2264, %v2262
    %v2303 = vpack.c.b16 %v2267, %v2265
    %v2304 = vpack.c.b16 %v2268, %v2266
    %v2305 = vpack.c.b16 %v2271, %v2269
    %v2306 = vpack.c.b16 %v2272, %v2270
    %v2307 = vpack.c.b16 %v2275, %v2273
    %v2308 = vpack.c.b16 %v2276, %v2274
    %2341 = vmatpush.bf16.msra.mxu0 %v2291
    %2342 = vmatpush.bf16.msra.mxu0 %v2289
    %2343 = vmatpush.bf16.msra.mxu0 %v2287
    %2344 = vmatpush.bf16.msra.mxu0 %v2285
    %2345 = vmatpush.bf16.msra.mxu0 %v2283
    %2346 = vmatpush.bf16.msra.mxu0 %v2281
    %2347 = vmatpush.bf16.msra.mxu0 %v2279
    %2348 = vmatpush.bf16.msra.mxu0 %v2277
    %2349 = vmatmul.bf16.gmra.mxu0 %v2147
    %v2350 = vpop.f32.mrf.mxu0
    %v2351 = vadd.f32 0.0, %v2350
    %v2352 = vpop.f32.mrf.mxu0
    %2353 = vdwg.mxu0
    %2354 = vmatpush.bf16.msra.mxu0 %v2307
    %2355 = vmatpush.bf16.msra.mxu0 %v2305
    %2356 = vmatpush.bf16.msra.mxu0 %v2303
    %2357 = vmatpush.bf16.msra.mxu0 %v2301
    %2358 = vmatpush.bf16.msra.mxu0 %v2299
    %2359 = vmatpush.bf16.msra.mxu0 %v2297
    %2360 = vmatpush.bf16.msra.mxu0 %v2295
    %2361 = vmatpush.bf16.msra.mxu0 %v2293
    %2362 = vmatmul.bf16.gmra.mxu0 %v2148
    %v2363 = vpop.f32.mrf.mxu0
    %v2364 = vadd.f32 %v2351, %v2363
    %v2365 = vpop.f32.mrf.mxu0
    %2366 = vdwg.mxu0
    %2367 = vmatpush.bf16.msra.mxu0 %v2292
    %2368 = vmatpush.bf16.msra.mxu0 %v2290
    %2369 = vmatpush.bf16.msra.mxu0 %v2288
    %2370 = vmatpush.bf16.msra.mxu0 %v2286
    %2371 = vmatpush.bf16.msra.mxu0 %v2284
    %2372 = vmatpush.bf16.msra.mxu0 %v2282
    %2373 = vmatpush.bf16.msra.mxu0 %v2280
    %2374 = vmatpush.bf16.msra.mxu0 %v2278
    %2375 = vmatmul.bf16.gmra.mxu0 %v2147
    %v2376 = vpop.f32.mrf.mxu0
    %v2377 = vadd.f32 0.0, %v2376
    %v2378 = vpop.f32.mrf.mxu0
    %2379 = vdwg.mxu0
    %2380 = vmatpush.bf16.msra.mxu0 %v2308
    %2381 = vmatpush.bf16.msra.mxu0 %v2306
    %2382 = vmatpush.bf16.msra.mxu0 %v2304
    %2383 = vmatpush.bf16.msra.mxu0 %v2302
    %2384 = vmatpush.bf16.msra.mxu0 %v2300
    %2385 = vmatpush.bf16.msra.mxu0 %v2298
    %2386 = vmatpush.bf16.msra.mxu0 %v2296
    %2387 = vmatpush.bf16.msra.mxu0 %v2294
    %2388 = vmatmul.bf16.gmra.mxu0 %v2148
    %v2389 = vpop.f32.mrf.mxu0
    %v2390 = vadd.f32 %v2377, %v2389
    %v2391 = vpop.f32.mrf.mxu0
    %2392 = vdwg.mxu0
    %v2393 = vld [vmem:[%s11] sm:$0xff]
    %v2394 = vld [vmem:[%s11 + $0x8] sm:$0xff]
    %s2395 = scalar_lea.vmem [#allocation6], 256
    %v2396 = vld [vmem:[%s2395] sm:$0xff]
    %v2397 = vld [vmem:[%s2395 + $0x8] sm:$0xff]
    %v2398 = vld [vmem:[%s2395 + $0x10] sm:$0xff]
    %v2399 = vld [vmem:[%s2395 + $0x18] sm:$0xff]
    %v2400 = vld [vmem:[%s2395 + $0x20] sm:$0xff]
    %v2401 = vld [vmem:[%s2395 + $0x28] sm:$0xff]
    %v2402 = vld [vmem:[%s2395 + $0x30] sm:$0xff]
    %v2403 = vld [vmem:[%s2395 + $0x38] sm:$0xff]
    %v2404 = vld [vmem:[%s2395 + $0x40] sm:$0xff]
    %v2405 = vld [vmem:[%s2395 + $0x48] sm:$0xff]
    %v2406 = vld [vmem:[%s2395 + $0x50] sm:$0xff]
    %v2407 = vld [vmem:[%s2395 + $0x58] sm:$0xff]
    %v2408 = vld [vmem:[%s2395 + $0x60] sm:$0xff]
    %v2409 = vld [vmem:[%s2395 + $0x68] sm:$0xff]
    %v2410 = vld [vmem:[%s2395 + $0x70] sm:$0xff]
    %v2411 = vld [vmem:[%s2395 + $0x78] sm:$0xff]
    %v2412 = vld [vmem:[%s2395 + $0x80] sm:$0xff]
    %v2413 = vld [vmem:[%s2395 + $0x88] sm:$0xff]
    %v2414 = vld [vmem:[%s2395 + $0x90] sm:$0xff]
    %v2415 = vld [vmem:[%s2395 + $0x98] sm:$0xff]
    %v2416 = vld [vmem:[%s2395 + $0xa0] sm:$0xff]
    %v2417 = vld [vmem:[%s2395 + $0xa8] sm:$0xff]
    %v2418 = vld [vmem:[%s2395 + $0xb0] sm:$0xff]
    %v2419 = vld [vmem:[%s2395 + $0xb8] sm:$0xff]
    %v2420 = vld [vmem:[%s2395 + $0xc0] sm:$0xff]
    %v2421 = vld [vmem:[%s2395 + $0xc8] sm:$0xff]
    %v2422 = vld [vmem:[%s2395 + $0xd0] sm:$0xff]
    %v2423 = vld [vmem:[%s2395 + $0xd8] sm:$0xff]
    %v2424 = vld [vmem:[%s2395 + $0xe0] sm:$0xff]
    %v2425 = vld [vmem:[%s2395 + $0xe8] sm:$0xff]
    %v2426 = vld [vmem:[%s2395 + $0xf0] sm:$0xff]
    %v2427 = vld [vmem:[%s2395 + $0xf8] sm:$0xff]
    %v2460 = vunpack.c.l.b16 %v2396
    %v2461 = vunpack.c.h.b16 %v2396
    %v2462 = vunpack.c.l.b16 %v2397
    %v2463 = vunpack.c.h.b16 %v2397
    %v2464 = vunpack.c.l.b16 %v2398
    %v2465 = vunpack.c.h.b16 %v2398
    %v2466 = vunpack.c.l.b16 %v2399
    %v2467 = vunpack.c.h.b16 %v2399
    %v2468 = vunpack.c.l.b16 %v2400
    %v2469 = vunpack.c.h.b16 %v2400
    %v2470 = vunpack.c.l.b16 %v2401
    %v2471 = vunpack.c.h.b16 %v2401
    %v2472 = vunpack.c.l.b16 %v2402
    %v2473 = vunpack.c.h.b16 %v2402
    %v2474 = vunpack.c.l.b16 %v2403
    %v2475 = vunpack.c.h.b16 %v2403
    %v2476 = vunpack.c.l.b16 %v2404
    %v2477 = vunpack.c.h.b16 %v2404
    %v2478 = vunpack.c.l.b16 %v2405
    %v2479 = vunpack.c.h.b16 %v2405
    %v2480 = vunpack.c.l.b16 %v2406
    %v2481 = vunpack.c.h.b16 %v2406
    %v2482 = vunpack.c.l.b16 %v2407
    %v2483 = vunpack.c.h.b16 %v2407
    %v2484 = vunpack.c.l.b16 %v2408
    %v2485 = vunpack.c.h.b16 %v2408
    %v2486 = vunpack.c.l.b16 %v2409
    %v2487 = vunpack.c.h.b16 %v2409
    %v2488 = vunpack.c.l.b16 %v2410
    %v2489 = vunpack.c.h.b16 %v2410
    %v2490 = vunpack.c.l.b16 %v2411
    %v2491 = vunpack.c.h.b16 %v2411
    %v2492 = vunpack.c.l.b16 %v2412
    %v2493 = vunpack.c.h.b16 %v2412
    %v2494 = vunpack.c.l.b16 %v2413
    %v2495 = vunpack.c.h.b16 %v2413
    %v2496 = vunpack.c.l.b16 %v2414
    %v2497 = vunpack.c.h.b16 %v2414
    %v2498 = vunpack.c.l.b16 %v2415
    %v2499 = vunpack.c.h.b16 %v2415
    %v2500 = vunpack.c.l.b16 %v2416
    %v2501 = vunpack.c.h.b16 %v2416
    %v2502 = vunpack.c.l.b16 %v2417
    %v2503 = vunpack.c.h.b16 %v2417
    %v2504 = vunpack.c.l.b16 %v2418
    %v2505 = vunpack.c.h.b16 %v2418
    %v2506 = vunpack.c.l.b16 %v2419
    %v2507 = vunpack.c.h.b16 %v2419
    %v2508 = vunpack.c.l.b16 %v2420
    %v2509 = vunpack.c.h.b16 %v2420
    %v2510 = vunpack.c.l.b16 %v2421
    %v2511 = vunpack.c.h.b16 %v2421
    %v2512 = vunpack.c.l.b16 %v2422
    %v2513 = vunpack.c.h.b16 %v2422
    %v2514 = vunpack.c.l.b16 %v2423
    %v2515 = vunpack.c.h.b16 %v2423
    %v2516 = vunpack.c.l.b16 %v2424
    %v2517 = vunpack.c.h.b16 %v2424
    %v2518 = vunpack.c.l.b16 %v2425
    %v2519 = vunpack.c.h.b16 %v2425
    %v2520 = vunpack.c.l.b16 %v2426
    %v2521 = vunpack.c.h.b16 %v2426
    %v2522 = vunpack.c.l.b16 %v2427
    %v2523 = vunpack.c.h.b16 %v2427
    %v2524 = vpack.c.b16 %v2462, %v2460
    %v2525 = vpack.c.b16 %v2463, %v2461
    %v2526 = vpack.c.b16 %v2466, %v2464
    %v2527 = vpack.c.b16 %v2467, %v2465
    %v2528 = vpack.c.b16 %v2470, %v2468
    %v2529 = vpack.c.b16 %v2471, %v2469
    %v2530 = vpack.c.b16 %v2474, %v2472
    %v2531 = vpack.c.b16 %v2475, %v2473
    %v2532 = vpack.c.b16 %v2478, %v2476
    %v2533 = vpack.c.b16 %v2479, %v2477
    %v2534 = vpack.c.b16 %v2482, %v2480
    %v2535 = vpack.c.b16 %v2483, %v2481
    %v2536 = vpack.c.b16 %v2486, %v2484
    %v2537 = vpack.c.b16 %v2487, %v2485
    %v2538 = vpack.c.b16 %v2490, %v2488
    %v2539 = vpack.c.b16 %v2491, %v2489
    %v2540 = vpack.c.b16 %v2494, %v2492
    %v2541 = vpack.c.b16 %v2495, %v2493
    %v2542 = vpack.c.b16 %v2498, %v2496
    %v2543 = vpack.c.b16 %v2499, %v2497
    %v2544 = vpack.c.b16 %v2502, %v2500
    %v2545 = vpack.c.b16 %v2503, %v2501
    %v2546 = vpack.c.b16 %v2506, %v2504
    %v2547 = vpack.c.b16 %v2507, %v2505
    %v2548 = vpack.c.b16 %v2510, %v2508
    %v2549 = vpack.c.b16 %v2511, %v2509
    %v2550 = vpack.c.b16 %v2514, %v2512
    %v2551 = vpack.c.b16 %v2515, %v2513
    %v2552 = vpack.c.b16 %v2518, %v2516
    %v2553 = vpack.c.b16 %v2519, %v2517
    %v2554 = vpack.c.b16 %v2522, %v2520
    %v2555 = vpack.c.b16 %v2523, %v2521
    %2588 = vmatpush.bf16.msra.mxu0 %v2538
    %2589 = vmatpush.bf16.msra.mxu0 %v2536
    %2590 = vmatpush.bf16.msra.mxu0 %v2534
    %2591 = vmatpush.bf16.msra.mxu0 %v2532
    %2592 = vmatpush.bf16.msra.mxu0 %v2530
    %2593 = vmatpush.bf16.msra.mxu0 %v2528
    %2594 = vmatpush.bf16.msra.mxu0 %v2526
    %2595 = vmatpush.bf16.msra.mxu0 %v2524
    %2596 = vmatmul.bf16.gmra.mxu0 %v2147
    %v2597 = vpop.f32.mrf.mxu0
    %v2598 = vadd.f32 0.0, %v2597
    %v2599 = vpop.f32.mrf.mxu0
    %2600 = vdwg.mxu0
    %2601 = vmatpush.bf16.msra.mxu0 %v2554
    %2602 = vmatpush.bf16.msra.mxu0 %v2552
    %2603 = vmatpush.bf16.msra.mxu0 %v2550
    %2604 = vmatpush.bf16.msra.mxu0 %v2548
    %2605 = vmatpush.bf16.msra.mxu0 %v2546
    %2606 = vmatpush.bf16.msra.mxu0 %v2544
    %2607 = vmatpush.bf16.msra.mxu0 %v2542
    %2608 = vmatpush.bf16.msra.mxu0 %v2540
    %2609 = vmatmul.bf16.gmra.mxu0 %v2148
    %v2610 = vpop.f32.mrf.mxu0
    %v2611 = vadd.f32 %v2598, %v2610
    %v2612 = vpop.f32.mrf.mxu0
    %2613 = vdwg.mxu0
    %2614 = vmatpush.bf16.msra.mxu0 %v2539
    %2615 = vmatpush.bf16.msra.mxu0 %v2537
    %2616 = vmatpush.bf16.msra.mxu0 %v2535
    %2617 = vmatpush.bf16.msra.mxu0 %v2533
    %2618 = vmatpush.bf16.msra.mxu0 %v2531
    %2619 = vmatpush.bf16.msra.mxu0 %v2529
    %2620 = vmatpush.bf16.msra.mxu0 %v2527
    %2621 = vmatpush.bf16.msra.mxu0 %v2525
    %2622 = vmatmul.bf16.gmra.mxu0 %v2147
    %v2623 = vpop.f32.mrf.mxu0
    %v2624 = vadd.f32 0.0, %v2623
    %v2625 = vpop.f32.mrf.mxu0
    %2626 = vdwg.mxu0
    %2627 = vmatpush.bf16.msra.mxu0 %v2555
    %2628 = vmatpush.bf16.msra.mxu0 %v2553
    %2629 = vmatpush.bf16.msra.mxu0 %v2551
    %2630 = vmatpush.bf16.msra.mxu0 %v2549
    %2631 = vmatpush.bf16.msra.mxu0 %v2547
    %2632 = vmatpush.bf16.msra.mxu0 %v2545
    %2633 = vmatpush.bf16.msra.mxu0 %v2543
    %2634 = vmatpush.bf16.msra.mxu0 %v2541
    %2635 = vmatmul.bf16.gmra.mxu0 %v2148
    %v2636 = vpop.f32.mrf.mxu0
    %v2637 = vadd.f32 %v2624, %v2636
    %v2638 = vpop.f32.mrf.mxu0
    %2639 = vdwg.mxu0
    %s2640 = scalar_lea.vmem %s11, 16
    %v2641 = vld [vmem:[%s2640] sm:$0xff]
    %v2642 = vld [vmem:[%s2640 + $0x8] sm:$0xff]
    %vm2643 = vcmask 64512
    %v2645 = vsel %vm2643, %v2641, 0
    %v2648 = vsel %vm2643, %v2642, 0
    %2650 = vmatpush.msra.mxu0 0.0
    %2651 = vmatpush.msra.mxu0 0.0
    %2652 = vmatpush.msra.mxu0 0.0
    %2653 = vmatpush.msra.mxu0 0.0
    %2654 = vmatpush.msra.mxu0 0.0
    %2655 = vmatpush.msra.mxu0 0.0
    %2656 = vmatpush.msra.mxu0 0.0
    %2657 = vmatpush.msra.mxu0 0.0
    %2658 = vmatpush.msra.mxu0 0.0
    %2659 = vmatpush.msra.mxu0 0.0
    %2660 = vmatpush.msra.mxu0 0.0
    %2661 = vmatpush.msra.mxu0 0.0
    %2662 = vmatpush.msra.mxu0 0.0
    %2663 = vmatpush.msra.mxu0 0.0
    %2664 = vmatpush.msra.mxu0 0.0
    %2665 = vmatpush.msra.mxu0 %v2611
    %2666 = vmatmul.f32.gmra.mxu0 %v2645
    %v2667 = vpop.f32.mrf.mxu0
    %v2668 = vadd.f32 0.0, %v2667
    %2669 = vmatmul.f32.gmra.mxu0 %v2648
    %v2670 = vpop.f32.mrf.mxu0
    %v2671 = vadd.f32 0.0, %v2670
    %2672 = vdwg.mxu0
    %2673 = vmatpush.msra.mxu0 0.0
    %2674 = vmatpush.msra.mxu0 0.0
    %2675 = vmatpush.msra.mxu0 0.0
    %2676 = vmatpush.msra.mxu0 0.0
    %2677 = vmatpush.msra.mxu0 0.0
    %2678 = vmatpush.msra.mxu0 0.0
    %2679 = vmatpush.msra.mxu0 0.0
    %2680 = vmatpush.msra.mxu0 0.0
    %2681 = vmatpush.msra.mxu0 0.0
    %2682 = vmatpush.msra.mxu0 0.0
    %2683 = vmatpush.msra.mxu0 0.0
    %2684 = vmatpush.msra.mxu0 0.0
    %2685 = vmatpush.msra.mxu0 0.0
    %2686 = vmatpush.msra.mxu0 0.0
    %2687 = vmatpush.msra.mxu0 0.0
    %2688 = vmatpush.msra.mxu0 %v2637
    %2689 = vmatmul.f32.gmra.mxu0 %v2645
    %v2690 = vpop.f32.mrf.mxu0
    %v2691 = vadd.f32 0.0, %v2690
    %2692 = vmatmul.f32.gmra.mxu0 %v2648
    %v2693 = vpop.f32.mrf.mxu0
    %v2694 = vadd.f32 0.0, %v2693
    %2695 = vdwg.mxu0
    %v2697 = vsel %vm2643, %v2393, 0
    %v2700 = vsel %vm2643, %v2394, 0
    %2702 = vmatpush.msra.mxu0 0.0
    %2703 = vmatpush.msra.mxu0 0.0
    %2704 = vmatpush.msra.mxu0 0.0
    %2705 = vmatpush.msra.mxu0 0.0
    %2706 = vmatpush.msra.mxu0 0.0
    %2707 = vmatpush.msra.mxu0 0.0
    %2708 = vmatpush.msra.mxu0 0.0
    %2709 = vmatpush.msra.mxu0 0.0
    %2710 = vmatpush.msra.mxu0 0.0
    %2711 = vmatpush.msra.mxu0 0.0
    %2712 = vmatpush.msra.mxu0 0.0
    %2713 = vmatpush.msra.mxu0 0.0
    %2714 = vmatpush.msra.mxu0 0.0
    %2715 = vmatpush.msra.mxu0 0.0
    %2716 = vmatpush.msra.mxu0 0.0
    %2717 = vmatpush.msra.mxu0 %v2364
    %2718 = vmatmul.f32.gmra.mxu0 %v2697
    %v2719 = vpop.f32.mrf.mxu0
    %v2720 = vadd.f32 %v2668, %v2719
    %2721 = vmatmul.f32.gmra.mxu0 %v2700
    %v2722 = vpop.f32.mrf.mxu0
    %v2723 = vadd.f32 %v2671, %v2722
    %2724 = vdwg.mxu0
    %2725 = vmatpush.msra.mxu0 0.0
    %2726 = vmatpush.msra.mxu0 0.0
    %2727 = vmatpush.msra.mxu0 0.0
    %2728 = vmatpush.msra.mxu0 0.0
    %2729 = vmatpush.msra.mxu0 0.0
    %2730 = vmatpush.msra.mxu0 0.0
    %2731 = vmatpush.msra.mxu0 0.0
    %2732 = vmatpush.msra.mxu0 0.0
    %2733 = vmatpush.msra.mxu0 0.0
    %2734 = vmatpush.msra.mxu0 0.0
    %2735 = vmatpush.msra.mxu0 0.0
    %2736 = vmatpush.msra.mxu0 0.0
    %2737 = vmatpush.msra.mxu0 0.0
    %2738 = vmatpush.msra.mxu0 0.0
    %2739 = vmatpush.msra.mxu0 0.0
    %2740 = vmatpush.msra.mxu0 %v2390
    %2741 = vmatmul.f32.gmra.mxu0 %v2697
    %v2742 = vpop.f32.mrf.mxu0
    %v2743 = vadd.f32 %v2691, %v2742
    %2744 = vmatmul.f32.gmra.mxu0 %v2700
    %v2745 = vpop.f32.mrf.mxu0
    %v2746 = vadd.f32 %v2694, %v2745
    %2747 = vdwg.mxu0
    %s2748 = scalar_lea.vmem [#allocation6], 512
    %v2749 = vld [vmem:[%s2748] sm:$0xff]
    %v2750 = vld [vmem:[%s2748 + $0x8] sm:$0xff]
    %v2751 = vld [vmem:[%s2748 + $0x10] sm:$0xff]
    %v2752 = vld [vmem:[%s2748 + $0x18] sm:$0xff]
    %v2753 = vld [vmem:[%s2748 + $0x20] sm:$0xff]
    %v2754 = vld [vmem:[%s2748 + $0x28] sm:$0xff]
    %v2755 = vld [vmem:[%s2748 + $0x30] sm:$0xff]
    %v2756 = vld [vmem:[%s2748 + $0x38] sm:$0xff]
    %v2757 = vld [vmem:[%s2748 + $0x40] sm:$0xff]
    %v2758 = vld [vmem:[%s2748 + $0x48] sm:$0xff]
    %v2759 = vld [vmem:[%s2748 + $0x50] sm:$0xff]
    %v2760 = vld [vmem:[%s2748 + $0x58] sm:$0xff]
    %v2761 = vld [vmem:[%s2748 + $0x60] sm:$0xff]
    %v2762 = vld [vmem:[%s2748 + $0x68] sm:$0xff]
    %v2763 = vld [vmem:[%s2748 + $0x70] sm:$0xff]
    %v2764 = vld [vmem:[%s2748 + $0x78] sm:$0xff]
    %v2765 = vld [vmem:[%s2748 + $0x80] sm:$0xff]
    %v2766 = vld [vmem:[%s2748 + $0x88] sm:$0xff]
    %v2767 = vld [vmem:[%s2748 + $0x90] sm:$0xff]
    %v2768 = vld [vmem:[%s2748 + $0x98] sm:$0xff]
    %v2769 = vld [vmem:[%s2748 + $0xa0] sm:$0xff]
    %v2770 = vld [vmem:[%s2748 + $0xa8] sm:$0xff]
    %v2771 = vld [vmem:[%s2748 + $0xb0] sm:$0xff]
    %v2772 = vld [vmem:[%s2748 + $0xb8] sm:$0xff]
    %v2773 = vld [vmem:[%s2748 + $0xc0] sm:$0xff]
    %v2774 = vld [vmem:[%s2748 + $0xc8] sm:$0xff]
    %v2775 = vld [vmem:[%s2748 + $0xd0] sm:$0xff]
    %v2776 = vld [vmem:[%s2748 + $0xd8] sm:$0xff]
    %v2777 = vld [vmem:[%s2748 + $0xe0] sm:$0xff]
    %v2778 = vld [vmem:[%s2748 + $0xe8] sm:$0xff]
    %v2779 = vld [vmem:[%s2748 + $0xf0] sm:$0xff]
    %v2780 = vld [vmem:[%s2748 + $0xf8] sm:$0xff]
    %v2813 = vunpack.c.l.b16 %v2749
    %v2814 = vunpack.c.h.b16 %v2749
    %v2815 = vunpack.c.l.b16 %v2750
    %v2816 = vunpack.c.h.b16 %v2750
    %v2817 = vunpack.c.l.b16 %v2751
    %v2818 = vunpack.c.h.b16 %v2751
    %v2819 = vunpack.c.l.b16 %v2752
    %v2820 = vunpack.c.h.b16 %v2752
    %v2821 = vunpack.c.l.b16 %v2753
    %v2822 = vunpack.c.h.b16 %v2753
    %v2823 = vunpack.c.l.b16 %v2754
    %v2824 = vunpack.c.h.b16 %v2754
    %v2825 = vunpack.c.l.b16 %v2755
    %v2826 = vunpack.c.h.b16 %v2755
    %v2827 = vunpack.c.l.b16 %v2756
    %v2828 = vunpack.c.h.b16 %v2756
    %v2829 = vunpack.c.l.b16 %v2757
    %v2830 = vunpack.c.h.b16 %v2757
    %v2831 = vunpack.c.l.b16 %v2758
    %v2832 = vunpack.c.h.b16 %v2758
    %v2833 = vunpack.c.l.b16 %v2759
    %v2834 = vunpack.c.h.b16 %v2759
    %v2835 = vunpack.c.l.b16 %v2760
    %v2836 = vunpack.c.h.b16 %v2760
    %v2837 = vunpack.c.l.b16 %v2761
    %v2838 = vunpack.c.h.b16 %v2761
    %v2839 = vunpack.c.l.b16 %v2762
    %v2840 = vunpack.c.h.b16 %v2762
    %v2841 = vunpack.c.l.b16 %v2763
    %v2842 = vunpack.c.h.b16 %v2763
    %v2843 = vunpack.c.l.b16 %v2764
    %v2844 = vunpack.c.h.b16 %v2764
    %v2845 = vunpack.c.l.b16 %v2765
    %v2846 = vunpack.c.h.b16 %v2765
    %v2847 = vunpack.c.l.b16 %v2766
    %v2848 = vunpack.c.h.b16 %v2766
    %v2849 = vunpack.c.l.b16 %v2767
    %v2850 = vunpack.c.h.b16 %v2767
    %v2851 = vunpack.c.l.b16 %v2768
    %v2852 = vunpack.c.h.b16 %v2768
    %v2853 = vunpack.c.l.b16 %v2769
    %v2854 = vunpack.c.h.b16 %v2769
    %v2855 = vunpack.c.l.b16 %v2770
    %v2856 = vunpack.c.h.b16 %v2770
    %v2857 = vunpack.c.l.b16 %v2771
    %v2858 = vunpack.c.h.b16 %v2771
    %v2859 = vunpack.c.l.b16 %v2772
    %v2860 = vunpack.c.h.b16 %v2772
    %v2861 = vunpack.c.l.b16 %v2773
    %v2862 = vunpack.c.h.b16 %v2773
    %v2863 = vunpack.c.l.b16 %v2774
    %v2864 = vunpack.c.h.b16 %v2774
    %v2865 = vunpack.c.l.b16 %v2775
    %v2866 = vunpack.c.h.b16 %v2775
    %v2867 = vunpack.c.l.b16 %v2776
    %v2868 = vunpack.c.h.b16 %v2776
    %v2869 = vunpack.c.l.b16 %v2777
    %v2870 = vunpack.c.h.b16 %v2777
    %v2871 = vunpack.c.l.b16 %v2778
    %v2872 = vunpack.c.h.b16 %v2778
    %v2873 = vunpack.c.l.b16 %v2779
    %v2874 = vunpack.c.h.b16 %v2779
    %v2875 = vunpack.c.l.b16 %v2780
    %v2876 = vunpack.c.h.b16 %v2780
    %v2877 = vpack.c.b16 %v2815, %v2813
    %v2878 = vpack.c.b16 %v2816, %v2814
    %v2879 = vpack.c.b16 %v2819, %v2817
    %v2880 = vpack.c.b16 %v2820, %v2818
    %v2881 = vpack.c.b16 %v2823, %v2821
    %v2882 = vpack.c.b16 %v2824, %v2822
    %v2883 = vpack.c.b16 %v2827, %v2825
    %v2884 = vpack.c.b16 %v2828, %v2826
    %v2885 = vpack.c.b16 %v2831, %v2829
    %v2886 = vpack.c.b16 %v2832, %v2830
    %v2887 = vpack.c.b16 %v2835, %v2833
    %v2888 = vpack.c.b16 %v2836, %v2834
    %v2889 = vpack.c.b16 %v2839, %v2837
    %v2890 = vpack.c.b16 %v2840, %v2838
    %v2891 = vpack.c.b16 %v2843, %v2841
    %v2892 = vpack.c.b16 %v2844, %v2842
    %v2893 = vpack.c.b16 %v2847, %v2845
    %v2894 = vpack.c.b16 %v2848, %v2846
    %v2895 = vpack.c.b16 %v2851, %v2849
    %v2896 = vpack.c.b16 %v2852, %v2850
    %v2897 = vpack.c.b16 %v2855, %v2853
    %v2898 = vpack.c.b16 %v2856, %v2854
    %v2899 = vpack.c.b16 %v2859, %v2857
    %v2900 = vpack.c.b16 %v2860, %v2858
    %v2901 = vpack.c.b16 %v2863, %v2861
    %v2902 = vpack.c.b16 %v2864, %v2862
    %v2903 = vpack.c.b16 %v2867, %v2865
    %v2904 = vpack.c.b16 %v2868, %v2866
    %v2905 = vpack.c.b16 %v2871, %v2869
    %v2906 = vpack.c.b16 %v2872, %v2870
    %v2907 = vpack.c.b16 %v2875, %v2873
    %v2908 = vpack.c.b16 %v2876, %v2874
    %2941 = vmatpush.bf16.msra.mxu0 %v2891
    %2942 = vmatpush.bf16.msra.mxu0 %v2889
    %2943 = vmatpush.bf16.msra.mxu0 %v2887
    %2944 = vmatpush.bf16.msra.mxu0 %v2885
    %2945 = vmatpush.bf16.msra.mxu0 %v2883
    %2946 = vmatpush.bf16.msra.mxu0 %v2881
    %2947 = vmatpush.bf16.msra.mxu0 %v2879
    %2948 = vmatpush.bf16.msra.mxu0 %v2877
    %2949 = vmatmul.bf16.gmra.mxu0 %v2147
    %v2950 = vpop.f32.mrf.mxu0
    %v2951 = vadd.f32 0.0, %v2950
    %v2952 = vpop.f32.mrf.mxu0
    %2953 = vdwg.mxu0
    %2954 = vmatpush.bf16.msra.mxu0 %v2907
    %2955 = vmatpush.bf16.msra.mxu0 %v2905
    %2956 = vmatpush.bf16.msra.mxu0 %v2903
    %2957 = vmatpush.bf16.msra.mxu0 %v2901
    %2958 = vmatpush.bf16.msra.mxu0 %v2899
    %2959 = vmatpush.bf16.msra.mxu0 %v2897
    %2960 = vmatpush.bf16.msra.mxu0 %v2895
    %2961 = vmatpush.bf16.msra.mxu0 %v2893
    %2962 = vmatmul.bf16.gmra.mxu0 %v2148
    %v2963 = vpop.f32.mrf.mxu0
    %v2964 = vadd.f32 %v2951, %v2963
    %v2965 = vpop.f32.mrf.mxu0
    %2966 = vdwg.mxu0
    %2967 = vmatpush.bf16.msra.mxu0 %v2892
    %2968 = vmatpush.bf16.msra.mxu0 %v2890
    %2969 = vmatpush.bf16.msra.mxu0 %v2888
    %2970 = vmatpush.bf16.msra.mxu0 %v2886
    %2971 = vmatpush.bf16.msra.mxu0 %v2884
    %2972 = vmatpush.bf16.msra.mxu0 %v2882
    %2973 = vmatpush.bf16.msra.mxu0 %v2880
    %2974 = vmatpush.bf16.msra.mxu0 %v2878
    %2975 = vmatmul.bf16.gmra.mxu0 %v2147
    %v2976 = vpop.f32.mrf.mxu0
    %v2977 = vadd.f32 0.0, %v2976
    %v2978 = vpop.f32.mrf.mxu0
    %2979 = vdwg.mxu0
    %2980 = vmatpush.bf16.msra.mxu0 %v2908
    %2981 = vmatpush.bf16.msra.mxu0 %v2906
    %2982 = vmatpush.bf16.msra.mxu0 %v2904
    %2983 = vmatpush.bf16.msra.mxu0 %v2902
    %2984 = vmatpush.bf16.msra.mxu0 %v2900
    %2985 = vmatpush.bf16.msra.mxu0 %v2898
    %2986 = vmatpush.bf16.msra.mxu0 %v2896
    %2987 = vmatpush.bf16.msra.mxu0 %v2894
    %2988 = vmatmul.bf16.gmra.mxu0 %v2148
    %v2989 = vpop.f32.mrf.mxu0
    %v2990 = vadd.f32 %v2977, %v2989
    %v2991 = vpop.f32.mrf.mxu0
    %2992 = vdwg.mxu0
    %s2993 = scalar_lea.vmem %s11, 32
    %v2994 = vld [vmem:[%s2993] sm:$0xff]
    %v2995 = vld [vmem:[%s2993 + $0x8] sm:$0xff]
    %v2997 = vsel %vm2643, %v2994, 0
    %v3000 = vsel %vm2643, %v2995, 0
    %3002 = vmatpush.msra.mxu0 0.0
    %3003 = vmatpush.msra.mxu0 0.0
    %3004 = vmatpush.msra.mxu0 0.0
    %3005 = vmatpush.msra.mxu0 0.0
    %3006 = vmatpush.msra.mxu0 0.0
    %3007 = vmatpush.msra.mxu0 0.0
    %3008 = vmatpush.msra.mxu0 0.0
    %3009 = vmatpush.msra.mxu0 0.0
    %3010 = vmatpush.msra.mxu0 0.0
    %3011 = vmatpush.msra.mxu0 0.0
    %3012 = vmatpush.msra.mxu0 0.0
    %3013 = vmatpush.msra.mxu0 0.0
    %3014 = vmatpush.msra.mxu0 0.0
    %3015 = vmatpush.msra.mxu0 0.0
    %3016 = vmatpush.msra.mxu0 0.0
    %3017 = vmatpush.msra.mxu0 %v2964
    %3018 = vmatmul.f32.gmra.mxu0 %v2997
    %v3019 = vpop.f32.mrf.mxu0
    %v3020 = vadd.f32 0.0, %v3019
    %3021 = vmatmul.f32.gmra.mxu0 %v3000
    %v3022 = vpop.f32.mrf.mxu0
    %v3023 = vadd.f32 0.0, %v3022
    %3024 = vdwg.mxu0
    %3025 = vmatpush.msra.mxu0 0.0
    %3026 = vmatpush.msra.mxu0 0.0
    %3027 = vmatpush.msra.mxu0 0.0
    %3028 = vmatpush.msra.mxu0 0.0
    %3029 = vmatpush.msra.mxu0 0.0
    %3030 = vmatpush.msra.mxu0 0.0
    %3031 = vmatpush.msra.mxu0 0.0
    %3032 = vmatpush.msra.mxu0 0.0
    %3033 = vmatpush.msra.mxu0 0.0
    %3034 = vmatpush.msra.mxu0 0.0
    %3035 = vmatpush.msra.mxu0 0.0
    %3036 = vmatpush.msra.mxu0 0.0
    %3037 = vmatpush.msra.mxu0 0.0
    %3038 = vmatpush.msra.mxu0 0.0
    %3039 = vmatpush.msra.mxu0 0.0
    %3040 = vmatpush.msra.mxu0 %v2990
    %3041 = vmatmul.f32.gmra.mxu0 %v2997
    %v3042 = vpop.f32.mrf.mxu0
    %v3043 = vadd.f32 0.0, %v3042
    %3044 = vmatmul.f32.gmra.mxu0 %v3000
    %v3045 = vpop.f32.mrf.mxu0
    %v3046 = vadd.f32 0.0, %v3045
    %3047 = vdwg.mxu0
    %v3048 = vadd.f32 %v2720, %v3020
    %v3049 = vadd.f32 %v2743, %v3043
    %v3050 = vadd.f32 %v2723, %v3023
    %v3051 = vadd.f32 %v2746, %v3046
    %s3052 = scalar_lea.vmem [#allocation6], 768
    %v3053 = vld [vmem:[%s3052] sm:$0xff]
    %v3054 = vld [vmem:[%s3052 + $0x8] sm:$0xff]
    %v3055 = vld [vmem:[%s3052 + $0x10] sm:$0xff]
    %v3056 = vld [vmem:[%s3052 + $0x18] sm:$0xff]
    %v3057 = vld [vmem:[%s3052 + $0x20] sm:$0xff]
    %v3058 = vld [vmem:[%s3052 + $0x28] sm:$0xff]
    %v3059 = vld [vmem:[%s3052 + $0x30] sm:$0xff]
    %v3060 = vld [vmem:[%s3052 + $0x38] sm:$0xff]
    %v3061 = vld [vmem:[%s3052 + $0x40] sm:$0xff]
    %v3062 = vld [vmem:[%s3052 + $0x48] sm:$0xff]
    %v3063 = vld [vmem:[%s3052 + $0x50] sm:$0xff]
    %v3064 = vld [vmem:[%s3052 + $0x58] sm:$0xff]
    %v3065 = vld [vmem:[%s3052 + $0x60] sm:$0xff]
    %v3066 = vld [vmem:[%s3052 + $0x68] sm:$0xff]
    %v3067 = vld [vmem:[%s3052 + $0x70] sm:$0xff]
    %v3068 = vld [vmem:[%s3052 + $0x78] sm:$0xff]
    %v3069 = vld [vmem:[%s3052 + $0x80] sm:$0xff]
    %v3070 = vld [vmem:[%s3052 + $0x88] sm:$0xff]
    %v3071 = vld [vmem:[%s3052 + $0x90] sm:$0xff]
    %v3072 = vld [vmem:[%s3052 + $0x98] sm:$0xff]
    %v3073 = vld [vmem:[%s3052 + $0xa0] sm:$0xff]
    %v3074 = vld [vmem:[%s3052 + $0xa8] sm:$0xff]
    %v3075 = vld [vmem:[%s3052 + $0xb0] sm:$0xff]
    %v3076 = vld [vmem:[%s3052 + $0xb8] sm:$0xff]
    %v3077 = vld [vmem:[%s3052 + $0xc0] sm:$0xff]
    %v3078 = vld [vmem:[%s3052 + $0xc8] sm:$0xff]
    %v3079 = vld [vmem:[%s3052 + $0xd0] sm:$0xff]
    %v3080 = vld [vmem:[%s3052 + $0xd8] sm:$0xff]
    %v3081 = vld [vmem:[%s3052 + $0xe0] sm:$0xff]
    %v3082 = vld [vmem:[%s3052 + $0xe8] sm:$0xff]
    %v3083 = vld [vmem:[%s3052 + $0xf0] sm:$0xff]
    %v3084 = vld [vmem:[%s3052 + $0xf8] sm:$0xff]
    %v3117 = vunpack.c.l.b16 %v3053
    %v3118 = vunpack.c.h.b16 %v3053
    %v3119 = vunpack.c.l.b16 %v3054
    %v3120 = vunpack.c.h.b16 %v3054
    %v3121 = vunpack.c.l.b16 %v3055
    %v3122 = vunpack.c.h.b16 %v3055
    %v3123 = vunpack.c.l.b16 %v3056
    %v3124 = vunpack.c.h.b16 %v3056
    %v3125 = vunpack.c.l.b16 %v3057
    %v3126 = vunpack.c.h.b16 %v3057
    %v3127 = vunpack.c.l.b16 %v3058
    %v3128 = vunpack.c.h.b16 %v3058
    %v3129 = vunpack.c.l.b16 %v3059
    %v3130 = vunpack.c.h.b16 %v3059
    %v3131 = vunpack.c.l.b16 %v3060
    %v3132 = vunpack.c.h.b16 %v3060
    %v3133 = vunpack.c.l.b16 %v3061
    %v3134 = vunpack.c.h.b16 %v3061
    %v3135 = vunpack.c.l.b16 %v3062
    %v3136 = vunpack.c.h.b16 %v3062
    %v3137 = vunpack.c.l.b16 %v3063
    %v3138 = vunpack.c.h.b16 %v3063
    %v3139 = vunpack.c.l.b16 %v3064
    %v3140 = vunpack.c.h.b16 %v3064
    %v3141 = vunpack.c.l.b16 %v3065
    %v3142 = vunpack.c.h.b16 %v3065
    %v3143 = vunpack.c.l.b16 %v3066
    %v3144 = vunpack.c.h.b16 %v3066
    %v3145 = vunpack.c.l.b16 %v3067
    %v3146 = vunpack.c.h.b16 %v3067
    %v3147 = vunpack.c.l.b16 %v3068
    %v3148 = vunpack.c.h.b16 %v3068
    %v3149 = vunpack.c.l.b16 %v3069
    %v3150 = vunpack.c.h.b16 %v3069
    %v3151 = vunpack.c.l.b16 %v3070
    %v3152 = vunpack.c.h.b16 %v3070
    %v3153 = vunpack.c.l.b16 %v3071
    %v3154 = vunpack.c.h.b16 %v3071
    %v3155 = vunpack.c.l.b16 %v3072
    %v3156 = vunpack.c.h.b16 %v3072
    %v3157 = vunpack.c.l.b16 %v3073
    %v3158 = vunpack.c.h.b16 %v3073
    %v3159 = vunpack.c.l.b16 %v3074
    %v3160 = vunpack.c.h.b16 %v3074
    %v3161 = vunpack.c.l.b16 %v3075
    %v3162 = vunpack.c.h.b16 %v3075
    %v3163 = vunpack.c.l.b16 %v3076
    %v3164 = vunpack.c.h.b16 %v3076
    %v3165 = vunpack.c.l.b16 %v3077
    %v3166 = vunpack.c.h.b16 %v3077
    %v3167 = vunpack.c.l.b16 %v3078
    %v3168 = vunpack.c.h.b16 %v3078
    %v3169 = vunpack.c.l.b16 %v3079
    %v3170 = vunpack.c.h.b16 %v3079
    %v3171 = vunpack.c.l.b16 %v3080
    %v3172 = vunpack.c.h.b16 %v3080
    %v3173 = vunpack.c.l.b16 %v3081
    %v3174 = vunpack.c.h.b16 %v3081
    %v3175 = vunpack.c.l.b16 %v3082
    %v3176 = vunpack.c.h.b16 %v3082
    %v3177 = vunpack.c.l.b16 %v3083
    %v3178 = vunpack.c.h.b16 %v3083
    %v3179 = vunpack.c.l.b16 %v3084
    %v3180 = vunpack.c.h.b16 %v3084
    %v3181 = vpack.c.b16 %v3119, %v3117
    %v3182 = vpack.c.b16 %v3120, %v3118
    %v3183 = vpack.c.b16 %v3123, %v3121
    %v3184 = vpack.c.b16 %v3124, %v3122
    %v3185 = vpack.c.b16 %v3127, %v3125
    %v3186 = vpack.c.b16 %v3128, %v3126
    %v3187 = vpack.c.b16 %v3131, %v3129
    %v3188 = vpack.c.b16 %v3132, %v3130
    %v3189 = vpack.c.b16 %v3135, %v3133
    %v3190 = vpack.c.b16 %v3136, %v3134
    %v3191 = vpack.c.b16 %v3139, %v3137
    %v3192 = vpack.c.b16 %v3140, %v3138
    %v3193 = vpack.c.b16 %v3143, %v3141
    %v3194 = vpack.c.b16 %v3144, %v3142
    %v3195 = vpack.c.b16 %v3147, %v3145
    %v3196 = vpack.c.b16 %v3148, %v3146
    %v3197 = vpack.c.b16 %v3151, %v3149
    %v3198 = vpack.c.b16 %v3152, %v3150
    %v3199 = vpack.c.b16 %v3155, %v3153
    %v3200 = vpack.c.b16 %v3156, %v3154
    %v3201 = vpack.c.b16 %v3159, %v3157
    %v3202 = vpack.c.b16 %v3160, %v3158
    %v3203 = vpack.c.b16 %v3163, %v3161
    %v3204 = vpack.c.b16 %v3164, %v3162
    %v3205 = vpack.c.b16 %v3167, %v3165
    %v3206 = vpack.c.b16 %v3168, %v3166
    %v3207 = vpack.c.b16 %v3171, %v3169
    %v3208 = vpack.c.b16 %v3172, %v3170
    %v3209 = vpack.c.b16 %v3175, %v3173
    %v3210 = vpack.c.b16 %v3176, %v3174
    %v3211 = vpack.c.b16 %v3179, %v3177
    %v3212 = vpack.c.b16 %v3180, %v3178
    %3245 = vmatpush.bf16.msra.mxu0 %v3195
    %3246 = vmatpush.bf16.msra.mxu0 %v3193
    %3247 = vmatpush.bf16.msra.mxu0 %v3191
    %3248 = vmatpush.bf16.msra.mxu0 %v3189
    %3249 = vmatpush.bf16.msra.mxu0 %v3187
    %3250 = vmatpush.bf16.msra.mxu0 %v3185
    %3251 = vmatpush.bf16.msra.mxu0 %v3183
    %3252 = vmatpush.bf16.msra.mxu0 %v3181
    %3253 = vmatmul.bf16.gmra.mxu0 %v2147
    %v3254 = vpop.f32.mrf.mxu0
    %v3255 = vadd.f32 0.0, %v3254
    %v3256 = vpop.f32.mrf.mxu0
    %3257 = vdwg.mxu0
    %3258 = vmatpush.bf16.msra.mxu0 %v3211
    %3259 = vmatpush.bf16.msra.mxu0 %v3209
    %3260 = vmatpush.bf16.msra.mxu0 %v3207
    %3261 = vmatpush.bf16.msra.mxu0 %v3205
    %3262 = vmatpush.bf16.msra.mxu0 %v3203
    %3263 = vmatpush.bf16.msra.mxu0 %v3201
    %3264 = vmatpush.bf16.msra.mxu0 %v3199
    %3265 = vmatpush.bf16.msra.mxu0 %v3197
    %3266 = vmatmul.bf16.gmra.mxu0 %v2148
    %v3267 = vpop.f32.mrf.mxu0
    %v3268 = vadd.f32 %v3255, %v3267
    %v3269 = vpop.f32.mrf.mxu0
    %3270 = vdwg.mxu0
    %3271 = vmatpush.bf16.msra.mxu0 %v3196
    %3272 = vmatpush.bf16.msra.mxu0 %v3194
    %3273 = vmatpush.bf16.msra.mxu0 %v3192
    %3274 = vmatpush.bf16.msra.mxu0 %v3190
    %3275 = vmatpush.bf16.msra.mxu0 %v3188
    %3276 = vmatpush.bf16.msra.mxu0 %v3186
    %3277 = vmatpush.bf16.msra.mxu0 %v3184
    %3278 = vmatpush.bf16.msra.mxu0 %v3182
    %3279 = vmatmul.bf16.gmra.mxu0 %v2147
    %v3280 = vpop.f32.mrf.mxu0
    %v3281 = vadd.f32 0.0, %v3280
    %v3282 = vpop.f32.mrf.mxu0
    %3283 = vdwg.mxu0
    %3284 = vmatpush.bf16.msra.mxu0 %v3212
    %3285 = vmatpush.bf16.msra.mxu0 %v3210
    %3286 = vmatpush.bf16.msra.mxu0 %v3208
    %3287 = vmatpush.bf16.msra.mxu0 %v3206
    %3288 = vmatpush.bf16.msra.mxu0 %v3204
    %3289 = vmatpush.bf16.msra.mxu0 %v3202
    %3290 = vmatpush.bf16.msra.mxu0 %v3200
    %3291 = vmatpush.bf16.msra.mxu0 %v3198
    %3292 = vmatmul.bf16.gmra.mxu0 %v2148
    %v3293 = vpop.f32.mrf.mxu0
    %v3294 = vadd.f32 %v3281, %v3293
    %v3295 = vpop.f32.mrf.mxu0
    %3296 = vdwg.mxu0
    %s3297 = scalar_lea.vmem %s11, 48
    %v3298 = vld [vmem:[%s3297] sm:$0xff]
    %v3299 = vld [vmem:[%s3297 + $0x8] sm:$0xff]
    %v3301 = vsel %vm2643, %v3298, 0
    %v3304 = vsel %vm2643, %v3299, 0
    %3306 = vmatpush.msra.mxu0 0.0
    %3307 = vmatpush.msra.mxu0 0.0
    %3308 = vmatpush.msra.mxu0 0.0
    %3309 = vmatpush.msra.mxu0 0.0
    %3310 = vmatpush.msra.mxu0 0.0
    %3311 = vmatpush.msra.mxu0 0.0
    %3312 = vmatpush.msra.mxu0 0.0
    %3313 = vmatpush.msra.mxu0 0.0
    %3314 = vmatpush.msra.mxu0 0.0
    %3315 = vmatpush.msra.mxu0 0.0
    %3316 = vmatpush.msra.mxu0 0.0
    %3317 = vmatpush.msra.mxu0 0.0
    %3318 = vmatpush.msra.mxu0 0.0
    %3319 = vmatpush.msra.mxu0 0.0
    %3320 = vmatpush.msra.mxu0 0.0
    %3321 = vmatpush.msra.mxu0 %v3268
    %3322 = vmatmul.f32.gmra.mxu0 %v3301
    %v3323 = vpop.f32.mrf.mxu0
    %v3324 = vadd.f32 0.0, %v3323
    %3325 = vmatmul.f32.gmra.mxu0 %v3304
    %v3326 = vpop.f32.mrf.mxu0
    %v3327 = vadd.f32 0.0, %v3326
    %3328 = vdwg.mxu0
    %3329 = vmatpush.msra.mxu0 0.0
    %3330 = vmatpush.msra.mxu0 0.0
    %3331 = vmatpush.msra.mxu0 0.0
    %3332 = vmatpush.msra.mxu0 0.0
    %3333 = vmatpush.msra.mxu0 0.0
    %3334 = vmatpush.msra.mxu0 0.0
    %3335 = vmatpush.msra.mxu0 0.0
    %3336 = vmatpush.msra.mxu0 0.0
    %3337 = vmatpush.msra.mxu0 0.0
    %3338 = vmatpush.msra.mxu0 0.0
    %3339 = vmatpush.msra.mxu0 0.0
    %3340 = vmatpush.msra.mxu0 0.0
    %3341 = vmatpush.msra.mxu0 0.0
    %3342 = vmatpush.msra.mxu0 0.0
    %3343 = vmatpush.msra.mxu0 0.0
    %3344 = vmatpush.msra.mxu0 %v3294
    %3345 = vmatmul.f32.gmra.mxu0 %v3301
    %v3346 = vpop.f32.mrf.mxu0
    %v3347 = vadd.f32 0.0, %v3346
    %3348 = vmatmul.f32.gmra.mxu0 %v3304
    %v3349 = vpop.f32.mrf.mxu0
    %v3350 = vadd.f32 0.0, %v3349
    %3351 = vdwg.mxu0
    %v3352 = vadd.f32 %v3048, %v3324
    %v3353 = vadd.f32 %v3049, %v3347
    %v3354 = vadd.f32 %v3050, %v3327
    %v3355 = vadd.f32 %v3051, %v3350
    %s3356 = scalar_lea.vmem [#allocation6], 1024
    %v3357 = vld [vmem:[%s3356] sm:$0xff]
    %v3358 = vld [vmem:[%s3356 + $0x8] sm:$0xff]
    %v3359 = vld [vmem:[%s3356 + $0x10] sm:$0xff]
    %v3360 = vld [vmem:[%s3356 + $0x18] sm:$0xff]
    %v3361 = vld [vmem:[%s3356 + $0x20] sm:$0xff]
    %v3362 = vld [vmem:[%s3356 + $0x28] sm:$0xff]
    %v3363 = vld [vmem:[%s3356 + $0x30] sm:$0xff]
    %v3364 = vld [vmem:[%s3356 + $0x38] sm:$0xff]
    %v3365 = vld [vmem:[%s3356 + $0x40] sm:$0xff]
    %v3366 = vld [vmem:[%s3356 + $0x48] sm:$0xff]
    %v3367 = vld [vmem:[%s3356 + $0x50] sm:$0xff]
    %v3368 = vld [vmem:[%s3356 + $0x58] sm:$0xff]
    %v3369 = vld [vmem:[%s3356 + $0x60] sm:$0xff]
    %v3370 = vld [vmem:[%s3356 + $0x68] sm:$0xff]
    %v3371 = vld [vmem:[%s3356 + $0x70] sm:$0xff]
    %v3372 = vld [vmem:[%s3356 + $0x78] sm:$0xff]
    %v3373 = vld [vmem:[%s3356 + $0x80] sm:$0xff]
    %v3374 = vld [vmem:[%s3356 + $0x88] sm:$0xff]
    %v3375 = vld [vmem:[%s3356 + $0x90] sm:$0xff]
    %v3376 = vld [vmem:[%s3356 + $0x98] sm:$0xff]
    %v3377 = vld [vmem:[%s3356 + $0xa0] sm:$0xff]
    %v3378 = vld [vmem:[%s3356 + $0xa8] sm:$0xff]
    %v3379 = vld [vmem:[%s3356 + $0xb0] sm:$0xff]
    %v3380 = vld [vmem:[%s3356 + $0xb8] sm:$0xff]
    %v3381 = vld [vmem:[%s3356 + $0xc0] sm:$0xff]
    %v3382 = vld [vmem:[%s3356 + $0xc8] sm:$0xff]
    %v3383 = vld [vmem:[%s3356 + $0xd0] sm:$0xff]
    %v3384 = vld [vmem:[%s3356 + $0xd8] sm:$0xff]
    %v3385 = vld [vmem:[%s3356 + $0xe0] sm:$0xff]
    %v3386 = vld [vmem:[%s3356 + $0xe8] sm:$0xff]
    %v3387 = vld [vmem:[%s3356 + $0xf0] sm:$0xff]
    %v3388 = vld [vmem:[%s3356 + $0xf8] sm:$0xff]
    %v3421 = vunpack.c.l.b16 %v3357
    %v3422 = vunpack.c.h.b16 %v3357
    %v3423 = vunpack.c.l.b16 %v3358
    %v3424 = vunpack.c.h.b16 %v3358
    %v3425 = vunpack.c.l.b16 %v3359
    %v3426 = vunpack.c.h.b16 %v3359
    %v3427 = vunpack.c.l.b16 %v3360
    %v3428 = vunpack.c.h.b16 %v3360
    %v3429 = vunpack.c.l.b16 %v3361
    %v3430 = vunpack.c.h.b16 %v3361
    %v3431 = vunpack.c.l.b16 %v3362
    %v3432 = vunpack.c.h.b16 %v3362
    %v3433 = vunpack.c.l.b16 %v3363
    %v3434 = vunpack.c.h.b16 %v3363
    %v3435 = vunpack.c.l.b16 %v3364
    %v3436 = vunpack.c.h.b16 %v3364
    %v3437 = vunpack.c.l.b16 %v3365
    %v3438 = vunpack.c.h.b16 %v3365
    %v3439 = vunpack.c.l.b16 %v3366
    %v3440 = vunpack.c.h.b16 %v3366
    %v3441 = vunpack.c.l.b16 %v3367
    %v3442 = vunpack.c.h.b16 %v3367
    %v3443 = vunpack.c.l.b16 %v3368
    %v3444 = vunpack.c.h.b16 %v3368
    %v3445 = vunpack.c.l.b16 %v3369
    %v3446 = vunpack.c.h.b16 %v3369
    %v3447 = vunpack.c.l.b16 %v3370
    %v3448 = vunpack.c.h.b16 %v3370
    %v3449 = vunpack.c.l.b16 %v3371
    %v3450 = vunpack.c.h.b16 %v3371
    %v3451 = vunpack.c.l.b16 %v3372
    %v3452 = vunpack.c.h.b16 %v3372
    %v3453 = vunpack.c.l.b16 %v3373
    %v3454 = vunpack.c.h.b16 %v3373
    %v3455 = vunpack.c.l.b16 %v3374
    %v3456 = vunpack.c.h.b16 %v3374
    %v3457 = vunpack.c.l.b16 %v3375
    %v3458 = vunpack.c.h.b16 %v3375
    %v3459 = vunpack.c.l.b16 %v3376
    %v3460 = vunpack.c.h.b16 %v3376
    %v3461 = vunpack.c.l.b16 %v3377
    %v3462 = vunpack.c.h.b16 %v3377
    %v3463 = vunpack.c.l.b16 %v3378
    %v3464 = vunpack.c.h.b16 %v3378
    %v3465 = vunpack.c.l.b16 %v3379
    %v3466 = vunpack.c.h.b16 %v3379
    %v3467 = vunpack.c.l.b16 %v3380
    %v3468 = vunpack.c.h.b16 %v3380
    %v3469 = vunpack.c.l.b16 %v3381
    %v3470 = vunpack.c.h.b16 %v3381
    %v3471 = vunpack.c.l.b16 %v3382
    %v3472 = vunpack.c.h.b16 %v3382
    %v3473 = vunpack.c.l.b16 %v3383
    %v3474 = vunpack.c.h.b16 %v3383
    %v3475 = vunpack.c.l.b16 %v3384
    %v3476 = vunpack.c.h.b16 %v3384
    %v3477 = vunpack.c.l.b16 %v3385
    %v3478 = vunpack.c.h.b16 %v3385
    %v3479 = vunpack.c.l.b16 %v3386
    %v3480 = vunpack.c.h.b16 %v3386
    %v3481 = vunpack.c.l.b16 %v3387
    %v3482 = vunpack.c.h.b16 %v3387
    %v3483 = vunpack.c.l.b16 %v3388
    %v3484 = vunpack.c.h.b16 %v3388
    %v3485 = vpack.c.b16 %v3423, %v3421
    %v3486 = vpack.c.b16 %v3424, %v3422
    %v3487 = vpack.c.b16 %v3427, %v3425
    %v3488 = vpack.c.b16 %v3428, %v3426
    %v3489 = vpack.c.b16 %v3431, %v3429
    %v3490 = vpack.c.b16 %v3432, %v3430
    %v3491 = vpack.c.b16 %v3435, %v3433
    %v3492 = vpack.c.b16 %v3436, %v3434
    %v3493 = vpack.c.b16 %v3439, %v3437
    %v3494 = vpack.c.b16 %v3440, %v3438
    %v3495 = vpack.c.b16 %v3443, %v3441
    %v3496 = vpack.c.b16 %v3444, %v3442
    %v3497 = vpack.c.b16 %v3447, %v3445
    %v3498 = vpack.c.b16 %v3448, %v3446
    %v3499 = vpack.c.b16 %v3451, %v3449
    %v3500 = vpack.c.b16 %v3452, %v3450
    %v3501 = vpack.c.b16 %v3455, %v3453
    %v3502 = vpack.c.b16 %v3456, %v3454
    %v3503 = vpack.c.b16 %v3459, %v3457
    %v3504 = vpack.c.b16 %v3460, %v3458
    %v3505 = vpack.c.b16 %v3463, %v3461
    %v3506 = vpack.c.b16 %v3464, %v3462
    %v3507 = vpack.c.b16 %v3467, %v3465
    %v3508 = vpack.c.b16 %v3468, %v3466
    %v3509 = vpack.c.b16 %v3471, %v3469
    %v3510 = vpack.c.b16 %v3472, %v3470
    %v3511 = vpack.c.b16 %v3475, %v3473
    %v3512 = vpack.c.b16 %v3476, %v3474
    %v3513 = vpack.c.b16 %v3479, %v3477
    %v3514 = vpack.c.b16 %v3480, %v3478
    %v3515 = vpack.c.b16 %v3483, %v3481
    %v3516 = vpack.c.b16 %v3484, %v3482
    %3549 = vmatpush.bf16.msra.mxu0 %v3499
    %3550 = vmatpush.bf16.msra.mxu0 %v3497
    %3551 = vmatpush.bf16.msra.mxu0 %v3495
    %3552 = vmatpush.bf16.msra.mxu0 %v3493
    %3553 = vmatpush.bf16.msra.mxu0 %v3491
    %3554 = vmatpush.bf16.msra.mxu0 %v3489
    %3555 = vmatpush.bf16.msra.mxu0 %v3487
    %3556 = vmatpush.bf16.msra.mxu0 %v3485
    %3557 = vmatmul.bf16.gmra.mxu0 %v2147
    %v3558 = vpop.f32.mrf.mxu0
    %v3559 = vadd.f32 0.0, %v3558
    %v3560 = vpop.f32.mrf.mxu0
    %3561 = vdwg.mxu0
    %3562 = vmatpush.bf16.msra.mxu0 %v3515
    %3563 = vmatpush.bf16.msra.mxu0 %v3513
    %3564 = vmatpush.bf16.msra.mxu0 %v3511
    %3565 = vmatpush.bf16.msra.mxu0 %v3509
    %3566 = vmatpush.bf16.msra.mxu0 %v3507
    %3567 = vmatpush.bf16.msra.mxu0 %v3505
    %3568 = vmatpush.bf16.msra.mxu0 %v3503
    %3569 = vmatpush.bf16.msra.mxu0 %v3501
    %3570 = vmatmul.bf16.gmra.mxu0 %v2148
    %v3571 = vpop.f32.mrf.mxu0
    %v3572 = vadd.f32 %v3559, %v3571
    %v3573 = vpop.f32.mrf.mxu0
    %3574 = vdwg.mxu0
    %3575 = vmatpush.bf16.msra.mxu0 %v3500
    %3576 = vmatpush.bf16.msra.mxu0 %v3498
    %3577 = vmatpush.bf16.msra.mxu0 %v3496
    %3578 = vmatpush.bf16.msra.mxu0 %v3494
    %3579 = vmatpush.bf16.msra.mxu0 %v3492
    %3580 = vmatpush.bf16.msra.mxu0 %v3490
    %3581 = vmatpush.bf16.msra.mxu0 %v3488
    %3582 = vmatpush.bf16.msra.mxu0 %v3486
    %3583 = vmatmul.bf16.gmra.mxu0 %v2147
    %v3584 = vpop.f32.mrf.mxu0
    %v3585 = vadd.f32 0.0, %v3584
    %v3586 = vpop.f32.mrf.mxu0
    %3587 = vdwg.mxu0
    %3588 = vmatpush.bf16.msra.mxu0 %v3516
    %3589 = vmatpush.bf16.msra.mxu0 %v3514
    %3590 = vmatpush.bf16.msra.mxu0 %v3512
    %3591 = vmatpush.bf16.msra.mxu0 %v3510
    %3592 = vmatpush.bf16.msra.mxu0 %v3508
    %3593 = vmatpush.bf16.msra.mxu0 %v3506
    %3594 = vmatpush.bf16.msra.mxu0 %v3504
    %3595 = vmatpush.bf16.msra.mxu0 %v3502
    %3596 = vmatmul.bf16.gmra.mxu0 %v2148
    %v3597 = vpop.f32.mrf.mxu0
    %v3598 = vadd.f32 %v3585, %v3597
    %v3599 = vpop.f32.mrf.mxu0
    %3600 = vdwg.mxu0
    %s3601 = scalar_lea.vmem %s11, 64
    %v3602 = vld [vmem:[%s3601] sm:$0xff]
    %v3603 = vld [vmem:[%s3601 + $0x8] sm:$0xff]
    %v3605 = vsel %vm2643, %v3602, 0
    %v3608 = vsel %vm2643, %v3603, 0
    %3610 = vmatpush.msra.mxu0 0.0
    %3611 = vmatpush.msra.mxu0 0.0
    %3612 = vmatpush.msra.mxu0 0.0
    %3613 = vmatpush.msra.mxu0 0.0
    %3614 = vmatpush.msra.mxu0 0.0
    %3615 = vmatpush.msra.mxu0 0.0
    %3616 = vmatpush.msra.mxu0 0.0
    %3617 = vmatpush.msra.mxu0 0.0
    %3618 = vmatpush.msra.mxu0 0.0
    %3619 = vmatpush.msra.mxu0 0.0
    %3620 = vmatpush.msra.mxu0 0.0
    %3621 = vmatpush.msra.mxu0 0.0
    %3622 = vmatpush.msra.mxu0 0.0
    %3623 = vmatpush.msra.mxu0 0.0
    %3624 = vmatpush.msra.mxu0 0.0
    %3625 = vmatpush.msra.mxu0 %v3572
    %3626 = vmatmul.f32.gmra.mxu0 %v3605
    %v3627 = vpop.f32.mrf.mxu0
    %v3628 = vadd.f32 0.0, %v3627
    %3629 = vmatmul.f32.gmra.mxu0 %v3608
    %v3630 = vpop.f32.mrf.mxu0
    %v3631 = vadd.f32 0.0, %v3630
    %3632 = vdwg.mxu0
    %3633 = vmatpush.msra.mxu0 0.0
    %3634 = vmatpush.msra.mxu0 0.0
    %3635 = vmatpush.msra.mxu0 0.0
    %3636 = vmatpush.msra.mxu0 0.0
    %3637 = vmatpush.msra.mxu0 0.0
    %3638 = vmatpush.msra.mxu0 0.0
    %3639 = vmatpush.msra.mxu0 0.0
    %3640 = vmatpush.msra.mxu0 0.0
    %3641 = vmatpush.msra.mxu0 0.0
    %3642 = vmatpush.msra.mxu0 0.0
    %3643 = vmatpush.msra.mxu0 0.0
    %3644 = vmatpush.msra.mxu0 0.0
    %3645 = vmatpush.msra.mxu0 0.0
    %3646 = vmatpush.msra.mxu0 0.0
    %3647 = vmatpush.msra.mxu0 0.0
    %3648 = vmatpush.msra.mxu0 %v3598
    %3649 = vmatmul.f32.gmra.mxu0 %v3605
    %v3650 = vpop.f32.mrf.mxu0
    %v3651 = vadd.f32 0.0, %v3650
    %3652 = vmatmul.f32.gmra.mxu0 %v3608
    %v3653 = vpop.f32.mrf.mxu0
    %v3654 = vadd.f32 0.0, %v3653
    %3655 = vdwg.mxu0
    %v3656 = vadd.f32 %v3352, %v3628
    %v3657 = vadd.f32 %v3353, %v3651
    %v3658 = vadd.f32 %v3354, %v3631
    %v3659 = vadd.f32 %v3355, %v3654
    %v3660 = vld [vmem:[%s13] sm:$0x3]
    %v3662 = vperm.slane %v3660, 0
    %v3663 = vperm.slane %v3660, 1
    %v3666 = vadd.f32 %v3656, %v3662
    %v3667 = vadd.f32 %v3657, %v3663
    %v3668 = vadd.f32 %v3658, %v3662
    %v3669 = vadd.f32 %v3659, %v3663
    %vm3670 = vcmp.gt.f32.partialorder %v3666, 0.0
    %vm3671 = vcmp.gt.f32.partialorder %v3667, 0.0
    %vm3672 = vcmp.gt.f32.partialorder %v3668, 0.0
    %vm3673 = vcmp.gt.f32.partialorder %v3669, 0.0
    %v3674 = vmul.f32 %v3666, 1.442695
    %v3675 = vpow.pop %v3674
    %v3676 = vmul.f32 %v3667, 1.442695
    %v3677 = vpow.pop %v3676
    %v3678 = vmul.f32 %v3668, 1.442695
    %v3679 = vpow.pop %v3678
    %v3680 = vmul.f32 %v3669, 1.442695
    %v3681 = vpow.pop %v3680
    %v3682 = vsub.f32 %v3675, 1.0
    %v3683 = vsub.f32 %v3677, 1.0
    %v3684 = vsub.f32 %v3679, 1.0
    %v3685 = vsub.f32 %v3681, 1.0
    %v3686 = vsel %vm3670, %v3666, %v3682
    %v3687 = vsel %vm3671, %v3667, %v3683
    %v3688 = vsel %vm3672, %v3668, %v3684
    %v3689 = vsel %vm3673, %v3669, %v3685
    %v3690 = vpack.c.bf16 %v3688, %v3686
    %v3691 = vpack.c.bf16 %v3689, %v3687
    %v3692 = vld [vmem:[#allocation7] sm:$0xff]
    %v3693 = vld [vmem:[#allocation7 + $0x8] sm:$0xff]
    %v3694 = vld [vmem:[#allocation7 + $0x10] sm:$0xff]
    %v3695 = vld [vmem:[#allocation7 + $0x18] sm:$0xff]
    %v3696 = vld [vmem:[#allocation7 + $0x20] sm:$0xff]
    %v3697 = vld [vmem:[#allocation7 + $0x28] sm:$0xff]
    %v3698 = vld [vmem:[#allocation7 + $0x30] sm:$0xff]
    %v3699 = vld [vmem:[#allocation7 + $0x38] sm:$0xff]
    %v3700 = vld [vmem:[#allocation7 + $0x40] sm:$0xff]
    %v3701 = vld [vmem:[#allocation7 + $0x48] sm:$0xff]
    %v3702 = vld [vmem:[#allocation7 + $0x50] sm:$0xff]
    %v3703 = vld [vmem:[#allocation7 + $0x58] sm:$0xff]
    %v3704 = vld [vmem:[#allocation7 + $0x60] sm:$0xff]
    %v3705 = vld [vmem:[#allocation7 + $0x68] sm:$0xff]
    %v3706 = vld [vmem:[#allocation7 + $0x70] sm:$0xff]
    %v3707 = vld [vmem:[#allocation7 + $0x78] sm:$0xff]
    %v3708 = vld [vmem:[#allocation7 + $0x80] sm:$0xff]
    %v3709 = vld [vmem:[#allocation7 + $0x88] sm:$0xff]
    %v3710 = vld [vmem:[#allocation7 + $0x90] sm:$0xff]
    %v3711 = vld [vmem:[#allocation7 + $0x98] sm:$0xff]
    %v3712 = vld [vmem:[#allocation7 + $0xa0] sm:$0xff]
    %v3713 = vld [vmem:[#allocation7 + $0xa8] sm:$0xff]
    %v3714 = vld [vmem:[#allocation7 + $0xb0] sm:$0xff]
    %v3715 = vld [vmem:[#allocation7 + $0xb8] sm:$0xff]
    %v3716 = vld [vmem:[#allocation7 + $0xc0] sm:$0xff]
    %v3717 = vld [vmem:[#allocation7 + $0xc8] sm:$0xff]
    %v3718 = vld [vmem:[#allocation7 + $0xd0] sm:$0xff]
    %v3719 = vld [vmem:[#allocation7 + $0xd8] sm:$0xff]
    %v3720 = vld [vmem:[#allocation7 + $0xe0] sm:$0xff]
    %v3721 = vld [vmem:[#allocation7 + $0xe8] sm:$0xff]
    %v3722 = vld [vmem:[#allocation7 + $0xf0] sm:$0xff]
    %v3723 = vld [vmem:[#allocation7 + $0xf8] sm:$0xff]
    %v3756 = vunpack.c.l.b16 %v3692
    %v3757 = vunpack.c.h.b16 %v3692
    %v3758 = vunpack.c.l.b16 %v3693
    %v3759 = vunpack.c.h.b16 %v3693
    %v3760 = vunpack.c.l.b16 %v3694
    %v3761 = vunpack.c.h.b16 %v3694
    %v3762 = vunpack.c.l.b16 %v3695
    %v3763 = vunpack.c.h.b16 %v3695
    %v3764 = vunpack.c.l.b16 %v3696
    %v3765 = vunpack.c.h.b16 %v3696
    %v3766 = vunpack.c.l.b16 %v3697
    %v3767 = vunpack.c.h.b16 %v3697
    %v3768 = vunpack.c.l.b16 %v3698
    %v3769 = vunpack.c.h.b16 %v3698
    %v3770 = vunpack.c.l.b16 %v3699
    %v3771 = vunpack.c.h.b16 %v3699
    %v3772 = vunpack.c.l.b16 %v3700
    %v3773 = vunpack.c.h.b16 %v3700
    %v3774 = vunpack.c.l.b16 %v3701
    %v3775 = vunpack.c.h.b16 %v3701
    %v3776 = vunpack.c.l.b16 %v3702
    %v3777 = vunpack.c.h.b16 %v3702
    %v3778 = vunpack.c.l.b16 %v3703
    %v3779 = vunpack.c.h.b16 %v3703
    %v3780 = vunpack.c.l.b16 %v3704
    %v3781 = vunpack.c.h.b16 %v3704
    %v3782 = vunpack.c.l.b16 %v3705
    %v3783 = vunpack.c.h.b16 %v3705
    %v3784 = vunpack.c.l.b16 %v3706
    %v3785 = vunpack.c.h.b16 %v3706
    %v3786 = vunpack.c.l.b16 %v3707
    %v3787 = vunpack.c.h.b16 %v3707
    %v3788 = vunpack.c.l.b16 %v3708
    %v3789 = vunpack.c.h.b16 %v3708
    %v3790 = vunpack.c.l.b16 %v3709
    %v3791 = vunpack.c.h.b16 %v3709
    %v3792 = vunpack.c.l.b16 %v3710
    %v3793 = vunpack.c.h.b16 %v3710
    %v3794 = vunpack.c.l.b16 %v3711
    %v3795 = vunpack.c.h.b16 %v3711
    %v3796 = vunpack.c.l.b16 %v3712
    %v3797 = vunpack.c.h.b16 %v3712
    %v3798 = vunpack.c.l.b16 %v3713
    %v3799 = vunpack.c.h.b16 %v3713
    %v3800 = vunpack.c.l.b16 %v3714
    %v3801 = vunpack.c.h.b16 %v3714
    %v3802 = vunpack.c.l.b16 %v3715
    %v3803 = vunpack.c.h.b16 %v3715
    %v3804 = vunpack.c.l.b16 %v3716
    %v3805 = vunpack.c.h.b16 %v3716
    %v3806 = vunpack.c.l.b16 %v3717
    %v3807 = vunpack.c.h.b16 %v3717
    %v3808 = vunpack.c.l.b16 %v3718
    %v3809 = vunpack.c.h.b16 %v3718
    %v3810 = vunpack.c.l.b16 %v3719
    %v3811 = vunpack.c.h.b16 %v3719
    %v3812 = vunpack.c.l.b16 %v3720
    %v3813 = vunpack.c.h.b16 %v3720
    %v3814 = vunpack.c.l.b16 %v3721
    %v3815 = vunpack.c.h.b16 %v3721
    %v3816 = vunpack.c.l.b16 %v3722
    %v3817 = vunpack.c.h.b16 %v3722
    %v3818 = vunpack.c.l.b16 %v3723
    %v3819 = vunpack.c.h.b16 %v3723
    %v3820 = vpack.c.b16 %v3758, %v3756
    %v3821 = vpack.c.b16 %v3759, %v3757
    %v3822 = vpack.c.b16 %v3762, %v3760
    %v3823 = vpack.c.b16 %v3763, %v3761
    %v3824 = vpack.c.b16 %v3766, %v3764
    %v3825 = vpack.c.b16 %v3767, %v3765
    %v3826 = vpack.c.b16 %v3770, %v3768
    %v3827 = vpack.c.b16 %v3771, %v3769
    %v3828 = vpack.c.b16 %v3774, %v3772
    %v3829 = vpack.c.b16 %v3775, %v3773
    %v3830 = vpack.c.b16 %v3778, %v3776
    %v3831 = vpack.c.b16 %v3779, %v3777
    %v3832 = vpack.c.b16 %v3782, %v3780
    %v3833 = vpack.c.b16 %v3783, %v3781
    %v3834 = vpack.c.b16 %v3786, %v3784
    %v3835 = vpack.c.b16 %v3787, %v3785
    %v3836 = vpack.c.b16 %v3790, %v3788
    %v3837 = vpack.c.b16 %v3791, %v3789
    %v3838 = vpack.c.b16 %v3794, %v3792
    %v3839 = vpack.c.b16 %v3795, %v3793
    %v3840 = vpack.c.b16 %v3798, %v3796
    %v3841 = vpack.c.b16 %v3799, %v3797
    %v3842 = vpack.c.b16 %v3802, %v3800
    %v3843 = vpack.c.b16 %v3803, %v3801
    %v3844 = vpack.c.b16 %v3806, %v3804
    %v3845 = vpack.c.b16 %v3807, %v3805
    %v3846 = vpack.c.b16 %v3810, %v3808
    %v3847 = vpack.c.b16 %v3811, %v3809
    %v3848 = vpack.c.b16 %v3814, %v3812
    %v3849 = vpack.c.b16 %v3815, %v3813
    %v3850 = vpack.c.b16 %v3818, %v3816
    %v3851 = vpack.c.b16 %v3819, %v3817
    %3884 = vmatpush.bf16.msra.mxu0 %v3834
    %3885 = vmatpush.bf16.msra.mxu0 %v3832
    %3886 = vmatpush.bf16.msra.mxu0 %v3830
    %3887 = vmatpush.bf16.msra.mxu0 %v3828
    %3888 = vmatpush.bf16.msra.mxu0 %v3826
    %3889 = vmatpush.bf16.msra.mxu0 %v3824
    %3890 = vmatpush.bf16.msra.mxu0 %v3822
    %3891 = vmatpush.bf16.msra.mxu0 %v3820
    %3892 = vmatmul.bf16.gmra.mxu0 %v3690
    %v3893 = vpop.f32.mrf.mxu0
    %v3894 = vadd.f32 0.0, %v3893
    %v3895 = vpop.f32.mrf.mxu0
    %v3896 = vadd.f32 0.0, %v3895
    %3897 = vdwg.mxu0
    %3898 = vmatpush.bf16.msra.mxu0 %v3850
    %3899 = vmatpush.bf16.msra.mxu0 %v3848
    %3900 = vmatpush.bf16.msra.mxu0 %v3846
    %3901 = vmatpush.bf16.msra.mxu0 %v3844
    %3902 = vmatpush.bf16.msra.mxu0 %v3842
    %3903 = vmatpush.bf16.msra.mxu0 %v3840
    %3904 = vmatpush.bf16.msra.mxu0 %v3838
    %3905 = vmatpush.bf16.msra.mxu0 %v3836
    %3906 = vmatmul.bf16.gmra.mxu0 %v3691
    %v3907 = vpop.f32.mrf.mxu0
    %v3908 = vadd.f32 %v3894, %v3907
    %v3909 = vpop.f32.mrf.mxu0
    %v3910 = vadd.f32 %v3896, %v3909
    %3911 = vdwg.mxu0
    %3912 = vmatpush.bf16.msra.mxu0 %v3835
    %3913 = vmatpush.bf16.msra.mxu0 %v3833
    %3914 = vmatpush.bf16.msra.mxu0 %v3831
    %3915 = vmatpush.bf16.msra.mxu0 %v3829
    %3916 = vmatpush.bf16.msra.mxu0 %v3827
    %3917 = vmatpush.bf16.msra.mxu0 %v3825
    %3918 = vmatpush.bf16.msra.mxu0 %v3823
    %3919 = vmatpush.bf16.msra.mxu0 %v3821
    %3920 = vmatmul.bf16.gmra.mxu0 %v3690
    %v3921 = vpop.f32.mrf.mxu0
    %v3922 = vadd.f32 0.0, %v3921
    %v3923 = vpop.f32.mrf.mxu0
    %v3924 = vadd.f32 0.0, %v3923
    %3925 = vdwg.mxu0
    %3926 = vmatpush.bf16.msra.mxu0 %v3851
    %3927 = vmatpush.bf16.msra.mxu0 %v3849
    %3928 = vmatpush.bf16.msra.mxu0 %v3847
    %3929 = vmatpush.bf16.msra.mxu0 %v3845
    %3930 = vmatpush.bf16.msra.mxu0 %v3843
    %3931 = vmatpush.bf16.msra.mxu0 %v3841
    %3932 = vmatpush.bf16.msra.mxu0 %v3839
    %3933 = vmatpush.bf16.msra.mxu0 %v3837
    %3934 = vmatmul.bf16.gmra.mxu0 %v3691
    %v3935 = vpop.f32.mrf.mxu0
    %v3936 = vadd.f32 %v3922, %v3935
    %v3937 = vpop.f32.mrf.mxu0
    %v3938 = vadd.f32 %v3924, %v3937
    %3939 = vdwg.mxu0
    %v3940 = vld [vmem:[%s14] sm:$0xff]
    %v3941 = vld [vmem:[%s14 + $0x8] sm:$0xff]
    %v3942 = vld [vmem:[%s14 + $0x10] sm:$0xff]
    %v3943 = vld [vmem:[%s14 + $0x18] sm:$0xff]
    %s3944 = scalar_lea.vmem [#allocation7], 256
    %v3945 = vld [vmem:[%s3944] sm:$0xff]
    %v3946 = vld [vmem:[%s3944 + $0x8] sm:$0xff]
    %v3947 = vld [vmem:[%s3944 + $0x10] sm:$0xff]
    %v3948 = vld [vmem:[%s3944 + $0x18] sm:$0xff]
    %v3949 = vld [vmem:[%s3944 + $0x20] sm:$0xff]
    %v3950 = vld [vmem:[%s3944 + $0x28] sm:$0xff]
    %v3951 = vld [vmem:[%s3944 + $0x30] sm:$0xff]
    %v3952 = vld [vmem:[%s3944 + $0x38] sm:$0xff]
    %v3953 = vld [vmem:[%s3944 + $0x40] sm:$0xff]
    %v3954 = vld [vmem:[%s3944 + $0x48] sm:$0xff]
    %v3955 = vld [vmem:[%s3944 + $0x50] sm:$0xff]
    %v3956 = vld [vmem:[%s3944 + $0x58] sm:$0xff]
    %v3957 = vld [vmem:[%s3944 + $0x60] sm:$0xff]
    %v3958 = vld [vmem:[%s3944 + $0x68] sm:$0xff]
    %v3959 = vld [vmem:[%s3944 + $0x70] sm:$0xff]
    %v3960 = vld [vmem:[%s3944 + $0x78] sm:$0xff]
    %v3961 = vld [vmem:[%s3944 + $0x80] sm:$0xff]
    %v3962 = vld [vmem:[%s3944 + $0x88] sm:$0xff]
    %v3963 = vld [vmem:[%s3944 + $0x90] sm:$0xff]
    %v3964 = vld [vmem:[%s3944 + $0x98] sm:$0xff]
    %v3965 = vld [vmem:[%s3944 + $0xa0] sm:$0xff]
    %v3966 = vld [vmem:[%s3944 + $0xa8] sm:$0xff]
    %v3967 = vld [vmem:[%s3944 + $0xb0] sm:$0xff]
    %v3968 = vld [vmem:[%s3944 + $0xb8] sm:$0xff]
    %v3969 = vld [vmem:[%s3944 + $0xc0] sm:$0xff]
    %v3970 = vld [vmem:[%s3944 + $0xc8] sm:$0xff]
    %v3971 = vld [vmem:[%s3944 + $0xd0] sm:$0xff]
    %v3972 = vld [vmem:[%s3944 + $0xd8] sm:$0xff]
    %v3973 = vld [vmem:[%s3944 + $0xe0] sm:$0xff]
    %v3974 = vld [vmem:[%s3944 + $0xe8] sm:$0xff]
    %v3975 = vld [vmem:[%s3944 + $0xf0] sm:$0xff]
    %v3976 = vld [vmem:[%s3944 + $0xf8] sm:$0xff]
    %v4009 = vunpack.c.l.b16 %v3945
    %v4010 = vunpack.c.h.b16 %v3945
    %v4011 = vunpack.c.l.b16 %v3946
    %v4012 = vunpack.c.h.b16 %v3946
    %v4013 = vunpack.c.l.b16 %v3947
    %v4014 = vunpack.c.h.b16 %v3947
    %v4015 = vunpack.c.l.b16 %v3948
    %v4016 = vunpack.c.h.b16 %v3948
    %v4017 = vunpack.c.l.b16 %v3949
    %v4018 = vunpack.c.h.b16 %v3949
    %v4019 = vunpack.c.l.b16 %v3950
    %v4020 = vunpack.c.h.b16 %v3950
    %v4021 = vunpack.c.l.b16 %v3951
    %v4022 = vunpack.c.h.b16 %v3951
    %v4023 = vunpack.c.l.b16 %v3952
    %v4024 = vunpack.c.h.b16 %v3952
    %v4025 = vunpack.c.l.b16 %v3953
    %v4026 = vunpack.c.h.b16 %v3953
    %v4027 = vunpack.c.l.b16 %v3954
    %v4028 = vunpack.c.h.b16 %v3954
    %v4029 = vunpack.c.l.b16 %v3955
    %v4030 = vunpack.c.h.b16 %v3955
    %v4031 = vunpack.c.l.b16 %v3956
    %v4032 = vunpack.c.h.b16 %v3956
    %v4033 = vunpack.c.l.b16 %v3957
    %v4034 = vunpack.c.h.b16 %v3957
    %v4035 = vunpack.c.l.b16 %v3958
    %v4036 = vunpack.c.h.b16 %v3958
    %v4037 = vunpack.c.l.b16 %v3959
    %v4038 = vunpack.c.h.b16 %v3959
    %v4039 = vunpack.c.l.b16 %v3960
    %v4040 = vunpack.c.h.b16 %v3960
    %v4041 = vunpack.c.l.b16 %v3961
    %v4042 = vunpack.c.h.b16 %v3961
    %v4043 = vunpack.c.l.b16 %v3962
    %v4044 = vunpack.c.h.b16 %v3962
    %v4045 = vunpack.c.l.b16 %v3963
    %v4046 = vunpack.c.h.b16 %v3963
    %v4047 = vunpack.c.l.b16 %v3964
    %v4048 = vunpack.c.h.b16 %v3964
    %v4049 = vunpack.c.l.b16 %v3965
    %v4050 = vunpack.c.h.b16 %v3965
    %v4051 = vunpack.c.l.b16 %v3966
    %v4052 = vunpack.c.h.b16 %v3966
    %v4053 = vunpack.c.l.b16 %v3967
    %v4054 = vunpack.c.h.b16 %v3967
    %v4055 = vunpack.c.l.b16 %v3968
    %v4056 = vunpack.c.h.b16 %v3968
    %v4057 = vunpack.c.l.b16 %v3969
    %v4058 = vunpack.c.h.b16 %v3969
    %v4059 = vunpack.c.l.b16 %v3970
    %v4060 = vunpack.c.h.b16 %v3970
    %v4061 = vunpack.c.l.b16 %v3971
    %v4062 = vunpack.c.h.b16 %v3971
    %v4063 = vunpack.c.l.b16 %v3972
    %v4064 = vunpack.c.h.b16 %v3972
    %v4065 = vunpack.c.l.b16 %v3973
    %v4066 = vunpack.c.h.b16 %v3973
    %v4067 = vunpack.c.l.b16 %v3974
    %v4068 = vunpack.c.h.b16 %v3974
    %v4069 = vunpack.c.l.b16 %v3975
    %v4070 = vunpack.c.h.b16 %v3975
    %v4071 = vunpack.c.l.b16 %v3976
    %v4072 = vunpack.c.h.b16 %v3976
    %v4073 = vpack.c.b16 %v4011, %v4009
    %v4074 = vpack.c.b16 %v4012, %v4010
    %v4075 = vpack.c.b16 %v4015, %v4013
    %v4076 = vpack.c.b16 %v4016, %v4014
    %v4077 = vpack.c.b16 %v4019, %v4017
    %v4078 = vpack.c.b16 %v4020, %v4018
    %v4079 = vpack.c.b16 %v4023, %v4021
    %v4080 = vpack.c.b16 %v4024, %v4022
    %v4081 = vpack.c.b16 %v4027, %v4025
    %v4082 = vpack.c.b16 %v4028, %v4026
    %v4083 = vpack.c.b16 %v4031, %v4029
    %v4084 = vpack.c.b16 %v4032, %v4030
    %v4085 = vpack.c.b16 %v4035, %v4033
    %v4086 = vpack.c.b16 %v4036, %v4034
    %v4087 = vpack.c.b16 %v4039, %v4037
    %v4088 = vpack.c.b16 %v4040, %v4038
    %v4089 = vpack.c.b16 %v4043, %v4041
    %v4090 = vpack.c.b16 %v4044, %v4042
    %v4091 = vpack.c.b16 %v4047, %v4045
    %v4092 = vpack.c.b16 %v4048, %v4046
    %v4093 = vpack.c.b16 %v4051, %v4049
    %v4094 = vpack.c.b16 %v4052, %v4050
    %v4095 = vpack.c.b16 %v4055, %v4053
    %v4096 = vpack.c.b16 %v4056, %v4054
    %v4097 = vpack.c.b16 %v4059, %v4057
    %v4098 = vpack.c.b16 %v4060, %v4058
    %v4099 = vpack.c.b16 %v4063, %v4061
    %v4100 = vpack.c.b16 %v4064, %v4062
    %v4101 = vpack.c.b16 %v4067, %v4065
    %v4102 = vpack.c.b16 %v4068, %v4066
    %v4103 = vpack.c.b16 %v4071, %v4069
    %v4104 = vpack.c.b16 %v4072, %v4070
    %4137 = vmatpush.bf16.msra.mxu0 %v4087
    %4138 = vmatpush.bf16.msra.mxu0 %v4085
    %4139 = vmatpush.bf16.msra.mxu0 %v4083
    %4140 = vmatpush.bf16.msra.mxu0 %v4081
    %4141 = vmatpush.bf16.msra.mxu0 %v4079
    %4142 = vmatpush.bf16.msra.mxu0 %v4077
    %4143 = vmatpush.bf16.msra.mxu0 %v4075
    %4144 = vmatpush.bf16.msra.mxu0 %v4073
    %4145 = vmatmul.bf16.gmra.mxu0 %v3690
    %v4146 = vpop.f32.mrf.mxu0
    %v4147 = vadd.f32 0.0, %v4146
    %v4148 = vpop.f32.mrf.mxu0
    %v4149 = vadd.f32 0.0, %v4148
    %4150 = vdwg.mxu0
    %4151 = vmatpush.bf16.msra.mxu0 %v4103
    %4152 = vmatpush.bf16.msra.mxu0 %v4101
    %4153 = vmatpush.bf16.msra.mxu0 %v4099
    %4154 = vmatpush.bf16.msra.mxu0 %v4097
    %4155 = vmatpush.bf16.msra.mxu0 %v4095
    %4156 = vmatpush.bf16.msra.mxu0 %v4093
    %4157 = vmatpush.bf16.msra.mxu0 %v4091
    %4158 = vmatpush.bf16.msra.mxu0 %v4089
    %4159 = vmatmul.bf16.gmra.mxu0 %v3691
    %v4160 = vpop.f32.mrf.mxu0
    %v4161 = vadd.f32 %v4147, %v4160
    %v4162 = vpop.f32.mrf.mxu0
    %v4163 = vadd.f32 %v4149, %v4162
    %4164 = vdwg.mxu0
    %4165 = vmatpush.bf16.msra.mxu0 %v4088
    %4166 = vmatpush.bf16.msra.mxu0 %v4086
    %4167 = vmatpush.bf16.msra.mxu0 %v4084
    %4168 = vmatpush.bf16.msra.mxu0 %v4082
    %4169 = vmatpush.bf16.msra.mxu0 %v4080
    %4170 = vmatpush.bf16.msra.mxu0 %v4078
    %4171 = vmatpush.bf16.msra.mxu0 %v4076
    %4172 = vmatpush.bf16.msra.mxu0 %v4074
    %4173 = vmatmul.bf16.gmra.mxu0 %v3690
    %v4174 = vpop.f32.mrf.mxu0
    %v4175 = vadd.f32 0.0, %v4174
    %v4176 = vpop.f32.mrf.mxu0
    %v4177 = vadd.f32 0.0, %v4176
    %4178 = vdwg.mxu0
    %4179 = vmatpush.bf16.msra.mxu0 %v4104
    %4180 = vmatpush.bf16.msra.mxu0 %v4102
    %4181 = vmatpush.bf16.msra.mxu0 %v4100
    %4182 = vmatpush.bf16.msra.mxu0 %v4098
    %4183 = vmatpush.bf16.msra.mxu0 %v4096
    %4184 = vmatpush.bf16.msra.mxu0 %v4094
    %4185 = vmatpush.bf16.msra.mxu0 %v4092
    %4186 = vmatpush.bf16.msra.mxu0 %v4090
    %4187 = vmatmul.bf16.gmra.mxu0 %v3691
    %v4188 = vpop.f32.mrf.mxu0
    %v4189 = vadd.f32 %v4175, %v4188
    %v4190 = vpop.f32.mrf.mxu0
    %v4191 = vadd.f32 %v4177, %v4190
    %4192 = vdwg.mxu0
    %s4193 = scalar_lea.vmem %s14, 32
    %v4194 = vld [vmem:[%s4193] sm:$0xff]
    %v4195 = vld [vmem:[%s4193 + $0x8] sm:$0xff]
    %v4196 = vld [vmem:[%s4193 + $0x10] sm:$0xff]
    %v4197 = vld [vmem:[%s4193 + $0x18] sm:$0xff]
    %vm4198 = vcmask 130048
    %v4200 = vsel %vm4198, %v4194, 0
    %v4203 = vsel %vm4198, %v4195, 0
    %v4206 = vsel %vm4198, %v4196, 0
    %v4209 = vsel %vm4198, %v4197, 0
    %4211 = vmatpush.msra.mxu0 0.0
    %4212 = vmatpush.msra.mxu0 0.0
    %4213 = vmatpush.msra.mxu0 0.0
    %4214 = vmatpush.msra.mxu0 0.0
    %4215 = vmatpush.msra.mxu0 0.0
    %4216 = vmatpush.msra.mxu0 0.0
    %4217 = vmatpush.msra.mxu0 0.0
    %4218 = vmatpush.msra.mxu0 0.0
    %4219 = vmatpush.msra.mxu0 0.0
    %4220 = vmatpush.msra.mxu0 0.0
    %4221 = vmatpush.msra.mxu0 0.0
    %4222 = vmatpush.msra.mxu0 0.0
    %4223 = vmatpush.msra.mxu0 0.0
    %4224 = vmatpush.msra.mxu0 0.0
    %4225 = vmatpush.msra.mxu0 %v4163
    %4226 = vmatpush.msra.mxu0 %v4161
    %4227 = vmatmul.f32.gmra.mxu0 %v4200
    %v4228 = vpop.f32.mrf.mxu0
    %v4229 = vadd.f32 0.0, %v4228
    %4230 = vmatmul.f32.gmra.mxu0 %v4203
    %v4231 = vpop.f32.mrf.mxu0
    %v4232 = vadd.f32 0.0, %v4231
    %4233 = vmatmul.f32.gmra.mxu0 %v4206
    %v4234 = vpop.f32.mrf.mxu0
    %v4235 = vadd.f32 0.0, %v4234
    %4236 = vmatmul.f32.gmra.mxu0 %v4209
    %v4237 = vpop.f32.mrf.mxu0
    %v4238 = vadd.f32 0.0, %v4237
    %4239 = vdwg.mxu0
    %4240 = vmatpush.msra.mxu0 0.0
    %4241 = vmatpush.msra.mxu0 0.0
    %4242 = vmatpush.msra.mxu0 0.0
    %4243 = vmatpush.msra.mxu0 0.0
    %4244 = vmatpush.msra.mxu0 0.0
    %4245 = vmatpush.msra.mxu0 0.0
    %4246 = vmatpush.msra.mxu0 0.0
    %4247 = vmatpush.msra.mxu0 0.0
    %4248 = vmatpush.msra.mxu0 0.0
    %4249 = vmatpush.msra.mxu0 0.0
    %4250 = vmatpush.msra.mxu0 0.0
    %4251 = vmatpush.msra.mxu0 0.0
    %4252 = vmatpush.msra.mxu0 0.0
    %4253 = vmatpush.msra.mxu0 0.0
    %4254 = vmatpush.msra.mxu0 %v4191
    %4255 = vmatpush.msra.mxu0 %v4189
    %4256 = vmatmul.f32.gmra.mxu0 %v4200
    %v4257 = vpop.f32.mrf.mxu0
    %v4258 = vadd.f32 0.0, %v4257
    %4259 = vmatmul.f32.gmra.mxu0 %v4203
    %v4260 = vpop.f32.mrf.mxu0
    %v4261 = vadd.f32 0.0, %v4260
    %4262 = vmatmul.f32.gmra.mxu0 %v4206
    %v4263 = vpop.f32.mrf.mxu0
    %v4264 = vadd.f32 0.0, %v4263
    %4265 = vmatmul.f32.gmra.mxu0 %v4209
    %v4266 = vpop.f32.mrf.mxu0
    %v4267 = vadd.f32 0.0, %v4266
    %4268 = vdwg.mxu0
    %v4270 = vsel %vm4198, %v3940, 0
    %v4273 = vsel %vm4198, %v3941, 0
    %v4276 = vsel %vm4198, %v3942, 0
    %v4279 = vsel %vm4198, %v3943, 0
    %4281 = vmatpush.msra.mxu0 0.0
    %4282 = vmatpush.msra.mxu0 0.0
    %4283 = vmatpush.msra.mxu0 0.0
    %4284 = vmatpush.msra.mxu0 0.0
    %4285 = vmatpush.msra.mxu0 0.0
    %4286 = vmatpush.msra.mxu0 0.0
    %4287 = vmatpush.msra.mxu0 0.0
    %4288 = vmatpush.msra.mxu0 0.0
    %4289 = vmatpush.msra.mxu0 0.0
    %4290 = vmatpush.msra.mxu0 0.0
    %4291 = vmatpush.msra.mxu0 0.0
    %4292 = vmatpush.msra.mxu0 0.0
    %4293 = vmatpush.msra.mxu0 0.0
    %4294 = vmatpush.msra.mxu0 0.0
    %4295 = vmatpush.msra.mxu0 %v3910
    %4296 = vmatpush.msra.mxu0 %v3908
    %4297 = vmatmul.f32.gmra.mxu0 %v4270
    %v4298 = vpop.f32.mrf.mxu0
    %v4299 = vadd.f32 %v4229, %v4298
    %4300 = vmatmul.f32.gmra.mxu0 %v4273
    %v4301 = vpop.f32.mrf.mxu0
    %v4302 = vadd.f32 %v4232, %v4301
    %4303 = vmatmul.f32.gmra.mxu0 %v4276
    %v4304 = vpop.f32.mrf.mxu0
    %v4305 = vadd.f32 %v4235, %v4304
    %4306 = vmatmul.f32.gmra.mxu0 %v4279
    %v4307 = vpop.f32.mrf.mxu0
    %v4308 = vadd.f32 %v4238, %v4307
    %4309 = vdwg.mxu0
    %4310 = vmatpush.msra.mxu0 0.0
    %4311 = vmatpush.msra.mxu0 0.0
    %4312 = vmatpush.msra.mxu0 0.0
    %4313 = vmatpush.msra.mxu0 0.0
    %4314 = vmatpush.msra.mxu0 0.0
    %4315 = vmatpush.msra.mxu0 0.0
    %4316 = vmatpush.msra.mxu0 0.0
    %4317 = vmatpush.msra.mxu0 0.0
    %4318 = vmatpush.msra.mxu0 0.0
    %4319 = vmatpush.msra.mxu0 0.0
    %4320 = vmatpush.msra.mxu0 0.0
    %4321 = vmatpush.msra.mxu0 0.0
    %4322 = vmatpush.msra.mxu0 0.0
    %4323 = vmatpush.msra.mxu0 0.0
    %4324 = vmatpush.msra.mxu0 %v3938
    %4325 = vmatpush.msra.mxu0 %v3936
    %4326 = vmatmul.f32.gmra.mxu0 %v4270
    %v4327 = vpop.f32.mrf.mxu0
    %v4328 = vadd.f32 %v4258, %v4327
    %4329 = vmatmul.f32.gmra.mxu0 %v4273
    %v4330 = vpop.f32.mrf.mxu0
    %v4331 = vadd.f32 %v4261, %v4330
    %4332 = vmatmul.f32.gmra.mxu0 %v4276
    %v4333 = vpop.f32.mrf.mxu0
    %v4334 = vadd.f32 %v4264, %v4333
    %4335 = vmatmul.f32.gmra.mxu0 %v4279
    %v4336 = vpop.f32.mrf.mxu0
    %v4337 = vadd.f32 %v4267, %v4336
    %4338 = vdwg.mxu0
    %s4339 = scalar_lea.vmem [#allocation7], 512
    %v4340 = vld [vmem:[%s4339] sm:$0xff]
    %v4341 = vld [vmem:[%s4339 + $0x8] sm:$0xff]
    %v4342 = vld [vmem:[%s4339 + $0x10] sm:$0xff]
    %v4343 = vld [vmem:[%s4339 + $0x18] sm:$0xff]
    %v4344 = vld [vmem:[%s4339 + $0x20] sm:$0xff]
    %v4345 = vld [vmem:[%s4339 + $0x28] sm:$0xff]
    %v4346 = vld [vmem:[%s4339 + $0x30] sm:$0xff]
    %v4347 = vld [vmem:[%s4339 + $0x38] sm:$0xff]
    %v4348 = vld [vmem:[%s4339 + $0x40] sm:$0xff]
    %v4349 = vld [vmem:[%s4339 + $0x48] sm:$0xff]
    %v4350 = vld [vmem:[%s4339 + $0x50] sm:$0xff]
    %v4351 = vld [vmem:[%s4339 + $0x58] sm:$0xff]
    %v4352 = vld [vmem:[%s4339 + $0x60] sm:$0xff]
    %v4353 = vld [vmem:[%s4339 + $0x68] sm:$0xff]
    %v4354 = vld [vmem:[%s4339 + $0x70] sm:$0xff]
    %v4355 = vld [vmem:[%s4339 + $0x78] sm:$0xff]
    %v4356 = vld [vmem:[%s4339 + $0x80] sm:$0xff]
    %v4357 = vld [vmem:[%s4339 + $0x88] sm:$0xff]
    %v4358 = vld [vmem:[%s4339 + $0x90] sm:$0xff]
    %v4359 = vld [vmem:[%s4339 + $0x98] sm:$0xff]
    %v4360 = vld [vmem:[%s4339 + $0xa0] sm:$0xff]
    %v4361 = vld [vmem:[%s4339 + $0xa8] sm:$0xff]
    %v4362 = vld [vmem:[%s4339 + $0xb0] sm:$0xff]
    %v4363 = vld [vmem:[%s4339 + $0xb8] sm:$0xff]
    %v4364 = vld [vmem:[%s4339 + $0xc0] sm:$0xff]
    %v4365 = vld [vmem:[%s4339 + $0xc8] sm:$0xff]
    %v4366 = vld [vmem:[%s4339 + $0xd0] sm:$0xff]
    %v4367 = vld [vmem:[%s4339 + $0xd8] sm:$0xff]
    %v4368 = vld [vmem:[%s4339 + $0xe0] sm:$0xff]
    %v4369 = vld [vmem:[%s4339 + $0xe8] sm:$0xff]
    %v4370 = vld [vmem:[%s4339 + $0xf0] sm:$0xff]
    %v4371 = vld [vmem:[%s4339 + $0xf8] sm:$0xff]
    %v4404 = vunpack.c.l.b16 %v4340
    %v4405 = vunpack.c.h.b16 %v4340
    %v4406 = vunpack.c.l.b16 %v4341
    %v4407 = vunpack.c.h.b16 %v4341
    %v4408 = vunpack.c.l.b16 %v4342
    %v4409 = vunpack.c.h.b16 %v4342
    %v4410 = vunpack.c.l.b16 %v4343
    %v4411 = vunpack.c.h.b16 %v4343
    %v4412 = vunpack.c.l.b16 %v4344
    %v4413 = vunpack.c.h.b16 %v4344
    %v4414 = vunpack.c.l.b16 %v4345
    %v4415 = vunpack.c.h.b16 %v4345
    %v4416 = vunpack.c.l.b16 %v4346
    %v4417 = vunpack.c.h.b16 %v4346
    %v4418 = vunpack.c.l.b16 %v4347
    %v4419 = vunpack.c.h.b16 %v4347
    %v4420 = vunpack.c.l.b16 %v4348
    %v4421 = vunpack.c.h.b16 %v4348
    %v4422 = vunpack.c.l.b16 %v4349
    %v4423 = vunpack.c.h.b16 %v4349
    %v4424 = vunpack.c.l.b16 %v4350
    %v4425 = vunpack.c.h.b16 %v4350
    %v4426 = vunpack.c.l.b16 %v4351
    %v4427 = vunpack.c.h.b16 %v4351
    %v4428 = vunpack.c.l.b16 %v4352
    %v4429 = vunpack.c.h.b16 %v4352
    %v4430 = vunpack.c.l.b16 %v4353
    %v4431 = vunpack.c.h.b16 %v4353
    %v4432 = vunpack.c.l.b16 %v4354
    %v4433 = vunpack.c.h.b16 %v4354
    %v4434 = vunpack.c.l.b16 %v4355
    %v4435 = vunpack.c.h.b16 %v4355
    %v4436 = vunpack.c.l.b16 %v4356
    %v4437 = vunpack.c.h.b16 %v4356
    %v4438 = vunpack.c.l.b16 %v4357
    %v4439 = vunpack.c.h.b16 %v4357
    %v4440 = vunpack.c.l.b16 %v4358
    %v4441 = vunpack.c.h.b16 %v4358
    %v4442 = vunpack.c.l.b16 %v4359
    %v4443 = vunpack.c.h.b16 %v4359
    %v4444 = vunpack.c.l.b16 %v4360
    %v4445 = vunpack.c.h.b16 %v4360
    %v4446 = vunpack.c.l.b16 %v4361
    %v4447 = vunpack.c.h.b16 %v4361
    %v4448 = vunpack.c.l.b16 %v4362
    %v4449 = vunpack.c.h.b16 %v4362
    %v4450 = vunpack.c.l.b16 %v4363
    %v4451 = vunpack.c.h.b16 %v4363
    %v4452 = vunpack.c.l.b16 %v4364
    %v4453 = vunpack.c.h.b16 %v4364
    %v4454 = vunpack.c.l.b16 %v4365
    %v4455 = vunpack.c.h.b16 %v4365
    %v4456 = vunpack.c.l.b16 %v4366
    %v4457 = vunpack.c.h.b16 %v4366
    %v4458 = vunpack.c.l.b16 %v4367
    %v4459 = vunpack.c.h.b16 %v4367
    %v4460 = vunpack.c.l.b16 %v4368
    %v4461 = vunpack.c.h.b16 %v4368
    %v4462 = vunpack.c.l.b16 %v4369
    %v4463 = vunpack.c.h.b16 %v4369
    %v4464 = vunpack.c.l.b16 %v4370
    %v4465 = vunpack.c.h.b16 %v4370
    %v4466 = vunpack.c.l.b16 %v4371
    %v4467 = vunpack.c.h.b16 %v4371
    %v4468 = vpack.c.b16 %v4406, %v4404
    %v4469 = vpack.c.b16 %v4407, %v4405
    %v4470 = vpack.c.b16 %v4410, %v4408
    %v4471 = vpack.c.b16 %v4411, %v4409
    %v4472 = vpack.c.b16 %v4414, %v4412
    %v4473 = vpack.c.b16 %v4415, %v4413
    %v4474 = vpack.c.b16 %v4418, %v4416
    %v4475 = vpack.c.b16 %v4419, %v4417
    %v4476 = vpack.c.b16 %v4422, %v4420
    %v4477 = vpack.c.b16 %v4423, %v4421
    %v4478 = vpack.c.b16 %v4426, %v4424
    %v4479 = vpack.c.b16 %v4427, %v4425
    %v4480 = vpack.c.b16 %v4430, %v4428
    %v4481 = vpack.c.b16 %v4431, %v4429
    %v4482 = vpack.c.b16 %v4434, %v4432
    %v4483 = vpack.c.b16 %v4435, %v4433
    %v4484 = vpack.c.b16 %v4438, %v4436
    %v4485 = vpack.c.b16 %v4439, %v4437
    %v4486 = vpack.c.b16 %v4442, %v4440
    %v4487 = vpack.c.b16 %v4443, %v4441
    %v4488 = vpack.c.b16 %v4446, %v4444
    %v4489 = vpack.c.b16 %v4447, %v4445
    %v4490 = vpack.c.b16 %v4450, %v4448
    %v4491 = vpack.c.b16 %v4451, %v4449
    %v4492 = vpack.c.b16 %v4454, %v4452
    %v4493 = vpack.c.b16 %v4455, %v4453
    %v4494 = vpack.c.b16 %v4458, %v4456
    %v4495 = vpack.c.b16 %v4459, %v4457
    %v4496 = vpack.c.b16 %v4462, %v4460
    %v4497 = vpack.c.b16 %v4463, %v4461
    %v4498 = vpack.c.b16 %v4466, %v4464
    %v4499 = vpack.c.b16 %v4467, %v4465
    %4532 = vmatpush.bf16.msra.mxu0 %v4482
    %4533 = vmatpush.bf16.msra.mxu0 %v4480
    %4534 = vmatpush.bf16.msra.mxu0 %v4478
    %4535 = vmatpush.bf16.msra.mxu0 %v4476
    %4536 = vmatpush.bf16.msra.mxu0 %v4474
    %4537 = vmatpush.bf16.msra.mxu0 %v4472
    %4538 = vmatpush.bf16.msra.mxu0 %v4470
    %4539 = vmatpush.bf16.msra.mxu0 %v4468
    %4540 = vmatmul.bf16.gmra.mxu0 %v3690
    %v4541 = vpop.f32.mrf.mxu0
    %v4542 = vadd.f32 0.0, %v4541
    %v4543 = vpop.f32.mrf.mxu0
    %v4544 = vadd.f32 0.0, %v4543
    %4545 = vdwg.mxu0
    %4546 = vmatpush.bf16.msra.mxu0 %v4498
    %4547 = vmatpush.bf16.msra.mxu0 %v4496
    %4548 = vmatpush.bf16.msra.mxu0 %v4494
    %4549 = vmatpush.bf16.msra.mxu0 %v4492
    %4550 = vmatpush.bf16.msra.mxu0 %v4490
    %4551 = vmatpush.bf16.msra.mxu0 %v4488
    %4552 = vmatpush.bf16.msra.mxu0 %v4486
    %4553 = vmatpush.bf16.msra.mxu0 %v4484
    %4554 = vmatmul.bf16.gmra.mxu0 %v3691
    %v4555 = vpop.f32.mrf.mxu0
    %v4556 = vadd.f32 %v4542, %v4555
    %v4557 = vpop.f32.mrf.mxu0
    %v4558 = vadd.f32 %v4544, %v4557
    %4559 = vdwg.mxu0
    %4560 = vmatpush.bf16.msra.mxu0 %v4483
    %4561 = vmatpush.bf16.msra.mxu0 %v4481
    %4562 = vmatpush.bf16.msra.mxu0 %v4479
    %4563 = vmatpush.bf16.msra.mxu0 %v4477
    %4564 = vmatpush.bf16.msra.mxu0 %v4475
    %4565 = vmatpush.bf16.msra.mxu0 %v4473
    %4566 = vmatpush.bf16.msra.mxu0 %v4471
    %4567 = vmatpush.bf16.msra.mxu0 %v4469
    %4568 = vmatmul.bf16.gmra.mxu0 %v3690
    %v4569 = vpop.f32.mrf.mxu0
    %v4570 = vadd.f32 0.0, %v4569
    %v4571 = vpop.f32.mrf.mxu0
    %v4572 = vadd.f32 0.0, %v4571
    %4573 = vdwg.mxu0
    %4574 = vmatpush.bf16.msra.mxu0 %v4499
    %4575 = vmatpush.bf16.msra.mxu0 %v4497
    %4576 = vmatpush.bf16.msra.mxu0 %v4495
    %4577 = vmatpush.bf16.msra.mxu0 %v4493
    %4578 = vmatpush.bf16.msra.mxu0 %v4491
    %4579 = vmatpush.bf16.msra.mxu0 %v4489
    %4580 = vmatpush.bf16.msra.mxu0 %v4487
    %4581 = vmatpush.bf16.msra.mxu0 %v4485
    %4582 = vmatmul.bf16.gmra.mxu0 %v3691
    %v4583 = vpop.f32.mrf.mxu0
    %v4584 = vadd.f32 %v4570, %v4583
    %v4585 = vpop.f32.mrf.mxu0
    %v4586 = vadd.f32 %v4572, %v4585
    %4587 = vdwg.mxu0
    %s4588 = scalar_lea.vmem %s14, 64
    %v4589 = vld [vmem:[%s4588] sm:$0xff]
    %v4590 = vld [vmem:[%s4588 + $0x8] sm:$0xff]
    %v4591 = vld [vmem:[%s4588 + $0x10] sm:$0xff]
    %v4592 = vld [vmem:[%s4588 + $0x18] sm:$0xff]
    %v4594 = vsel %vm4198, %v4589, 0
    %v4597 = vsel %vm4198, %v4590, 0
    %v4600 = vsel %vm4198, %v4591, 0
    %v4603 = vsel %vm4198, %v4592, 0
    %4605 = vmatpush.msra.mxu0 0.0
    %4606 = vmatpush.msra.mxu0 0.0
    %4607 = vmatpush.msra.mxu0 0.0
    %4608 = vmatpush.msra.mxu0 0.0
    %4609 = vmatpush.msra.mxu0 0.0
    %4610 = vmatpush.msra.mxu0 0.0
    %4611 = vmatpush.msra.mxu0 0.0
    %4612 = vmatpush.msra.mxu0 0.0
    %4613 = vmatpush.msra.mxu0 0.0
    %4614 = vmatpush.msra.mxu0 0.0
    %4615 = vmatpush.msra.mxu0 0.0
    %4616 = vmatpush.msra.mxu0 0.0
    %4617 = vmatpush.msra.mxu0 0.0
    %4618 = vmatpush.msra.mxu0 0.0
    %4619 = vmatpush.msra.mxu0 %v4558
    %4620 = vmatpush.msra.mxu0 %v4556
    %4621 = vmatmul.f32.gmra.mxu0 %v4594
    %v4622 = vpop.f32.mrf.mxu0
    %v4623 = vadd.f32 0.0, %v4622
    %4624 = vmatmul.f32.gmra.mxu0 %v4597
    %v4625 = vpop.f32.mrf.mxu0
    %v4626 = vadd.f32 0.0, %v4625
    %4627 = vmatmul.f32.gmra.mxu0 %v4600
    %v4628 = vpop.f32.mrf.mxu0
    %v4629 = vadd.f32 0.0, %v4628
    %4630 = vmatmul.f32.gmra.mxu0 %v4603
    %v4631 = vpop.f32.mrf.mxu0
    %v4632 = vadd.f32 0.0, %v4631
    %4633 = vdwg.mxu0
    %4634 = vmatpush.msra.mxu0 0.0
    %4635 = vmatpush.msra.mxu0 0.0
    %4636 = vmatpush.msra.mxu0 0.0
    %4637 = vmatpush.msra.mxu0 0.0
    %4638 = vmatpush.msra.mxu0 0.0
    %4639 = vmatpush.msra.mxu0 0.0
    %4640 = vmatpush.msra.mxu0 0.0
    %4641 = vmatpush.msra.mxu0 0.0
    %4642 = vmatpush.msra.mxu0 0.0
    %4643 = vmatpush.msra.mxu0 0.0
    %4644 = vmatpush.msra.mxu0 0.0
    %4645 = vmatpush.msra.mxu0 0.0
    %4646 = vmatpush.msra.mxu0 0.0
    %4647 = vmatpush.msra.mxu0 0.0
    %4648 = vmatpush.msra.mxu0 %v4586
    %4649 = vmatpush.msra.mxu0 %v4584
    %4650 = vmatmul.f32.gmra.mxu0 %v4594
    %v4651 = vpop.f32.mrf.mxu0
    %v4652 = vadd.f32 0.0, %v4651
    %4653 = vmatmul.f32.gmra.mxu0 %v4597
    %v4654 = vpop.f32.mrf.mxu0
    %v4655 = vadd.f32 0.0, %v4654
    %4656 = vmatmul.f32.gmra.mxu0 %v4600
    %v4657 = vpop.f32.mrf.mxu0
    %v4658 = vadd.f32 0.0, %v4657
    %4659 = vmatmul.f32.gmra.mxu0 %v4603
    %v4660 = vpop.f32.mrf.mxu0
    %v4661 = vadd.f32 0.0, %v4660
    %4662 = vdwg.mxu0
    %v4663 = vadd.f32 %v4299, %v4623
    %v4664 = vadd.f32 %v4328, %v4652
    %v4665 = vadd.f32 %v4302, %v4626
    %v4666 = vadd.f32 %v4331, %v4655
    %v4667 = vadd.f32 %v4305, %v4629
    %v4668 = vadd.f32 %v4334, %v4658
    %v4669 = vadd.f32 %v4308, %v4632
    %v4670 = vadd.f32 %v4337, %v4661
    %s4671 = scalar_lea.vmem [#allocation7], 768
    %v4672 = vld [vmem:[%s4671] sm:$0xff]
    %v4673 = vld [vmem:[%s4671 + $0x8] sm:$0xff]
    %v4674 = vld [vmem:[%s4671 + $0x10] sm:$0xff]
    %v4675 = vld [vmem:[%s4671 + $0x18] sm:$0xff]
    %v4676 = vld [vmem:[%s4671 + $0x20] sm:$0xff]
    %v4677 = vld [vmem:[%s4671 + $0x28] sm:$0xff]
    %v4678 = vld [vmem:[%s4671 + $0x30] sm:$0xff]
    %v4679 = vld [vmem:[%s4671 + $0x38] sm:$0xff]
    %v4680 = vld [vmem:[%s4671 + $0x40] sm:$0xff]
    %v4681 = vld [vmem:[%s4671 + $0x48] sm:$0xff]
    %v4682 = vld [vmem:[%s4671 + $0x50] sm:$0xff]
    %v4683 = vld [vmem:[%s4671 + $0x58] sm:$0xff]
    %v4684 = vld [vmem:[%s4671 + $0x60] sm:$0xff]
    %v4685 = vld [vmem:[%s4671 + $0x68] sm:$0xff]
    %v4686 = vld [vmem:[%s4671 + $0x70] sm:$0xff]
    %v4687 = vld [vmem:[%s4671 + $0x78] sm:$0xff]
    %v4688 = vld [vmem:[%s4671 + $0x80] sm:$0xff]
    %v4689 = vld [vmem:[%s4671 + $0x88] sm:$0xff]
    %v4690 = vld [vmem:[%s4671 + $0x90] sm:$0xff]
    %v4691 = vld [vmem:[%s4671 + $0x98] sm:$0xff]
    %v4692 = vld [vmem:[%s4671 + $0xa0] sm:$0xff]
    %v4693 = vld [vmem:[%s4671 + $0xa8] sm:$0xff]
    %v4694 = vld [vmem:[%s4671 + $0xb0] sm:$0xff]
    %v4695 = vld [vmem:[%s4671 + $0xb8] sm:$0xff]
    %v4696 = vld [vmem:[%s4671 + $0xc0] sm:$0xff]
    %v4697 = vld [vmem:[%s4671 + $0xc8] sm:$0xff]
    %v4698 = vld [vmem:[%s4671 + $0xd0] sm:$0xff]
    %v4699 = vld [vmem:[%s4671 + $0xd8] sm:$0xff]
    %v4700 = vld [vmem:[%s4671 + $0xe0] sm:$0xff]
    %v4701 = vld [vmem:[%s4671 + $0xe8] sm:$0xff]
    %v4702 = vld [vmem:[%s4671 + $0xf0] sm:$0xff]
    %v4703 = vld [vmem:[%s4671 + $0xf8] sm:$0xff]
    %v4736 = vunpack.c.l.b16 %v4672
    %v4737 = vunpack.c.h.b16 %v4672
    %v4738 = vunpack.c.l.b16 %v4673
    %v4739 = vunpack.c.h.b16 %v4673
    %v4740 = vunpack.c.l.b16 %v4674
    %v4741 = vunpack.c.h.b16 %v4674
    %v4742 = vunpack.c.l.b16 %v4675
    %v4743 = vunpack.c.h.b16 %v4675
    %v4744 = vunpack.c.l.b16 %v4676
    %v4745 = vunpack.c.h.b16 %v4676
    %v4746 = vunpack.c.l.b16 %v4677
    %v4747 = vunpack.c.h.b16 %v4677
    %v4748 = vunpack.c.l.b16 %v4678
    %v4749 = vunpack.c.h.b16 %v4678
    %v4750 = vunpack.c.l.b16 %v4679
    %v4751 = vunpack.c.h.b16 %v4679
    %v4752 = vunpack.c.l.b16 %v4680
    %v4753 = vunpack.c.h.b16 %v4680
    %v4754 = vunpack.c.l.b16 %v4681
    %v4755 = vunpack.c.h.b16 %v4681
    %v4756 = vunpack.c.l.b16 %v4682
    %v4757 = vunpack.c.h.b16 %v4682
    %v4758 = vunpack.c.l.b16 %v4683
    %v4759 = vunpack.c.h.b16 %v4683
    %v4760 = vunpack.c.l.b16 %v4684
    %v4761 = vunpack.c.h.b16 %v4684
    %v4762 = vunpack.c.l.b16 %v4685
    %v4763 = vunpack.c.h.b16 %v4685
    %v4764 = vunpack.c.l.b16 %v4686
    %v4765 = vunpack.c.h.b16 %v4686
    %v4766 = vunpack.c.l.b16 %v4687
    %v4767 = vunpack.c.h.b16 %v4687
    %v4768 = vunpack.c.l.b16 %v4688
    %v4769 = vunpack.c.h.b16 %v4688
    %v4770 = vunpack.c.l.b16 %v4689
    %v4771 = vunpack.c.h.b16 %v4689
    %v4772 = vunpack.c.l.b16 %v4690
    %v4773 = vunpack.c.h.b16 %v4690
    %v4774 = vunpack.c.l.b16 %v4691
    %v4775 = vunpack.c.h.b16 %v4691
    %v4776 = vunpack.c.l.b16 %v4692
    %v4777 = vunpack.c.h.b16 %v4692
    %v4778 = vunpack.c.l.b16 %v4693
    %v4779 = vunpack.c.h.b16 %v4693
    %v4780 = vunpack.c.l.b16 %v4694
    %v4781 = vunpack.c.h.b16 %v4694
    %v4782 = vunpack.c.l.b16 %v4695
    %v4783 = vunpack.c.h.b16 %v4695
    %v4784 = vunpack.c.l.b16 %v4696
    %v4785 = vunpack.c.h.b16 %v4696
    %v4786 = vunpack.c.l.b16 %v4697
    %v4787 = vunpack.c.h.b16 %v4697
    %v4788 = vunpack.c.l.b16 %v4698
    %v4789 = vunpack.c.h.b16 %v4698
    %v4790 = vunpack.c.l.b16 %v4699
    %v4791 = vunpack.c.h.b16 %v4699
    %v4792 = vunpack.c.l.b16 %v4700
    %v4793 = vunpack.c.h.b16 %v4700
    %v4794 = vunpack.c.l.b16 %v4701
    %v4795 = vunpack.c.h.b16 %v4701
    %v4796 = vunpack.c.l.b16 %v4702
    %v4797 = vunpack.c.h.b16 %v4702
    %v4798 = vunpack.c.l.b16 %v4703
    %v4799 = vunpack.c.h.b16 %v4703
    %v4800 = vpack.c.b16 %v4738, %v4736
    %v4801 = vpack.c.b16 %v4739, %v4737
    %v4802 = vpack.c.b16 %v4742, %v4740
    %v4803 = vpack.c.b16 %v4743, %v4741
    %v4804 = vpack.c.b16 %v4746, %v4744
    %v4805 = vpack.c.b16 %v4747, %v4745
    %v4806 = vpack.c.b16 %v4750, %v4748
    %v4807 = vpack.c.b16 %v4751, %v4749
    %v4808 = vpack.c.b16 %v4754, %v4752
    %v4809 = vpack.c.b16 %v4755, %v4753
    %v4810 = vpack.c.b16 %v4758, %v4756
    %v4811 = vpack.c.b16 %v4759, %v4757
    %v4812 = vpack.c.b16 %v4762, %v4760
    %v4813 = vpack.c.b16 %v4763, %v4761
    %v4814 = vpack.c.b16 %v4766, %v4764
    %v4815 = vpack.c.b16 %v4767, %v4765
    %v4816 = vpack.c.b16 %v4770, %v4768
    %v4817 = vpack.c.b16 %v4771, %v4769
    %v4818 = vpack.c.b16 %v4774, %v4772
    %v4819 = vpack.c.b16 %v4775, %v4773
    %v4820 = vpack.c.b16 %v4778, %v4776
    %v4821 = vpack.c.b16 %v4779, %v4777
    %v4822 = vpack.c.b16 %v4782, %v4780
    %v4823 = vpack.c.b16 %v4783, %v4781
    %v4824 = vpack.c.b16 %v4786, %v4784
    %v4825 = vpack.c.b16 %v4787, %v4785
    %v4826 = vpack.c.b16 %v4790, %v4788
    %v4827 = vpack.c.b16 %v4791, %v4789
    %v4828 = vpack.c.b16 %v4794, %v4792
    %v4829 = vpack.c.b16 %v4795, %v4793
    %v4830 = vpack.c.b16 %v4798, %v4796
    %v4831 = vpack.c.b16 %v4799, %v4797
    %4864 = vmatpush.bf16.msra.mxu0 %v4814
    %4865 = vmatpush.bf16.msra.mxu0 %v4812
    %4866 = vmatpush.bf16.msra.mxu0 %v4810
    %4867 = vmatpush.bf16.msra.mxu0 %v4808
    %4868 = vmatpush.bf16.msra.mxu0 %v4806
    %4869 = vmatpush.bf16.msra.mxu0 %v4804
    %4870 = vmatpush.bf16.msra.mxu0 %v4802
    %4871 = vmatpush.bf16.msra.mxu0 %v4800
    %4872 = vmatmul.bf16.gmra.mxu0 %v3690
    %v4873 = vpop.f32.mrf.mxu0
    %v4874 = vadd.f32 0.0, %v4873
    %v4875 = vpop.f32.mrf.mxu0
    %v4876 = vadd.f32 0.0, %v4875
    %4877 = vdwg.mxu0
    %4878 = vmatpush.bf16.msra.mxu0 %v4830
    %4879 = vmatpush.bf16.msra.mxu0 %v4828
    %4880 = vmatpush.bf16.msra.mxu0 %v4826
    %4881 = vmatpush.bf16.msra.mxu0 %v4824
    %4882 = vmatpush.bf16.msra.mxu0 %v4822
    %4883 = vmatpush.bf16.msra.mxu0 %v4820
    %4884 = vmatpush.bf16.msra.mxu0 %v4818
    %4885 = vmatpush.bf16.msra.mxu0 %v4816
    %4886 = vmatmul.bf16.gmra.mxu0 %v3691
    %v4887 = vpop.f32.mrf.mxu0
    %v4888 = vadd.f32 %v4874, %v4887
    %v4889 = vpop.f32.mrf.mxu0
    %v4890 = vadd.f32 %v4876, %v4889
    %4891 = vdwg.mxu0
    %4892 = vmatpush.bf16.msra.mxu0 %v4815
    %4893 = vmatpush.bf16.msra.mxu0 %v4813
    %4894 = vmatpush.bf16.msra.mxu0 %v4811
    %4895 = vmatpush.bf16.msra.mxu0 %v4809
    %4896 = vmatpush.bf16.msra.mxu0 %v4807
    %4897 = vmatpush.bf16.msra.mxu0 %v4805
    %4898 = vmatpush.bf16.msra.mxu0 %v4803
    %4899 = vmatpush.bf16.msra.mxu0 %v4801
    %4900 = vmatmul.bf16.gmra.mxu0 %v3690
    %v4901 = vpop.f32.mrf.mxu0
    %v4902 = vadd.f32 0.0, %v4901
    %v4903 = vpop.f32.mrf.mxu0
    %v4904 = vadd.f32 0.0, %v4903
    %4905 = vdwg.mxu0
    %4906 = vmatpush.bf16.msra.mxu0 %v4831
    %4907 = vmatpush.bf16.msra.mxu0 %v4829
    %4908 = vmatpush.bf16.msra.mxu0 %v4827
    %4909 = vmatpush.bf16.msra.mxu0 %v4825
    %4910 = vmatpush.bf16.msra.mxu0 %v4823
    %4911 = vmatpush.bf16.msra.mxu0 %v4821
    %4912 = vmatpush.bf16.msra.mxu0 %v4819
    %4913 = vmatpush.bf16.msra.mxu0 %v4817
    %4914 = vmatmul.bf16.gmra.mxu0 %v3691
    %v4915 = vpop.f32.mrf.mxu0
    %v4916 = vadd.f32 %v4902, %v4915
    %v4917 = vpop.f32.mrf.mxu0
    %v4918 = vadd.f32 %v4904, %v4917
    %4919 = vdwg.mxu0
    %s4920 = scalar_lea.vmem %s14, 96
    %v4921 = vld [vmem:[%s4920] sm:$0xff]
    %v4922 = vld [vmem:[%s4920 + $0x8] sm:$0xff]
    %v4923 = vld [vmem:[%s4920 + $0x10] sm:$0xff]
    %v4924 = vld [vmem:[%s4920 + $0x18] sm:$0xff]
    %v4926 = vsel %vm4198, %v4921, 0
    %v4929 = vsel %vm4198, %v4922, 0
    %v4932 = vsel %vm4198, %v4923, 0
    %v4935 = vsel %vm4198, %v4924, 0
    %4937 = vmatpush.msra.mxu0 0.0
    %4938 = vmatpush.msra.mxu0 0.0
    %4939 = vmatpush.msra.mxu0 0.0
    %4940 = vmatpush.msra.mxu0 0.0
    %4941 = vmatpush.msra.mxu0 0.0
    %4942 = vmatpush.msra.mxu0 0.0
    %4943 = vmatpush.msra.mxu0 0.0
    %4944 = vmatpush.msra.mxu0 0.0
    %4945 = vmatpush.msra.mxu0 0.0
    %4946 = vmatpush.msra.mxu0 0.0
    %4947 = vmatpush.msra.mxu0 0.0
    %4948 = vmatpush.msra.mxu0 0.0
    %4949 = vmatpush.msra.mxu0 0.0
    %4950 = vmatpush.msra.mxu0 0.0
    %4951 = vmatpush.msra.mxu0 %v4890
    %4952 = vmatpush.msra.mxu0 %v4888
    %4953 = vmatmul.f32.gmra.mxu0 %v4926
    %v4954 = vpop.f32.mrf.mxu0
    %v4955 = vadd.f32 0.0, %v4954
    %4956 = vmatmul.f32.gmra.mxu0 %v4929
    %v4957 = vpop.f32.mrf.mxu0
    %v4958 = vadd.f32 0.0, %v4957
    %4959 = vmatmul.f32.gmra.mxu0 %v4932
    %v4960 = vpop.f32.mrf.mxu0
    %v4961 = vadd.f32 0.0, %v4960
    %4962 = vmatmul.f32.gmra.mxu0 %v4935
    %v4963 = vpop.f32.mrf.mxu0
    %v4964 = vadd.f32 0.0, %v4963
    %4965 = vdwg.mxu0
    %4966 = vmatpush.msra.mxu0 0.0
    %4967 = vmatpush.msra.mxu0 0.0
    %4968 = vmatpush.msra.mxu0 0.0
    %4969 = vmatpush.msra.mxu0 0.0
    %4970 = vmatpush.msra.mxu0 0.0
    %4971 = vmatpush.msra.mxu0 0.0
    %4972 = vmatpush.msra.mxu0 0.0
    %4973 = vmatpush.msra.mxu0 0.0
    %4974 = vmatpush.msra.mxu0 0.0
    %4975 = vmatpush.msra.mxu0 0.0
    %4976 = vmatpush.msra.mxu0 0.0
    %4977 = vmatpush.msra.mxu0 0.0
    %4978 = vmatpush.msra.mxu0 0.0
    %4979 = vmatpush.msra.mxu0 0.0
    %4980 = vmatpush.msra.mxu0 %v4918
    %4981 = vmatpush.msra.mxu0 %v4916
    %4982 = vmatmul.f32.gmra.mxu0 %v4926
    %v4983 = vpop.f32.mrf.mxu0
    %v4984 = vadd.f32 0.0, %v4983
    %4985 = vmatmul.f32.gmra.mxu0 %v4929
    %v4986 = vpop.f32.mrf.mxu0
    %v4987 = vadd.f32 0.0, %v4986
    %4988 = vmatmul.f32.gmra.mxu0 %v4932
    %v4989 = vpop.f32.mrf.mxu0
    %v4990 = vadd.f32 0.0, %v4989
    %4991 = vmatmul.f32.gmra.mxu0 %v4935
    %v4992 = vpop.f32.mrf.mxu0
    %v4993 = vadd.f32 0.0, %v4992
    %4994 = vdwg.mxu0
    %v4995 = vadd.f32 %v4663, %v4955
    %v4996 = vadd.f32 %v4664, %v4984
    %v4997 = vadd.f32 %v4665, %v4958
    %v4998 = vadd.f32 %v4666, %v4987
    %v4999 = vadd.f32 %v4667, %v4961
    %v5000 = vadd.f32 %v4668, %v4990
    %v5001 = vadd.f32 %v4669, %v4964
    %v5002 = vadd.f32 %v4670, %v4993
    %s5003 = scalar_lea.vmem [#allocation7], 1024
    %v5004 = vld [vmem:[%s5003] sm:$0xff]
    %v5005 = vld [vmem:[%s5003 + $0x8] sm:$0xff]
    %v5006 = vld [vmem:[%s5003 + $0x10] sm:$0xff]
    %v5007 = vld [vmem:[%s5003 + $0x18] sm:$0xff]
    %v5008 = vld [vmem:[%s5003 + $0x20] sm:$0xff]
    %v5009 = vld [vmem:[%s5003 + $0x28] sm:$0xff]
    %v5010 = vld [vmem:[%s5003 + $0x30] sm:$0xff]
    %v5011 = vld [vmem:[%s5003 + $0x38] sm:$0xff]
    %v5012 = vld [vmem:[%s5003 + $0x40] sm:$0xff]
    %v5013 = vld [vmem:[%s5003 + $0x48] sm:$0xff]
    %v5014 = vld [vmem:[%s5003 + $0x50] sm:$0xff]
    %v5015 = vld [vmem:[%s5003 + $0x58] sm:$0xff]
    %v5016 = vld [vmem:[%s5003 + $0x60] sm:$0xff]
    %v5017 = vld [vmem:[%s5003 + $0x68] sm:$0xff]
    %v5018 = vld [vmem:[%s5003 + $0x70] sm:$0xff]
    %v5019 = vld [vmem:[%s5003 + $0x78] sm:$0xff]
    %v5020 = vld [vmem:[%s5003 + $0x80] sm:$0xff]
    %v5021 = vld [vmem:[%s5003 + $0x88] sm:$0xff]
    %v5022 = vld [vmem:[%s5003 + $0x90] sm:$0xff]
    %v5023 = vld [vmem:[%s5003 + $0x98] sm:$0xff]
    %v5024 = vld [vmem:[%s5003 + $0xa0] sm:$0xff]
    %v5025 = vld [vmem:[%s5003 + $0xa8] sm:$0xff]
    %v5026 = vld [vmem:[%s5003 + $0xb0] sm:$0xff]
    %v5027 = vld [vmem:[%s5003 + $0xb8] sm:$0xff]
    %v5028 = vld [vmem:[%s5003 + $0xc0] sm:$0xff]
    %v5029 = vld [vmem:[%s5003 + $0xc8] sm:$0xff]
    %v5030 = vld [vmem:[%s5003 + $0xd0] sm:$0xff]
    %v5031 = vld [vmem:[%s5003 + $0xd8] sm:$0xff]
    %v5032 = vld [vmem:[%s5003 + $0xe0] sm:$0xff]
    %v5033 = vld [vmem:[%s5003 + $0xe8] sm:$0xff]
    %v5034 = vld [vmem:[%s5003 + $0xf0] sm:$0xff]
    %v5035 = vld [vmem:[%s5003 + $0xf8] sm:$0xff]
    %v5068 = vunpack.c.l.b16 %v5004
    %v5069 = vunpack.c.h.b16 %v5004
    %v5070 = vunpack.c.l.b16 %v5005
    %v5071 = vunpack.c.h.b16 %v5005
    %v5072 = vunpack.c.l.b16 %v5006
    %v5073 = vunpack.c.h.b16 %v5006
    %v5074 = vunpack.c.l.b16 %v5007
    %v5075 = vunpack.c.h.b16 %v5007
    %v5076 = vunpack.c.l.b16 %v5008
    %v5077 = vunpack.c.h.b16 %v5008
    %v5078 = vunpack.c.l.b16 %v5009
    %v5079 = vunpack.c.h.b16 %v5009
    %v5080 = vunpack.c.l.b16 %v5010
    %v5081 = vunpack.c.h.b16 %v5010
    %v5082 = vunpack.c.l.b16 %v5011
    %v5083 = vunpack.c.h.b16 %v5011
    %v5084 = vunpack.c.l.b16 %v5012
    %v5085 = vunpack.c.h.b16 %v5012
    %v5086 = vunpack.c.l.b16 %v5013
    %v5087 = vunpack.c.h.b16 %v5013
    %v5088 = vunpack.c.l.b16 %v5014
    %v5089 = vunpack.c.h.b16 %v5014
    %v5090 = vunpack.c.l.b16 %v5015
    %v5091 = vunpack.c.h.b16 %v5015
    %v5092 = vunpack.c.l.b16 %v5016
    %v5093 = vunpack.c.h.b16 %v5016
    %v5094 = vunpack.c.l.b16 %v5017
    %v5095 = vunpack.c.h.b16 %v5017
    %v5096 = vunpack.c.l.b16 %v5018
    %v5097 = vunpack.c.h.b16 %v5018
    %v5098 = vunpack.c.l.b16 %v5019
    %v5099 = vunpack.c.h.b16 %v5019
    %v5100 = vunpack.c.l.b16 %v5020
    %v5101 = vunpack.c.h.b16 %v5020
    %v5102 = vunpack.c.l.b16 %v5021
    %v5103 = vunpack.c.h.b16 %v5021
    %v5104 = vunpack.c.l.b16 %v5022
    %v5105 = vunpack.c.h.b16 %v5022
    %v5106 = vunpack.c.l.b16 %v5023
    %v5107 = vunpack.c.h.b16 %v5023
    %v5108 = vunpack.c.l.b16 %v5024
    %v5109 = vunpack.c.h.b16 %v5024
    %v5110 = vunpack.c.l.b16 %v5025
    %v5111 = vunpack.c.h.b16 %v5025
    %v5112 = vunpack.c.l.b16 %v5026
    %v5113 = vunpack.c.h.b16 %v5026
    %v5114 = vunpack.c.l.b16 %v5027
    %v5115 = vunpack.c.h.b16 %v5027
    %v5116 = vunpack.c.l.b16 %v5028
    %v5117 = vunpack.c.h.b16 %v5028
    %v5118 = vunpack.c.l.b16 %v5029
    %v5119 = vunpack.c.h.b16 %v5029
    %v5120 = vunpack.c.l.b16 %v5030
    %v5121 = vunpack.c.h.b16 %v5030
    %v5122 = vunpack.c.l.b16 %v5031
    %v5123 = vunpack.c.h.b16 %v5031
    %v5124 = vunpack.c.l.b16 %v5032
    %v5125 = vunpack.c.h.b16 %v5032
    %v5126 = vunpack.c.l.b16 %v5033
    %v5127 = vunpack.c.h.b16 %v5033
    %v5128 = vunpack.c.l.b16 %v5034
    %v5129 = vunpack.c.h.b16 %v5034
    %v5130 = vunpack.c.l.b16 %v5035
    %v5131 = vunpack.c.h.b16 %v5035
    %v5132 = vpack.c.b16 %v5070, %v5068
    %v5133 = vpack.c.b16 %v5071, %v5069
    %v5134 = vpack.c.b16 %v5074, %v5072
    %v5135 = vpack.c.b16 %v5075, %v5073
    %v5136 = vpack.c.b16 %v5078, %v5076
    %v5137 = vpack.c.b16 %v5079, %v5077
    %v5138 = vpack.c.b16 %v5082, %v5080
    %v5139 = vpack.c.b16 %v5083, %v5081
    %v5140 = vpack.c.b16 %v5086, %v5084
    %v5141 = vpack.c.b16 %v5087, %v5085
    %v5142 = vpack.c.b16 %v5090, %v5088
    %v5143 = vpack.c.b16 %v5091, %v5089
    %v5144 = vpack.c.b16 %v5094, %v5092
    %v5145 = vpack.c.b16 %v5095, %v5093
    %v5146 = vpack.c.b16 %v5098, %v5096
    %v5147 = vpack.c.b16 %v5099, %v5097
    %v5148 = vpack.c.b16 %v5102, %v5100
    %v5149 = vpack.c.b16 %v5103, %v5101
    %v5150 = vpack.c.b16 %v5106, %v5104
    %v5151 = vpack.c.b16 %v5107, %v5105
    %v5152 = vpack.c.b16 %v5110, %v5108
    %v5153 = vpack.c.b16 %v5111, %v5109
    %v5154 = vpack.c.b16 %v5114, %v5112
    %v5155 = vpack.c.b16 %v5115, %v5113
    %v5156 = vpack.c.b16 %v5118, %v5116
    %v5157 = vpack.c.b16 %v5119, %v5117
    %v5158 = vpack.c.b16 %v5122, %v5120
    %v5159 = vpack.c.b16 %v5123, %v5121
    %v5160 = vpack.c.b16 %v5126, %v5124
    %v5161 = vpack.c.b16 %v5127, %v5125
    %v5162 = vpack.c.b16 %v5130, %v5128
    %v5163 = vpack.c.b16 %v5131, %v5129
    %5196 = vmatpush.bf16.msra.mxu0 %v5146
    %5197 = vmatpush.bf16.msra.mxu0 %v5144
    %5198 = vmatpush.bf16.msra.mxu0 %v5142
    %5199 = vmatpush.bf16.msra.mxu0 %v5140
    %5200 = vmatpush.bf16.msra.mxu0 %v5138
    %5201 = vmatpush.bf16.msra.mxu0 %v5136
    %5202 = vmatpush.bf16.msra.mxu0 %v5134
    %5203 = vmatpush.bf16.msra.mxu0 %v5132
    %5204 = vmatmul.bf16.gmra.mxu0 %v3690
    %v5205 = vpop.f32.mrf.mxu0
    %v5206 = vadd.f32 0.0, %v5205
    %v5207 = vpop.f32.mrf.mxu0
    %v5208 = vadd.f32 0.0, %v5207
    %5209 = vdwg.mxu0
    %5210 = vmatpush.bf16.msra.mxu0 %v5162
    %5211 = vmatpush.bf16.msra.mxu0 %v5160
    %5212 = vmatpush.bf16.msra.mxu0 %v5158
    %5213 = vmatpush.bf16.msra.mxu0 %v5156
    %5214 = vmatpush.bf16.msra.mxu0 %v5154
    %5215 = vmatpush.bf16.msra.mxu0 %v5152
    %5216 = vmatpush.bf16.msra.mxu0 %v5150
    %5217 = vmatpush.bf16.msra.mxu0 %v5148
    %5218 = vmatmul.bf16.gmra.mxu0 %v3691
    %v5219 = vpop.f32.mrf.mxu0
    %v5220 = vadd.f32 %v5206, %v5219
    %v5221 = vpop.f32.mrf.mxu0
    %v5222 = vadd.f32 %v5208, %v5221
    %5223 = vdwg.mxu0
    %5224 = vmatpush.bf16.msra.mxu0 %v5147
    %5225 = vmatpush.bf16.msra.mxu0 %v5145
    %5226 = vmatpush.bf16.msra.mxu0 %v5143
    %5227 = vmatpush.bf16.msra.mxu0 %v5141
    %5228 = vmatpush.bf16.msra.mxu0 %v5139
    %5229 = vmatpush.bf16.msra.mxu0 %v5137
    %5230 = vmatpush.bf16.msra.mxu0 %v5135
    %5231 = vmatpush.bf16.msra.mxu0 %v5133
    %5232 = vmatmul.bf16.gmra.mxu0 %v3690
    %v5233 = vpop.f32.mrf.mxu0
    %v5234 = vadd.f32 0.0, %v5233
    %v5235 = vpop.f32.mrf.mxu0
    %v5236 = vadd.f32 0.0, %v5235
    %5237 = vdwg.mxu0
    %5238 = vmatpush.bf16.msra.mxu0 %v5163
    %5239 = vmatpush.bf16.msra.mxu0 %v5161
    %5240 = vmatpush.bf16.msra.mxu0 %v5159
    %5241 = vmatpush.bf16.msra.mxu0 %v5157
    %5242 = vmatpush.bf16.msra.mxu0 %v5155
    %5243 = vmatpush.bf16.msra.mxu0 %v5153
    %5244 = vmatpush.bf16.msra.mxu0 %v5151
    %5245 = vmatpush.bf16.msra.mxu0 %v5149
    %5246 = vmatmul.bf16.gmra.mxu0 %v3691
    %v5247 = vpop.f32.mrf.mxu0
    %v5248 = vadd.f32 %v5234, %v5247
    %v5249 = vpop.f32.mrf.mxu0
    %v5250 = vadd.f32 %v5236, %v5249
    %5251 = vdwg.mxu0
    %s5252 = scalar_lea.vmem %s14, 128
    %v5253 = vld [vmem:[%s5252] sm:$0xff]
    %v5254 = vld [vmem:[%s5252 + $0x8] sm:$0xff]
    %v5255 = vld [vmem:[%s5252 + $0x10] sm:$0xff]
    %v5256 = vld [vmem:[%s5252 + $0x18] sm:$0xff]
    %v5258 = vsel %vm4198, %v5253, 0
    %v5261 = vsel %vm4198, %v5254, 0
    %v5264 = vsel %vm4198, %v5255, 0
    %v5267 = vsel %vm4198, %v5256, 0
    %5269 = vmatpush.msra.mxu0 0.0
    %5270 = vmatpush.msra.mxu0 0.0
    %5271 = vmatpush.msra.mxu0 0.0
    %5272 = vmatpush.msra.mxu0 0.0
    %5273 = vmatpush.msra.mxu0 0.0
    %5274 = vmatpush.msra.mxu0 0.0
    %5275 = vmatpush.msra.mxu0 0.0
    %5276 = vmatpush.msra.mxu0 0.0
    %5277 = vmatpush.msra.mxu0 0.0
    %5278 = vmatpush.msra.mxu0 0.0
    %5279 = vmatpush.msra.mxu0 0.0
    %5280 = vmatpush.msra.mxu0 0.0
    %5281 = vmatpush.msra.mxu0 0.0
    %5282 = vmatpush.msra.mxu0 0.0
    %5283 = vmatpush.msra.mxu0 %v5222
    %5284 = vmatpush.msra.mxu0 %v5220
    %5285 = vmatmul.f32.gmra.mxu0 %v5258
    %v5286 = vpop.f32.mrf.mxu0
    %v5287 = vadd.f32 0.0, %v5286
    %5288 = vmatmul.f32.gmra.mxu0 %v5261
    %v5289 = vpop.f32.mrf.mxu0
    %v5290 = vadd.f32 0.0, %v5289
    %5291 = vmatmul.f32.gmra.mxu0 %v5264
    %v5292 = vpop.f32.mrf.mxu0
    %v5293 = vadd.f32 0.0, %v5292
    %5294 = vmatmul.f32.gmra.mxu0 %v5267
    %v5295 = vpop.f32.mrf.mxu0
    %v5296 = vadd.f32 0.0, %v5295
    %5297 = vdwg.mxu0
    %5298 = vmatpush.msra.mxu0 0.0
    %5299 = vmatpush.msra.mxu0 0.0
    %5300 = vmatpush.msra.mxu0 0.0
    %5301 = vmatpush.msra.mxu0 0.0
    %5302 = vmatpush.msra.mxu0 0.0
    %5303 = vmatpush.msra.mxu0 0.0
    %5304 = vmatpush.msra.mxu0 0.0
    %5305 = vmatpush.msra.mxu0 0.0
    %5306 = vmatpush.msra.mxu0 0.0
    %5307 = vmatpush.msra.mxu0 0.0
    %5308 = vmatpush.msra.mxu0 0.0
    %5309 = vmatpush.msra.mxu0 0.0
    %5310 = vmatpush.msra.mxu0 0.0
    %5311 = vmatpush.msra.mxu0 0.0
    %5312 = vmatpush.msra.mxu0 %v5250
    %5313 = vmatpush.msra.mxu0 %v5248
    %5314 = vmatmul.f32.gmra.mxu0 %v5258
    %v5315 = vpop.f32.mrf.mxu0
    %v5316 = vadd.f32 0.0, %v5315
    %5317 = vmatmul.f32.gmra.mxu0 %v5261
    %v5318 = vpop.f32.mrf.mxu0
    %v5319 = vadd.f32 0.0, %v5318
    %5320 = vmatmul.f32.gmra.mxu0 %v5264
    %v5321 = vpop.f32.mrf.mxu0
    %v5322 = vadd.f32 0.0, %v5321
    %5323 = vmatmul.f32.gmra.mxu0 %v5267
    %v5324 = vpop.f32.mrf.mxu0
    %v5325 = vadd.f32 0.0, %v5324
    %5326 = vdwg.mxu0
    %v5327 = vadd.f32 %v4995, %v5287
    %v5328 = vadd.f32 %v4996, %v5316
    %v5329 = vadd.f32 %v4997, %v5290
    %v5330 = vadd.f32 %v4998, %v5319
    %v5331 = vadd.f32 %v4999, %v5293
    %v5332 = vadd.f32 %v5000, %v5322
    %v5333 = vadd.f32 %v5001, %v5296
    %v5334 = vadd.f32 %v5002, %v5325
    %v5335 = vld [vmem:[%s16] sm:$0x3]
    %v5337 = vperm.slane %v5335, 0
    %v5338 = vperm.slane %v5335, 1
    %v5341 = vadd.f32 %v5327, %v5337
    %v5342 = vadd.f32 %v5328, %v5338
    %v5343 = vadd.f32 %v5329, %v5337
    %v5344 = vadd.f32 %v5330, %v5338
    %v5345 = vadd.f32 %v5331, %v5337
    %v5346 = vadd.f32 %v5332, %v5338
    %v5347 = vadd.f32 %v5333, %v5337
    %v5348 = vadd.f32 %v5334, %v5338
    %vm5349 = vcmp.gt.f32.partialorder %v5341, 0.0
    %vm5350 = vcmp.gt.f32.partialorder %v5342, 0.0
    %vm5351 = vcmp.gt.f32.partialorder %v5343, 0.0
    %vm5352 = vcmp.gt.f32.partialorder %v5344, 0.0
    %vm5353 = vcmp.gt.f32.partialorder %v5345, 0.0
    %vm5354 = vcmp.gt.f32.partialorder %v5346, 0.0
    %vm5355 = vcmp.gt.f32.partialorder %v5347, 0.0
    %vm5356 = vcmp.gt.f32.partialorder %v5348, 0.0
    %v5357 = vmul.f32 %v5341, 1.442695
    %v5358 = vpow.pop %v5357
    %v5359 = vmul.f32 %v5342, 1.442695
    %v5360 = vpow.pop %v5359
    %v5361 = vmul.f32 %v5343, 1.442695
    %v5362 = vpow.pop %v5361
    %v5363 = vmul.f32 %v5344, 1.442695
    %v5364 = vpow.pop %v5363
    %v5365 = vmul.f32 %v5345, 1.442695
    %v5366 = vpow.pop %v5365
    %v5367 = vmul.f32 %v5346, 1.442695
    %v5368 = vpow.pop %v5367
    %v5369 = vmul.f32 %v5347, 1.442695
    %v5370 = vpow.pop %v5369
    %v5371 = vmul.f32 %v5348, 1.442695
    %v5372 = vpow.pop %v5371
    %v5373 = vsub.f32 %v5358, 1.0
    %v5374 = vsub.f32 %v5360, 1.0
    %v5375 = vsub.f32 %v5362, 1.0
    %v5376 = vsub.f32 %v5364, 1.0
    %v5377 = vsub.f32 %v5366, 1.0
    %v5378 = vsub.f32 %v5368, 1.0
    %v5379 = vsub.f32 %v5370, 1.0
    %v5380 = vsub.f32 %v5372, 1.0
    %v5381 = vsel %vm5349, %v5341, %v5373
    %v5382 = vsel %vm5350, %v5342, %v5374
    %v5383 = vsel %vm5351, %v5343, %v5375
    %v5384 = vsel %vm5352, %v5344, %v5376
    %v5385 = vsel %vm5353, %v5345, %v5377
    %v5386 = vsel %vm5354, %v5346, %v5378
    %v5387 = vsel %vm5355, %v5347, %v5379
    %v5388 = vsel %vm5356, %v5348, %v5380
    %v5389 = vpack.c.bf16 %v5383, %v5381
    %v5390 = vpack.c.bf16 %v5384, %v5382
    %v5391 = vpack.c.bf16 %v5387, %v5385
    %v5392 = vpack.c.bf16 %v5388, %v5386
    %v5393 = vld [vmem:[#allocation10] sm:$0xf]
    %v5394 = vld [vmem:[#allocation10 + $0x4] sm:$0xf]
    %v5395 = vld [vmem:[#allocation10 + $0x8] sm:$0xf]
    %v5396 = vld [vmem:[#allocation10 + $0xc] sm:$0xf]
    %v5397 = vld [vmem:[#allocation10 + $0x10] sm:$0xf]
    %v5398 = vld [vmem:[#allocation10 + $0x14] sm:$0xf]
    %v5399 = vld [vmem:[#allocation10 + $0x18] sm:$0xf]
    %v5400 = vld [vmem:[#allocation10 + $0x1c] sm:$0xf]
    %v5401 = vld [vmem:[#allocation10 + $0x20] sm:$0xf]
    %v5402 = vld [vmem:[#allocation10 + $0x24] sm:$0xf]
    %v5403 = vld [vmem:[#allocation10 + $0x28] sm:$0xf]
    %v5404 = vld [vmem:[#allocation10 + $0x2c] sm:$0xf]
    %v5405 = vld [vmem:[#allocation10 + $0x30] sm:$0xf]
    %v5406 = vld [vmem:[#allocation10 + $0x34] sm:$0xf]
    %v5407 = vld [vmem:[#allocation10 + $0x38] sm:$0xf]
    %v5408 = vld [vmem:[#allocation10 + $0x3c] sm:$0xf]
    %v5409 = vld [vmem:[#allocation10 + $0x40] sm:$0xf]
    %v5410 = vld [vmem:[#allocation10 + $0x44] sm:$0xf]
    %v5411 = vld [vmem:[#allocation10 + $0x48] sm:$0xf]
    %v5412 = vld [vmem:[#allocation10 + $0x4c] sm:$0xf]
    %v5413 = vld [vmem:[#allocation10 + $0x50] sm:$0xf]
    %v5414 = vld [vmem:[#allocation10 + $0x54] sm:$0xf]
    %v5415 = vld [vmem:[#allocation10 + $0x58] sm:$0xf]
    %v5416 = vld [vmem:[#allocation10 + $0x5c] sm:$0xf]
    %v5417 = vld [vmem:[#allocation10 + $0x60] sm:$0xf]
    %v5418 = vld [vmem:[#allocation10 + $0x64] sm:$0xf]
    %v5419 = vld [vmem:[#allocation10 + $0x68] sm:$0xf]
    %v5420 = vld [vmem:[#allocation10 + $0x6c] sm:$0xf]
    %v5421 = vld [vmem:[#allocation10 + $0x70] sm:$0xf]
    %v5422 = vld [vmem:[#allocation10 + $0x74] sm:$0xf]
    %v5423 = vld [vmem:[#allocation10 + $0x78] sm:$0xf]
    %v5424 = vld [vmem:[#allocation10 + $0x7c] sm:$0xf]
    %v5457 = vunpack.c.l.b16 %v5393
    %v5458 = vunpack.c.l.b16 %v5394
    %v5459 = vunpack.c.l.b16 %v5395
    %v5460 = vunpack.c.l.b16 %v5396
    %v5461 = vunpack.c.l.b16 %v5397
    %v5462 = vunpack.c.l.b16 %v5398
    %v5463 = vunpack.c.l.b16 %v5399
    %v5464 = vunpack.c.l.b16 %v5400
    %v5465 = vunpack.c.l.b16 %v5401
    %v5466 = vunpack.c.l.b16 %v5402
    %v5467 = vunpack.c.l.b16 %v5403
    %v5468 = vunpack.c.l.b16 %v5404
    %v5469 = vunpack.c.l.b16 %v5405
    %v5470 = vunpack.c.l.b16 %v5406
    %v5471 = vunpack.c.l.b16 %v5407
    %v5472 = vunpack.c.l.b16 %v5408
    %v5473 = vunpack.c.l.b16 %v5409
    %v5474 = vunpack.c.l.b16 %v5410
    %v5475 = vunpack.c.l.b16 %v5411
    %v5476 = vunpack.c.l.b16 %v5412
    %v5477 = vunpack.c.l.b16 %v5413
    %v5478 = vunpack.c.l.b16 %v5414
    %v5479 = vunpack.c.l.b16 %v5415
    %v5480 = vunpack.c.l.b16 %v5416
    %v5481 = vunpack.c.l.b16 %v5417
    %v5482 = vunpack.c.l.b16 %v5418
    %v5483 = vunpack.c.l.b16 %v5419
    %v5484 = vunpack.c.l.b16 %v5420
    %v5485 = vunpack.c.l.b16 %v5421
    %v5486 = vunpack.c.l.b16 %v5422
    %v5487 = vunpack.c.l.b16 %v5423
    %v5488 = vunpack.c.l.b16 %v5424
    %v5489 = vpack.c.b16 %v5458, %v5457
    %v5490 = vpack.c.b16 %v5460, %v5459
    %v5491 = vpack.c.b16 %v5462, %v5461
    %v5492 = vpack.c.b16 %v5464, %v5463
    %v5493 = vpack.c.b16 %v5466, %v5465
    %v5494 = vpack.c.b16 %v5468, %v5467
    %v5495 = vpack.c.b16 %v5470, %v5469
    %v5496 = vpack.c.b16 %v5472, %v5471
    %v5497 = vpack.c.b16 %v5474, %v5473
    %v5498 = vpack.c.b16 %v5476, %v5475
    %v5499 = vpack.c.b16 %v5478, %v5477
    %v5500 = vpack.c.b16 %v5480, %v5479
    %v5501 = vpack.c.b16 %v5482, %v5481
    %v5502 = vpack.c.b16 %v5484, %v5483
    %v5503 = vpack.c.b16 %v5486, %v5485
    %v5504 = vpack.c.b16 %v5488, %v5487
    %5521 = vmatpush.bf16.msra.mxu0 %v5496
    %5522 = vmatpush.bf16.msra.mxu0 %v5495
    %5523 = vmatpush.bf16.msra.mxu0 %v5494
    %5524 = vmatpush.bf16.msra.mxu0 %v5493
    %5525 = vmatpush.bf16.msra.mxu0 %v5492
    %5526 = vmatpush.bf16.msra.mxu0 %v5491
    %5527 = vmatpush.bf16.msra.mxu0 %v5490
    %5528 = vmatpush.bf16.msra.mxu0 %v5489
    %5529 = vmatmul.bf16.gmra.mxu0 %v5389
    %v5530 = vpop.f32.mrf.mxu0
    %v5531 = vadd.f32 0.0, %v5530
    %v5532 = vpop.f32.mrf.mxu0
    %v5533 = vadd.f32 0.0, %v5532
    %5534 = vmatmul.bf16.gmra.mxu0 %v5391
    %v5535 = vpop.f32.mrf.mxu0
    %v5536 = vadd.f32 0.0, %v5535
    %v5537 = vpop.f32.mrf.mxu0
    %v5538 = vadd.f32 0.0, %v5537
    %5539 = vdwg.mxu0
    %5540 = vmatpush.bf16.msra.mxu0 %v5504
    %5541 = vmatpush.bf16.msra.mxu0 %v5503
    %5542 = vmatpush.bf16.msra.mxu0 %v5502
    %5543 = vmatpush.bf16.msra.mxu0 %v5501
    %5544 = vmatpush.bf16.msra.mxu0 %v5500
    %5545 = vmatpush.bf16.msra.mxu0 %v5499
    %5546 = vmatpush.bf16.msra.mxu0 %v5498
    %5547 = vmatpush.bf16.msra.mxu0 %v5497
    %5548 = vmatmul.bf16.gmra.mxu0 %v5390
    %v5549 = vpop.f32.mrf.mxu0
    %v5550 = vadd.f32 %v5531, %v5549
    %v5551 = vpop.f32.mrf.mxu0
    %v5552 = vadd.f32 %v5533, %v5551
    %5553 = vmatmul.bf16.gmra.mxu0 %v5392
    %v5554 = vpop.f32.mrf.mxu0
    %v5555 = vadd.f32 %v5536, %v5554
    %v5556 = vpop.f32.mrf.mxu0
    %v5557 = vadd.f32 %v5538, %v5556
    %5558 = vdwg.mxu0
    %v5559 = vld [vmem:[#allocation9] sm:$0xff]
    %v5560 = vld [vmem:[#allocation9 + $0x8] sm:$0xff]
    %v5561 = vld [vmem:[#allocation9 + $0x10] sm:$0xff]
    %v5562 = vld [vmem:[#allocation9 + $0x18] sm:$0xff]
    %s5563 = scalar_lea.vmem [#allocation10], 128
    %v5564 = vld [vmem:[%s5563] sm:$0xf]
    %v5565 = vld [vmem:[%s5563 + $0x4] sm:$0xf]
    %v5566 = vld [vmem:[%s5563 + $0x8] sm:$0xf]
    %v5567 = vld [vmem:[%s5563 + $0xc] sm:$0xf]
    %v5568 = vld [vmem:[%s5563 + $0x10] sm:$0xf]
    %v5569 = vld [vmem:[%s5563 + $0x14] sm:$0xf]
    %v5570 = vld [vmem:[%s5563 + $0x18] sm:$0xf]
    %v5571 = vld [vmem:[%s5563 + $0x1c] sm:$0xf]
    %v5572 = vld [vmem:[%s5563 + $0x20] sm:$0xf]
    %v5573 = vld [vmem:[%s5563 + $0x24] sm:$0xf]
    %v5574 = vld [vmem:[%s5563 + $0x28] sm:$0xf]
    %v5575 = vld [vmem:[%s5563 + $0x2c] sm:$0xf]
    %v5576 = vld [vmem:[%s5563 + $0x30] sm:$0xf]
    %v5577 = vld [vmem:[%s5563 + $0x34] sm:$0xf]
    %v5578 = vld [vmem:[%s5563 + $0x38] sm:$0xf]
    %v5579 = vld [vmem:[%s5563 + $0x3c] sm:$0xf]
    %v5580 = vld [vmem:[%s5563 + $0x40] sm:$0xf]
    %v5581 = vld [vmem:[%s5563 + $0x44] sm:$0xf]
    %v5582 = vld [vmem:[%s5563 + $0x48] sm:$0xf]
    %v5583 = vld [vmem:[%s5563 + $0x4c] sm:$0xf]
    %v5584 = vld [vmem:[%s5563 + $0x50] sm:$0xf]
    %v5585 = vld [vmem:[%s5563 + $0x54] sm:$0xf]
    %v5586 = vld [vmem:[%s5563 + $0x58] sm:$0xf]
    %v5587 = vld [vmem:[%s5563 + $0x5c] sm:$0xf]
    %v5588 = vld [vmem:[%s5563 + $0x60] sm:$0xf]
    %v5589 = vld [vmem:[%s5563 + $0x64] sm:$0xf]
    %v5590 = vld [vmem:[%s5563 + $0x68] sm:$0xf]
    %v5591 = vld [vmem:[%s5563 + $0x6c] sm:$0xf]
    %v5592 = vld [vmem:[%s5563 + $0x70] sm:$0xf]
    %v5593 = vld [vmem:[%s5563 + $0x74] sm:$0xf]
    %v5594 = vld [vmem:[%s5563 + $0x78] sm:$0xf]
    %v5595 = vld [vmem:[%s5563 + $0x7c] sm:$0xf]
    %v5628 = vunpack.c.l.b16 %v5564
    %v5629 = vunpack.c.l.b16 %v5565
    %v5630 = vunpack.c.l.b16 %v5566
    %v5631 = vunpack.c.l.b16 %v5567
    %v5632 = vunpack.c.l.b16 %v5568
    %v5633 = vunpack.c.l.b16 %v5569
    %v5634 = vunpack.c.l.b16 %v5570
    %v5635 = vunpack.c.l.b16 %v5571
    %v5636 = vunpack.c.l.b16 %v5572
    %v5637 = vunpack.c.l.b16 %v5573
    %v5638 = vunpack.c.l.b16 %v5574
    %v5639 = vunpack.c.l.b16 %v5575
    %v5640 = vunpack.c.l.b16 %v5576
    %v5641 = vunpack.c.l.b16 %v5577
    %v5642 = vunpack.c.l.b16 %v5578
    %v5643 = vunpack.c.l.b16 %v5579
    %v5644 = vunpack.c.l.b16 %v5580
    %v5645 = vunpack.c.l.b16 %v5581
    %v5646 = vunpack.c.l.b16 %v5582
    %v5647 = vunpack.c.l.b16 %v5583
    %v5648 = vunpack.c.l.b16 %v5584
    %v5649 = vunpack.c.l.b16 %v5585
    %v5650 = vunpack.c.l.b16 %v5586
    %v5651 = vunpack.c.l.b16 %v5587
    %v5652 = vunpack.c.l.b16 %v5588
    %v5653 = vunpack.c.l.b16 %v5589
    %v5654 = vunpack.c.l.b16 %v5590
    %v5655 = vunpack.c.l.b16 %v5591
    %v5656 = vunpack.c.l.b16 %v5592
    %v5657 = vunpack.c.l.b16 %v5593
    %v5658 = vunpack.c.l.b16 %v5594
    %v5659 = vunpack.c.l.b16 %v5595
    %v5660 = vpack.c.b16 %v5629, %v5628
    %v5661 = vpack.c.b16 %v5631, %v5630
    %v5662 = vpack.c.b16 %v5633, %v5632
    %v5663 = vpack.c.b16 %v5635, %v5634
    %v5664 = vpack.c.b16 %v5637, %v5636
    %v5665 = vpack.c.b16 %v5639, %v5638
    %v5666 = vpack.c.b16 %v5641, %v5640
    %v5667 = vpack.c.b16 %v5643, %v5642
    %v5668 = vpack.c.b16 %v5645, %v5644
    %v5669 = vpack.c.b16 %v5647, %v5646
    %v5670 = vpack.c.b16 %v5649, %v5648
    %v5671 = vpack.c.b16 %v5651, %v5650
    %v5672 = vpack.c.b16 %v5653, %v5652
    %v5673 = vpack.c.b16 %v5655, %v5654
    %v5674 = vpack.c.b16 %v5657, %v5656
    %v5675 = vpack.c.b16 %v5659, %v5658
    %5692 = vmatpush.bf16.msra.mxu0 %v5667
    %5693 = vmatpush.bf16.msra.mxu0 %v5666
    %5694 = vmatpush.bf16.msra.mxu0 %v5665
    %5695 = vmatpush.bf16.msra.mxu0 %v5664
    %5696 = vmatpush.bf16.msra.mxu0 %v5663
    %5697 = vmatpush.bf16.msra.mxu0 %v5662
    %5698 = vmatpush.bf16.msra.mxu0 %v5661
    %5699 = vmatpush.bf16.msra.mxu0 %v5660
    %5700 = vmatmul.bf16.gmra.mxu0 %v5389
    %v5701 = vpop.f32.mrf.mxu0
    %v5702 = vadd.f32 0.0, %v5701
    %v5703 = vpop.f32.mrf.mxu0
    %v5704 = vadd.f32 0.0, %v5703
    %5705 = vmatmul.bf16.gmra.mxu0 %v5391
    %v5706 = vpop.f32.mrf.mxu0
    %v5707 = vadd.f32 0.0, %v5706
    %v5708 = vpop.f32.mrf.mxu0
    %v5709 = vadd.f32 0.0, %v5708
    %5710 = vdwg.mxu0
    %5711 = vmatpush.bf16.msra.mxu0 %v5675
    %5712 = vmatpush.bf16.msra.mxu0 %v5674
    %5713 = vmatpush.bf16.msra.mxu0 %v5673
    %5714 = vmatpush.bf16.msra.mxu0 %v5672
    %5715 = vmatpush.bf16.msra.mxu0 %v5671
    %5716 = vmatpush.bf16.msra.mxu0 %v5670
    %5717 = vmatpush.bf16.msra.mxu0 %v5669
    %5718 = vmatpush.bf16.msra.mxu0 %v5668
    %5719 = vmatmul.bf16.gmra.mxu0 %v5390
    %v5720 = vpop.f32.mrf.mxu0
    %v5721 = vadd.f32 %v5702, %v5720
    %v5722 = vpop.f32.mrf.mxu0
    %v5723 = vadd.f32 %v5704, %v5722
    %5724 = vmatmul.bf16.gmra.mxu0 %v5392
    %v5725 = vpop.f32.mrf.mxu0
    %v5726 = vadd.f32 %v5707, %v5725
    %v5727 = vpop.f32.mrf.mxu0
    %v5728 = vadd.f32 %v5709, %v5727
    %5729 = vdwg.mxu0
    %s5730 = scalar_lea.vmem [#allocation9], 32
    %v5731 = vld [vmem:[%s5730] sm:$0xff]
    %v5732 = vld [vmem:[%s5730 + $0x8] sm:$0xff]
    %v5733 = vld [vmem:[%s5730 + $0x10] sm:$0xff]
    %v5734 = vld [vmem:[%s5730 + $0x18] sm:$0xff]
    %vm5735 = vcmask 261120
    %v5737 = vsel %vm5735, %v5731, 0
    %v5740 = vsel %vm5735, %v5732, 0
    %v5743 = vsel %vm5735, %v5733, 0
    %v5746 = vsel %vm5735, %v5734, 0
    %5748 = vmatpush.msra.mxu0 0.0
    %5749 = vmatpush.msra.mxu0 0.0
    %5750 = vmatpush.msra.mxu0 0.0
    %5751 = vmatpush.msra.mxu0 0.0
    %5752 = vmatpush.msra.mxu0 0.0
    %5753 = vmatpush.msra.mxu0 0.0
    %5754 = vmatpush.msra.mxu0 0.0
    %5755 = vmatpush.msra.mxu0 0.0
    %5756 = vmatpush.msra.mxu0 0.0
    %5757 = vmatpush.msra.mxu0 0.0
    %5758 = vmatpush.msra.mxu0 0.0
    %5759 = vmatpush.msra.mxu0 0.0
    %5760 = vmatpush.msra.mxu0 %v5728
    %5761 = vmatpush.msra.mxu0 %v5726
    %5762 = vmatpush.msra.mxu0 %v5723
    %5763 = vmatpush.msra.mxu0 %v5721
    %5764 = vmatmul.f32.gmra.mxu0 %v5737
    %v5765 = vpop.f32.mrf.mxu0
    %v5766 = vadd.f32 0.0, %v5765
    %5767 = vmatmul.f32.gmra.mxu0 %v5740
    %v5768 = vpop.f32.mrf.mxu0
    %v5769 = vadd.f32 0.0, %v5768
    %5770 = vmatmul.f32.gmra.mxu0 %v5743
    %v5771 = vpop.f32.mrf.mxu0
    %v5772 = vadd.f32 0.0, %v5771
    %5773 = vmatmul.f32.gmra.mxu0 %v5746
    %v5774 = vpop.f32.mrf.mxu0
    %v5775 = vadd.f32 0.0, %v5774
    %5776 = vdwg.mxu0
    %v5778 = vsel %vm5735, %v5559, 0
    %v5781 = vsel %vm5735, %v5560, 0
    %v5784 = vsel %vm5735, %v5561, 0
    %v5787 = vsel %vm5735, %v5562, 0
    %5789 = vmatpush.msra.mxu0 0.0
    %5790 = vmatpush.msra.mxu0 0.0
    %5791 = vmatpush.msra.mxu0 0.0
    %5792 = vmatpush.msra.mxu0 0.0
    %5793 = vmatpush.msra.mxu0 0.0
    %5794 = vmatpush.msra.mxu0 0.0
    %5795 = vmatpush.msra.mxu0 0.0
    %5796 = vmatpush.msra.mxu0 0.0
    %5797 = vmatpush.msra.mxu0 0.0
    %5798 = vmatpush.msra.mxu0 0.0
    %5799 = vmatpush.msra.mxu0 0.0
    %5800 = vmatpush.msra.mxu0 0.0
    %5801 = vmatpush.msra.mxu0 %v5557
    %5802 = vmatpush.msra.mxu0 %v5555
    %5803 = vmatpush.msra.mxu0 %v5552
    %5804 = vmatpush.msra.mxu0 %v5550
    %5805 = vmatmul.f32.gmra.mxu0 %v5778
    %v5806 = vpop.f32.mrf.mxu0
    %v5807 = vadd.f32 %v5766, %v5806
    %5808 = vmatmul.f32.gmra.mxu0 %v5781
    %v5809 = vpop.f32.mrf.mxu0
    %v5810 = vadd.f32 %v5769, %v5809
    %5811 = vmatmul.f32.gmra.mxu0 %v5784
    %v5812 = vpop.f32.mrf.mxu0
    %v5813 = vadd.f32 %v5772, %v5812
    %5814 = vmatmul.f32.gmra.mxu0 %v5787
    %v5815 = vpop.f32.mrf.mxu0
    %v5816 = vadd.f32 %v5775, %v5815
    %5817 = vdwg.mxu0
    %s5818 = scalar_lea.vmem [#allocation10], 256
    %v5819 = vld [vmem:[%s5818] sm:$0xf]
    %v5820 = vld [vmem:[%s5818 + $0x4] sm:$0xf]
    %v5821 = vld [vmem:[%s5818 + $0x8] sm:$0xf]
    %v5822 = vld [vmem:[%s5818 + $0xc] sm:$0xf]
    %v5823 = vld [vmem:[%s5818 + $0x10] sm:$0xf]
    %v5824 = vld [vmem:[%s5818 + $0x14] sm:$0xf]
    %v5825 = vld [vmem:[%s5818 + $0x18] sm:$0xf]
    %v5826 = vld [vmem:[%s5818 + $0x1c] sm:$0xf]
    %v5827 = vld [vmem:[%s5818 + $0x20] sm:$0xf]
    %v5828 = vld [vmem:[%s5818 + $0x24] sm:$0xf]
    %v5829 = vld [vmem:[%s5818 + $0x28] sm:$0xf]
    %v5830 = vld [vmem:[%s5818 + $0x2c] sm:$0xf]
    %v5831 = vld [vmem:[%s5818 + $0x30] sm:$0xf]
    %v5832 = vld [vmem:[%s5818 + $0x34] sm:$0xf]
    %v5833 = vld [vmem:[%s5818 + $0x38] sm:$0xf]
    %v5834 = vld [vmem:[%s5818 + $0x3c] sm:$0xf]
    %v5835 = vld [vmem:[%s5818 + $0x40] sm:$0xf]
    %v5836 = vld [vmem:[%s5818 + $0x44] sm:$0xf]
    %v5837 = vld [vmem:[%s5818 + $0x48] sm:$0xf]
    %v5838 = vld [vmem:[%s5818 + $0x4c] sm:$0xf]
    %v5839 = vld [vmem:[%s5818 + $0x50] sm:$0xf]
    %v5840 = vld [vmem:[%s5818 + $0x54] sm:$0xf]
    %v5841 = vld [vmem:[%s5818 + $0x58] sm:$0xf]
    %v5842 = vld [vmem:[%s5818 + $0x5c] sm:$0xf]
    %v5843 = vld [vmem:[%s5818 + $0x60] sm:$0xf]
    %v5844 = vld [vmem:[%s5818 + $0x64] sm:$0xf]
    %v5845 = vld [vmem:[%s5818 + $0x68] sm:$0xf]
    %v5846 = vld [vmem:[%s5818 + $0x6c] sm:$0xf]
    %v5847 = vld [vmem:[%s5818 + $0x70] sm:$0xf]
    %v5848 = vld [vmem:[%s5818 + $0x74] sm:$0xf]
    %v5849 = vld [vmem:[%s5818 + $0x78] sm:$0xf]
    %v5850 = vld [vmem:[%s5818 + $0x7c] sm:$0xf]
    %v5883 = vunpack.c.l.b16 %v5819
    %v5884 = vunpack.c.l.b16 %v5820
    %v5885 = vunpack.c.l.b16 %v5821
    %v5886 = vunpack.c.l.b16 %v5822
    %v5887 = vunpack.c.l.b16 %v5823
    %v5888 = vunpack.c.l.b16 %v5824
    %v5889 = vunpack.c.l.b16 %v5825
    %v5890 = vunpack.c.l.b16 %v5826
    %v5891 = vunpack.c.l.b16 %v5827
    %v5892 = vunpack.c.l.b16 %v5828
    %v5893 = vunpack.c.l.b16 %v5829
    %v5894 = vunpack.c.l.b16 %v5830
    %v5895 = vunpack.c.l.b16 %v5831
    %v5896 = vunpack.c.l.b16 %v5832
    %v5897 = vunpack.c.l.b16 %v5833
    %v5898 = vunpack.c.l.b16 %v5834
    %v5899 = vunpack.c.l.b16 %v5835
    %v5900 = vunpack.c.l.b16 %v5836
    %v5901 = vunpack.c.l.b16 %v5837
    %v5902 = vunpack.c.l.b16 %v5838
    %v5903 = vunpack.c.l.b16 %v5839
    %v5904 = vunpack.c.l.b16 %v5840
    %v5905 = vunpack.c.l.b16 %v5841
    %v5906 = vunpack.c.l.b16 %v5842
    %v5907 = vunpack.c.l.b16 %v5843
    %v5908 = vunpack.c.l.b16 %v5844
    %v5909 = vunpack.c.l.b16 %v5845
    %v5910 = vunpack.c.l.b16 %v5846
    %v5911 = vunpack.c.l.b16 %v5847
    %v5912 = vunpack.c.l.b16 %v5848
    %v5913 = vunpack.c.l.b16 %v5849
    %v5914 = vunpack.c.l.b16 %v5850
    %v5915 = vpack.c.b16 %v5884, %v5883
    %v5916 = vpack.c.b16 %v5886, %v5885
    %v5917 = vpack.c.b16 %v5888, %v5887
    %v5918 = vpack.c.b16 %v5890, %v5889
    %v5919 = vpack.c.b16 %v5892, %v5891
    %v5920 = vpack.c.b16 %v5894, %v5893
    %v5921 = vpack.c.b16 %v5896, %v5895
    %v5922 = vpack.c.b16 %v5898, %v5897
    %v5923 = vpack.c.b16 %v5900, %v5899
    %v5924 = vpack.c.b16 %v5902, %v5901
    %v5925 = vpack.c.b16 %v5904, %v5903
    %v5926 = vpack.c.b16 %v5906, %v5905
    %v5927 = vpack.c.b16 %v5908, %v5907
    %v5928 = vpack.c.b16 %v5910, %v5909
    %v5929 = vpack.c.b16 %v5912, %v5911
    %v5930 = vpack.c.b16 %v5914, %v5913
    %5947 = vmatpush.bf16.msra.mxu0 %v5922
    %5948 = vmatpush.bf16.msra.mxu0 %v5921
    %5949 = vmatpush.bf16.msra.mxu0 %v5920
    %5950 = vmatpush.bf16.msra.mxu0 %v5919
    %5951 = vmatpush.bf16.msra.mxu0 %v5918
    %5952 = vmatpush.bf16.msra.mxu0 %v5917
    %5953 = vmatpush.bf16.msra.mxu0 %v5916
    %5954 = vmatpush.bf16.msra.mxu0 %v5915
    %5955 = vmatmul.bf16.gmra.mxu0 %v5389
    %v5956 = vpop.f32.mrf.mxu0
    %v5957 = vadd.f32 0.0, %v5956
    %v5958 = vpop.f32.mrf.mxu0
    %v5959 = vadd.f32 0.0, %v5958
    %5960 = vmatmul.bf16.gmra.mxu0 %v5391
    %v5961 = vpop.f32.mrf.mxu0
    %v5962 = vadd.f32 0.0, %v5961
    %v5963 = vpop.f32.mrf.mxu0
    %v5964 = vadd.f32 0.0, %v5963
    %5965 = vdwg.mxu0
    %5966 = vmatpush.bf16.msra.mxu0 %v5930
    %5967 = vmatpush.bf16.msra.mxu0 %v5929
    %5968 = vmatpush.bf16.msra.mxu0 %v5928
    %5969 = vmatpush.bf16.msra.mxu0 %v5927
    %5970 = vmatpush.bf16.msra.mxu0 %v5926
    %5971 = vmatpush.bf16.msra.mxu0 %v5925
    %5972 = vmatpush.bf16.msra.mxu0 %v5924
    %5973 = vmatpush.bf16.msra.mxu0 %v5923
    %5974 = vmatmul.bf16.gmra.mxu0 %v5390
    %v5975 = vpop.f32.mrf.mxu0
    %v5976 = vadd.f32 %v5957, %v5975
    %v5977 = vpop.f32.mrf.mxu0
    %v5978 = vadd.f32 %v5959, %v5977
    %5979 = vmatmul.bf16.gmra.mxu0 %v5392
    %v5980 = vpop.f32.mrf.mxu0
    %v5981 = vadd.f32 %v5962, %v5980
    %v5982 = vpop.f32.mrf.mxu0
    %v5983 = vadd.f32 %v5964, %v5982
    %5984 = vdwg.mxu0
    %s5985 = scalar_lea.vmem [#allocation9], 64
    %v5986 = vld [vmem:[%s5985] sm:$0xff]
    %v5987 = vld [vmem:[%s5985 + $0x8] sm:$0xff]
    %v5988 = vld [vmem:[%s5985 + $0x10] sm:$0xff]
    %v5989 = vld [vmem:[%s5985 + $0x18] sm:$0xff]
    %v5991 = vsel %vm5735, %v5986, 0
    %v5994 = vsel %vm5735, %v5987, 0
    %v5997 = vsel %vm5735, %v5988, 0
    %v6000 = vsel %vm5735, %v5989, 0
    %6002 = vmatpush.msra.mxu0 0.0
    %6003 = vmatpush.msra.mxu0 0.0
    %6004 = vmatpush.msra.mxu0 0.0
    %6005 = vmatpush.msra.mxu0 0.0
    %6006 = vmatpush.msra.mxu0 0.0
    %6007 = vmatpush.msra.mxu0 0.0
    %6008 = vmatpush.msra.mxu0 0.0
    %6009 = vmatpush.msra.mxu0 0.0
    %6010 = vmatpush.msra.mxu0 0.0
    %6011 = vmatpush.msra.mxu0 0.0
    %6012 = vmatpush.msra.mxu0 0.0
    %6013 = vmatpush.msra.mxu0 0.0
    %6014 = vmatpush.msra.mxu0 %v5983
    %6015 = vmatpush.msra.mxu0 %v5981
    %6016 = vmatpush.msra.mxu0 %v5978
    %6017 = vmatpush.msra.mxu0 %v5976
    %6018 = vmatmul.f32.gmra.mxu0 %v5991
    %v6019 = vpop.f32.mrf.mxu0
    %v6020 = vadd.f32 0.0, %v6019
    %6021 = vmatmul.f32.gmra.mxu0 %v5994
    %v6022 = vpop.f32.mrf.mxu0
    %v6023 = vadd.f32 0.0, %v6022
    %6024 = vmatmul.f32.gmra.mxu0 %v5997
    %v6025 = vpop.f32.mrf.mxu0
    %v6026 = vadd.f32 0.0, %v6025
    %6027 = vmatmul.f32.gmra.mxu0 %v6000
    %v6028 = vpop.f32.mrf.mxu0
    %v6029 = vadd.f32 0.0, %v6028
    %6030 = vdwg.mxu0
    %v6031 = vadd.f32 %v5807, %v6020
    %v6032 = vadd.f32 %v5810, %v6023
    %v6033 = vadd.f32 %v5813, %v6026
    %v6034 = vadd.f32 %v5816, %v6029
    %s6035 = scalar_lea.vmem [#allocation10], 384
    %v6036 = vld [vmem:[%s6035] sm:$0xf]
    %v6037 = vld [vmem:[%s6035 + $0x4] sm:$0xf]
    %v6038 = vld [vmem:[%s6035 + $0x8] sm:$0xf]
    %v6039 = vld [vmem:[%s6035 + $0xc] sm:$0xf]
    %v6040 = vld [vmem:[%s6035 + $0x10] sm:$0xf]
    %v6041 = vld [vmem:[%s6035 + $0x14] sm:$0xf]
    %v6042 = vld [vmem:[%s6035 + $0x18] sm:$0xf]
    %v6043 = vld [vmem:[%s6035 + $0x1c] sm:$0xf]
    %v6044 = vld [vmem:[%s6035 + $0x20] sm:$0xf]
    %v6045 = vld [vmem:[%s6035 + $0x24] sm:$0xf]
    %v6046 = vld [vmem:[%s6035 + $0x28] sm:$0xf]
    %v6047 = vld [vmem:[%s6035 + $0x2c] sm:$0xf]
    %v6048 = vld [vmem:[%s6035 + $0x30] sm:$0xf]
    %v6049 = vld [vmem:[%s6035 + $0x34] sm:$0xf]
    %v6050 = vld [vmem:[%s6035 + $0x38] sm:$0xf]
    %v6051 = vld [vmem:[%s6035 + $0x3c] sm:$0xf]
    %v6052 = vld [vmem:[%s6035 + $0x40] sm:$0xf]
    %v6053 = vld [vmem:[%s6035 + $0x44] sm:$0xf]
    %v6054 = vld [vmem:[%s6035 + $0x48] sm:$0xf]
    %v6055 = vld [vmem:[%s6035 + $0x4c] sm:$0xf]
    %v6056 = vld [vmem:[%s6035 + $0x50] sm:$0xf]
    %v6057 = vld [vmem:[%s6035 + $0x54] sm:$0xf]
    %v6058 = vld [vmem:[%s6035 + $0x58] sm:$0xf]
    %v6059 = vld [vmem:[%s6035 + $0x5c] sm:$0xf]
    %v6060 = vld [vmem:[%s6035 + $0x60] sm:$0xf]
    %v6061 = vld [vmem:[%s6035 + $0x64] sm:$0xf]
    %v6062 = vld [vmem:[%s6035 + $0x68] sm:$0xf]
    %v6063 = vld [vmem:[%s6035 + $0x6c] sm:$0xf]
    %v6064 = vld [vmem:[%s6035 + $0x70] sm:$0xf]
    %v6065 = vld [vmem:[%s6035 + $0x74] sm:$0xf]
    %v6066 = vld [vmem:[%s6035 + $0x78] sm:$0xf]
    %v6067 = vld [vmem:[%s6035 + $0x7c] sm:$0xf]
    %v6100 = vunpack.c.l.b16 %v6036
    %v6101 = vunpack.c.l.b16 %v6037
    %v6102 = vunpack.c.l.b16 %v6038
    %v6103 = vunpack.c.l.b16 %v6039
    %v6104 = vunpack.c.l.b16 %v6040
    %v6105 = vunpack.c.l.b16 %v6041
    %v6106 = vunpack.c.l.b16 %v6042
    %v6107 = vunpack.c.l.b16 %v6043
    %v6108 = vunpack.c.l.b16 %v6044
    %v6109 = vunpack.c.l.b16 %v6045
    %v6110 = vunpack.c.l.b16 %v6046
    %v6111 = vunpack.c.l.b16 %v6047
    %v6112 = vunpack.c.l.b16 %v6048
    %v6113 = vunpack.c.l.b16 %v6049
    %v6114 = vunpack.c.l.b16 %v6050
    %v6115 = vunpack.c.l.b16 %v6051
    %v6116 = vunpack.c.l.b16 %v6052
    %v6117 = vunpack.c.l.b16 %v6053
    %v6118 = vunpack.c.l.b16 %v6054
    %v6119 = vunpack.c.l.b16 %v6055
    %v6120 = vunpack.c.l.b16 %v6056
    %v6121 = vunpack.c.l.b16 %v6057
    %v6122 = vunpack.c.l.b16 %v6058
    %v6123 = vunpack.c.l.b16 %v6059
    %v6124 = vunpack.c.l.b16 %v6060
    %v6125 = vunpack.c.l.b16 %v6061
    %v6126 = vunpack.c.l.b16 %v6062
    %v6127 = vunpack.c.l.b16 %v6063
    %v6128 = vunpack.c.l.b16 %v6064
    %v6129 = vunpack.c.l.b16 %v6065
    %v6130 = vunpack.c.l.b16 %v6066
    %v6131 = vunpack.c.l.b16 %v6067
    %v6132 = vpack.c.b16 %v6101, %v6100
    %v6133 = vpack.c.b16 %v6103, %v6102
    %v6134 = vpack.c.b16 %v6105, %v6104
    %v6135 = vpack.c.b16 %v6107, %v6106
    %v6136 = vpack.c.b16 %v6109, %v6108
    %v6137 = vpack.c.b16 %v6111, %v6110
    %v6138 = vpack.c.b16 %v6113, %v6112
    %v6139 = vpack.c.b16 %v6115, %v6114
    %v6140 = vpack.c.b16 %v6117, %v6116
    %v6141 = vpack.c.b16 %v6119, %v6118
    %v6142 = vpack.c.b16 %v6121, %v6120
    %v6143 = vpack.c.b16 %v6123, %v6122
    %v6144 = vpack.c.b16 %v6125, %v6124
    %v6145 = vpack.c.b16 %v6127, %v6126
    %v6146 = vpack.c.b16 %v6129, %v6128
    %v6147 = vpack.c.b16 %v6131, %v6130
    %6164 = vmatpush.bf16.msra.mxu0 %v6139
    %6165 = vmatpush.bf16.msra.mxu0 %v6138
    %6166 = vmatpush.bf16.msra.mxu0 %v6137
    %6167 = vmatpush.bf16.msra.mxu0 %v6136
    %6168 = vmatpush.bf16.msra.mxu0 %v6135
    %6169 = vmatpush.bf16.msra.mxu0 %v6134
    %6170 = vmatpush.bf16.msra.mxu0 %v6133
    %6171 = vmatpush.bf16.msra.mxu0 %v6132
    %6172 = vmatmul.bf16.gmra.mxu0 %v5389
    %v6173 = vpop.f32.mrf.mxu0
    %v6174 = vadd.f32 0.0, %v6173
    %v6175 = vpop.f32.mrf.mxu0
    %v6176 = vadd.f32 0.0, %v6175
    %6177 = vmatmul.bf16.gmra.mxu0 %v5391
    %v6178 = vpop.f32.mrf.mxu0
    %v6179 = vadd.f32 0.0, %v6178
    %v6180 = vpop.f32.mrf.mxu0
    %v6181 = vadd.f32 0.0, %v6180
    %6182 = vdwg.mxu0
    %6183 = vmatpush.bf16.msra.mxu0 %v6147
    %6184 = vmatpush.bf16.msra.mxu0 %v6146
    %6185 = vmatpush.bf16.msra.mxu0 %v6145
    %6186 = vmatpush.bf16.msra.mxu0 %v6144
    %6187 = vmatpush.bf16.msra.mxu0 %v6143
    %6188 = vmatpush.bf16.msra.mxu0 %v6142
    %6189 = vmatpush.bf16.msra.mxu0 %v6141
    %6190 = vmatpush.bf16.msra.mxu0 %v6140
    %6191 = vmatmul.bf16.gmra.mxu0 %v5390
    %v6192 = vpop.f32.mrf.mxu0
    %v6193 = vadd.f32 %v6174, %v6192
    %v6194 = vpop.f32.mrf.mxu0
    %v6195 = vadd.f32 %v6176, %v6194
    %6196 = vmatmul.bf16.gmra.mxu0 %v5392
    %v6197 = vpop.f32.mrf.mxu0
    %v6198 = vadd.f32 %v6179, %v6197
    %v6199 = vpop.f32.mrf.mxu0
    %v6200 = vadd.f32 %v6181, %v6199
    %6201 = vdwg.mxu0
    %s6202 = scalar_lea.vmem [#allocation9], 96
    %v6203 = vld [vmem:[%s6202] sm:$0xff]
    %v6204 = vld [vmem:[%s6202 + $0x8] sm:$0xff]
    %v6205 = vld [vmem:[%s6202 + $0x10] sm:$0xff]
    %v6206 = vld [vmem:[%s6202 + $0x18] sm:$0xff]
    %v6208 = vsel %vm5735, %v6203, 0
    %v6211 = vsel %vm5735, %v6204, 0
    %v6214 = vsel %vm5735, %v6205, 0
    %v6217 = vsel %vm5735, %v6206, 0
    %6219 = vmatpush.msra.mxu0 0.0
    %6220 = vmatpush.msra.mxu0 0.0
    %6221 = vmatpush.msra.mxu0 0.0
    %6222 = vmatpush.msra.mxu0 0.0
    %6223 = vmatpush.msra.mxu0 0.0
    %6224 = vmatpush.msra.mxu0 0.0
    %6225 = vmatpush.msra.mxu0 0.0
    %6226 = vmatpush.msra.mxu0 0.0
    %6227 = vmatpush.msra.mxu0 0.0
    %6228 = vmatpush.msra.mxu0 0.0
    %6229 = vmatpush.msra.mxu0 0.0
    %6230 = vmatpush.msra.mxu0 0.0
    %6231 = vmatpush.msra.mxu0 %v6200
    %6232 = vmatpush.msra.mxu0 %v6198
    %6233 = vmatpush.msra.mxu0 %v6195
    %6234 = vmatpush.msra.mxu0 %v6193
    %6235 = vmatmul.f32.gmra.mxu0 %v6208
    %v6236 = vpop.f32.mrf.mxu0
    %v6237 = vadd.f32 0.0, %v6236
    %6238 = vmatmul.f32.gmra.mxu0 %v6211
    %v6239 = vpop.f32.mrf.mxu0
    %v6240 = vadd.f32 0.0, %v6239
    %6241 = vmatmul.f32.gmra.mxu0 %v6214
    %v6242 = vpop.f32.mrf.mxu0
    %v6243 = vadd.f32 0.0, %v6242
    %6244 = vmatmul.f32.gmra.mxu0 %v6217
    %v6245 = vpop.f32.mrf.mxu0
    %v6246 = vadd.f32 0.0, %v6245
    %6247 = vdwg.mxu0
    %v6248 = vadd.f32 %v6031, %v6237
    %v6249 = vadd.f32 %v6032, %v6240
    %v6250 = vadd.f32 %v6033, %v6243
    %v6251 = vadd.f32 %v6034, %v6246
    %s6252 = scalar_lea.vmem [#allocation10], 512
    %v6253 = vld [vmem:[%s6252] sm:$0xf]
    %v6254 = vld [vmem:[%s6252 + $0x4] sm:$0xf]
    %v6255 = vld [vmem:[%s6252 + $0x8] sm:$0xf]
    %v6256 = vld [vmem:[%s6252 + $0xc] sm:$0xf]
    %v6257 = vld [vmem:[%s6252 + $0x10] sm:$0xf]
    %v6258 = vld [vmem:[%s6252 + $0x14] sm:$0xf]
    %v6259 = vld [vmem:[%s6252 + $0x18] sm:$0xf]
    %v6260 = vld [vmem:[%s6252 + $0x1c] sm:$0xf]
    %v6261 = vld [vmem:[%s6252 + $0x20] sm:$0xf]
    %v6262 = vld [vmem:[%s6252 + $0x24] sm:$0xf]
    %v6263 = vld [vmem:[%s6252 + $0x28] sm:$0xf]
    %v6264 = vld [vmem:[%s6252 + $0x2c] sm:$0xf]
    %v6265 = vld [vmem:[%s6252 + $0x30] sm:$0xf]
    %v6266 = vld [vmem:[%s6252 + $0x34] sm:$0xf]
    %v6267 = vld [vmem:[%s6252 + $0x38] sm:$0xf]
    %v6268 = vld [vmem:[%s6252 + $0x3c] sm:$0xf]
    %v6269 = vld [vmem:[%s6252 + $0x40] sm:$0xf]
    %v6270 = vld [vmem:[%s6252 + $0x44] sm:$0xf]
    %v6271 = vld [vmem:[%s6252 + $0x48] sm:$0xf]
    %v6272 = vld [vmem:[%s6252 + $0x4c] sm:$0xf]
    %v6273 = vld [vmem:[%s6252 + $0x50] sm:$0xf]
    %v6274 = vld [vmem:[%s6252 + $0x54] sm:$0xf]
    %v6275 = vld [vmem:[%s6252 + $0x58] sm:$0xf]
    %v6276 = vld [vmem:[%s6252 + $0x5c] sm:$0xf]
    %v6277 = vld [vmem:[%s6252 + $0x60] sm:$0xf]
    %v6278 = vld [vmem:[%s6252 + $0x64] sm:$0xf]
    %v6279 = vld [vmem:[%s6252 + $0x68] sm:$0xf]
    %v6280 = vld [vmem:[%s6252 + $0x6c] sm:$0xf]
    %v6281 = vld [vmem:[%s6252 + $0x70] sm:$0xf]
    %v6282 = vld [vmem:[%s6252 + $0x74] sm:$0xf]
    %v6283 = vld [vmem:[%s6252 + $0x78] sm:$0xf]
    %v6284 = vld [vmem:[%s6252 + $0x7c] sm:$0xf]
    %v6317 = vunpack.c.l.b16 %v6253
    %v6318 = vunpack.c.l.b16 %v6254
    %v6319 = vunpack.c.l.b16 %v6255
    %v6320 = vunpack.c.l.b16 %v6256
    %v6321 = vunpack.c.l.b16 %v6257
    %v6322 = vunpack.c.l.b16 %v6258
    %v6323 = vunpack.c.l.b16 %v6259
    %v6324 = vunpack.c.l.b16 %v6260
    %v6325 = vunpack.c.l.b16 %v6261
    %v6326 = vunpack.c.l.b16 %v6262
    %v6327 = vunpack.c.l.b16 %v6263
    %v6328 = vunpack.c.l.b16 %v6264
    %v6329 = vunpack.c.l.b16 %v6265
    %v6330 = vunpack.c.l.b16 %v6266
    %v6331 = vunpack.c.l.b16 %v6267
    %v6332 = vunpack.c.l.b16 %v6268
    %v6333 = vunpack.c.l.b16 %v6269
    %v6334 = vunpack.c.l.b16 %v6270
    %v6335 = vunpack.c.l.b16 %v6271
    %v6336 = vunpack.c.l.b16 %v6272
    %v6337 = vunpack.c.l.b16 %v6273
    %v6338 = vunpack.c.l.b16 %v6274
    %v6339 = vunpack.c.l.b16 %v6275
    %v6340 = vunpack.c.l.b16 %v6276
    %v6341 = vunpack.c.l.b16 %v6277
    %v6342 = vunpack.c.l.b16 %v6278
    %v6343 = vunpack.c.l.b16 %v6279
    %v6344 = vunpack.c.l.b16 %v6280
    %v6345 = vunpack.c.l.b16 %v6281
    %v6346 = vunpack.c.l.b16 %v6282
    %v6347 = vunpack.c.l.b16 %v6283
    %v6348 = vunpack.c.l.b16 %v6284
    %v6349 = vpack.c.b16 %v6318, %v6317
    %v6350 = vpack.c.b16 %v6320, %v6319
    %v6351 = vpack.c.b16 %v6322, %v6321
    %v6352 = vpack.c.b16 %v6324, %v6323
    %v6353 = vpack.c.b16 %v6326, %v6325
    %v6354 = vpack.c.b16 %v6328, %v6327
    %v6355 = vpack.c.b16 %v6330, %v6329
    %v6356 = vpack.c.b16 %v6332, %v6331
    %v6357 = vpack.c.b16 %v6334, %v6333
    %v6358 = vpack.c.b16 %v6336, %v6335
    %v6359 = vpack.c.b16 %v6338, %v6337
    %v6360 = vpack.c.b16 %v6340, %v6339
    %v6361 = vpack.c.b16 %v6342, %v6341
    %v6362 = vpack.c.b16 %v6344, %v6343
    %v6363 = vpack.c.b16 %v6346, %v6345
    %v6364 = vpack.c.b16 %v6348, %v6347
    %6381 = vmatpush.bf16.msra.mxu0 %v6356
    %6382 = vmatpush.bf16.msra.mxu0 %v6355
    %6383 = vmatpush.bf16.msra.mxu0 %v6354
    %6384 = vmatpush.bf16.msra.mxu0 %v6353
    %6385 = vmatpush.bf16.msra.mxu0 %v6352
    %6386 = vmatpush.bf16.msra.mxu0 %v6351
    %6387 = vmatpush.bf16.msra.mxu0 %v6350
    %6388 = vmatpush.bf16.msra.mxu0 %v6349
    %6389 = vmatmul.bf16.gmra.mxu0 %v5389
    %v6390 = vpop.f32.mrf.mxu0
    %v6391 = vadd.f32 0.0, %v6390
    %v6392 = vpop.f32.mrf.mxu0
    %v6393 = vadd.f32 0.0, %v6392
    %6394 = vmatmul.bf16.gmra.mxu0 %v5391
    %v6395 = vpop.f32.mrf.mxu0
    %v6396 = vadd.f32 0.0, %v6395
    %v6397 = vpop.f32.mrf.mxu0
    %v6398 = vadd.f32 0.0, %v6397
    %6399 = vdwg.mxu0
    %6400 = vmatpush.bf16.msra.mxu0 %v6364
    %6401 = vmatpush.bf16.msra.mxu0 %v6363
    %6402 = vmatpush.bf16.msra.mxu0 %v6362
    %6403 = vmatpush.bf16.msra.mxu0 %v6361
    %6404 = vmatpush.bf16.msra.mxu0 %v6360
    %6405 = vmatpush.bf16.msra.mxu0 %v6359
    %6406 = vmatpush.bf16.msra.mxu0 %v6358
    %6407 = vmatpush.bf16.msra.mxu0 %v6357
    %6408 = vmatmul.bf16.gmra.mxu0 %v5390
    %v6409 = vpop.f32.mrf.mxu0
    %v6410 = vadd.f32 %v6391, %v6409
    %v6411 = vpop.f32.mrf.mxu0
    %v6412 = vadd.f32 %v6393, %v6411
    %6413 = vmatmul.bf16.gmra.mxu0 %v5392
    %v6414 = vpop.f32.mrf.mxu0
    %v6415 = vadd.f32 %v6396, %v6414
    %v6416 = vpop.f32.mrf.mxu0
    %v6417 = vadd.f32 %v6398, %v6416
    %6418 = vdwg.mxu0
    %s6419 = scalar_lea.vmem [#allocation9], 128
    %v6420 = vld [vmem:[%s6419] sm:$0xff]
    %v6421 = vld [vmem:[%s6419 + $0x8] sm:$0xff]
    %v6422 = vld [vmem:[%s6419 + $0x10] sm:$0xff]
    %v6423 = vld [vmem:[%s6419 + $0x18] sm:$0xff]
    %v6425 = vsel %vm5735, %v6420, 0
    %v6428 = vsel %vm5735, %v6421, 0
    %v6431 = vsel %vm5735, %v6422, 0
    %v6434 = vsel %vm5735, %v6423, 0
    %6436 = vmatpush.msra.mxu0 0.0
    %6437 = vmatpush.msra.mxu0 0.0
    %6438 = vmatpush.msra.mxu0 0.0
    %6439 = vmatpush.msra.mxu0 0.0
    %6440 = vmatpush.msra.mxu0 0.0
    %6441 = vmatpush.msra.mxu0 0.0
    %6442 = vmatpush.msra.mxu0 0.0
    %6443 = vmatpush.msra.mxu0 0.0
    %6444 = vmatpush.msra.mxu0 0.0
    %6445 = vmatpush.msra.mxu0 0.0
    %6446 = vmatpush.msra.mxu0 0.0
    %6447 = vmatpush.msra.mxu0 0.0
    %6448 = vmatpush.msra.mxu0 %v6417
    %6449 = vmatpush.msra.mxu0 %v6415
    %6450 = vmatpush.msra.mxu0 %v6412
    %6451 = vmatpush.msra.mxu0 %v6410
    %6452 = vmatmul.f32.gmra.mxu0 %v6425
    %v6453 = vpop.f32.mrf.mxu0
    %v6454 = vadd.f32 0.0, %v6453
    %6455 = vmatmul.f32.gmra.mxu0 %v6428
    %v6456 = vpop.f32.mrf.mxu0
    %v6457 = vadd.f32 0.0, %v6456
    %6458 = vmatmul.f32.gmra.mxu0 %v6431
    %v6459 = vpop.f32.mrf.mxu0
    %v6460 = vadd.f32 0.0, %v6459
    %6461 = vmatmul.f32.gmra.mxu0 %v6434
    %v6462 = vpop.f32.mrf.mxu0
    %v6463 = vadd.f32 0.0, %v6462
    %6464 = vdwg.mxu0
    %v6465 = vadd.f32 %v6248, %v6454
    %v6466 = vadd.f32 %v6249, %v6457
    %v6467 = vadd.f32 %v6250, %v6460
    %v6468 = vadd.f32 %v6251, %v6463
    %v6469 = vld [vmem:[%s19] sm:$0x1]
    %v6471 = vperm.slane %v6469, 0
    %v6473 = vadd.f32 %v6465, %v6471
    %v6474 = vadd.f32 %v6466, %v6471
    %v6475 = vadd.f32 %v6467, %v6471
    %v6476 = vadd.f32 %v6468, %v6471
    %vm6477 = vcmp.gt.f32.partialorder %v6473, 0.0
    %vm6478 = vcmp.gt.f32.partialorder %v6474, 0.0
    %vm6479 = vcmp.gt.f32.partialorder %v6475, 0.0
    %vm6480 = vcmp.gt.f32.partialorder %v6476, 0.0
    %v6481 = vmul.f32 %v6473, 1.442695
    %v6482 = vpow.pop %v6481
    %v6483 = vmul.f32 %v6474, 1.442695
    %v6484 = vpow.pop %v6483
    %v6485 = vmul.f32 %v6475, 1.442695
    %v6486 = vpow.pop %v6485
    %v6487 = vmul.f32 %v6476, 1.442695
    %v6488 = vpow.pop %v6487
    %v6489 = vsub.f32 %v6482, 1.0
    %v6490 = vsub.f32 %v6484, 1.0
    %v6491 = vsub.f32 %v6486, 1.0
    %v6492 = vsub.f32 %v6488, 1.0
    %v6493 = vsel %vm6477, %v6473, %v6489
    %v6494 = vsel %vm6478, %v6474, %v6490
    %v6495 = vsel %vm6479, %v6475, %v6491
    %v6496 = vsel %vm6480, %v6476, %v6492
    %v6497 = vpack.c.bf16 %v6494, %v6493
    %v6498 = vpack.c.bf16 %v6496, %v6495
    %v6499 = vld [vmem:[#allocation13] sm:$0xf]
    %v6500 = vld [vmem:[#allocation13 + $0x4] sm:$0xf]
    %v6501 = vld [vmem:[#allocation13 + $0x8] sm:$0xf]
    %v6502 = vld [vmem:[#allocation13 + $0xc] sm:$0xf]
    %v6503 = vld [vmem:[#allocation13 + $0x10] sm:$0xf]
    %v6504 = vld [vmem:[#allocation13 + $0x14] sm:$0xf]
    %v6505 = vld [vmem:[#allocation13 + $0x18] sm:$0xf]
    %v6506 = vld [vmem:[#allocation13 + $0x1c] sm:$0xf]
    %v6507 = vld [vmem:[#allocation13 + $0x20] sm:$0xf]
    %v6508 = vld [vmem:[#allocation13 + $0x24] sm:$0xf]
    %v6509 = vld [vmem:[#allocation13 + $0x28] sm:$0xf]
    %v6510 = vld [vmem:[#allocation13 + $0x2c] sm:$0xf]
    %v6511 = vld [vmem:[#allocation13 + $0x30] sm:$0xf]
    %v6512 = vld [vmem:[#allocation13 + $0x34] sm:$0xf]
    %v6513 = vld [vmem:[#allocation13 + $0x38] sm:$0xf]
    %v6514 = vld [vmem:[#allocation13 + $0x3c] sm:$0xf]
    %v6531 = vunpack.c.l.b16 %v6499
    %v6532 = vunpack.c.l.b16 %v6500
    %v6533 = vunpack.c.l.b16 %v6501
    %v6534 = vunpack.c.l.b16 %v6502
    %v6535 = vunpack.c.l.b16 %v6503
    %v6536 = vunpack.c.l.b16 %v6504
    %v6537 = vunpack.c.l.b16 %v6505
    %v6538 = vunpack.c.l.b16 %v6506
    %v6539 = vunpack.c.l.b16 %v6507
    %v6540 = vunpack.c.l.b16 %v6508
    %v6541 = vunpack.c.l.b16 %v6509
    %v6542 = vunpack.c.l.b16 %v6510
    %v6543 = vunpack.c.l.b16 %v6511
    %v6544 = vunpack.c.l.b16 %v6512
    %v6545 = vunpack.c.l.b16 %v6513
    %v6546 = vunpack.c.l.b16 %v6514
    %v6547 = vpack.c.b16 %v6532, %v6531
    %v6548 = vpack.c.b16 %v6534, %v6533
    %v6549 = vpack.c.b16 %v6536, %v6535
    %v6550 = vpack.c.b16 %v6538, %v6537
    %v6551 = vpack.c.b16 %v6540, %v6539
    %v6552 = vpack.c.b16 %v6542, %v6541
    %v6553 = vpack.c.b16 %v6544, %v6543
    %v6554 = vpack.c.b16 %v6546, %v6545
    %6563 = vmatpush.bf16.msra.mxu0 %v6554
    %6564 = vmatpush.bf16.msra.mxu0 %v6553
    %6565 = vmatpush.bf16.msra.mxu0 %v6552
    %6566 = vmatpush.bf16.msra.mxu0 %v6551
    %6567 = vmatpush.bf16.msra.mxu0 %v6550
    %6568 = vmatpush.bf16.msra.mxu0 %v6549
    %6569 = vmatpush.bf16.msra.mxu0 %v6548
    %6570 = vmatpush.bf16.msra.mxu0 %v6547
    %6571 = vmatmul.bf16.gmra.mxu0 %v6497
    %v6572 = vpop.f32.mrf.mxu0
    %v6573 = vadd.f32 0.0, %v6572
    %v6574 = vpop.f32.mrf.mxu0
    %v6575 = vadd.f32 0.0, %v6574
    %6576 = vmatmul.bf16.gmra.mxu0 %v6498
    %v6577 = vpop.f32.mrf.mxu0
    %v6578 = vadd.f32 0.0, %v6577
    %v6579 = vpop.f32.mrf.mxu0
    %v6580 = vadd.f32 0.0, %v6579
    %6581 = vdwg.mxu0
    %v6582 = vld [vmem:[#allocation12] sm:$0xff]
    %v6583 = vld [vmem:[#allocation12 + $0x8] sm:$0xff]
    %v6584 = vld [vmem:[#allocation12 + $0x10] sm:$0xff]
    %v6585 = vld [vmem:[#allocation12 + $0x18] sm:$0xff]
    %s6586 = scalar_lea.vmem [#allocation13], 64
    %v6587 = vld [vmem:[%s6586] sm:$0xf]
    %v6588 = vld [vmem:[%s6586 + $0x4] sm:$0xf]
    %v6589 = vld [vmem:[%s6586 + $0x8] sm:$0xf]
    %v6590 = vld [vmem:[%s6586 + $0xc] sm:$0xf]
    %v6591 = vld [vmem:[%s6586 + $0x10] sm:$0xf]
    %v6592 = vld [vmem:[%s6586 + $0x14] sm:$0xf]
    %v6593 = vld [vmem:[%s6586 + $0x18] sm:$0xf]
    %v6594 = vld [vmem:[%s6586 + $0x1c] sm:$0xf]
    %v6595 = vld [vmem:[%s6586 + $0x20] sm:$0xf]
    %v6596 = vld [vmem:[%s6586 + $0x24] sm:$0xf]
    %v6597 = vld [vmem:[%s6586 + $0x28] sm:$0xf]
    %v6598 = vld [vmem:[%s6586 + $0x2c] sm:$0xf]
    %v6599 = vld [vmem:[%s6586 + $0x30] sm:$0xf]
    %v6600 = vld [vmem:[%s6586 + $0x34] sm:$0xf]
    %v6601 = vld [vmem:[%s6586 + $0x38] sm:$0xf]
    %v6602 = vld [vmem:[%s6586 + $0x3c] sm:$0xf]
    %v6619 = vunpack.c.l.b16 %v6587
    %v6620 = vunpack.c.l.b16 %v6588
    %v6621 = vunpack.c.l.b16 %v6589
    %v6622 = vunpack.c.l.b16 %v6590
    %v6623 = vunpack.c.l.b16 %v6591
    %v6624 = vunpack.c.l.b16 %v6592
    %v6625 = vunpack.c.l.b16 %v6593
    %v6626 = vunpack.c.l.b16 %v6594
    %v6627 = vunpack.c.l.b16 %v6595
    %v6628 = vunpack.c.l.b16 %v6596
    %v6629 = vunpack.c.l.b16 %v6597
    %v6630 = vunpack.c.l.b16 %v6598
    %v6631 = vunpack.c.l.b16 %v6599
    %v6632 = vunpack.c.l.b16 %v6600
    %v6633 = vunpack.c.l.b16 %v6601
    %v6634 = vunpack.c.l.b16 %v6602
    %v6635 = vpack.c.b16 %v6620, %v6619
    %v6636 = vpack.c.b16 %v6622, %v6621
    %v6637 = vpack.c.b16 %v6624, %v6623
    %v6638 = vpack.c.b16 %v6626, %v6625
    %v6639 = vpack.c.b16 %v6628, %v6627
    %v6640 = vpack.c.b16 %v6630, %v6629
    %v6641 = vpack.c.b16 %v6632, %v6631
    %v6642 = vpack.c.b16 %v6634, %v6633
    %6651 = vmatpush.bf16.msra.mxu0 %v6642
    %6652 = vmatpush.bf16.msra.mxu0 %v6641
    %6653 = vmatpush.bf16.msra.mxu0 %v6640
    %6654 = vmatpush.bf16.msra.mxu0 %v6639
    %6655 = vmatpush.bf16.msra.mxu0 %v6638
    %6656 = vmatpush.bf16.msra.mxu0 %v6637
    %6657 = vmatpush.bf16.msra.mxu0 %v6636
    %6658 = vmatpush.bf16.msra.mxu0 %v6635
    %6659 = vmatmul.bf16.gmra.mxu0 %v6497
    %v6660 = vpop.f32.mrf.mxu0
    %v6661 = vadd.f32 0.0, %v6660
    %v6662 = vpop.f32.mrf.mxu0
    %v6663 = vadd.f32 0.0, %v6662
    %6664 = vmatmul.bf16.gmra.mxu0 %v6498
    %v6665 = vpop.f32.mrf.mxu0
    %v6666 = vadd.f32 0.0, %v6665
    %v6667 = vpop.f32.mrf.mxu0
    %v6668 = vadd.f32 0.0, %v6667
    %6669 = vdwg.mxu0
    %s6670 = scalar_lea.vmem [#allocation12], 32
    %v6671 = vld [vmem:[%s6670] sm:$0xff]
    %v6672 = vld [vmem:[%s6670 + $0x8] sm:$0xff]
    %v6673 = vld [vmem:[%s6670 + $0x10] sm:$0xff]
    %v6674 = vld [vmem:[%s6670 + $0x18] sm:$0xff]
    %v6676 = vsel %vm5735, %v6671, 0
    %v6679 = vsel %vm5735, %v6672, 0
    %v6682 = vsel %vm5735, %v6673, 0
    %v6685 = vsel %vm5735, %v6674, 0
    %6687 = vmatpush.msra.mxu0 0.0
    %6688 = vmatpush.msra.mxu0 0.0
    %6689 = vmatpush.msra.mxu0 0.0
    %6690 = vmatpush.msra.mxu0 0.0
    %6691 = vmatpush.msra.mxu0 0.0
    %6692 = vmatpush.msra.mxu0 0.0
    %6693 = vmatpush.msra.mxu0 0.0
    %6694 = vmatpush.msra.mxu0 0.0
    %6695 = vmatpush.msra.mxu0 0.0
    %6696 = vmatpush.msra.mxu0 0.0
    %6697 = vmatpush.msra.mxu0 0.0
    %6698 = vmatpush.msra.mxu0 0.0
    %6699 = vmatpush.msra.mxu0 %v6668
    %6700 = vmatpush.msra.mxu0 %v6666
    %6701 = vmatpush.msra.mxu0 %v6663
    %6702 = vmatpush.msra.mxu0 %v6661
    %6703 = vmatmul.f32.gmra.mxu0 %v6676
    %v6704 = vpop.f32.mrf.mxu0
    %v6705 = vadd.f32 0.0, %v6704
    %6706 = vmatmul.f32.gmra.mxu0 %v6679
    %v6707 = vpop.f32.mrf.mxu0
    %v6708 = vadd.f32 0.0, %v6707
    %6709 = vmatmul.f32.gmra.mxu0 %v6682
    %v6710 = vpop.f32.mrf.mxu0
    %v6711 = vadd.f32 0.0, %v6710
    %6712 = vmatmul.f32.gmra.mxu0 %v6685
    %v6713 = vpop.f32.mrf.mxu0
    %v6714 = vadd.f32 0.0, %v6713
    %6715 = vdwg.mxu0
    %v6717 = vsel %vm5735, %v6582, 0
    %v6720 = vsel %vm5735, %v6583, 0
    %v6723 = vsel %vm5735, %v6584, 0
    %v6726 = vsel %vm5735, %v6585, 0
    %6728 = vmatpush.msra.mxu0 0.0
    %6729 = vmatpush.msra.mxu0 0.0
    %6730 = vmatpush.msra.mxu0 0.0
    %6731 = vmatpush.msra.mxu0 0.0
    %6732 = vmatpush.msra.mxu0 0.0
    %6733 = vmatpush.msra.mxu0 0.0
    %6734 = vmatpush.msra.mxu0 0.0
    %6735 = vmatpush.msra.mxu0 0.0
    %6736 = vmatpush.msra.mxu0 0.0
    %6737 = vmatpush.msra.mxu0 0.0
    %6738 = vmatpush.msra.mxu0 0.0
    %6739 = vmatpush.msra.mxu0 0.0
    %6740 = vmatpush.msra.mxu0 %v6580
    %6741 = vmatpush.msra.mxu0 %v6578
    %6742 = vmatpush.msra.mxu0 %v6575
    %6743 = vmatpush.msra.mxu0 %v6573
    %6744 = vmatmul.f32.gmra.mxu0 %v6717
    %v6745 = vpop.f32.mrf.mxu0
    %v6746 = vadd.f32 %v6705, %v6745
    %6747 = vmatmul.f32.gmra.mxu0 %v6720
    %v6748 = vpop.f32.mrf.mxu0
    %v6749 = vadd.f32 %v6708, %v6748
    %6750 = vmatmul.f32.gmra.mxu0 %v6723
    %v6751 = vpop.f32.mrf.mxu0
    %v6752 = vadd.f32 %v6711, %v6751
    %6753 = vmatmul.f32.gmra.mxu0 %v6726
    %v6754 = vpop.f32.mrf.mxu0
    %v6755 = vadd.f32 %v6714, %v6754
    %6756 = vdwg.mxu0
    %s6757 = scalar_lea.vmem [#allocation13], 128
    %v6758 = vld [vmem:[%s6757] sm:$0xf]
    %v6759 = vld [vmem:[%s6757 + $0x4] sm:$0xf]
    %v6760 = vld [vmem:[%s6757 + $0x8] sm:$0xf]
    %v6761 = vld [vmem:[%s6757 + $0xc] sm:$0xf]
    %v6762 = vld [vmem:[%s6757 + $0x10] sm:$0xf]
    %v6763 = vld [vmem:[%s6757 + $0x14] sm:$0xf]
    %v6764 = vld [vmem:[%s6757 + $0x18] sm:$0xf]
    %v6765 = vld [vmem:[%s6757 + $0x1c] sm:$0xf]
    %v6766 = vld [vmem:[%s6757 + $0x20] sm:$0xf]
    %v6767 = vld [vmem:[%s6757 + $0x24] sm:$0xf]
    %v6768 = vld [vmem:[%s6757 + $0x28] sm:$0xf]
    %v6769 = vld [vmem:[%s6757 + $0x2c] sm:$0xf]
    %v6770 = vld [vmem:[%s6757 + $0x30] sm:$0xf]
    %v6771 = vld [vmem:[%s6757 + $0x34] sm:$0xf]
    %v6772 = vld [vmem:[%s6757 + $0x38] sm:$0xf]
    %v6773 = vld [vmem:[%s6757 + $0x3c] sm:$0xf]
    %v6790 = vunpack.c.l.b16 %v6758
    %v6791 = vunpack.c.l.b16 %v6759
    %v6792 = vunpack.c.l.b16 %v6760
    %v6793 = vunpack.c.l.b16 %v6761
    %v6794 = vunpack.c.l.b16 %v6762
    %v6795 = vunpack.c.l.b16 %v6763
    %v6796 = vunpack.c.l.b16 %v6764
    %v6797 = vunpack.c.l.b16 %v6765
    %v6798 = vunpack.c.l.b16 %v6766
    %v6799 = vunpack.c.l.b16 %v6767
    %v6800 = vunpack.c.l.b16 %v6768
    %v6801 = vunpack.c.l.b16 %v6769
    %v6802 = vunpack.c.l.b16 %v6770
    %v6803 = vunpack.c.l.b16 %v6771
    %v6804 = vunpack.c.l.b16 %v6772
    %v6805 = vunpack.c.l.b16 %v6773
    %v6806 = vpack.c.b16 %v6791, %v6790
    %v6807 = vpack.c.b16 %v6793, %v6792
    %v6808 = vpack.c.b16 %v6795, %v6794
    %v6809 = vpack.c.b16 %v6797, %v6796
    %v6810 = vpack.c.b16 %v6799, %v6798
    %v6811 = vpack.c.b16 %v6801, %v6800
    %v6812 = vpack.c.b16 %v6803, %v6802
    %v6813 = vpack.c.b16 %v6805, %v6804
    %6822 = vmatpush.bf16.msra.mxu0 %v6813
    %6823 = vmatpush.bf16.msra.mxu0 %v6812
    %6824 = vmatpush.bf16.msra.mxu0 %v6811
    %6825 = vmatpush.bf16.msra.mxu0 %v6810
    %6826 = vmatpush.bf16.msra.mxu0 %v6809
    %6827 = vmatpush.bf16.msra.mxu0 %v6808
    %6828 = vmatpush.bf16.msra.mxu0 %v6807
    %6829 = vmatpush.bf16.msra.mxu0 %v6806
    %6830 = vmatmul.bf16.gmra.mxu0 %v6497
    %v6831 = vpop.f32.mrf.mxu0
    %v6832 = vadd.f32 0.0, %v6831
    %v6833 = vpop.f32.mrf.mxu0
    %v6834 = vadd.f32 0.0, %v6833
    %6835 = vmatmul.bf16.gmra.mxu0 %v6498
    %v6836 = vpop.f32.mrf.mxu0
    %v6837 = vadd.f32 0.0, %v6836
    %v6838 = vpop.f32.mrf.mxu0
    %v6839 = vadd.f32 0.0, %v6838
    %6840 = vdwg.mxu0
    %s6841 = scalar_lea.vmem [#allocation12], 64
    %v6842 = vld [vmem:[%s6841] sm:$0xff]
    %v6843 = vld [vmem:[%s6841 + $0x8] sm:$0xff]
    %v6844 = vld [vmem:[%s6841 + $0x10] sm:$0xff]
    %v6845 = vld [vmem:[%s6841 + $0x18] sm:$0xff]
    %v6847 = vsel %vm5735, %v6842, 0
    %v6850 = vsel %vm5735, %v6843, 0
    %v6853 = vsel %vm5735, %v6844, 0
    %v6856 = vsel %vm5735, %v6845, 0
    %6858 = vmatpush.msra.mxu0 0.0
    %6859 = vmatpush.msra.mxu0 0.0
    %6860 = vmatpush.msra.mxu0 0.0
    %6861 = vmatpush.msra.mxu0 0.0
    %6862 = vmatpush.msra.mxu0 0.0
    %6863 = vmatpush.msra.mxu0 0.0
    %6864 = vmatpush.msra.mxu0 0.0
    %6865 = vmatpush.msra.mxu0 0.0
    %6866 = vmatpush.msra.mxu0 0.0
    %6867 = vmatpush.msra.mxu0 0.0
    %6868 = vmatpush.msra.mxu0 0.0
    %6869 = vmatpush.msra.mxu0 0.0
    %6870 = vmatpush.msra.mxu0 %v6839
    %6871 = vmatpush.msra.mxu0 %v6837
    %6872 = vmatpush.msra.mxu0 %v6834
    %6873 = vmatpush.msra.mxu0 %v6832
    %6874 = vmatmul.f32.gmra.mxu0 %v6847
    %v6875 = vpop.f32.mrf.mxu0
    %v6876 = vadd.f32 0.0, %v6875
    %6877 = vmatmul.f32.gmra.mxu0 %v6850
    %v6878 = vpop.f32.mrf.mxu0
    %v6879 = vadd.f32 0.0, %v6878
    %6880 = vmatmul.f32.gmra.mxu0 %v6853
    %v6881 = vpop.f32.mrf.mxu0
    %v6882 = vadd.f32 0.0, %v6881
    %6883 = vmatmul.f32.gmra.mxu0 %v6856
    %v6884 = vpop.f32.mrf.mxu0
    %v6885 = vadd.f32 0.0, %v6884
    %6886 = vdwg.mxu0
    %v6887 = vadd.f32 %v6746, %v6876
    %v6888 = vadd.f32 %v6749, %v6879
    %v6889 = vadd.f32 %v6752, %v6882
    %v6890 = vadd.f32 %v6755, %v6885
    %s6891 = scalar_lea.vmem [#allocation13], 192
    %v6892 = vld [vmem:[%s6891] sm:$0xf]
    %v6893 = vld [vmem:[%s6891 + $0x4] sm:$0xf]
    %v6894 = vld [vmem:[%s6891 + $0x8] sm:$0xf]
    %v6895 = vld [vmem:[%s6891 + $0xc] sm:$0xf]
    %v6896 = vld [vmem:[%s6891 + $0x10] sm:$0xf]
    %v6897 = vld [vmem:[%s6891 + $0x14] sm:$0xf]
    %v6898 = vld [vmem:[%s6891 + $0x18] sm:$0xf]
    %v6899 = vld [vmem:[%s6891 + $0x1c] sm:$0xf]
    %v6900 = vld [vmem:[%s6891 + $0x20] sm:$0xf]
    %v6901 = vld [vmem:[%s6891 + $0x24] sm:$0xf]
    %v6902 = vld [vmem:[%s6891 + $0x28] sm:$0xf]
    %v6903 = vld [vmem:[%s6891 + $0x2c] sm:$0xf]
    %v6904 = vld [vmem:[%s6891 + $0x30] sm:$0xf]
    %v6905 = vld [vmem:[%s6891 + $0x34] sm:$0xf]
    %v6906 = vld [vmem:[%s6891 + $0x38] sm:$0xf]
    %v6907 = vld [vmem:[%s6891 + $0x3c] sm:$0xf]
    %v6924 = vunpack.c.l.b16 %v6892
    %v6925 = vunpack.c.l.b16 %v6893
    %v6926 = vunpack.c.l.b16 %v6894
    %v6927 = vunpack.c.l.b16 %v6895
    %v6928 = vunpack.c.l.b16 %v6896
    %v6929 = vunpack.c.l.b16 %v6897
    %v6930 = vunpack.c.l.b16 %v6898
    %v6931 = vunpack.c.l.b16 %v6899
    %v6932 = vunpack.c.l.b16 %v6900
    %v6933 = vunpack.c.l.b16 %v6901
    %v6934 = vunpack.c.l.b16 %v6902
    %v6935 = vunpack.c.l.b16 %v6903
    %v6936 = vunpack.c.l.b16 %v6904
    %v6937 = vunpack.c.l.b16 %v6905
    %v6938 = vunpack.c.l.b16 %v6906
    %v6939 = vunpack.c.l.b16 %v6907
    %v6940 = vpack.c.b16 %v6925, %v6924
    %v6941 = vpack.c.b16 %v6927, %v6926
    %v6942 = vpack.c.b16 %v6929, %v6928
    %v6943 = vpack.c.b16 %v6931, %v6930
    %v6944 = vpack.c.b16 %v6933, %v6932
    %v6945 = vpack.c.b16 %v6935, %v6934
    %v6946 = vpack.c.b16 %v6937, %v6936
    %v6947 = vpack.c.b16 %v6939, %v6938
    %6956 = vmatpush.bf16.msra.mxu0 %v6947
    %6957 = vmatpush.bf16.msra.mxu0 %v6946
    %6958 = vmatpush.bf16.msra.mxu0 %v6945
    %6959 = vmatpush.bf16.msra.mxu0 %v6944
    %6960 = vmatpush.bf16.msra.mxu0 %v6943
    %6961 = vmatpush.bf16.msra.mxu0 %v6942
    %6962 = vmatpush.bf16.msra.mxu0 %v6941
    %6963 = vmatpush.bf16.msra.mxu0 %v6940
    %6964 = vmatmul.bf16.gmra.mxu0 %v6497
    %v6965 = vpop.f32.mrf.mxu0
    %v6966 = vadd.f32 0.0, %v6965
    %v6967 = vpop.f32.mrf.mxu0
    %v6968 = vadd.f32 0.0, %v6967
    %6969 = vmatmul.bf16.gmra.mxu0 %v6498
    %v6970 = vpop.f32.mrf.mxu0
    %v6971 = vadd.f32 0.0, %v6970
    %v6972 = vpop.f32.mrf.mxu0
    %v6973 = vadd.f32 0.0, %v6972
    %6974 = vdwg.mxu0
    %s6975 = scalar_lea.vmem [#allocation12], 96
    %v6976 = vld [vmem:[%s6975] sm:$0xff]
    %v6977 = vld [vmem:[%s6975 + $0x8] sm:$0xff]
    %v6978 = vld [vmem:[%s6975 + $0x10] sm:$0xff]
    %v6979 = vld [vmem:[%s6975 + $0x18] sm:$0xff]
    %v6981 = vsel %vm5735, %v6976, 0
    %v6984 = vsel %vm5735, %v6977, 0
    %v6987 = vsel %vm5735, %v6978, 0
    %v6990 = vsel %vm5735, %v6979, 0
    %6992 = vmatpush.msra.mxu0 0.0
    %6993 = vmatpush.msra.mxu0 0.0
    %6994 = vmatpush.msra.mxu0 0.0
    %6995 = vmatpush.msra.mxu0 0.0
    %6996 = vmatpush.msra.mxu0 0.0
    %6997 = vmatpush.msra.mxu0 0.0
    %6998 = vmatpush.msra.mxu0 0.0
    %6999 = vmatpush.msra.mxu0 0.0
    %7000 = vmatpush.msra.mxu0 0.0
    %7001 = vmatpush.msra.mxu0 0.0
    %7002 = vmatpush.msra.mxu0 0.0
    %7003 = vmatpush.msra.mxu0 0.0
    %7004 = vmatpush.msra.mxu0 %v6973
    %7005 = vmatpush.msra.mxu0 %v6971
    %7006 = vmatpush.msra.mxu0 %v6968
    %7007 = vmatpush.msra.mxu0 %v6966
    %7008 = vmatmul.f32.gmra.mxu0 %v6981
    %v7009 = vpop.f32.mrf.mxu0
    %v7010 = vadd.f32 0.0, %v7009
    %7011 = vmatmul.f32.gmra.mxu0 %v6984
    %v7012 = vpop.f32.mrf.mxu0
    %v7013 = vadd.f32 0.0, %v7012
    %7014 = vmatmul.f32.gmra.mxu0 %v6987
    %v7015 = vpop.f32.mrf.mxu0
    %v7016 = vadd.f32 0.0, %v7015
    %7017 = vmatmul.f32.gmra.mxu0 %v6990
    %v7018 = vpop.f32.mrf.mxu0
    %v7019 = vadd.f32 0.0, %v7018
    %7020 = vdwg.mxu0
    %v7021 = vadd.f32 %v6887, %v7010
    %v7022 = vadd.f32 %v6888, %v7013
    %v7023 = vadd.f32 %v6889, %v7016
    %v7024 = vadd.f32 %v6890, %v7019
    %s7025 = scalar_lea.vmem [#allocation13], 256
    %v7026 = vld [vmem:[%s7025] sm:$0xf]
    %v7027 = vld [vmem:[%s7025 + $0x4] sm:$0xf]
    %v7028 = vld [vmem:[%s7025 + $0x8] sm:$0xf]
    %v7029 = vld [vmem:[%s7025 + $0xc] sm:$0xf]
    %v7030 = vld [vmem:[%s7025 + $0x10] sm:$0xf]
    %v7031 = vld [vmem:[%s7025 + $0x14] sm:$0xf]
    %v7032 = vld [vmem:[%s7025 + $0x18] sm:$0xf]
    %v7033 = vld [vmem:[%s7025 + $0x1c] sm:$0xf]
    %v7034 = vld [vmem:[%s7025 + $0x20] sm:$0xf]
    %v7035 = vld [vmem:[%s7025 + $0x24] sm:$0xf]
    %v7036 = vld [vmem:[%s7025 + $0x28] sm:$0xf]
    %v7037 = vld [vmem:[%s7025 + $0x2c] sm:$0xf]
    %v7038 = vld [vmem:[%s7025 + $0x30] sm:$0xf]
    %v7039 = vld [vmem:[%s7025 + $0x34] sm:$0xf]
    %v7040 = vld [vmem:[%s7025 + $0x38] sm:$0xf]
    %v7041 = vld [vmem:[%s7025 + $0x3c] sm:$0xf]
    %v7058 = vunpack.c.l.b16 %v7026
    %v7059 = vunpack.c.l.b16 %v7027
    %v7060 = vunpack.c.l.b16 %v7028
    %v7061 = vunpack.c.l.b16 %v7029
    %v7062 = vunpack.c.l.b16 %v7030
    %v7063 = vunpack.c.l.b16 %v7031
    %v7064 = vunpack.c.l.b16 %v7032
    %v7065 = vunpack.c.l.b16 %v7033
    %v7066 = vunpack.c.l.b16 %v7034
    %v7067 = vunpack.c.l.b16 %v7035
    %v7068 = vunpack.c.l.b16 %v7036
    %v7069 = vunpack.c.l.b16 %v7037
    %v7070 = vunpack.c.l.b16 %v7038
    %v7071 = vunpack.c.l.b16 %v7039
    %v7072 = vunpack.c.l.b16 %v7040
    %v7073 = vunpack.c.l.b16 %v7041
    %v7074 = vpack.c.b16 %v7059, %v7058
    %v7075 = vpack.c.b16 %v7061, %v7060
    %v7076 = vpack.c.b16 %v7063, %v7062
    %v7077 = vpack.c.b16 %v7065, %v7064
    %v7078 = vpack.c.b16 %v7067, %v7066
    %v7079 = vpack.c.b16 %v7069, %v7068
    %v7080 = vpack.c.b16 %v7071, %v7070
    %v7081 = vpack.c.b16 %v7073, %v7072
    %7090 = vmatpush.bf16.msra.mxu0 %v7081
    %7091 = vmatpush.bf16.msra.mxu0 %v7080
    %7092 = vmatpush.bf16.msra.mxu0 %v7079
    %7093 = vmatpush.bf16.msra.mxu0 %v7078
    %7094 = vmatpush.bf16.msra.mxu0 %v7077
    %7095 = vmatpush.bf16.msra.mxu0 %v7076
    %7096 = vmatpush.bf16.msra.mxu0 %v7075
    %7097 = vmatpush.bf16.msra.mxu0 %v7074
    %7098 = vmatmul.bf16.gmra.mxu0 %v6497
    %v7099 = vpop.f32.mrf.mxu0
    %v7100 = vadd.f32 0.0, %v7099
    %v7101 = vpop.f32.mrf.mxu0
    %v7102 = vadd.f32 0.0, %v7101
    %7103 = vmatmul.bf16.gmra.mxu0 %v6498
    %v7104 = vpop.f32.mrf.mxu0
    %v7105 = vadd.f32 0.0, %v7104
    %v7106 = vpop.f32.mrf.mxu0
    %v7107 = vadd.f32 0.0, %v7106
    %7108 = vdwg.mxu0
    %s7109 = scalar_lea.vmem [#allocation12], 128
    %v7110 = vld [vmem:[%s7109] sm:$0xff]
    %v7111 = vld [vmem:[%s7109 + $0x8] sm:$0xff]
    %v7112 = vld [vmem:[%s7109 + $0x10] sm:$0xff]
    %v7113 = vld [vmem:[%s7109 + $0x18] sm:$0xff]
    %v7115 = vsel %vm5735, %v7110, 0
    %v7118 = vsel %vm5735, %v7111, 0
    %v7121 = vsel %vm5735, %v7112, 0
    %v7124 = vsel %vm5735, %v7113, 0
    %7126 = vmatpush.msra.mxu0 0.0
    %7127 = vmatpush.msra.mxu0 0.0
    %7128 = vmatpush.msra.mxu0 0.0
    %7129 = vmatpush.msra.mxu0 0.0
    %7130 = vmatpush.msra.mxu0 0.0
    %7131 = vmatpush.msra.mxu0 0.0
    %7132 = vmatpush.msra.mxu0 0.0
    %7133 = vmatpush.msra.mxu0 0.0
    %7134 = vmatpush.msra.mxu0 0.0
    %7135 = vmatpush.msra.mxu0 0.0
    %7136 = vmatpush.msra.mxu0 0.0
    %7137 = vmatpush.msra.mxu0 0.0
    %7138 = vmatpush.msra.mxu0 %v7107
    %7139 = vmatpush.msra.mxu0 %v7105
    %7140 = vmatpush.msra.mxu0 %v7102
    %7141 = vmatpush.msra.mxu0 %v7100
    %7142 = vmatmul.f32.gmra.mxu0 %v7115
    %v7143 = vpop.f32.mrf.mxu0
    %v7144 = vadd.f32 0.0, %v7143
    %7145 = vmatmul.f32.gmra.mxu0 %v7118
    %v7146 = vpop.f32.mrf.mxu0
    %v7147 = vadd.f32 0.0, %v7146
    %7148 = vmatmul.f32.gmra.mxu0 %v7121
    %v7149 = vpop.f32.mrf.mxu0
    %v7150 = vadd.f32 0.0, %v7149
    %7151 = vmatmul.f32.gmra.mxu0 %v7124
    %v7152 = vpop.f32.mrf.mxu0
    %v7153 = vadd.f32 0.0, %v7152
    %7154 = vdwg.mxu0
    %v7155 = vadd.f32 %v7021, %v7144
    %v7156 = vadd.f32 %v7022, %v7147
    %v7157 = vadd.f32 %v7023, %v7150
    %v7158 = vadd.f32 %v7024, %v7153
    %v7159 = vld [vmem:[%s22] sm:$0x1]
    %v7161 = vperm.slane %v7159, 0
    %v7163 = vadd.f32 %v7155, %v7161
    %v7164 = vadd.f32 %v7156, %v7161
    %v7165 = vadd.f32 %v7157, %v7161
    %v7166 = vadd.f32 %v7158, %v7161
    %v7167 = vsub.f32 0.0, %v7163
    %v7168 = vsub.f32 0.0, %v7164
    %v7169 = vsub.f32 0.0, %v7165
    %v7170 = vsub.f32 0.0, %v7166
    %v7171 = vmul.f32 %v7167, 1.442695
    %v7172 = vpow.pop %v7171
    %v7173 = vmul.f32 %v7168, 1.442695
    %v7174 = vpow.pop %v7173
    %v7175 = vmul.f32 %v7169, 1.442695
    %v7176 = vpow.pop %v7175
    %v7177 = vmul.f32 %v7170, 1.442695
    %v7178 = vpow.pop %v7177
    %v7179 = vadd.f32 %v7172, 1.0
    %v7180 = vadd.f32 %v7174, 1.0
    %v7181 = vadd.f32 %v7176, 1.0
    %v7182 = vadd.f32 %v7178, 1.0
    %v7183 = vrcp.pop %v7179
    %v7184 = vmul.f32 %v7179, %v7183
    %v7185 = vsub.f32 1.0, %v7184
    %v7186 = vmul.f32 %v7183, %v7185
    %v7187 = vadd.f32 %v7183, %v7186
    %vm7188 = vweird.f32 %v7179
    %vm7189 = vweird.f32 %v7183
    %vm7190 = vmor %vm7188, %vm7189
    %v7191 = vsel %vm7190, %v7183, %v7187
    %v7192 = vand.u32 2147483647, %v7179
    %vm7193 = vcmp.eq.f32.partialorder %v7192, 8.507059e+37
    %v7194 = vand.u32 %v7179, 2147483648
    %v7195 = vor.u32 1.1754944e-38, %v7194
    %v7196 = vsel %vm7193, %v7195, %v7191
    %v7197 = vmul.f32 1.0, %v7196
    %v7198 = vrcp.pop %v7180
    %v7199 = vmul.f32 %v7180, %v7198
    %v7200 = vsub.f32 1.0, %v7199
    %v7201 = vmul.f32 %v7198, %v7200
    %v7202 = vadd.f32 %v7198, %v7201
    %vm7203 = vweird.f32 %v7180
    %vm7204 = vweird.f32 %v7198
    %vm7205 = vmor %vm7203, %vm7204
    %v7206 = vsel %vm7205, %v7198, %v7202
    %v7207 = vand.u32 2147483647, %v7180
    %vm7208 = vcmp.eq.f32.partialorder %v7207, 8.507059e+37
    %v7209 = vand.u32 %v7180, 2147483648
    %v7210 = vor.u32 1.1754944e-38, %v7209
    %v7211 = vsel %vm7208, %v7210, %v7206
    %v7212 = vmul.f32 1.0, %v7211
    %v7213 = vrcp.pop %v7181
    %v7214 = vmul.f32 %v7181, %v7213
    %v7215 = vsub.f32 1.0, %v7214
    %v7216 = vmul.f32 %v7213, %v7215
    %v7217 = vadd.f32 %v7213, %v7216
    %vm7218 = vweird.f32 %v7181
    %vm7219 = vweird.f32 %v7213
    %vm7220 = vmor %vm7218, %vm7219
    %v7221 = vsel %vm7220, %v7213, %v7217
    %v7222 = vand.u32 2147483647, %v7181
    %vm7223 = vcmp.eq.f32.partialorder %v7222, 8.507059e+37
    %v7224 = vand.u32 %v7181, 2147483648
    %v7225 = vor.u32 1.1754944e-38, %v7224
    %v7226 = vsel %vm7223, %v7225, %v7221
    %v7227 = vmul.f32 1.0, %v7226
    %v7228 = vrcp.pop %v7182
    %v7229 = vmul.f32 %v7182, %v7228
    %v7230 = vsub.f32 1.0, %v7229
    %v7231 = vmul.f32 %v7228, %v7230
    %v7232 = vadd.f32 %v7228, %v7231
    %vm7233 = vweird.f32 %v7182
    %vm7234 = vweird.f32 %v7228
    %vm7235 = vmor %vm7233, %vm7234
    %v7236 = vsel %vm7235, %v7228, %v7232
    %v7237 = vand.u32 2147483647, %v7182
    %vm7238 = vcmp.eq.f32.partialorder %v7237, 8.507059e+37
    %v7239 = vand.u32 %v7182, 2147483648
    %v7240 = vor.u32 1.1754944e-38, %v7239
    %v7241 = vsel %vm7238, %v7240, %v7236
    %v7242 = vmul.f32 1.0, %v7241
    %7243 = vst [vmem:[%s23] sm:$0xff] %v7197
    %7244 = vst [vmem:[%s23 + $0x8] sm:$0xff] %v7212
    %7245 = vst [vmem:[%s23 + $0x10] sm:$0xff] %v7227
    %7246 = vst [vmem:[%s23 + $0x18] sm:$0xff] %v7242
    // Predicated region
    $region126: #{_lambda_.3} parent=1 // pred_check
      _
    $region127: #{_lambda_.3} parent=1 // pred_check_branch
      %7248 = sbr.rel (0) target = $region129
    $region128: #{_lambda_.3} parent=1 // pred_region
      _
    $region129: #{_lambda_.3} parent=1 // pred_fallthru
      _
    // Predicated region
    $region130: #{_lambda_.3} parent=1 // pred_check
      _
    $region131: #{_lambda_.3} parent=1 // pred_check_branch
      %7250 = sbr.rel (0) target = $region133
    $region132: #{_lambda_.3} parent=1 // pred_region
      _
    $region133: #{_lambda_.3} parent=1 // pred_fallthru
      _
    %7251 = vsyncpa [#allocation3], 1
    %7252 = vsyncpa [#allocation5], 1
    %7253 = vsyncpa [#allocation8], 1
    %7254 = vsyncpa [#allocation11], 1
    %7255 = vsyncpa [#allocation14], 1

</llo_original>
